<compile_context>
chip_gen: v6e
topology: v6e:2x2x1
jax: 0.10.0
libtpu: 0.0.40
codegen_flags: <defaults>
</compile_context>

<pallas_src>
import functools

import jax
import jax.numpy as jnp
from jax.experimental import pallas as pl
from jax.experimental.pallas import tpu as pltpu


# ---------------- fused 2-layer bidirectional LSTM: ONE pallas_call ----------------
def fused_bilstm_kernel(x_ref, wih0_ref, whh0f_ref, whh0b_ref, b0_ref,
                        wih1_ref, whh1f_ref, whh1b_ref, b1_ref,
                        out_ref, gx_sc, y0_sc, *, T, Bp, H):
    """Both LSTM layers, whole sequence, both directions, one kernel.

    x_ref      : (T*Bp, E)   bf16  time-major embedded input, batch padded to Bp
    wih{l}_ref : (Din, 8H)   bf16  [W_ih_fwd^T | W_ih_bwd^T]   (Din = E for l=0, 2H for l=1)
    whh{l}f/b  : (H, 4H)     bf16  per-direction W_hh^T (split: no wasted MXU columns)
    b{l}_ref   : (1, 8H)     f32   [b_ih_f+b_hh_f | b_ih_b+b_hh_b]
    out_ref    : (Bp, 2H)    f32   [layer-1 fwd final h | layer-1 bwd final h]
    gx_sc      : (T*Bp, 8H)  bf16  reused scratch: whole-sequence input projection
    y0_sc      : (T*Bp, 2H)  bf16  layer-0 per-step outputs (= layer-1 input), VMEM-resident
    PyTorch gate order: i, f, g, o.
    """
    H4 = 4 * H
    unroll = min(T, 8)   # bounded unroll: LLO visibility without vreg blowup at large T

    def recurrence(whhf_ref, whhb_ref, store_fn):
        def step(s, carry):
            hf, cf, hb, cb = carry                                   # each (Bp, H) f32
            # two independent per-direction hidden matmuls (nothing is discarded)
            ghf = jnp.dot(hf.astype(jnp.bfloat16), whhf_ref[...],
                          preferred_element_type=jnp.float32)        # (Bp, 4H)
            ghb = jnp.dot(hb.astype(jnp.bfloat16), whhb_ref[...],
                          preferred_element_type=jnp.float32)        # (Bp, 4H)

            row_f = pl.multiple_of(s * Bp, Bp)                       # fwd reads time s
            row_b = pl.multiple_of((T - 1 - s) * Bp, Bp)             # bwd reads time T-1-s
            gf = ghf + gx_sc[pl.ds(row_f, Bp), :H4].astype(jnp.float32)
            gb = ghb + gx_sc[pl.ds(row_b, Bp), H4:].astype(jnp.float32)

            def cell(g, c):                                          # f32 gate math (v5e-safe)
                i = jax.nn.sigmoid(g[:, 0 * H:1 * H])
                f = jax.nn.sigmoid(g[:, 1 * H:2 * H])
                gg = jnp.tanh(g[:, 2 * H:3 * H])
                o = jax.nn.sigmoid(g[:, 3 * H:4 * H])
                c_new = f * c + i * gg
                return o * jnp.tanh(c_new), c_new

            hf_n, cf_n = cell(gf, cf)
            hb_n, cb_n = cell(gb, cb)
            if store_fn is not None:
                store_fn(row_f, row_b, hf_n, hb_n)
            return hf_n, cf_n, hb_n, cb_n

        z = jnp.zeros((Bp, H), jnp.float32)
        return jax.lax.fori_loop(0, T, step, (z, z, z, z), unroll=unroll)

    # -------- layer 0: whole-sequence input projection (one MXU matmul) + recurrence --------
    gx_sc[...] = (jnp.dot(x_ref[...], wih0_ref[...],
                          preferred_element_type=jnp.float32)
                  + b0_ref[...]).astype(gx_sc.dtype)      # bias add hoisted out of the loop

    def store_l0(row_f, row_b, hf, hb):
        # fwd output -> time s, bwd output -> time T-1-s (original time order), bf16 in VMEM
        y0_sc[pl.ds(row_f, Bp), :H] = hf.astype(y0_sc.dtype)
        y0_sc[pl.ds(row_b, Bp), H:] = hb.astype(y0_sc.dtype)

    recurrence(whh0f_ref, whh0b_ref, store_l0)

    # -------- layer 1: input = layer-0 outputs (already bf16 in VMEM), only final h needed ----
    gx_sc[...] = (jnp.dot(y0_sc[...], wih1_ref[...],
                          preferred_element_type=jnp.float32)
                  + b1_ref[...]).astype(gx_sc.dtype)

    hf_fin, _, hb_fin, _ = recurrence(whh1f_ref, whh1b_ref, None)
    out_ref[:, :H] = hf_fin     # == hidden[-2] (last layer, fwd, t = T-1)
    out_ref[:, H:] = hb_fin     # == hidden[-1] (last layer, bwd, t = 0)
    # TODO(synk): v7x — split fwd/bwd recurrences across the two TensorCores
    # (CORE_PARALLEL / pl.core_map) and T-chunk gx_sc for the 64 MiB VMEM budget.


def fused_bilstm(x2d, packed, *, T, Bp, H):
    """x2d: (T*Bp, E) bf16. Returns (Bp, 2H) f32 = last-layer [fwd_final | bwd_final]."""
    args = (x2d,
            packed["wih0"], packed["whh0_f"], packed["whh0_b"], packed["b0"],
            packed["wih1"], packed["whh1_f"], packed["whh1_b"], packed["b1"])

    def nbytes(a):
        return int(a.size) * a.dtype.itemsize

    needed = (sum(nbytes(a) for a in args)
              + Bp * 2 * H * 4            # f32 output
              + T * Bp * 8 * H * 2        # gx_sc (bf16)
              + T * Bp * 2 * H * 2)       # y0_sc (bf16)
    vmem_limit = int(min(2 * needed + (2 << 20), 64 << 20))

    return pl.pallas_call(
        functools.partial(fused_bilstm_kernel, T=T, Bp=Bp, H=H),
        out_shape=jax.ShapeDtypeStruct((Bp, 2 * H), jnp.float32),
        scratch_shapes=[pltpu.VMEM((T * Bp, 8 * H), jnp.bfloat16),
                        pltpu.VMEM((T * Bp, 2 * H), jnp.bfloat16)],
        compiler_params=pltpu.CompilerParams(vmem_limit_bytes=vmem_limit),
    )(*args)


# ------------------------------- params: init + one-time packing --------------------------------
def init_params(key, vocab_size, embedding_dim, hidden_dim, output_dim, n_layers):
    params = {}
    keys = jax.random.split(key, 3 + 8 * n_layers)
    kidx = 0

    emb = jax.random.normal(keys[kidx], (vocab_size, embedding_dim), jnp.float32); kidx += 1
    emb = emb.at[0].set(0.0)  # padding_idx=0
    params["embedding"] = emb

    bound = 1.0 / jnp.sqrt(hidden_dim)
    for layer in range(n_layers):
        din = embedding_dim if layer == 0 else 2 * hidden_dim
        for direction in ("", "_reverse"):
            for name, shape in (
                (f"weight_ih_l{layer}{direction}", (4 * hidden_dim, din)),
                (f"weight_hh_l{layer}{direction}", (4 * hidden_dim, hidden_dim)),
                (f"bias_ih_l{layer}{direction}", (4 * hidden_dim,)),
                (f"bias_hh_l{layer}{direction}", (4 * hidden_dim,)),
            ):
                params[name] = jax.random.uniform(keys[kidx], shape, jnp.float32, -bound, bound)
                kidx += 1

    fc_bound = 1.0 / jnp.sqrt(2 * hidden_dim)
    params["fc_w"] = jax.random.uniform(
        keys[kidx], (output_dim, 2 * hidden_dim), jnp.float32, -fc_bound, fc_bound); kidx += 1
    params["fc_b"] = jax.random.uniform(
        keys[kidx], (output_dim,), jnp.float32, -fc_bound, fc_bound)
    return params


def pack_params(raw, n_layers, hidden_dim):
    """One-time weight packing (transpose / concat / bf16 cast) OUTSIDE the jitted forward."""
    assert n_layers == 2, "fused kernel is specialized for the module's n_layers=2"
    H = hidden_dim
    packed = {"embedding": raw["embedding"], "fc_w": raw["fc_w"], "fc_b": raw["fc_b"]}
    for l in range(n_layers):
        wih_f = raw[f"weight_ih_l{l}"]
        wih_b = raw[f"weight_ih_l{l}_reverse"]
        whh_f = raw[f"weight_hh_l{l}"]
        whh_b = raw[f"weight_hh_l{l}_reverse"]
        b_f = raw[f"bias_ih_l{l}"] + raw[f"bias_hh_l{l}"]
        b_b = raw[f"bias_ih_l{l}_reverse"] + raw[f"bias_hh_l{l}_reverse"]
        packed[f"wih{l}"] = jnp.concatenate([wih_f.T, wih_b.T], axis=1).astype(jnp.bfloat16)
        packed[f"whh{l}_f"] = whh_f.T.astype(jnp.bfloat16)
        packed[f"whh{l}_b"] = whh_b.T.astype(jnp.bfloat16)
        packed[f"b{l}"] = jnp.concatenate([b_f, b_b]).reshape(1, 8 * H).astype(jnp.float32)
    return packed


# --------------------------------------- forward ---------------------------------------
def sentiment_lstm_forward(packed, text, *, hidden_dim):
    """text: (B, T) int32 token ids. Returns (B,) float32 logits."""
    B, T = text.shape
    H = hidden_dim
    Bp = max(8, ((B + 7) // 8) * 8)                         # pad batch to >= 8 sublanes

    # Embedding (gather); dropout is identity in eval mode.
    emb = jnp.take(packed["embedding"], text, axis=0)       # (B, T, E)
    x = jnp.transpose(emb, (1, 0, 2))                       # (T, B, E) time-major
    if Bp != B:
        x = jnp.pad(x, ((0, 0), (0, Bp - B), (0, 0)))       # zero-padded batch rows
    x2d = x.reshape(T * Bp, -1).astype(jnp.bfloat16)

    hid = fused_bilstm(x2d, packed, T=T, Bp=Bp, H=H)        # (Bp, 2H) f32
    hidden_cat = hid[:B]                                    # dropout identity in eval mode
    logits = hidden_cat @ packed["fc_w"].T + packed["fc_b"] # (B, 1)
    return logits[:, 0]


# ------------------------------------------ main ------------------------------------------
if __name__ == "__main__":
    vocab_size = 50
    embedding_dim = 128
    hidden_dim = 128
    output_dim = 1
    n_layers = 2
    batch = 2
    seq_len = 8

    key = jax.random.PRNGKey(0)
    pkey, tkey = jax.random.split(key)
    raw_params = init_params(pkey, vocab_size, embedding_dim, hidden_dim,
                             output_dim, n_layers)
    packed = pack_params(raw_params, n_layers, hidden_dim)   # pre-packed once, reused per call
    text = jax.random.randint(tkey, (batch, seq_len), 0, vocab_size, dtype=jnp.int32)

    fwd = jax.jit(functools.partial(sentiment_lstm_forward, hidden_dim=hidden_dim))
    out = jax.block_until_ready(fwd(packed, text))
    assert out.shape == (batch,), out.shape
    print("KERNEL_OK")
</pallas_src>

<mosaic_0001>
module attributes {stable_mosaic.version = 11 : i64} {
  func.func @fused_bilstm_kernel(%arg0: memref<64x128xbf16, #tpu.memory_space<vmem>>, %arg1: memref<128x1024xbf16, #tpu.memory_space<vmem>>, %arg2: memref<128x512xbf16, #tpu.memory_space<vmem>>, %arg3: memref<128x512xbf16, #tpu.memory_space<vmem>>, %arg4: memref<1x1024xf32, #tpu.memory_space<vmem>>, %arg5: memref<256x1024xbf16, #tpu.memory_space<vmem>>, %arg6: memref<128x512xbf16, #tpu.memory_space<vmem>>, %arg7: memref<128x512xbf16, #tpu.memory_space<vmem>>, %arg8: memref<1x1024xf32, #tpu.memory_space<vmem>>, %arg9: memref<8x256xf32, #tpu.memory_space<vmem>>, %arg10: memref<64x1024xbf16, #tpu.memory_space<vmem>>, %arg11: memref<64x256xbf16, #tpu.memory_space<vmem>>) attributes {dimension_semantics = [], scalar_prefetch = 0 : i64, scratch_operands = 2 : i64, tpu.core_type = #tpu.core_type<tc>} {
    %c0 = arith.constant 0 : index
    %c0_0 = arith.constant 0 : index
    %0 = vector.load %arg0[%c0, %c0_0] : memref<64x128xbf16, #tpu.memory_space<vmem>>, vector<64x128xbf16>
    %c0_1 = arith.constant 0 : index
    %c0_2 = arith.constant 0 : index
    %1 = vector.load %arg1[%c0_1, %c0_2] : memref<128x1024xbf16, #tpu.memory_space<vmem>>, vector<128x1024xbf16>
    %cst = arith.constant dense<0.000000e+00> : vector<64x1024xf32>
    %2 = tpu.matmul %0, %1, %cst {dimension_numbers = #tpu.dot_dimension_numbers<[1], [0], [0], [1], [0, 0, 1, 1], [], []>} : vector<64x128xbf16>, vector<128x1024xbf16>, vector<64x1024xf32> -> vector<64x1024xf32>
    %c0_3 = arith.constant 0 : index
    %c0_4 = arith.constant 0 : index
    %3 = vector.load %arg4[%c0_3, %c0_4] : memref<1x1024xf32, #tpu.memory_space<vmem>>, vector<1x1024xf32>
    %4 = vector.broadcast %3 : vector<1x1024xf32> to vector<64x1024xf32>
    %5 = arith.addf %2, %4 : vector<64x1024xf32>
    %6 = arith.truncf %5 : vector<64x1024xf32> to vector<64x1024xbf16>
    %c0_5 = arith.constant 0 : index
    %c0_6 = arith.constant 0 : index
    %7 = vector.load %arg10[%c0_5, %c0_6] : memref<64x1024xbf16, #tpu.memory_space<vmem>>, vector<64x1024xbf16>
    tpu.vector_store %arg10[%c0_5, %c0_6], %6 {strides = array<i32>} : memref<64x1024xbf16, #tpu.memory_space<vmem>>, vector<64x1024xbf16>,
    %cst_7 = arith.constant 0.000000e+00 : f32
    %8 = vector.broadcast %cst_7 : f32 to vector<8x128xf32>
    %c0_i32 = arith.constant 0 : i32
    %9 = arith.truncf %8 : vector<8x128xf32> to vector<8x128xbf16>
    %c0_8 = arith.constant 0 : index
    %c0_9 = arith.constant 0 : index
    %10 = vector.load %arg2[%c0_8, %c0_9] : memref<128x512xbf16, #tpu.memory_space<vmem>>, vector<128x512xbf16>
    %cst_10 = arith.constant dense<0.000000e+00> : vector<8x512xf32>
    %11 = tpu.matmul %9, %10, %cst_10 {dimension_numbers = #tpu.dot_dimension_numbers<[1], [0], [0], [1], [0, 0, 1, 1], [], []>} : vector<8x128xbf16>, vector<128x512xbf16>, vector<8x512xf32> -> vector<8x512xf32>
    %12 = arith.truncf %8 : vector<8x128xf32> to vector<8x128xbf16>
    %c0_11 = arith.constant 0 : index
    %c0_12 = arith.constant 0 : index
    %13 = vector.load %arg3[%c0_11, %c0_12] : memref<128x512xbf16, #tpu.memory_space<vmem>>, vector<128x512xbf16>
    %cst_13 = arith.constant dense<0.000000e+00> : vector<8x512xf32>
    %14 = tpu.matmul %12, %13, %cst_13 {dimension_numbers = #tpu.dot_dimension_numbers<[1], [0], [0], [1], [0, 0, 1, 1], [], []>} : vector<8x128xbf16>, vector<128x512xbf16>, vector<8x512xf32> -> vector<8x512xf32>
    %c8_i32 = arith.constant 8 : i32
    %15 = arith.muli %c0_i32, %c8_i32 : i32
    %16 = tpu.assume_multiple %15, 8 : i32
    %c7_i32 = arith.constant 7 : i32
    %17 = arith.subi %c7_i32, %c0_i32 : i32
    %c8_i32_14 = arith.constant 8 : i32
    %18 = arith.muli %17, %c8_i32_14 : i32
    %19 = tpu.assume_multiple %18, 8 : i32
    %20 = arith.index_cast %16 : i32 to index
    %c0_15 = arith.constant 0 : index
    %21 = vector.load %arg10[%20, %c0_15] : memref<64x1024xbf16, #tpu.memory_space<vmem>>, vector<8x512xbf16>
    %22 = arith.extf %21 : vector<8x512xbf16> to vector<8x512xf32>
    %23 = arith.addf %11, %22 : vector<8x512xf32>
    %24 = arith.index_cast %19 : i32 to index
    %c512 = arith.constant 512 : index
    %25 = vector.load %arg10[%24, %c512] : memref<64x1024xbf16, #tpu.memory_space<vmem>>, vector<8x512xbf16>
    %26 = arith.extf %25 : vector<8x512xbf16> to vector<8x512xf32>
    %27 = arith.addf %14, %26 : vector<8x512xf32>
    %28 = vector.extract_strided_slice %23 {offsets = [0, 0], sizes = [8, 128], strides = [1, 1]} : vector<8x512xf32> to vector<8x128xf32>
    %29 = arith.negf %28 : vector<8x128xf32>
    %30 = math.exp %29 : vector<8x128xf32>
    %cst_16 = arith.constant 1.000000e+00 : f32
    %31 = vector.broadcast %cst_16 : f32 to vector<8x128xf32>
    %32 = arith.addf %31, %30 : vector<8x128xf32>
    %33 = arith.divf %31, %32 : vector<8x128xf32>
    %34 = vector.extract_strided_slice %23 {offsets = [0, 128], sizes = [8, 128], strides = [1, 1]} : vector<8x512xf32> to vector<8x128xf32>
    %35 = arith.negf %34 : vector<8x128xf32>
    %36 = math.exp %35 : vector<8x128xf32>
    %cst_17 = arith.constant 1.000000e+00 : f32
    %37 = vector.broadcast %cst_17 : f32 to vector<8x128xf32>
    %38 = arith.addf %37, %36 : vector<8x128xf32>
    %39 = arith.divf %37, %38 : vector<8x128xf32>
    %40 = vector.extract_strided_slice %23 {offsets = [0, 256], sizes = [8, 128], strides = [1, 1]} : vector<8x512xf32> to vector<8x128xf32>
    %41 = math.tanh %40 : vector<8x128xf32>
    %42 = vector.extract_strided_slice %23 {offsets = [0, 384], sizes = [8, 128], strides = [1, 1]} : vector<8x512xf32> to vector<8x128xf32>
    %43 = arith.negf %42 : vector<8x128xf32>
    %44 = math.exp %43 : vector<8x128xf32>
    %cst_18 = arith.constant 1.000000e+00 : f32
    %45 = vector.broadcast %cst_18 : f32 to vector<8x128xf32>
    %46 = arith.addf %45, %44 : vector<8x128xf32>
    %47 = arith.divf %45, %46 : vector<8x128xf32>
    %48 = arith.mulf %39, %8 : vector<8x128xf32>
    %49 = arith.mulf %33, %41 : vector<8x128xf32>
    %50 = arith.addf %48, %49 : vector<8x128xf32>
    %51 = math.tanh %50 : vector<8x128xf32>
    %52 = arith.mulf %47, %51 : vector<8x128xf32>
    %53 = vector.extract_strided_slice %27 {offsets = [0, 0], sizes = [8, 128], strides = [1, 1]} : vector<8x512xf32> to vector<8x128xf32>
    %54 = arith.negf %53 : vector<8x128xf32>
    %55 = math.exp %54 : vector<8x128xf32>
    %cst_19 = arith.constant 1.000000e+00 : f32
    %56 = vector.broadcast %cst_19 : f32 to vector<8x128xf32>
    %57 = arith.addf %56, %55 : vector<8x128xf32>
    %58 = arith.divf %56, %57 : vector<8x128xf32>
    %59 = vector.extract_strided_slice %27 {offsets = [0, 128], sizes = [8, 128], strides = [1, 1]} : vector<8x512xf32> to vector<8x128xf32>
    %60 = arith.negf %59 : vector<8x128xf32>
    %61 = math.exp %60 : vector<8x128xf32>
    %cst_20 = arith.constant 1.000000e+00 : f32
    %62 = vector.broadcast %cst_20 : f32 to vector<8x128xf32>
    %63 = arith.addf %62, %61 : vector<8x128xf32>
    %64 = arith.divf %62, %63 : vector<8x128xf32>
    %65 = vector.extract_strided_slice %27 {offsets = [0, 256], sizes = [8, 128], strides = [1, 1]} : vector<8x512xf32> to vector<8x128xf32>
    %66 = math.tanh %65 : vector<8x128xf32>
    %67 = vector.extract_strided_slice %27 {offsets = [0, 384], sizes = [8, 128], strides = [1, 1]} : vector<8x512xf32> to vector<8x128xf32>
    %68 = arith.negf %67 : vector<8x128xf32>
    %69 = math.exp %68 : vector<8x128xf32>
    %cst_21 = arith.constant 1.000000e+00 : f32
    %70 = vector.broadcast %cst_21 : f32 to vector<8x128xf32>
    %71 = arith.addf %70, %69 : vector<8x128xf32>
    %72 = arith.divf %70, %71 : vector<8x128xf32>
    %73 = arith.mulf %64, %8 : vector<8x128xf32>
    %74 = arith.mulf %58, %66 : vector<8x128xf32>
    %75 = arith.addf %73, %74 : vector<8x128xf32>
    %76 = math.tanh %75 : vector<8x128xf32>
    %77 = arith.mulf %72, %76 : vector<8x128xf32>
    %78 = arith.truncf %52 : vector<8x128xf32> to vector<8x128xbf16>
    %79 = arith.index_cast %16 : i32 to index
    %c0_22 = arith.constant 0 : index
    %80 = vector.load %arg11[%79, %c0_22] : memref<64x256xbf16, #tpu.memory_space<vmem>>, vector<8x128xbf16>
    tpu.vector_store %arg11[%79, %c0_22], %78 {strides = array<i32>} : memref<64x256xbf16, #tpu.memory_space<vmem>>, vector<8x128xbf16>,
    %81 = arith.truncf %77 : vector<8x128xf32> to vector<8x128xbf16>
    %82 = arith.index_cast %19 : i32 to index
    %c128 = arith.constant 128 : index
    %83 = vector.load %arg11[%82, %c128] : memref<64x256xbf16, #tpu.memory_space<vmem>>, vector<8x128xbf16>
    tpu.vector_store %arg11[%82, %c128], %81 {strides = array<i32>} : memref<64x256xbf16, #tpu.memory_space<vmem>>, vector<8x128xbf16>,
    %c1_i32 = arith.constant 1 : i32
    %84 = arith.truncf %52 : vector<8x128xf32> to vector<8x128xbf16>
    %c0_23 = arith.constant 0 : index
    %c0_24 = arith.constant 0 : index
    %85 = vector.load %arg2[%c0_23, %c0_24] : memref<128x512xbf16, #tpu.memory_space<vmem>>, vector<128x512xbf16>
    %cst_25 = arith.constant dense<0.000000e+00> : vector<8x512xf32>
    %86 = tpu.matmul %84, %85, %cst_25 {dimension_numbers = #tpu.dot_dimension_numbers<[1], [0], [0], [1], [0, 0, 1, 1], [], []>} : vector<8x128xbf16>, vector<128x512xbf16>, vector<8x512xf32> -> vector<8x512xf32>
    %87 = arith.truncf %77 : vector<8x128xf32> to vector<8x128xbf16>
    %c0_26 = arith.constant 0 : index
    %c0_27 = arith.constant 0 : index
    %88 = vector.load %arg3[%c0_26, %c0_27] : memref<128x512xbf16, #tpu.memory_space<vmem>>, vector<128x512xbf16>
    %cst_28 = arith.constant dense<0.000000e+00> : vector<8x512xf32>
    %89 = tpu.matmul %87, %88, %cst_28 {dimension_numbers = #tpu.dot_dimension_numbers<[1], [0], [0], [1], [0, 0, 1, 1], [], []>} : vector<8x128xbf16>, vector<128x512xbf16>, vector<8x512xf32> -> vector<8x512xf32>
    %c8_i32_29 = arith.constant 8 : i32
    %90 = arith.muli %c1_i32, %c8_i32_29 : i32
    %91 = tpu.assume_multiple %90, 8 : i32
    %c7_i32_30 = arith.constant 7 : i32
    %92 = arith.subi %c7_i32_30, %c1_i32 : i32
    %c8_i32_31 = arith.constant 8 : i32
    %93 = arith.muli %92, %c8_i32_31 : i32
    %94 = tpu.assume_multiple %93, 8 : i32
    %95 = arith.index_cast %91 : i32 to index
    %c0_32 = arith.constant 0 : index
    %96 = vector.load %arg10[%95, %c0_32] : memref<64x1024xbf16, #tpu.memory_space<vmem>>, vector<8x512xbf16>
    %97 = arith.extf %96 : vector<8x512xbf16> to vector<8x512xf32>
    %98 = arith.addf %86, %97 : vector<8x512xf32>
    %99 = arith.index_cast %94 : i32 to index
    %c512_33 = arith.constant 512 : index
    %100 = vector.load %arg10[%99, %c512_33] : memref<64x1024xbf16, #tpu.memory_space<vmem>>, vector<8x512xbf16>
    %101 = arith.extf %100 : vector<8x512xbf16> to vector<8x512xf32>
    %102 = arith.addf %89, %101 : vector<8x512xf32>
    %103 = vector.extract_strided_slice %98 {offsets = [0, 0], sizes = [8, 128], strides = [1, 1]} : vector<8x512xf32> to vector<8x128xf32>
    %104 = arith.negf %103 : vector<8x128xf32>
    %105 = math.exp %104 : vector<8x128xf32>
    %cst_34 = arith.constant 1.000000e+00 : f32
    %106 = vector.broadcast %cst_34 : f32 to vector<8x128xf32>
    %107 = arith.addf %106, %105 : vector<8x128xf32>
    %108 = arith.divf %106, %107 : vector<8x128xf32>
    %109 = vector.extract_strided_slice %98 {offsets = [0, 128], sizes = [8, 128], strides = [1, 1]} : vector<8x512xf32> to vector<8x128xf32>
    %110 = arith.negf %109 : vector<8x128xf32>
    %111 = math.exp %110 : vector<8x128xf32>
    %cst_35 = arith.constant 1.000000e+00 : f32
    %112 = vector.broadcast %cst_35 : f32 to vector<8x128xf32>
    %113 = arith.addf %112, %111 : vector<8x128xf32>
    %114 = arith.divf %112, %113 : vector<8x128xf32>
    %115 = vector.extract_strided_slice %98 {offsets = [0, 256], sizes = [8, 128], strides = [1, 1]} : vector<8x512xf32> to vector<8x128xf32>
    %116 = math.tanh %115 : vector<8x128xf32>
    %117 = vector.extract_strided_slice %98 {offsets = [0, 384], sizes = [8, 128], strides = [1, 1]} : vector<8x512xf32> to vector<8x128xf32>
    %118 = arith.negf %117 : vector<8x128xf32>
    %119 = math.exp %118 : vector<8x128xf32>
    %cst_36 = arith.constant 1.000000e+00 : f32
    %120 = vector.broadcast %cst_36 : f32 to vector<8x128xf32>
    %121 = arith.addf %120, %119 : vector<8x128xf32>
    %122 = arith.divf %120, %121 : vector<8x128xf32>
    %123 = arith.mulf %114, %50 : vector<8x128xf32>
    %124 = arith.mulf %108, %116 : vector<8x128xf32>
    %125 = arith.addf %123, %124 : vector<8x128xf32>
    %126 = math.tanh %125 : vector<8x128xf32>
    %127 = arith.mulf %122, %126 : vector<8x128xf32>
    %128 = vector.extract_strided_slice %102 {offsets = [0, 0], sizes = [8, 128], strides = [1, 1]} : vector<8x512xf32> to vector<8x128xf32>
    %129 = arith.negf %128 : vector<8x128xf32>
    %130 = math.exp %129 : vector<8x128xf32>
    %cst_37 = arith.constant 1.000000e+00 : f32
    %131 = vector.broadcast %cst_37 : f32 to vector<8x128xf32>
    %132 = arith.addf %131, %130 : vector<8x128xf32>
    %133 = arith.divf %131, %132 : vector<8x128xf32>
    %134 = vector.extract_strided_slice %102 {offsets = [0, 128], sizes = [8, 128], strides = [1, 1]} : vector<8x512xf32> to vector<8x128xf32>
    %135 = arith.negf %134 : vector<8x128xf32>
    %136 = math.exp %135 : vector<8x128xf32>
    %cst_38 = arith.constant 1.000000e+00 : f32
    %137 = vector.broadcast %cst_38 : f32 to vector<8x128xf32>
    %138 = arith.addf %137, %136 : vector<8x128xf32>
    %139 = arith.divf %137, %138 : vector<8x128xf32>
    %140 = vector.extract_strided_slice %102 {offsets = [0, 256], sizes = [8, 128], strides = [1, 1]} : vector<8x512xf32> to vector<8x128xf32>
    %141 = math.tanh %140 : vector<8x128xf32>
    %142 = vector.extract_strided_slice %102 {offsets = [0, 384], sizes = [8, 128], strides = [1, 1]} : vector<8x512xf32> to vector<8x128xf32>
    %143 = arith.negf %142 : vector<8x128xf32>
    %144 = math.exp %143 : vector<8x128xf32>
    %cst_39 = arith.constant 1.000000e+00 : f32
    %145 = vector.broadcast %cst_39 : f32 to vector<8x128xf32>
    %146 = arith.addf %145, %144 : vector<8x128xf32>
    %147 = arith.divf %145, %146 : vector<8x128xf32>
    %148 = arith.mulf %139, %75 : vector<8x128xf32>
    %149 = arith.mulf %133, %141 : vector<8x128xf32>
    %150 = arith.addf %148, %149 : vector<8x128xf32>
    %151 = math.tanh %150 : vector<8x128xf32>
    %152 = arith.mulf %147, %151 : vector<8x128xf32>
    %153 = arith.truncf %127 : vector<8x128xf32> to vector<8x128xbf16>
    %154 = arith.index_cast %91 : i32 to index
    %c0_40 = arith.constant 0 : index
    %155 = vector.load %arg11[%154, %c0_40] : memref<64x256xbf16, #tpu.memory_space<vmem>>, vector<8x128xbf16>
    tpu.vector_store %arg11[%154, %c0_40], %153 {strides = array<i32>} : memref<64x256xbf16, #tpu.memory_space<vmem>>, vector<8x128xbf16>,
    %156 = arith.truncf %152 : vector<8x128xf32> to vector<8x128xbf16>
    %157 = arith.index_cast %94 : i32 to index
    %c128_41 = arith.constant 128 : index
    %158 = vector.load %arg11[%157, %c128_41] : memref<64x256xbf16, #tpu.memory_space<vmem>>, vector<8x128xbf16>
    tpu.vector_store %arg11[%157, %c128_41], %156 {strides = array<i32>} : memref<64x256xbf16, #tpu.memory_space<vmem>>, vector<8x128xbf16>,
    %c2_i32 = arith.constant 2 : i32
    %159 = arith.truncf %127 : vector<8x128xf32> to vector<8x128xbf16>
    %c0_42 = arith.constant 0 : index
    %c0_43 = arith.constant 0 : index
    %160 = vector.load %arg2[%c0_42, %c0_43] : memref<128x512xbf16, #tpu.memory_space<vmem>>, vector<128x512xbf16>
    %cst_44 = arith.constant dense<0.000000e+00> : vector<8x512xf32>
    %161 = tpu.matmul %159, %160, %cst_44 {dimension_numbers = #tpu.dot_dimension_numbers<[1], [0], [0], [1], [0, 0, 1, 1], [], []>} : vector<8x128xbf16>, vector<128x512xbf16>, vector<8x512xf32> -> vector<8x512xf32>
    %162 = arith.truncf %152 : vector<8x128xf32> to vector<8x128xbf16>
    %c0_45 = arith.constant 0 : index
    %c0_46 = arith.constant 0 : index
    %163 = vector.load %arg3[%c0_45, %c0_46] : memref<128x512xbf16, #tpu.memory_space<vmem>>, vector<128x512xbf16>
    %cst_47 = arith.constant dense<0.000000e+00> : vector<8x512xf32>
    %164 = tpu.matmul %162, %163, %cst_47 {dimension_numbers = #tpu.dot_dimension_numbers<[1], [0], [0], [1], [0, 0, 1, 1], [], []>} : vector<8x128xbf16>, vector<128x512xbf16>, vector<8x512xf32> -> vector<8x512xf32>
    %c8_i32_48 = arith.constant 8 : i32
    %165 = arith.muli %c2_i32, %c8_i32_48 : i32
    %166 = tpu.assume_multiple %165, 8 : i32
    %c7_i32_49 = arith.constant 7 : i32
    %167 = arith.subi %c7_i32_49, %c2_i32 : i32
    %c8_i32_50 = arith.constant 8 : i32
    %168 = arith.muli %167, %c8_i32_50 : i32
    %169 = tpu.assume_multiple %168, 8 : i32
    %170 = arith.index_cast %166 : i32 to index
    %c0_51 = arith.constant 0 : index
    %171 = vector.load %arg10[%170, %c0_51] : memref<64x1024xbf16, #tpu.memory_space<vmem>>, vector<8x512xbf16>
    %172 = arith.extf %171 : vector<8x512xbf16> to vector<8x512xf32>
    %173 = arith.addf %161, %172 : vector<8x512xf32>
    %174 = arith.index_cast %169 : i32 to index
    %c512_52 = arith.constant 512 : index
    %175 = vector.load %arg10[%174, %c512_52] : memref<64x1024xbf16, #tpu.memory_space<vmem>>, vector<8x512xbf16>
    %176 = arith.extf %175 : vector<8x512xbf16> to vector<8x512xf32>
    %177 = arith.addf %164, %176 : vector<8x512xf32>
    %178 = vector.extract_strided_slice %173 {offsets = [0, 0], sizes = [8, 128], strides = [1, 1]} : vector<8x512xf32> to vector<8x128xf32>
    %179 = arith.negf %178 : vector<8x128xf32>
    %180 = math.exp %179 : vector<8x128xf32>
    %cst_53 = arith.constant 1.000000e+00 : f32
    %181 = vector.broadcast %cst_53 : f32 to vector<8x128xf32>
    %182 = arith.addf %181, %180 : vector<8x128xf32>
    %183 = arith.divf %181, %182 : vector<8x128xf32>
    %184 = vector.extract_strided_slice %173 {offsets = [0, 128], sizes = [8, 128], strides = [1, 1]} : vector<8x512xf32> to vector<8x128xf32>
    %185 = arith.negf %184 : vector<8x128xf32>
    %186 = math.exp %185 : vector<8x128xf32>
    %cst_54 = arith.constant 1.000000e+00 : f32
    %187 = vector.broadcast %cst_54 : f32 to vector<8x128xf32>
    %188 = arith.addf %187, %186 : vector<8x128xf32>
    %189 = arith.divf %187, %188 : vector<8x128xf32>
    %190 = vector.extract_strided_slice %173 {offsets = [0, 256], sizes = [8, 128], strides = [1, 1]} : vector<8x512xf32> to vector<8x128xf32>
    %191 = math.tanh %190 : vector<8x128xf32>
    %192 = vector.extract_strided_slice %173 {offsets = [0, 384], sizes = [8, 128], strides = [1, 1]} : vector<8x512xf32> to vector<8x128xf32>
    %193 = arith.negf %192 : vector<8x128xf32>
    %194 = math.exp %193 : vector<8x128xf32>
    %cst_55 = arith.constant 1.000000e+00 : f32
    %195 = vector.broadcast %cst_55 : f32 to vector<8x128xf32>
    %196 = arith.addf %195, %194 : vector<8x128xf32>
    %197 = arith.divf %195, %196 : vector<8x128xf32>
    %198 = arith.mulf %189, %125 : vector<8x128xf32>
    %199 = arith.mulf %183, %191 : vector<8x128xf32>
    %200 = arith.addf %198, %199 : vector<8x128xf32>
    %201 = math.tanh %200 : vector<8x128xf32>
    %202 = arith.mulf %197, %201 : vector<8x128xf32>
    %203 = vector.extract_strided_slice %177 {offsets = [0, 0], sizes = [8, 128], strides = [1, 1]} : vector<8x512xf32> to vector<8x128xf32>
    %204 = arith.negf %203 : vector<8x128xf32>
    %205 = math.exp %204 : vector<8x128xf32>
    %cst_56 = arith.constant 1.000000e+00 : f32
    %206 = vector.broadcast %cst_56 : f32 to vector<8x128xf32>
    %207 = arith.addf %206, %205 : vector<8x128xf32>
    %208 = arith.divf %206, %207 : vector<8x128xf32>
    %209 = vector.extract_strided_slice %177 {offsets = [0, 128], sizes = [8, 128], strides = [1, 1]} : vector<8x512xf32> to vector<8x128xf32>
    %210 = arith.negf %209 : vector<8x128xf32>
    %211 = math.exp %210 : vector<8x128xf32>
    %cst_57 = arith.constant 1.000000e+00 : f32
    %212 = vector.broadcast %cst_57 : f32 to vector<8x128xf32>
    %213 = arith.addf %212, %211 : vector<8x128xf32>
    %214 = arith.divf %212, %213 : vector<8x128xf32>
    %215 = vector.extract_strided_slice %177 {offsets = [0, 256], sizes = [8, 128], strides = [1, 1]} : vector<8x512xf32> to vector<8x128xf32>
    %216 = math.tanh %215 : vector<8x128xf32>
    %217 = vector.extract_strided_slice %177 {offsets = [0, 384], sizes = [8, 128], strides = [1, 1]} : vector<8x512xf32> to vector<8x128xf32>
    %218 = arith.negf %217 : vector<8x128xf32>
    %219 = math.exp %218 : vector<8x128xf32>
    %cst_58 = arith.constant 1.000000e+00 : f32
    %220 = vector.broadcast %cst_58 : f32 to vector<8x128xf32>
    %221 = arith.addf %220, %219 : vector<8x128xf32>
    %222 = arith.divf %220, %221 : vector<8x128xf32>
    %223 = arith.mulf %214, %150 : vector<8x128xf32>
    %224 = arith.mulf %208, %216 : vector<8x128xf32>
    %225 = arith.addf %223, %224 : vector<8x128xf32>
    %226 = math.tanh %225 : vector<8x128xf32>
    %227 = arith.mulf %222, %226 : vector<8x128xf32>
    %228 = arith.truncf %202 : vector<8x128xf32> to vector<8x128xbf16>
    %229 = arith.index_cast %166 : i32 to index
    %c0_59 = arith.constant 0 : index
    %230 = vector.load %arg11[%229, %c0_59] : memref<64x256xbf16, #tpu.memory_space<vmem>>, vector<8x128xbf16>
    tpu.vector_store %arg11[%229, %c0_59], %228 {strides = array<i32>} : memref<64x256xbf16, #tpu.memory_space<vmem>>, vector<8x128xbf16>,
    %231 = arith.truncf %227 : vector<8x128xf32> to vector<8x128xbf16>
    %232 = arith.index_cast %169 : i32 to index
    %c128_60 = arith.constant 128 : index
    %233 = vector.load %arg11[%232, %c128_60] : memref<64x256xbf16, #tpu.memory_space<vmem>>, vector<8x128xbf16>
    tpu.vector_store %arg11[%232, %c128_60], %231 {strides = array<i32>} : memref<64x256xbf16, #tpu.memory_space<vmem>>, vector<8x128xbf16>,
    %c3_i32 = arith.constant 3 : i32
    %234 = arith.truncf %202 : vector<8x128xf32> to vector<8x128xbf16>
    %c0_61 = arith.constant 0 : index
    %c0_62 = arith.constant 0 : index
    %235 = vector.load %arg2[%c0_61, %c0_62] : memref<128x512xbf16, #tpu.memory_space<vmem>>, vector<128x512xbf16>
    %cst_63 = arith.constant dense<0.000000e+00> : vector<8x512xf32>
    %236 = tpu.matmul %234, %235, %cst_63 {dimension_numbers = #tpu.dot_dimension_numbers<[1], [0], [0], [1], [0, 0, 1, 1], [], []>} : vector<8x128xbf16>, vector<128x512xbf16>, vector<8x512xf32> -> vector<8x512xf32>
    %237 = arith.truncf %227 : vector<8x128xf32> to vector<8x128xbf16>
    %c0_64 = arith.constant 0 : index
    %c0_65 = arith.constant 0 : index
    %238 = vector.load %arg3[%c0_64, %c0_65] : memref<128x512xbf16, #tpu.memory_space<vmem>>, vector<128x512xbf16>
    %cst_66 = arith.constant dense<0.000000e+00> : vector<8x512xf32>
    %239 = tpu.matmul %237, %238, %cst_66 {dimension_numbers = #tpu.dot_dimension_numbers<[1], [0], [0], [1], [0, 0, 1, 1], [], []>} : vector<8x128xbf16>, vector<128x512xbf16>, vector<8x512xf32> -> vector<8x512xf32>
    %c8_i32_67 = arith.constant 8 : i32
    %240 = arith.muli %c3_i32, %c8_i32_67 : i32
    %241 = tpu.assume_multiple %240, 8 : i32
    %c7_i32_68 = arith.constant 7 : i32
    %242 = arith.subi %c7_i32_68, %c3_i32 : i32
    %c8_i32_69 = arith.constant 8 : i32
    %243 = arith.muli %242, %c8_i32_69 : i32
    %244 = tpu.assume_multiple %243, 8 : i32
    %245 = arith.index_cast %241 : i32 to index
    %c0_70 = arith.constant 0 : index
    %246 = vector.load %arg10[%245, %c0_70] : memref<64x1024xbf16, #tpu.memory_space<vmem>>, vector<8x512xbf16>
    %247 = arith.extf %246 : vector<8x512xbf16> to vector<8x512xf32>
    %248 = arith.addf %236, %247 : vector<8x512xf32>
    %249 = arith.index_cast %244 : i32 to index
    %c512_71 = arith.constant 512 : index
    %250 = vector.load %arg10[%249, %c512_71] : memref<64x1024xbf16, #tpu.memory_space<vmem>>, vector<8x512xbf16>
    %251 = arith.extf %250 : vector<8x512xbf16> to vector<8x512xf32>
    %252 = arith.addf %239, %251 : vector<8x512xf32>
    %253 = vector.extract_strided_slice %248 {offsets = [0, 0], sizes = [8, 128], strides = [1, 1]} : vector<8x512xf32> to vector<8x128xf32>
    %254 = arith.negf %253 : vector<8x128xf32>
    %255 = math.exp %254 : vector<8x128xf32>
    %cst_72 = arith.constant 1.000000e+00 : f32
    %256 = vector.broadcast %cst_72 : f32 to vector<8x128xf32>
    %257 = arith.addf %256, %255 : vector<8x128xf32>
    %258 = arith.divf %256, %257 : vector<8x128xf32>
    %259 = vector.extract_strided_slice %248 {offsets = [0, 128], sizes = [8, 128], strides = [1, 1]} : vector<8x512xf32> to vector<8x128xf32>
    %260 = arith.negf %259 : vector<8x128xf32>
    %261 = math.exp %260 : vector<8x128xf32>
    %cst_73 = arith.constant 1.000000e+00 : f32
    %262 = vector.broadcast %cst_73 : f32 to vector<8x128xf32>
    %263 = arith.addf %262, %261 : vector<8x128xf32>
    %264 = arith.divf %262, %263 : vector<8x128xf32>
    %265 = vector.extract_strided_slice %248 {offsets = [0, 256], sizes = [8, 128], strides = [1, 1]} : vector<8x512xf32> to vector<8x128xf32>
    %266 = math.tanh %265 : vector<8x128xf32>
    %267 = vector.extract_strided_slice %248 {offsets = [0, 384], sizes = [8, 128], strides = [1, 1]} : vector<8x512xf32> to vector<8x128xf32>
    %268 = arith.negf %267 : vector<8x128xf32>
    %269 = math.exp %268 : vector<8x128xf32>
    %cst_74 = arith.constant 1.000000e+00 : f32
    %270 = vector.broadcast %cst_74 : f32 to vector<8x128xf32>
    %271 = arith.addf %270, %269 : vector<8x128xf32>
    %272 = arith.divf %270, %271 : vector<8x128xf32>
    %273 = arith.mulf %264, %200 : vector<8x128xf32>
    %274 = arith.mulf %258, %266 : vector<8x128xf32>
    %275 = arith.addf %273, %274 : vector<8x128xf32>
    %276 = math.tanh %275 : vector<8x128xf32>
    %277 = arith.mulf %272, %276 : vector<8x128xf32>
    %278 = vector.extract_strided_slice %252 {offsets = [0, 0], sizes = [8, 128], strides = [1, 1]} : vector<8x512xf32> to vector<8x128xf32>
    %279 = arith.negf %278 : vector<8x128xf32>
    %280 = math.exp %279 : vector<8x128xf32>
    %cst_75 = arith.constant 1.000000e+00 : f32
    %281 = vector.broadcast %cst_75 : f32 to vector<8x128xf32>
    %282 = arith.addf %281, %280 : vector<8x128xf32>
    %283 = arith.divf %281, %282 : vector<8x128xf32>
    %284 = vector.extract_strided_slice %252 {offsets = [0, 128], sizes = [8, 128], strides = [1, 1]} : vector<8x512xf32> to vector<8x128xf32>
    %285 = arith.negf %284 : vector<8x128xf32>
    %286 = math.exp %285 : vector<8x128xf32>
    %cst_76 = arith.constant 1.000000e+00 : f32
    %287 = vector.broadcast %cst_76 : f32 to vector<8x128xf32>
    %288 = arith.addf %287, %286 : vector<8x128xf32>
    %289 = arith.divf %287, %288 : vector<8x128xf32>
    %290 = vector.extract_strided_slice %252 {offsets = [0, 256], sizes = [8, 128], strides = [1, 1]} : vector<8x512xf32> to vector<8x128xf32>
    %291 = math.tanh %290 : vector<8x128xf32>
    %292 = vector.extract_strided_slice %252 {offsets = [0, 384], sizes = [8, 128], strides = [1, 1]} : vector<8x512xf32> to vector<8x128xf32>
    %293 = arith.negf %292 : vector<8x128xf32>
    %294 = math.exp %293 : vector<8x128xf32>
    %cst_77 = arith.constant 1.000000e+00 : f32
    %295 = vector.broadcast %cst_77 : f32 to vector<8x128xf32>
    %296 = arith.addf %295, %294 : vector<8x128xf32>
    %297 = arith.divf %295, %296 : vector<8x128xf32>
    %298 = arith.mulf %289, %225 : vector<8x128xf32>
    %299 = arith.mulf %283, %291 : vector<8x128xf32>
    %300 = arith.addf %298, %299 : vector<8x128xf32>
    %301 = math.tanh %300 : vector<8x128xf32>
    %302 = arith.mulf %297, %301 : vector<8x128xf32>
    %303 = arith.truncf %277 : vector<8x128xf32> to vector<8x128xbf16>
    %304 = arith.index_cast %241 : i32 to index
    %c0_78 = arith.constant 0 : index
    %305 = vector.load %arg11[%304, %c0_78] : memref<64x256xbf16, #tpu.memory_space<vmem>>, vector<8x128xbf16>
    tpu.vector_store %arg11[%304, %c0_78], %303 {strides = array<i32>} : memref<64x256xbf16, #tpu.memory_space<vmem>>, vector<8x128xbf16>,
    %306 = arith.truncf %302 : vector<8x128xf32> to vector<8x128xbf16>
    %307 = arith.index_cast %244 : i32 to index
    %c128_79 = arith.constant 128 : index
    %308 = vector.load %arg11[%307, %c128_79] : memref<64x256xbf16, #tpu.memory_space<vmem>>, vector<8x128xbf16>
    tpu.vector_store %arg11[%307, %c128_79], %306 {strides = array<i32>} : memref<64x256xbf16, #tpu.memory_space<vmem>>, vector<8x128xbf16>,
    %c4_i32 = arith.constant 4 : i32
    %309 = arith.truncf %277 : vector<8x128xf32> to vector<8x128xbf16>
    %c0_80 = arith.constant 0 : index
    %c0_81 = arith.constant 0 : index
    %310 = vector.load %arg2[%c0_80, %c0_81] : memref<128x512xbf16, #tpu.memory_space<vmem>>, vector<128x512xbf16>
    %cst_82 = arith.constant dense<0.000000e+00> : vector<8x512xf32>
    %311 = tpu.matmul %309, %310, %cst_82 {dimension_numbers = #tpu.dot_dimension_numbers<[1], [0], [0], [1], [0, 0, 1, 1], [], []>} : vector<8x128xbf16>, vector<128x512xbf16>, vector<8x512xf32> -> vector<8x512xf32>
    %312 = arith.truncf %302 : vector<8x128xf32> to vector<8x128xbf16>
    %c0_83 = arith.constant 0 : index
    %c0_84 = arith.constant 0 : index
    %313 = vector.load %arg3[%c0_83, %c0_84] : memref<128x512xbf16, #tpu.memory_space<vmem>>, vector<128x512xbf16>
    %cst_85 = arith.constant dense<0.000000e+00> : vector<8x512xf32>
    %314 = tpu.matmul %312, %313, %cst_85 {dimension_numbers = #tpu.dot_dimension_numbers<[1], [0], [0], [1], [0, 0, 1, 1], [], []>} : vector<8x128xbf16>, vector<128x512xbf16>, vector<8x512xf32> -> vector<8x512xf32>
    %c8_i32_86 = arith.constant 8 : i32
    %315 = arith.muli %c4_i32, %c8_i32_86 : i32
    %316 = tpu.assume_multiple %315, 8 : i32
    %c7_i32_87 = arith.constant 7 : i32
    %317 = arith.subi %c7_i32_87, %c4_i32 : i32
    %c8_i32_88 = arith.constant 8 : i32
    %318 = arith.muli %317, %c8_i32_88 : i32
    %319 = tpu.assume_multiple %318, 8 : i32
    %320 = arith.index_cast %316 : i32 to index
    %c0_89 = arith.constant 0 : index
    %321 = vector.load %arg10[%320, %c0_89] : memref<64x1024xbf16, #tpu.memory_space<vmem>>, vector<8x512xbf16>
    %322 = arith.extf %321 : vector<8x512xbf16> to vector<8x512xf32>
    %323 = arith.addf %311, %322 : vector<8x512xf32>
    %324 = arith.index_cast %319 : i32 to index
    %c512_90 = arith.constant 512 : index
    %325 = vector.load %arg10[%324, %c512_90] : memref<64x1024xbf16, #tpu.memory_space<vmem>>, vector<8x512xbf16>
    %326 = arith.extf %325 : vector<8x512xbf16> to vector<8x512xf32>
    %327 = arith.addf %314, %326 : vector<8x512xf32>
    %328 = vector.extract_strided_slice %323 {offsets = [0, 0], sizes = [8, 128], strides = [1, 1]} : vector<8x512xf32> to vector<8x128xf32>
    %329 = arith.negf %328 : vector<8x128xf32>
    %330 = math.exp %329 : vector<8x128xf32>
    %cst_91 = arith.constant 1.000000e+00 : f32
    %331 = vector.broadcast %cst_91 : f32 to vector<8x128xf32>
    %332 = arith.addf %331, %330 : vector<8x128xf32>
    %333 = arith.divf %331, %332 : vector<8x128xf32>
    %334 = vector.extract_strided_slice %323 {offsets = [0, 128], sizes = [8, 128], strides = [1, 1]} : vector<8x512xf32> to vector<8x128xf32>
    %335 = arith.negf %334 : vector<8x128xf32>
    %336 = math.exp %335 : vector<8x128xf32>
    %cst_92 = arith.constant 1.000000e+00 : f32
    %337 = vector.broadcast %cst_92 : f32 to vector<8x128xf32>
    %338 = arith.addf %337, %336 : vector<8x128xf32>
    %339 = arith.divf %337, %338 : vector<8x128xf32>
    %340 = vector.extract_strided_slice %323 {offsets = [0, 256], sizes = [8, 128], strides = [1, 1]} : vector<8x512xf32> to vector<8x128xf32>
    %341 = math.tanh %340 : vector<8x128xf32>
    %342 = vector.extract_strided_slice %323 {offsets = [0, 384], sizes = [8, 128], strides = [1, 1]} : vector<8x512xf32> to vector<8x128xf32>
    %343 = arith.negf %342 : vector<8x128xf32>
    %344 = math.exp %343 : vector<8x128xf32>
    %cst_93 = arith.constant 1.000000e+00 : f32
    %345 = vector.broadcast %cst_93 : f32 to vector<8x128xf32>
    %346 = arith.addf %345, %344 : vector<8x128xf32>
    %347 = arith.divf %345, %346 : vector<8x128xf32>
    %348 = arith.mulf %339, %275 : vector<8x128xf32>
    %349 = arith.mulf %333, %341 : vector<8x128xf32>
    %350 = arith.addf %348, %349 : vector<8x128xf32>
    %351 = math.tanh %350 : vector<8x128xf32>
    %352 = arith.mulf %347, %351 : vector<8x128xf32>
    %353 = vector.extract_strided_slice %327 {offsets = [0, 0], sizes = [8, 128], strides = [1, 1]} : vector<8x512xf32> to vector<8x128xf32>
    %354 = arith.negf %353 : vector<8x128xf32>
    %355 = math.exp %354 : vector<8x128xf32>
    %cst_94 = arith.constant 1.000000e+00 : f32
    %356 = vector.broadcast %cst_94 : f32 to vector<8x128xf32>
    %357 = arith.addf %356, %355 : vector<8x128xf32>
    %358 = arith.divf %356, %357 : vector<8x128xf32>
    %359 = vector.extract_strided_slice %327 {offsets = [0, 128], sizes = [8, 128], strides = [1, 1]} : vector<8x512xf32> to vector<8x128xf32>
    %360 = arith.negf %359 : vector<8x128xf32>
    %361 = math.exp %360 : vector<8x128xf32>
    %cst_95 = arith.constant 1.000000e+00 : f32
    %362 = vector.broadcast %cst_95 : f32 to vector<8x128xf32>
    %363 = arith.addf %362, %361 : vector<8x128xf32>
    %364 = arith.divf %362, %363 : vector<8x128xf32>
    %365 = vector.extract_strided_slice %327 {offsets = [0, 256], sizes = [8, 128], strides = [1, 1]} : vector<8x512xf32> to vector<8x128xf32>
    %366 = math.tanh %365 : vector<8x128xf32>
    %367 = vector.extract_strided_slice %327 {offsets = [0, 384], sizes = [8, 128], strides = [1, 1]} : vector<8x512xf32> to vector<8x128xf32>
    %368 = arith.negf %367 : vector<8x128xf32>
    %369 = math.exp %368 : vector<8x128xf32>
    %cst_96 = arith.constant 1.000000e+00 : f32
    %370 = vector.broadcast %cst_96 : f32 to vector<8x128xf32>
    %371 = arith.addf %370, %369 : vector<8x128xf32>
    %372 = arith.divf %370, %371 : vector<8x128xf32>
    %373 = arith.mulf %364, %300 : vector<8x128xf32>
    %374 = arith.mulf %358, %366 : vector<8x128xf32>
    %375 = arith.addf %373, %374 : vector<8x128xf32>
    %376 = math.tanh %375 : vector<8x128xf32>
    %377 = arith.mulf %372, %376 : vector<8x128xf32>
    %378 = arith.truncf %352 : vector<8x128xf32> to vector<8x128xbf16>
    %379 = arith.index_cast %316 : i32 to index
    %c0_97 = arith.constant 0 : index
    %380 = vector.load %arg11[%379, %c0_97] : memref<64x256xbf16, #tpu.memory_space<vmem>>, vector<8x128xbf16>
    tpu.vector_store %arg11[%379, %c0_97], %378 {strides = array<i32>} : memref<64x256xbf16, #tpu.memory_space<vmem>>, vector<8x128xbf16>,
    %381 = arith.truncf %377 : vector<8x128xf32> to vector<8x128xbf16>
    %382 = arith.index_cast %319 : i32 to index
    %c128_98 = arith.constant 128 : index
    %383 = vector.load %arg11[%382, %c128_98] : memref<64x256xbf16, #tpu.memory_space<vmem>>, vector<8x128xbf16>
    tpu.vector_store %arg11[%382, %c128_98], %381 {strides = array<i32>} : memref<64x256xbf16, #tpu.memory_space<vmem>>, vector<8x128xbf16>,
    %c5_i32 = arith.constant 5 : i32
    %384 = arith.truncf %352 : vector<8x128xf32> to vector<8x128xbf16>
    %c0_99 = arith.constant 0 : index
    %c0_100 = arith.constant 0 : index
    %385 = vector.load %arg2[%c0_99, %c0_100] : memref<128x512xbf16, #tpu.memory_space<vmem>>, vector<128x512xbf16>
    %cst_101 = arith.constant dense<0.000000e+00> : vector<8x512xf32>
    %386 = tpu.matmul %384, %385, %cst_101 {dimension_numbers = #tpu.dot_dimension_numbers<[1], [0], [0], [1], [0, 0, 1, 1], [], []>} : vector<8x128xbf16>, vector<128x512xbf16>, vector<8x512xf32> -> vector<8x512xf32>
    %387 = arith.truncf %377 : vector<8x128xf32> to vector<8x128xbf16>
    %c0_102 = arith.constant 0 : index
    %c0_103 = arith.constant 0 : index
    %388 = vector.load %arg3[%c0_102, %c0_103] : memref<128x512xbf16, #tpu.memory_space<vmem>>, vector<128x512xbf16>
    %cst_104 = arith.constant dense<0.000000e+00> : vector<8x512xf32>
    %389 = tpu.matmul %387, %388, %cst_104 {dimension_numbers = #tpu.dot_dimension_numbers<[1], [0], [0], [1], [0, 0, 1, 1], [], []>} : vector<8x128xbf16>, vector<128x512xbf16>, vector<8x512xf32> -> vector<8x512xf32>
    %c8_i32_105 = arith.constant 8 : i32
    %390 = arith.muli %c5_i32, %c8_i32_105 : i32
    %391 = tpu.assume_multiple %390, 8 : i32
    %c7_i32_106 = arith.constant 7 : i32
    %392 = arith.subi %c7_i32_106, %c5_i32 : i32
    %c8_i32_107 = arith.constant 8 : i32
    %393 = arith.muli %392, %c8_i32_107 : i32
    %394 = tpu.assume_multiple %393, 8 : i32
    %395 = arith.index_cast %391 : i32 to index
    %c0_108 = arith.constant 0 : index
    %396 = vector.load %arg10[%395, %c0_108] : memref<64x1024xbf16, #tpu.memory_space<vmem>>, vector<8x512xbf16>
    %397 = arith.extf %396 : vector<8x512xbf16> to vector<8x512xf32>
    %398 = arith.addf %386, %397 : vector<8x512xf32>
    %399 = arith.index_cast %394 : i32 to index
    %c512_109 = arith.constant 512 : index
    %400 = vector.load %arg10[%399, %c512_109] : memref<64x1024xbf16, #tpu.memory_space<vmem>>, vector<8x512xbf16>
    %401 = arith.extf %400 : vector<8x512xbf16> to vector<8x512xf32>
    %402 = arith.addf %389, %401 : vector<8x512xf32>
    %403 = vector.extract_strided_slice %398 {offsets = [0, 0], sizes = [8, 128], strides = [1, 1]} : vector<8x512xf32> to vector<8x128xf32>
    %404 = arith.negf %403 : vector<8x128xf32>
    %405 = math.exp %404 : vector<8x128xf32>
    %cst_110 = arith.constant 1.000000e+00 : f32
    %406 = vector.broadcast %cst_110 : f32 to vector<8x128xf32>
    %407 = arith.addf %406, %405 : vector<8x128xf32>
    %408 = arith.divf %406, %407 : vector<8x128xf32>
    %409 = vector.extract_strided_slice %398 {offsets = [0, 128], sizes = [8, 128], strides = [1, 1]} : vector<8x512xf32> to vector<8x128xf32>
    %410 = arith.negf %409 : vector<8x128xf32>
    %411 = math.exp %410 : vector<8x128xf32>
    %cst_111 = arith.constant 1.000000e+00 : f32
    %412 = vector.broadcast %cst_111 : f32 to vector<8x128xf32>
    %413 = arith.addf %412, %411 : vector<8x128xf32>
    %414 = arith.divf %412, %413 : vector<8x128xf32>
    %415 = vector.extract_strided_slice %398 {offsets = [0, 256], sizes = [8, 128], strides = [1, 1]} : vector<8x512xf32> to vector<8x128xf32>
    %416 = math.tanh %415 : vector<8x128xf32>
    %417 = vector.extract_strided_slice %398 {offsets = [0, 384], sizes = [8, 128], strides = [1, 1]} : vector<8x512xf32> to vector<8x128xf32>
    %418 = arith.negf %417 : vector<8x128xf32>
    %419 = math.exp %418 : vector<8x128xf32>
    %cst_112 = arith.constant 1.000000e+00 : f32
    %420 = vector.broadcast %cst_112 : f32 to vector<8x128xf32>
    %421 = arith.addf %420, %419 : vector<8x128xf32>
    %422 = arith.divf %420, %421 : vector<8x128xf32>
    %423 = arith.mulf %414, %350 : vector<8x128xf32>
    %424 = arith.mulf %408, %416 : vector<8x128xf32>
    %425 = arith.addf %423, %424 : vector<8x128xf32>
    %426 = math.tanh %425 : vector<8x128xf32>
    %427 = arith.mulf %422, %426 : vector<8x128xf32>
    %428 = vector.extract_strided_slice %402 {offsets = [0, 0], sizes = [8, 128], strides = [1, 1]} : vector<8x512xf32> to vector<8x128xf32>
    %429 = arith.negf %428 : vector<8x128xf32>
    %430 = math.exp %429 : vector<8x128xf32>
    %cst_113 = arith.constant 1.000000e+00 : f32
    %431 = vector.broadcast %cst_113 : f32 to vector<8x128xf32>
    %432 = arith.addf %431, %430 : vector<8x128xf32>
    %433 = arith.divf %431, %432 : vector<8x128xf32>
    %434 = vector.extract_strided_slice %402 {offsets = [0, 128], sizes = [8, 128], strides = [1, 1]} : vector<8x512xf32> to vector<8x128xf32>
    %435 = arith.negf %434 : vector<8x128xf32>
    %436 = math.exp %435 : vector<8x128xf32>
    %cst_114 = arith.constant 1.000000e+00 : f32
    %437 = vector.broadcast %cst_114 : f32 to vector<8x128xf32>
    %438 = arith.addf %437, %436 : vector<8x128xf32>
    %439 = arith.divf %437, %438 : vector<8x128xf32>
    %440 = vector.extract_strided_slice %402 {offsets = [0, 256], sizes = [8, 128], strides = [1, 1]} : vector<8x512xf32> to vector<8x128xf32>
    %441 = math.tanh %440 : vector<8x128xf32>
    %442 = vector.extract_strided_slice %402 {offsets = [0, 384], sizes = [8, 128], strides = [1, 1]} : vector<8x512xf32> to vector<8x128xf32>
    %443 = arith.negf %442 : vector<8x128xf32>
    %444 = math.exp %443 : vector<8x128xf32>
    %cst_115 = arith.constant 1.000000e+00 : f32
    %445 = vector.broadcast %cst_115 : f32 to vector<8x128xf32>
    %446 = arith.addf %445, %444 : vector<8x128xf32>
    %447 = arith.divf %445, %446 : vector<8x128xf32>
    %448 = arith.mulf %439, %375 : vector<8x128xf32>
    %449 = arith.mulf %433, %441 : vector<8x128xf32>
    %450 = arith.addf %448, %449 : vector<8x128xf32>
    %451 = math.tanh %450 : vector<8x128xf32>
    %452 = arith.mulf %447, %451 : vector<8x128xf32>
    %453 = arith.truncf %427 : vector<8x128xf32> to vector<8x128xbf16>
    %454 = arith.index_cast %391 : i32 to index
    %c0_116 = arith.constant 0 : index
    %455 = vector.load %arg11[%454, %c0_116] : memref<64x256xbf16, #tpu.memory_space<vmem>>, vector<8x128xbf16>
    tpu.vector_store %arg11[%454, %c0_116], %453 {strides = array<i32>} : memref<64x256xbf16, #tpu.memory_space<vmem>>, vector<8x128xbf16>,
    %456 = arith.truncf %452 : vector<8x128xf32> to vector<8x128xbf16>
    %457 = arith.index_cast %394 : i32 to index
    %c128_117 = arith.constant 128 : index
    %458 = vector.load %arg11[%457, %c128_117] : memref<64x256xbf16, #tpu.memory_space<vmem>>, vector<8x128xbf16>
    tpu.vector_store %arg11[%457, %c128_117], %456 {strides = array<i32>} : memref<64x256xbf16, #tpu.memory_space<vmem>>, vector<8x128xbf16>,
    %c6_i32 = arith.constant 6 : i32
    %459 = arith.truncf %427 : vector<8x128xf32> to vector<8x128xbf16>
    %c0_118 = arith.constant 0 : index
    %c0_119 = arith.constant 0 : index
    %460 = vector.load %arg2[%c0_118, %c0_119] : memref<128x512xbf16, #tpu.memory_space<vmem>>, vector<128x512xbf16>
    %cst_120 = arith.constant dense<0.000000e+00> : vector<8x512xf32>
    %461 = tpu.matmul %459, %460, %cst_120 {dimension_numbers = #tpu.dot_dimension_numbers<[1], [0], [0], [1], [0, 0, 1, 1], [], []>} : vector<8x128xbf16>, vector<128x512xbf16>, vector<8x512xf32> -> vector<8x512xf32>
    %462 = arith.truncf %452 : vector<8x128xf32> to vector<8x128xbf16>
    %c0_121 = arith.constant 0 : index
    %c0_122 = arith.constant 0 : index
    %463 = vector.load %arg3[%c0_121, %c0_122] : memref<128x512xbf16, #tpu.memory_space<vmem>>, vector<128x512xbf16>
    %cst_123 = arith.constant dense<0.000000e+00> : vector<8x512xf32>
    %464 = tpu.matmul %462, %463, %cst_123 {dimension_numbers = #tpu.dot_dimension_numbers<[1], [0], [0], [1], [0, 0, 1, 1], [], []>} : vector<8x128xbf16>, vector<128x512xbf16>, vector<8x512xf32> -> vector<8x512xf32>
    %c8_i32_124 = arith.constant 8 : i32
    %465 = arith.muli %c6_i32, %c8_i32_124 : i32
    %466 = tpu.assume_multiple %465, 8 : i32
    %c7_i32_125 = arith.constant 7 : i32
    %467 = arith.subi %c7_i32_125, %c6_i32 : i32
    %c8_i32_126 = arith.constant 8 : i32
    %468 = arith.muli %467, %c8_i32_126 : i32
    %469 = tpu.assume_multiple %468, 8 : i32
    %470 = arith.index_cast %466 : i32 to index
    %c0_127 = arith.constant 0 : index
    %471 = vector.load %arg10[%470, %c0_127] : memref<64x1024xbf16, #tpu.memory_space<vmem>>, vector<8x512xbf16>
    %472 = arith.extf %471 : vector<8x512xbf16> to vector<8x512xf32>
    %473 = arith.addf %461, %472 : vector<8x512xf32>
    %474 = arith.index_cast %469 : i32 to index
    %c512_128 = arith.constant 512 : index
    %475 = vector.load %arg10[%474, %c512_128] : memref<64x1024xbf16, #tpu.memory_space<vmem>>, vector<8x512xbf16>
    %476 = arith.extf %475 : vector<8x512xbf16> to vector<8x512xf32>
    %477 = arith.addf %464, %476 : vector<8x512xf32>
    %478 = vector.extract_strided_slice %473 {offsets = [0, 0], sizes = [8, 128], strides = [1, 1]} : vector<8x512xf32> to vector<8x128xf32>
    %479 = arith.negf %478 : vector<8x128xf32>
    %480 = math.exp %479 : vector<8x128xf32>
    %cst_129 = arith.constant 1.000000e+00 : f32
    %481 = vector.broadcast %cst_129 : f32 to vector<8x128xf32>
    %482 = arith.addf %481, %480 : vector<8x128xf32>
    %483 = arith.divf %481, %482 : vector<8x128xf32>
    %484 = vector.extract_strided_slice %473 {offsets = [0, 128], sizes = [8, 128], strides = [1, 1]} : vector<8x512xf32> to vector<8x128xf32>
    %485 = arith.negf %484 : vector<8x128xf32>
    %486 = math.exp %485 : vector<8x128xf32>
    %cst_130 = arith.constant 1.000000e+00 : f32
    %487 = vector.broadcast %cst_130 : f32 to vector<8x128xf32>
    %488 = arith.addf %487, %486 : vector<8x128xf32>
    %489 = arith.divf %487, %488 : vector<8x128xf32>
    %490 = vector.extract_strided_slice %473 {offsets = [0, 256], sizes = [8, 128], strides = [1, 1]} : vector<8x512xf32> to vector<8x128xf32>
    %491 = math.tanh %490 : vector<8x128xf32>
    %492 = vector.extract_strided_slice %473 {offsets = [0, 384], sizes = [8, 128], strides = [1, 1]} : vector<8x512xf32> to vector<8x128xf32>
    %493 = arith.negf %492 : vector<8x128xf32>
    %494 = math.exp %493 : vector<8x128xf32>
    %cst_131 = arith.constant 1.000000e+00 : f32
    %495 = vector.broadcast %cst_131 : f32 to vector<8x128xf32>
    %496 = arith.addf %495, %494 : vector<8x128xf32>
    %497 = arith.divf %495, %496 : vector<8x128xf32>
    %498 = arith.mulf %489, %425 : vector<8x128xf32>
    %499 = arith.mulf %483, %491 : vector<8x128xf32>
    %500 = arith.addf %498, %499 : vector<8x128xf32>
    %501 = math.tanh %500 : vector<8x128xf32>
    %502 = arith.mulf %497, %501 : vector<8x128xf32>
    %503 = vector.extract_strided_slice %477 {offsets = [0, 0], sizes = [8, 128], strides = [1, 1]} : vector<8x512xf32> to vector<8x128xf32>
    %504 = arith.negf %503 : vector<8x128xf32>
    %505 = math.exp %504 : vector<8x128xf32>
    %cst_132 = arith.constant 1.000000e+00 : f32
    %506 = vector.broadcast %cst_132 : f32 to vector<8x128xf32>
    %507 = arith.addf %506, %505 : vector<8x128xf32>
    %508 = arith.divf %506, %507 : vector<8x128xf32>
    %509 = vector.extract_strided_slice %477 {offsets = [0, 128], sizes = [8, 128], strides = [1, 1]} : vector<8x512xf32> to vector<8x128xf32>
    %510 = arith.negf %509 : vector<8x128xf32>
    %511 = math.exp %510 : vector<8x128xf32>
    %cst_133 = arith.constant 1.000000e+00 : f32
    %512 = vector.broadcast %cst_133 : f32 to vector<8x128xf32>
    %513 = arith.addf %512, %511 : vector<8x128xf32>
    %514 = arith.divf %512, %513 : vector<8x128xf32>
    %515 = vector.extract_strided_slice %477 {offsets = [0, 256], sizes = [8, 128], strides = [1, 1]} : vector<8x512xf32> to vector<8x128xf32>
    %516 = math.tanh %515 : vector<8x128xf32>
    %517 = vector.extract_strided_slice %477 {offsets = [0, 384], sizes = [8, 128], strides = [1, 1]} : vector<8x512xf32> to vector<8x128xf32>
    %518 = arith.negf %517 : vector<8x128xf32>
    %519 = math.exp %518 : vector<8x128xf32>
    %cst_134 = arith.constant 1.000000e+00 : f32
    %520 = vector.broadcast %cst_134 : f32 to vector<8x128xf32>
    %521 = arith.addf %520, %519 : vector<8x128xf32>
    %522 = arith.divf %520, %521 : vector<8x128xf32>
    %523 = arith.mulf %514, %450 : vector<8x128xf32>
    %524 = arith.mulf %508, %516 : vector<8x128xf32>
    %525 = arith.addf %523, %524 : vector<8x128xf32>
    %526 = math.tanh %525 : vector<8x128xf32>
    %527 = arith.mulf %522, %526 : vector<8x128xf32>
    %528 = arith.truncf %502 : vector<8x128xf32> to vector<8x128xbf16>
    %529 = arith.index_cast %466 : i32 to index
    %c0_135 = arith.constant 0 : index
    %530 = vector.load %arg11[%529, %c0_135] : memref<64x256xbf16, #tpu.memory_space<vmem>>, vector<8x128xbf16>
    tpu.vector_store %arg11[%529, %c0_135], %528 {strides = array<i32>} : memref<64x256xbf16, #tpu.memory_space<vmem>>, vector<8x128xbf16>,
    %531 = arith.truncf %527 : vector<8x128xf32> to vector<8x128xbf16>
    %532 = arith.index_cast %469 : i32 to index
    %c128_136 = arith.constant 128 : index
    %533 = vector.load %arg11[%532, %c128_136] : memref<64x256xbf16, #tpu.memory_space<vmem>>, vector<8x128xbf16>
    tpu.vector_store %arg11[%532, %c128_136], %531 {strides = array<i32>} : memref<64x256xbf16, #tpu.memory_space<vmem>>, vector<8x128xbf16>,
    %c7_i32_137 = arith.constant 7 : i32
    %534 = arith.truncf %502 : vector<8x128xf32> to vector<8x128xbf16>
    %c0_138 = arith.constant 0 : index
    %c0_139 = arith.constant 0 : index
    %535 = vector.load %arg2[%c0_138, %c0_139] : memref<128x512xbf16, #tpu.memory_space<vmem>>, vector<128x512xbf16>
    %cst_140 = arith.constant dense<0.000000e+00> : vector<8x512xf32>
    %536 = tpu.matmul %534, %535, %cst_140 {dimension_numbers = #tpu.dot_dimension_numbers<[1], [0], [0], [1], [0, 0, 1, 1], [], []>} : vector<8x128xbf16>, vector<128x512xbf16>, vector<8x512xf32> -> vector<8x512xf32>
    %537 = arith.truncf %527 : vector<8x128xf32> to vector<8x128xbf16>
    %c0_141 = arith.constant 0 : index
    %c0_142 = arith.constant 0 : index
    %538 = vector.load %arg3[%c0_141, %c0_142] : memref<128x512xbf16, #tpu.memory_space<vmem>>, vector<128x512xbf16>
    %cst_143 = arith.constant dense<0.000000e+00> : vector<8x512xf32>
    %539 = tpu.matmul %537, %538, %cst_143 {dimension_numbers = #tpu.dot_dimension_numbers<[1], [0], [0], [1], [0, 0, 1, 1], [], []>} : vector<8x128xbf16>, vector<128x512xbf16>, vector<8x512xf32> -> vector<8x512xf32>
    %c8_i32_144 = arith.constant 8 : i32
    %540 = arith.muli %c7_i32_137, %c8_i32_144 : i32
    %541 = tpu.assume_multiple %540, 8 : i32
    %c7_i32_145 = arith.constant 7 : i32
    %542 = arith.subi %c7_i32_145, %c7_i32_137 : i32
    %c8_i32_146 = arith.constant 8 : i32
    %543 = arith.muli %542, %c8_i32_146 : i32
    %544 = tpu.assume_multiple %543, 8 : i32
    %545 = arith.index_cast %541 : i32 to index
    %c0_147 = arith.constant 0 : index
    %546 = vector.load %arg10[%545, %c0_147] : memref<64x1024xbf16, #tpu.memory_space<vmem>>, vector<8x512xbf16>
    %547 = arith.extf %546 : vector<8x512xbf16> to vector<8x512xf32>
    %548 = arith.addf %536, %547 : vector<8x512xf32>
    %549 = arith.index_cast %544 : i32 to index
    %c512_148 = arith.constant 512 : index
    %550 = vector.load %arg10[%549, %c512_148] : memref<64x1024xbf16, #tpu.memory_space<vmem>>, vector<8x512xbf16>
    %551 = arith.extf %550 : vector<8x512xbf16> to vector<8x512xf32>
    %552 = arith.addf %539, %551 : vector<8x512xf32>
    %553 = vector.extract_strided_slice %548 {offsets = [0, 0], sizes = [8, 128], strides = [1, 1]} : vector<8x512xf32> to vector<8x128xf32>
    %554 = arith.negf %553 : vector<8x128xf32>
    %555 = math.exp %554 : vector<8x128xf32>
    %cst_149 = arith.constant 1.000000e+00 : f32
    %556 = vector.broadcast %cst_149 : f32 to vector<8x128xf32>
    %557 = arith.addf %556, %555 : vector<8x128xf32>
    %558 = arith.divf %556, %557 : vector<8x128xf32>
    %559 = vector.extract_strided_slice %548 {offsets = [0, 128], sizes = [8, 128], strides = [1, 1]} : vector<8x512xf32> to vector<8x128xf32>
    %560 = arith.negf %559 : vector<8x128xf32>
    %561 = math.exp %560 : vector<8x128xf32>
    %cst_150 = arith.constant 1.000000e+00 : f32
    %562 = vector.broadcast %cst_150 : f32 to vector<8x128xf32>
    %563 = arith.addf %562, %561 : vector<8x128xf32>
    %564 = arith.divf %562, %563 : vector<8x128xf32>
    %565 = vector.extract_strided_slice %548 {offsets = [0, 256], sizes = [8, 128], strides = [1, 1]} : vector<8x512xf32> to vector<8x128xf32>
    %566 = math.tanh %565 : vector<8x128xf32>
    %567 = vector.extract_strided_slice %548 {offsets = [0, 384], sizes = [8, 128], strides = [1, 1]} : vector<8x512xf32> to vector<8x128xf32>
    %568 = arith.negf %567 : vector<8x128xf32>
    %569 = math.exp %568 : vector<8x128xf32>
    %cst_151 = arith.constant 1.000000e+00 : f32
    %570 = vector.broadcast %cst_151 : f32 to vector<8x128xf32>
    %571 = arith.addf %570, %569 : vector<8x128xf32>
    %572 = arith.divf %570, %571 : vector<8x128xf32>
    %573 = arith.mulf %564, %500 : vector<8x128xf32>
    %574 = arith.mulf %558, %566 : vector<8x128xf32>
    %575 = arith.addf %573, %574 : vector<8x128xf32>
    %576 = math.tanh %575 : vector<8x128xf32>
    %577 = arith.mulf %572, %576 : vector<8x128xf32>
    %578 = vector.extract_strided_slice %552 {offsets = [0, 0], sizes = [8, 128], strides = [1, 1]} : vector<8x512xf32> to vector<8x128xf32>
    %579 = arith.negf %578 : vector<8x128xf32>
    %580 = math.exp %579 : vector<8x128xf32>
    %cst_152 = arith.constant 1.000000e+00 : f32
    %581 = vector.broadcast %cst_152 : f32 to vector<8x128xf32>
    %582 = arith.addf %581, %580 : vector<8x128xf32>
    %583 = arith.divf %581, %582 : vector<8x128xf32>
    %584 = vector.extract_strided_slice %552 {offsets = [0, 128], sizes = [8, 128], strides = [1, 1]} : vector<8x512xf32> to vector<8x128xf32>
    %585 = arith.negf %584 : vector<8x128xf32>
    %586 = math.exp %585 : vector<8x128xf32>
    %cst_153 = arith.constant 1.000000e+00 : f32
    %587 = vector.broadcast %cst_153 : f32 to vector<8x128xf32>
    %588 = arith.addf %587, %586 : vector<8x128xf32>
    %589 = arith.divf %587, %588 : vector<8x128xf32>
    %590 = vector.extract_strided_slice %552 {offsets = [0, 256], sizes = [8, 128], strides = [1, 1]} : vector<8x512xf32> to vector<8x128xf32>
    %591 = math.tanh %590 : vector<8x128xf32>
    %592 = vector.extract_strided_slice %552 {offsets = [0, 384], sizes = [8, 128], strides = [1, 1]} : vector<8x512xf32> to vector<8x128xf32>
    %593 = arith.negf %592 : vector<8x128xf32>
    %594 = math.exp %593 : vector<8x128xf32>
    %cst_154 = arith.constant 1.000000e+00 : f32
    %595 = vector.broadcast %cst_154 : f32 to vector<8x128xf32>
    %596 = arith.addf %595, %594 : vector<8x128xf32>
    %597 = arith.divf %595, %596 : vector<8x128xf32>
    %598 = arith.mulf %589, %525 : vector<8x128xf32>
    %599 = arith.mulf %583, %591 : vector<8x128xf32>
    %600 = arith.addf %598, %599 : vector<8x128xf32>
    %601 = math.tanh %600 : vector<8x128xf32>
    %602 = arith.mulf %597, %601 : vector<8x128xf32>
    %603 = arith.truncf %577 : vector<8x128xf32> to vector<8x128xbf16>
    %604 = arith.index_cast %541 : i32 to index
    %c0_155 = arith.constant 0 : index
    %605 = vector.load %arg11[%604, %c0_155] : memref<64x256xbf16, #tpu.memory_space<vmem>>, vector<8x128xbf16>
    tpu.vector_store %arg11[%604, %c0_155], %603 {strides = array<i32>} : memref<64x256xbf16, #tpu.memory_space<vmem>>, vector<8x128xbf16>,
    %606 = arith.truncf %602 : vector<8x128xf32> to vector<8x128xbf16>
    %607 = arith.index_cast %544 : i32 to index
    %c128_156 = arith.constant 128 : index
    %608 = vector.load %arg11[%607, %c128_156] : memref<64x256xbf16, #tpu.memory_space<vmem>>, vector<8x128xbf16>
    tpu.vector_store %arg11[%607, %c128_156], %606 {strides = array<i32>} : memref<64x256xbf16, #tpu.memory_space<vmem>>, vector<8x128xbf16>,
    %c8_i32_157 = arith.constant 8 : i32
    %c0_158 = arith.constant 0 : index
    %c0_159 = arith.constant 0 : index
    %609 = vector.load %arg11[%c0_158, %c0_159] : memref<64x256xbf16, #tpu.memory_space<vmem>>, vector<64x256xbf16>
    %c0_160 = arith.constant 0 : index
    %c0_161 = arith.constant 0 : index
    %610 = vector.load %arg5[%c0_160, %c0_161] : memref<256x1024xbf16, #tpu.memory_space<vmem>>, vector<256x1024xbf16>
    %cst_162 = arith.constant dense<0.000000e+00> : vector<64x1024xf32>
    %611 = tpu.matmul %609, %610, %cst_162 {dimension_numbers = #tpu.dot_dimension_numbers<[1], [0], [0], [1], [0, 0, 1, 1], [], []>} : vector<64x256xbf16>, vector<256x1024xbf16>, vector<64x1024xf32> -> vector<64x1024xf32>
    %c0_163 = arith.constant 0 : index
    %c0_164 = arith.constant 0 : index
    %612 = vector.load %arg8[%c0_163, %c0_164] : memref<1x1024xf32, #tpu.memory_space<vmem>>, vector<1x1024xf32>
    %613 = vector.broadcast %612 : vector<1x1024xf32> to vector<64x1024xf32>
    %614 = arith.addf %611, %613 : vector<64x1024xf32>
    %615 = arith.truncf %614 : vector<64x1024xf32> to vector<64x1024xbf16>
    %c0_165 = arith.constant 0 : index
    %c0_166 = arith.constant 0 : index
    %616 = vector.load %arg10[%c0_165, %c0_166] : memref<64x1024xbf16, #tpu.memory_space<vmem>>, vector<64x1024xbf16>
    tpu.vector_store %arg10[%c0_165, %c0_166], %615 {strides = array<i32>} : memref<64x1024xbf16, #tpu.memory_space<vmem>>, vector<64x1024xbf16>,
    %cst_167 = arith.constant 0.000000e+00 : f32
    %617 = vector.broadcast %cst_167 : f32 to vector<8x128xf32>
    %c0_i32_168 = arith.constant 0 : i32
    %618 = arith.truncf %617 : vector<8x128xf32> to vector<8x128xbf16>
    %c0_169 = arith.constant 0 : index
    %c0_170 = arith.constant 0 : index
    %619 = vector.load %arg6[%c0_169, %c0_170] : memref<128x512xbf16, #tpu.memory_space<vmem>>, vector<128x512xbf16>
    %cst_171 = arith.constant dense<0.000000e+00> : vector<8x512xf32>
    %620 = tpu.matmul %618, %619, %cst_171 {dimension_numbers = #tpu.dot_dimension_numbers<[1], [0], [0], [1], [0, 0, 1, 1], [], []>} : vector<8x128xbf16>, vector<128x512xbf16>, vector<8x512xf32> -> vector<8x512xf32>
    %621 = arith.truncf %617 : vector<8x128xf32> to vector<8x128xbf16>
    %c0_172 = arith.constant 0 : index
    %c0_173 = arith.constant 0 : index
    %622 = vector.load %arg7[%c0_172, %c0_173] : memref<128x512xbf16, #tpu.memory_space<vmem>>, vector<128x512xbf16>
    %cst_174 = arith.constant dense<0.000000e+00> : vector<8x512xf32>
    %623 = tpu.matmul %621, %622, %cst_174 {dimension_numbers = #tpu.dot_dimension_numbers<[1], [0], [0], [1], [0, 0, 1, 1], [], []>} : vector<8x128xbf16>, vector<128x512xbf16>, vector<8x512xf32> -> vector<8x512xf32>
    %c8_i32_175 = arith.constant 8 : i32
    %624 = arith.muli %c0_i32_168, %c8_i32_175 : i32
    %625 = tpu.assume_multiple %624, 8 : i32
    %c7_i32_176 = arith.constant 7 : i32
    %626 = arith.subi %c7_i32_176, %c0_i32_168 : i32
    %c8_i32_177 = arith.constant 8 : i32
    %627 = arith.muli %626, %c8_i32_177 : i32
    %628 = tpu.assume_multiple %627, 8 : i32
    %629 = arith.index_cast %625 : i32 to index
    %c0_178 = arith.constant 0 : index
    %630 = vector.load %arg10[%629, %c0_178] : memref<64x1024xbf16, #tpu.memory_space<vmem>>, vector<8x512xbf16>
    %631 = arith.extf %630 : vector<8x512xbf16> to vector<8x512xf32>
    %632 = arith.addf %620, %631 : vector<8x512xf32>
    %633 = arith.index_cast %628 : i32 to index
    %c512_179 = arith.constant 512 : index
    %634 = vector.load %arg10[%633, %c512_179] : memref<64x1024xbf16, #tpu.memory_space<vmem>>, vector<8x512xbf16>
    %635 = arith.extf %634 : vector<8x512xbf16> to vector<8x512xf32>
    %636 = arith.addf %623, %635 : vector<8x512xf32>
    %637 = vector.extract_strided_slice %632 {offsets = [0, 0], sizes = [8, 128], strides = [1, 1]} : vector<8x512xf32> to vector<8x128xf32>
    %638 = arith.negf %637 : vector<8x128xf32>
    %639 = math.exp %638 : vector<8x128xf32>
    %cst_180 = arith.constant 1.000000e+00 : f32
    %640 = vector.broadcast %cst_180 : f32 to vector<8x128xf32>
    %641 = arith.addf %640, %639 : vector<8x128xf32>
    %642 = arith.divf %640, %641 : vector<8x128xf32>
    %643 = vector.extract_strided_slice %632 {offsets = [0, 128], sizes = [8, 128], strides = [1, 1]} : vector<8x512xf32> to vector<8x128xf32>
    %644 = arith.negf %643 : vector<8x128xf32>
    %645 = math.exp %644 : vector<8x128xf32>
    %cst_181 = arith.constant 1.000000e+00 : f32
    %646 = vector.broadcast %cst_181 : f32 to vector<8x128xf32>
    %647 = arith.addf %646, %645 : vector<8x128xf32>
    %648 = arith.divf %646, %647 : vector<8x128xf32>
    %649 = vector.extract_strided_slice %632 {offsets = [0, 256], sizes = [8, 128], strides = [1, 1]} : vector<8x512xf32> to vector<8x128xf32>
    %650 = math.tanh %649 : vector<8x128xf32>
    %651 = vector.extract_strided_slice %632 {offsets = [0, 384], sizes = [8, 128], strides = [1, 1]} : vector<8x512xf32> to vector<8x128xf32>
    %652 = arith.negf %651 : vector<8x128xf32>
    %653 = math.exp %652 : vector<8x128xf32>
    %cst_182 = arith.constant 1.000000e+00 : f32
    %654 = vector.broadcast %cst_182 : f32 to vector<8x128xf32>
    %655 = arith.addf %654, %653 : vector<8x128xf32>
    %656 = arith.divf %654, %655 : vector<8x128xf32>
    %657 = arith.mulf %648, %617 : vector<8x128xf32>
    %658 = arith.mulf %642, %650 : vector<8x128xf32>
    %659 = arith.addf %657, %658 : vector<8x128xf32>
    %660 = math.tanh %659 : vector<8x128xf32>
    %661 = arith.mulf %656, %660 : vector<8x128xf32>
    %662 = vector.extract_strided_slice %636 {offsets = [0, 0], sizes = [8, 128], strides = [1, 1]} : vector<8x512xf32> to vector<8x128xf32>
    %663 = arith.negf %662 : vector<8x128xf32>
    %664 = math.exp %663 : vector<8x128xf32>
    %cst_183 = arith.constant 1.000000e+00 : f32
    %665 = vector.broadcast %cst_183 : f32 to vector<8x128xf32>
    %666 = arith.addf %665, %664 : vector<8x128xf32>
    %667 = arith.divf %665, %666 : vector<8x128xf32>
    %668 = vector.extract_strided_slice %636 {offsets = [0, 128], sizes = [8, 128], strides = [1, 1]} : vector<8x512xf32> to vector<8x128xf32>
    %669 = arith.negf %668 : vector<8x128xf32>
    %670 = math.exp %669 : vector<8x128xf32>
    %cst_184 = arith.constant 1.000000e+00 : f32
    %671 = vector.broadcast %cst_184 : f32 to vector<8x128xf32>
    %672 = arith.addf %671, %670 : vector<8x128xf32>
    %673 = arith.divf %671, %672 : vector<8x128xf32>
    %674 = vector.extract_strided_slice %636 {offsets = [0, 256], sizes = [8, 128], strides = [1, 1]} : vector<8x512xf32> to vector<8x128xf32>
    %675 = math.tanh %674 : vector<8x128xf32>
    %676 = vector.extract_strided_slice %636 {offsets = [0, 384], sizes = [8, 128], strides = [1, 1]} : vector<8x512xf32> to vector<8x128xf32>
    %677 = arith.negf %676 : vector<8x128xf32>
    %678 = math.exp %677 : vector<8x128xf32>
    %cst_185 = arith.constant 1.000000e+00 : f32
    %679 = vector.broadcast %cst_185 : f32 to vector<8x128xf32>
    %680 = arith.addf %679, %678 : vector<8x128xf32>
    %681 = arith.divf %679, %680 : vector<8x128xf32>
    %682 = arith.mulf %673, %617 : vector<8x128xf32>
    %683 = arith.mulf %667, %675 : vector<8x128xf32>
    %684 = arith.addf %682, %683 : vector<8x128xf32>
    %685 = math.tanh %684 : vector<8x128xf32>
    %686 = arith.mulf %681, %685 : vector<8x128xf32>
    %c1_i32_186 = arith.constant 1 : i32
    %687 = arith.truncf %661 : vector<8x128xf32> to vector<8x128xbf16>
    %c0_187 = arith.constant 0 : index
    %c0_188 = arith.constant 0 : index
    %688 = vector.load %arg6[%c0_187, %c0_188] : memref<128x512xbf16, #tpu.memory_space<vmem>>, vector<128x512xbf16>
    %cst_189 = arith.constant dense<0.000000e+00> : vector<8x512xf32>
    %689 = tpu.matmul %687, %688, %cst_189 {dimension_numbers = #tpu.dot_dimension_numbers<[1], [0], [0], [1], [0, 0, 1, 1], [], []>} : vector<8x128xbf16>, vector<128x512xbf16>, vector<8x512xf32> -> vector<8x512xf32>
    %690 = arith.truncf %686 : vector<8x128xf32> to vector<8x128xbf16>
    %c0_190 = arith.constant 0 : index
    %c0_191 = arith.constant 0 : index
    %691 = vector.load %arg7[%c0_190, %c0_191] : memref<128x512xbf16, #tpu.memory_space<vmem>>, vector<128x512xbf16>
    %cst_192 = arith.constant dense<0.000000e+00> : vector<8x512xf32>
    %692 = tpu.matmul %690, %691, %cst_192 {dimension_numbers = #tpu.dot_dimension_numbers<[1], [0], [0], [1], [0, 0, 1, 1], [], []>} : vector<8x128xbf16>, vector<128x512xbf16>, vector<8x512xf32> -> vector<8x512xf32>
    %c8_i32_193 = arith.constant 8 : i32
    %693 = arith.muli %c1_i32_186, %c8_i32_193 : i32
    %694 = tpu.assume_multiple %693, 8 : i32
    %c7_i32_194 = arith.constant 7 : i32
    %695 = arith.subi %c7_i32_194, %c1_i32_186 : i32
    %c8_i32_195 = arith.constant 8 : i32
    %696 = arith.muli %695, %c8_i32_195 : i32
    %697 = tpu.assume_multiple %696, 8 : i32
    %698 = arith.index_cast %694 : i32 to index
    %c0_196 = arith.constant 0 : index
    %699 = vector.load %arg10[%698, %c0_196] : memref<64x1024xbf16, #tpu.memory_space<vmem>>, vector<8x512xbf16>
    %700 = arith.extf %699 : vector<8x512xbf16> to vector<8x512xf32>
    %701 = arith.addf %689, %700 : vector<8x512xf32>
    %702 = arith.index_cast %697 : i32 to index
    %c512_197 = arith.constant 512 : index
    %703 = vector.load %arg10[%702, %c512_197] : memref<64x1024xbf16, #tpu.memory_space<vmem>>, vector<8x512xbf16>
    %704 = arith.extf %703 : vector<8x512xbf16> to vector<8x512xf32>
    %705 = arith.addf %692, %704 : vector<8x512xf32>
    %706 = vector.extract_strided_slice %701 {offsets = [0, 0], sizes = [8, 128], strides = [1, 1]} : vector<8x512xf32> to vector<8x128xf32>
    %707 = arith.negf %706 : vector<8x128xf32>
    %708 = math.exp %707 : vector<8x128xf32>
    %cst_198 = arith.constant 1.000000e+00 : f32
    %709 = vector.broadcast %cst_198 : f32 to vector<8x128xf32>
    %710 = arith.addf %709, %708 : vector<8x128xf32>
    %711 = arith.divf %709, %710 : vector<8x128xf32>
    %712 = vector.extract_strided_slice %701 {offsets = [0, 128], sizes = [8, 128], strides = [1, 1]} : vector<8x512xf32> to vector<8x128xf32>
    %713 = arith.negf %712 : vector<8x128xf32>
    %714 = math.exp %713 : vector<8x128xf32>
    %cst_199 = arith.constant 1.000000e+00 : f32
    %715 = vector.broadcast %cst_199 : f32 to vector<8x128xf32>
    %716 = arith.addf %715, %714 : vector<8x128xf32>
    %717 = arith.divf %715, %716 : vector<8x128xf32>
    %718 = vector.extract_strided_slice %701 {offsets = [0, 256], sizes = [8, 128], strides = [1, 1]} : vector<8x512xf32> to vector<8x128xf32>
    %719 = math.tanh %718 : vector<8x128xf32>
    %720 = vector.extract_strided_slice %701 {offsets = [0, 384], sizes = [8, 128], strides = [1, 1]} : vector<8x512xf32> to vector<8x128xf32>
    %721 = arith.negf %720 : vector<8x128xf32>
    %722 = math.exp %721 : vector<8x128xf32>
    %cst_200 = arith.constant 1.000000e+00 : f32
    %723 = vector.broadcast %cst_200 : f32 to vector<8x128xf32>
    %724 = arith.addf %723, %722 : vector<8x128xf32>
    %725 = arith.divf %723, %724 : vector<8x128xf32>
    %726 = arith.mulf %717, %659 : vector<8x128xf32>
    %727 = arith.mulf %711, %719 : vector<8x128xf32>
    %728 = arith.addf %726, %727 : vector<8x128xf32>
    %729 = math.tanh %728 : vector<8x128xf32>
    %730 = arith.mulf %725, %729 : vector<8x128xf32>
    %731 = vector.extract_strided_slice %705 {offsets = [0, 0], sizes = [8, 128], strides = [1, 1]} : vector<8x512xf32> to vector<8x128xf32>
    %732 = arith.negf %731 : vector<8x128xf32>
    %733 = math.exp %732 : vector<8x128xf32>
    %cst_201 = arith.constant 1.000000e+00 : f32
    %734 = vector.broadcast %cst_201 : f32 to vector<8x128xf32>
    %735 = arith.addf %734, %733 : vector<8x128xf32>
    %736 = arith.divf %734, %735 : vector<8x128xf32>
    %737 = vector.extract_strided_slice %705 {offsets = [0, 128], sizes = [8, 128], strides = [1, 1]} : vector<8x512xf32> to vector<8x128xf32>
    %738 = arith.negf %737 : vector<8x128xf32>
    %739 = math.exp %738 : vector<8x128xf32>
    %cst_202 = arith.constant 1.000000e+00 : f32
    %740 = vector.broadcast %cst_202 : f32 to vector<8x128xf32>
    %741 = arith.addf %740, %739 : vector<8x128xf32>
    %742 = arith.divf %740, %741 : vector<8x128xf32>
    %743 = vector.extract_strided_slice %705 {offsets = [0, 256], sizes = [8, 128], strides = [1, 1]} : vector<8x512xf32> to vector<8x128xf32>
    %744 = math.tanh %743 : vector<8x128xf32>
    %745 = vector.extract_strided_slice %705 {offsets = [0, 384], sizes = [8, 128], strides = [1, 1]} : vector<8x512xf32> to vector<8x128xf32>
    %746 = arith.negf %745 : vector<8x128xf32>
    %747 = math.exp %746 : vector<8x128xf32>
    %cst_203 = arith.constant 1.000000e+00 : f32
    %748 = vector.broadcast %cst_203 : f32 to vector<8x128xf32>
    %749 = arith.addf %748, %747 : vector<8x128xf32>
    %750 = arith.divf %748, %749 : vector<8x128xf32>
    %751 = arith.mulf %742, %684 : vector<8x128xf32>
    %752 = arith.mulf %736, %744 : vector<8x128xf32>
    %753 = arith.addf %751, %752 : vector<8x128xf32>
    %754 = math.tanh %753 : vector<8x128xf32>
    %755 = arith.mulf %750, %754 : vector<8x128xf32>
    %c2_i32_204 = arith.constant 2 : i32
    %756 = arith.truncf %730 : vector<8x128xf32> to vector<8x128xbf16>
    %c0_205 = arith.constant 0 : index
    %c0_206 = arith.constant 0 : index
    %757 = vector.load %arg6[%c0_205, %c0_206] : memref<128x512xbf16, #tpu.memory_space<vmem>>, vector<128x512xbf16>
    %cst_207 = arith.constant dense<0.000000e+00> : vector<8x512xf32>
    %758 = tpu.matmul %756, %757, %cst_207 {dimension_numbers = #tpu.dot_dimension_numbers<[1], [0], [0], [1], [0, 0, 1, 1], [], []>} : vector<8x128xbf16>, vector<128x512xbf16>, vector<8x512xf32> -> vector<8x512xf32>
    %759 = arith.truncf %755 : vector<8x128xf32> to vector<8x128xbf16>
    %c0_208 = arith.constant 0 : index
    %c0_209 = arith.constant 0 : index
    %760 = vector.load %arg7[%c0_208, %c0_209] : memref<128x512xbf16, #tpu.memory_space<vmem>>, vector<128x512xbf16>
    %cst_210 = arith.constant dense<0.000000e+00> : vector<8x512xf32>
    %761 = tpu.matmul %759, %760, %cst_210 {dimension_numbers = #tpu.dot_dimension_numbers<[1], [0], [0], [1], [0, 0, 1, 1], [], []>} : vector<8x128xbf16>, vector<128x512xbf16>, vector<8x512xf32> -> vector<8x512xf32>
    %c8_i32_211 = arith.constant 8 : i32
    %762 = arith.muli %c2_i32_204, %c8_i32_211 : i32
    %763 = tpu.assume_multiple %762, 8 : i32
    %c7_i32_212 = arith.constant 7 : i32
    %764 = arith.subi %c7_i32_212, %c2_i32_204 : i32
    %c8_i32_213 = arith.constant 8 : i32
    %765 = arith.muli %764, %c8_i32_213 : i32
    %766 = tpu.assume_multiple %765, 8 : i32
    %767 = arith.index_cast %763 : i32 to index
    %c0_214 = arith.constant 0 : index
    %768 = vector.load %arg10[%767, %c0_214] : memref<64x1024xbf16, #tpu.memory_space<vmem>>, vector<8x512xbf16>
    %769 = arith.extf %768 : vector<8x512xbf16> to vector<8x512xf32>
    %770 = arith.addf %758, %769 : vector<8x512xf32>
    %771 = arith.index_cast %766 : i32 to index
    %c512_215 = arith.constant 512 : index
    %772 = vector.load %arg10[%771, %c512_215] : memref<64x1024xbf16, #tpu.memory_space<vmem>>, vector<8x512xbf16>
    %773 = arith.extf %772 : vector<8x512xbf16> to vector<8x512xf32>
    %774 = arith.addf %761, %773 : vector<8x512xf32>
    %775 = vector.extract_strided_slice %770 {offsets = [0, 0], sizes = [8, 128], strides = [1, 1]} : vector<8x512xf32> to vector<8x128xf32>
    %776 = arith.negf %775 : vector<8x128xf32>
    %777 = math.exp %776 : vector<8x128xf32>
    %cst_216 = arith.constant 1.000000e+00 : f32
    %778 = vector.broadcast %cst_216 : f32 to vector<8x128xf32>
    %779 = arith.addf %778, %777 : vector<8x128xf32>
    %780 = arith.divf %778, %779 : vector<8x128xf32>
    %781 = vector.extract_strided_slice %770 {offsets = [0, 128], sizes = [8, 128], strides = [1, 1]} : vector<8x512xf32> to vector<8x128xf32>
    %782 = arith.negf %781 : vector<8x128xf32>
    %783 = math.exp %782 : vector<8x128xf32>
    %cst_217 = arith.constant 1.000000e+00 : f32
    %784 = vector.broadcast %cst_217 : f32 to vector<8x128xf32>
    %785 = arith.addf %784, %783 : vector<8x128xf32>
    %786 = arith.divf %784, %785 : vector<8x128xf32>
    %787 = vector.extract_strided_slice %770 {offsets = [0, 256], sizes = [8, 128], strides = [1, 1]} : vector<8x512xf32> to vector<8x128xf32>
    %788 = math.tanh %787 : vector<8x128xf32>
    %789 = vector.extract_strided_slice %770 {offsets = [0, 384], sizes = [8, 128], strides = [1, 1]} : vector<8x512xf32> to vector<8x128xf32>
    %790 = arith.negf %789 : vector<8x128xf32>
    %791 = math.exp %790 : vector<8x128xf32>
    %cst_218 = arith.constant 1.000000e+00 : f32
    %792 = vector.broadcast %cst_218 : f32 to vector<8x128xf32>
    %793 = arith.addf %792, %791 : vector<8x128xf32>
    %794 = arith.divf %792, %793 : vector<8x128xf32>
    %795 = arith.mulf %786, %728 : vector<8x128xf32>
    %796 = arith.mulf %780, %788 : vector<8x128xf32>
    %797 = arith.addf %795, %796 : vector<8x128xf32>
    %798 = math.tanh %797 : vector<8x128xf32>
    %799 = arith.mulf %794, %798 : vector<8x128xf32>
    %800 = vector.extract_strided_slice %774 {offsets = [0, 0], sizes = [8, 128], strides = [1, 1]} : vector<8x512xf32> to vector<8x128xf32>
    %801 = arith.negf %800 : vector<8x128xf32>
    %802 = math.exp %801 : vector<8x128xf32>
    %cst_219 = arith.constant 1.000000e+00 : f32
    %803 = vector.broadcast %cst_219 : f32 to vector<8x128xf32>
    %804 = arith.addf %803, %802 : vector<8x128xf32>
    %805 = arith.divf %803, %804 : vector<8x128xf32>
    %806 = vector.extract_strided_slice %774 {offsets = [0, 128], sizes = [8, 128], strides = [1, 1]} : vector<8x512xf32> to vector<8x128xf32>
    %807 = arith.negf %806 : vector<8x128xf32>
    %808 = math.exp %807 : vector<8x128xf32>
    %cst_220 = arith.constant 1.000000e+00 : f32
    %809 = vector.broadcast %cst_220 : f32 to vector<8x128xf32>
    %810 = arith.addf %809, %808 : vector<8x128xf32>
    %811 = arith.divf %809, %810 : vector<8x128xf32>
    %812 = vector.extract_strided_slice %774 {offsets = [0, 256], sizes = [8, 128], strides = [1, 1]} : vector<8x512xf32> to vector<8x128xf32>
    %813 = math.tanh %812 : vector<8x128xf32>
    %814 = vector.extract_strided_slice %774 {offsets = [0, 384], sizes = [8, 128], strides = [1, 1]} : vector<8x512xf32> to vector<8x128xf32>
    %815 = arith.negf %814 : vector<8x128xf32>
    %816 = math.exp %815 : vector<8x128xf32>
    %cst_221 = arith.constant 1.000000e+00 : f32
    %817 = vector.broadcast %cst_221 : f32 to vector<8x128xf32>
    %818 = arith.addf %817, %816 : vector<8x128xf32>
    %819 = arith.divf %817, %818 : vector<8x128xf32>
    %820 = arith.mulf %811, %753 : vector<8x128xf32>
    %821 = arith.mulf %805, %813 : vector<8x128xf32>
    %822 = arith.addf %820, %821 : vector<8x128xf32>
    %823 = math.tanh %822 : vector<8x128xf32>
    %824 = arith.mulf %819, %823 : vector<8x128xf32>
    %c3_i32_222 = arith.constant 3 : i32
    %825 = arith.truncf %799 : vector<8x128xf32> to vector<8x128xbf16>
    %c0_223 = arith.constant 0 : index
    %c0_224 = arith.constant 0 : index
    %826 = vector.load %arg6[%c0_223, %c0_224] : memref<128x512xbf16, #tpu.memory_space<vmem>>, vector<128x512xbf16>
    %cst_225 = arith.constant dense<0.000000e+00> : vector<8x512xf32>
    %827 = tpu.matmul %825, %826, %cst_225 {dimension_numbers = #tpu.dot_dimension_numbers<[1], [0], [0], [1], [0, 0, 1, 1], [], []>} : vector<8x128xbf16>, vector<128x512xbf16>, vector<8x512xf32> -> vector<8x512xf32>
    %828 = arith.truncf %824 : vector<8x128xf32> to vector<8x128xbf16>
    %c0_226 = arith.constant 0 : index
    %c0_227 = arith.constant 0 : index
    %829 = vector.load %arg7[%c0_226, %c0_227] : memref<128x512xbf16, #tpu.memory_space<vmem>>, vector<128x512xbf16>
    %cst_228 = arith.constant dense<0.000000e+00> : vector<8x512xf32>
    %830 = tpu.matmul %828, %829, %cst_228 {dimension_numbers = #tpu.dot_dimension_numbers<[1], [0], [0], [1], [0, 0, 1, 1], [], []>} : vector<8x128xbf16>, vector<128x512xbf16>, vector<8x512xf32> -> vector<8x512xf32>
    %c8_i32_229 = arith.constant 8 : i32
    %831 = arith.muli %c3_i32_222, %c8_i32_229 : i32
    %832 = tpu.assume_multiple %831, 8 : i32
    %c7_i32_230 = arith.constant 7 : i32
    %833 = arith.subi %c7_i32_230, %c3_i32_222 : i32
    %c8_i32_231 = arith.constant 8 : i32
    %834 = arith.muli %833, %c8_i32_231 : i32
    %835 = tpu.assume_multiple %834, 8 : i32
    %836 = arith.index_cast %832 : i32 to index
    %c0_232 = arith.constant 0 : index
    %837 = vector.load %arg10[%836, %c0_232] : memref<64x1024xbf16, #tpu.memory_space<vmem>>, vector<8x512xbf16>
    %838 = arith.extf %837 : vector<8x512xbf16> to vector<8x512xf32>
    %839 = arith.addf %827, %838 : vector<8x512xf32>
    %840 = arith.index_cast %835 : i32 to index
    %c512_233 = arith.constant 512 : index
    %841 = vector.load %arg10[%840, %c512_233] : memref<64x1024xbf16, #tpu.memory_space<vmem>>, vector<8x512xbf16>
    %842 = arith.extf %841 : vector<8x512xbf16> to vector<8x512xf32>
    %843 = arith.addf %830, %842 : vector<8x512xf32>
    %844 = vector.extract_strided_slice %839 {offsets = [0, 0], sizes = [8, 128], strides = [1, 1]} : vector<8x512xf32> to vector<8x128xf32>
    %845 = arith.negf %844 : vector<8x128xf32>
    %846 = math.exp %845 : vector<8x128xf32>
    %cst_234 = arith.constant 1.000000e+00 : f32
    %847 = vector.broadcast %cst_234 : f32 to vector<8x128xf32>
    %848 = arith.addf %847, %846 : vector<8x128xf32>
    %849 = arith.divf %847, %848 : vector<8x128xf32>
    %850 = vector.extract_strided_slice %839 {offsets = [0, 128], sizes = [8, 128], strides = [1, 1]} : vector<8x512xf32> to vector<8x128xf32>
    %851 = arith.negf %850 : vector<8x128xf32>
    %852 = math.exp %851 : vector<8x128xf32>
    %cst_235 = arith.constant 1.000000e+00 : f32
    %853 = vector.broadcast %cst_235 : f32 to vector<8x128xf32>
    %854 = arith.addf %853, %852 : vector<8x128xf32>
    %855 = arith.divf %853, %854 : vector<8x128xf32>
    %856 = vector.extract_strided_slice %839 {offsets = [0, 256], sizes = [8, 128], strides = [1, 1]} : vector<8x512xf32> to vector<8x128xf32>
    %857 = math.tanh %856 : vector<8x128xf32>
    %858 = vector.extract_strided_slice %839 {offsets = [0, 384], sizes = [8, 128], strides = [1, 1]} : vector<8x512xf32> to vector<8x128xf32>
    %859 = arith.negf %858 : vector<8x128xf32>
    %860 = math.exp %859 : vector<8x128xf32>
    %cst_236 = arith.constant 1.000000e+00 : f32
    %861 = vector.broadcast %cst_236 : f32 to vector<8x128xf32>
    %862 = arith.addf %861, %860 : vector<8x128xf32>
    %863 = arith.divf %861, %862 : vector<8x128xf32>
    %864 = arith.mulf %855, %797 : vector<8x128xf32>
    %865 = arith.mulf %849, %857 : vector<8x128xf32>
    %866 = arith.addf %864, %865 : vector<8x128xf32>
    %867 = math.tanh %866 : vector<8x128xf32>
    %868 = arith.mulf %863, %867 : vector<8x128xf32>
    %869 = vector.extract_strided_slice %843 {offsets = [0, 0], sizes = [8, 128], strides = [1, 1]} : vector<8x512xf32> to vector<8x128xf32>
    %870 = arith.negf %869 : vector<8x128xf32>
    %871 = math.exp %870 : vector<8x128xf32>
    %cst_237 = arith.constant 1.000000e+00 : f32
    %872 = vector.broadcast %cst_237 : f32 to vector<8x128xf32>
    %873 = arith.addf %872, %871 : vector<8x128xf32>
    %874 = arith.divf %872, %873 : vector<8x128xf32>
    %875 = vector.extract_strided_slice %843 {offsets = [0, 128], sizes = [8, 128], strides = [1, 1]} : vector<8x512xf32> to vector<8x128xf32>
    %876 = arith.negf %875 : vector<8x128xf32>
    %877 = math.exp %876 : vector<8x128xf32>
    %cst_238 = arith.constant 1.000000e+00 : f32
    %878 = vector.broadcast %cst_238 : f32 to vector<8x128xf32>
    %879 = arith.addf %878, %877 : vector<8x128xf32>
    %880 = arith.divf %878, %879 : vector<8x128xf32>
    %881 = vector.extract_strided_slice %843 {offsets = [0, 256], sizes = [8, 128], strides = [1, 1]} : vector<8x512xf32> to vector<8x128xf32>
    %882 = math.tanh %881 : vector<8x128xf32>
    %883 = vector.extract_strided_slice %843 {offsets = [0, 384], sizes = [8, 128], strides = [1, 1]} : vector<8x512xf32> to vector<8x128xf32>
    %884 = arith.negf %883 : vector<8x128xf32>
    %885 = math.exp %884 : vector<8x128xf32>
    %cst_239 = arith.constant 1.000000e+00 : f32
    %886 = vector.broadcast %cst_239 : f32 to vector<8x128xf32>
    %887 = arith.addf %886, %885 : vector<8x128xf32>
    %888 = arith.divf %886, %887 : vector<8x128xf32>
    %889 = arith.mulf %880, %822 : vector<8x128xf32>
    %890 = arith.mulf %874, %882 : vector<8x128xf32>
    %891 = arith.addf %889, %890 : vector<8x128xf32>
    %892 = math.tanh %891 : vector<8x128xf32>
    %893 = arith.mulf %888, %892 : vector<8x128xf32>
    %c4_i32_240 = arith.constant 4 : i32
    %894 = arith.truncf %868 : vector<8x128xf32> to vector<8x128xbf16>
    %c0_241 = arith.constant 0 : index
    %c0_242 = arith.constant 0 : index
    %895 = vector.load %arg6[%c0_241, %c0_242] : memref<128x512xbf16, #tpu.memory_space<vmem>>, vector<128x512xbf16>
    %cst_243 = arith.constant dense<0.000000e+00> : vector<8x512xf32>
    %896 = tpu.matmul %894, %895, %cst_243 {dimension_numbers = #tpu.dot_dimension_numbers<[1], [0], [0], [1], [0, 0, 1, 1], [], []>} : vector<8x128xbf16>, vector<128x512xbf16>, vector<8x512xf32> -> vector<8x512xf32>
    %897 = arith.truncf %893 : vector<8x128xf32> to vector<8x128xbf16>
    %c0_244 = arith.constant 0 : index
    %c0_245 = arith.constant 0 : index
    %898 = vector.load %arg7[%c0_244, %c0_245] : memref<128x512xbf16, #tpu.memory_space<vmem>>, vector<128x512xbf16>
    %cst_246 = arith.constant dense<0.000000e+00> : vector<8x512xf32>
    %899 = tpu.matmul %897, %898, %cst_246 {dimension_numbers = #tpu.dot_dimension_numbers<[1], [0], [0], [1], [0, 0, 1, 1], [], []>} : vector<8x128xbf16>, vector<128x512xbf16>, vector<8x512xf32> -> vector<8x512xf32>
    %c8_i32_247 = arith.constant 8 : i32
    %900 = arith.muli %c4_i32_240, %c8_i32_247 : i32
    %901 = tpu.assume_multiple %900, 8 : i32
    %c7_i32_248 = arith.constant 7 : i32
    %902 = arith.subi %c7_i32_248, %c4_i32_240 : i32
    %c8_i32_249 = arith.constant 8 : i32
    %903 = arith.muli %902, %c8_i32_249 : i32
    %904 = tpu.assume_multiple %903, 8 : i32
    %905 = arith.index_cast %901 : i32 to index
    %c0_250 = arith.constant 0 : index
    %906 = vector.load %arg10[%905, %c0_250] : memref<64x1024xbf16, #tpu.memory_space<vmem>>, vector<8x512xbf16>
    %907 = arith.extf %906 : vector<8x512xbf16> to vector<8x512xf32>
    %908 = arith.addf %896, %907 : vector<8x512xf32>
    %909 = arith.index_cast %904 : i32 to index
    %c512_251 = arith.constant 512 : index
    %910 = vector.load %arg10[%909, %c512_251] : memref<64x1024xbf16, #tpu.memory_space<vmem>>, vector<8x512xbf16>
    %911 = arith.extf %910 : vector<8x512xbf16> to vector<8x512xf32>
    %912 = arith.addf %899, %911 : vector<8x512xf32>
    %913 = vector.extract_strided_slice %908 {offsets = [0, 0], sizes = [8, 128], strides = [1, 1]} : vector<8x512xf32> to vector<8x128xf32>
    %914 = arith.negf %913 : vector<8x128xf32>
    %915 = math.exp %914 : vector<8x128xf32>
    %cst_252 = arith.constant 1.000000e+00 : f32
    %916 = vector.broadcast %cst_252 : f32 to vector<8x128xf32>
    %917 = arith.addf %916, %915 : vector<8x128xf32>
    %918 = arith.divf %916, %917 : vector<8x128xf32>
    %919 = vector.extract_strided_slice %908 {offsets = [0, 128], sizes = [8, 128], strides = [1, 1]} : vector<8x512xf32> to vector<8x128xf32>
    %920 = arith.negf %919 : vector<8x128xf32>
    %921 = math.exp %920 : vector<8x128xf32>
    %cst_253 = arith.constant 1.000000e+00 : f32
    %922 = vector.broadcast %cst_253 : f32 to vector<8x128xf32>
    %923 = arith.addf %922, %921 : vector<8x128xf32>
    %924 = arith.divf %922, %923 : vector<8x128xf32>
    %925 = vector.extract_strided_slice %908 {offsets = [0, 256], sizes = [8, 128], strides = [1, 1]} : vector<8x512xf32> to vector<8x128xf32>
    %926 = math.tanh %925 : vector<8x128xf32>
    %927 = vector.extract_strided_slice %908 {offsets = [0, 384], sizes = [8, 128], strides = [1, 1]} : vector<8x512xf32> to vector<8x128xf32>
    %928 = arith.negf %927 : vector<8x128xf32>
    %929 = math.exp %928 : vector<8x128xf32>
    %cst_254 = arith.constant 1.000000e+00 : f32
    %930 = vector.broadcast %cst_254 : f32 to vector<8x128xf32>
    %931 = arith.addf %930, %929 : vector<8x128xf32>
    %932 = arith.divf %930, %931 : vector<8x128xf32>
    %933 = arith.mulf %924, %866 : vector<8x128xf32>
    %934 = arith.mulf %918, %926 : vector<8x128xf32>
    %935 = arith.addf %933, %934 : vector<8x128xf32>
    %936 = math.tanh %935 : vector<8x128xf32>
    %937 = arith.mulf %932, %936 : vector<8x128xf32>
    %938 = vector.extract_strided_slice %912 {offsets = [0, 0], sizes = [8, 128], strides = [1, 1]} : vector<8x512xf32> to vector<8x128xf32>
    %939 = arith.negf %938 : vector<8x128xf32>
    %940 = math.exp %939 : vector<8x128xf32>
    %cst_255 = arith.constant 1.000000e+00 : f32
    %941 = vector.broadcast %cst_255 : f32 to vector<8x128xf32>
    %942 = arith.addf %941, %940 : vector<8x128xf32>
    %943 = arith.divf %941, %942 : vector<8x128xf32>
    %944 = vector.extract_strided_slice %912 {offsets = [0, 128], sizes = [8, 128], strides = [1, 1]} : vector<8x512xf32> to vector<8x128xf32>
    %945 = arith.negf %944 : vector<8x128xf32>
    %946 = math.exp %945 : vector<8x128xf32>
    %cst_256 = arith.constant 1.000000e+00 : f32
    %947 = vector.broadcast %cst_256 : f32 to vector<8x128xf32>
    %948 = arith.addf %947, %946 : vector<8x128xf32>
    %949 = arith.divf %947, %948 : vector<8x128xf32>
    %950 = vector.extract_strided_slice %912 {offsets = [0, 256], sizes = [8, 128], strides = [1, 1]} : vector<8x512xf32> to vector<8x128xf32>
    %951 = math.tanh %950 : vector<8x128xf32>
    %952 = vector.extract_strided_slice %912 {offsets = [0, 384], sizes = [8, 128], strides = [1, 1]} : vector<8x512xf32> to vector<8x128xf32>
    %953 = arith.negf %952 : vector<8x128xf32>
    %954 = math.exp %953 : vector<8x128xf32>
    %cst_257 = arith.constant 1.000000e+00 : f32
    %955 = vector.broadcast %cst_257 : f32 to vector<8x128xf32>
    %956 = arith.addf %955, %954 : vector<8x128xf32>
    %957 = arith.divf %955, %956 : vector<8x128xf32>
    %958 = arith.mulf %949, %891 : vector<8x128xf32>
    %959 = arith.mulf %943, %951 : vector<8x128xf32>
    %960 = arith.addf %958, %959 : vector<8x128xf32>
    %961 = math.tanh %960 : vector<8x128xf32>
    %962 = arith.mulf %957, %961 : vector<8x128xf32>
    %c5_i32_258 = arith.constant 5 : i32
    %963 = arith.truncf %937 : vector<8x128xf32> to vector<8x128xbf16>
    %c0_259 = arith.constant 0 : index
    %c0_260 = arith.constant 0 : index
    %964 = vector.load %arg6[%c0_259, %c0_260] : memref<128x512xbf16, #tpu.memory_space<vmem>>, vector<128x512xbf16>
    %cst_261 = arith.constant dense<0.000000e+00> : vector<8x512xf32>
    %965 = tpu.matmul %963, %964, %cst_261 {dimension_numbers = #tpu.dot_dimension_numbers<[1], [0], [0], [1], [0, 0, 1, 1], [], []>} : vector<8x128xbf16>, vector<128x512xbf16>, vector<8x512xf32> -> vector<8x512xf32>
    %966 = arith.truncf %962 : vector<8x128xf32> to vector<8x128xbf16>
    %c0_262 = arith.constant 0 : index
    %c0_263 = arith.constant 0 : index
    %967 = vector.load %arg7[%c0_262, %c0_263] : memref<128x512xbf16, #tpu.memory_space<vmem>>, vector<128x512xbf16>
    %cst_264 = arith.constant dense<0.000000e+00> : vector<8x512xf32>
    %968 = tpu.matmul %966, %967, %cst_264 {dimension_numbers = #tpu.dot_dimension_numbers<[1], [0], [0], [1], [0, 0, 1, 1], [], []>} : vector<8x128xbf16>, vector<128x512xbf16>, vector<8x512xf32> -> vector<8x512xf32>
    %c8_i32_265 = arith.constant 8 : i32
    %969 = arith.muli %c5_i32_258, %c8_i32_265 : i32
    %970 = tpu.assume_multiple %969, 8 : i32
    %c7_i32_266 = arith.constant 7 : i32
    %971 = arith.subi %c7_i32_266, %c5_i32_258 : i32
    %c8_i32_267 = arith.constant 8 : i32
    %972 = arith.muli %971, %c8_i32_267 : i32
    %973 = tpu.assume_multiple %972, 8 : i32
    %974 = arith.index_cast %970 : i32 to index
    %c0_268 = arith.constant 0 : index
    %975 = vector.load %arg10[%974, %c0_268] : memref<64x1024xbf16, #tpu.memory_space<vmem>>, vector<8x512xbf16>
    %976 = arith.extf %975 : vector<8x512xbf16> to vector<8x512xf32>
    %977 = arith.addf %965, %976 : vector<8x512xf32>
    %978 = arith.index_cast %973 : i32 to index
    %c512_269 = arith.constant 512 : index
    %979 = vector.load %arg10[%978, %c512_269] : memref<64x1024xbf16, #tpu.memory_space<vmem>>, vector<8x512xbf16>
    %980 = arith.extf %979 : vector<8x512xbf16> to vector<8x512xf32>
    %981 = arith.addf %968, %980 : vector<8x512xf32>
    %982 = vector.extract_strided_slice %977 {offsets = [0, 0], sizes = [8, 128], strides = [1, 1]} : vector<8x512xf32> to vector<8x128xf32>
    %983 = arith.negf %982 : vector<8x128xf32>
    %984 = math.exp %983 : vector<8x128xf32>
    %cst_270 = arith.constant 1.000000e+00 : f32
    %985 = vector.broadcast %cst_270 : f32 to vector<8x128xf32>
    %986 = arith.addf %985, %984 : vector<8x128xf32>
    %987 = arith.divf %985, %986 : vector<8x128xf32>
    %988 = vector.extract_strided_slice %977 {offsets = [0, 128], sizes = [8, 128], strides = [1, 1]} : vector<8x512xf32> to vector<8x128xf32>
    %989 = arith.negf %988 : vector<8x128xf32>
    %990 = math.exp %989 : vector<8x128xf32>
    %cst_271 = arith.constant 1.000000e+00 : f32
    %991 = vector.broadcast %cst_271 : f32 to vector<8x128xf32>
    %992 = arith.addf %991, %990 : vector<8x128xf32>
    %993 = arith.divf %991, %992 : vector<8x128xf32>
    %994 = vector.extract_strided_slice %977 {offsets = [0, 256], sizes = [8, 128], strides = [1, 1]} : vector<8x512xf32> to vector<8x128xf32>
    %995 = math.tanh %994 : vector<8x128xf32>
    %996 = vector.extract_strided_slice %977 {offsets = [0, 384], sizes = [8, 128], strides = [1, 1]} : vector<8x512xf32> to vector<8x128xf32>
    %997 = arith.negf %996 : vector<8x128xf32>
    %998 = math.exp %997 : vector<8x128xf32>
    %cst_272 = arith.constant 1.000000e+00 : f32
    %999 = vector.broadcast %cst_272 : f32 to vector<8x128xf32>
    %1000 = arith.addf %999, %998 : vector<8x128xf32>
    %1001 = arith.divf %999, %1000 : vector<8x128xf32>
    %1002 = arith.mulf %993, %935 : vector<8x128xf32>
    %1003 = arith.mulf %987, %995 : vector<8x128xf32>
    %1004 = arith.addf %1002, %1003 : vector<8x128xf32>
    %1005 = math.tanh %1004 : vector<8x128xf32>
    %1006 = arith.mulf %1001, %1005 : vector<8x128xf32>
    %1007 = vector.extract_strided_slice %981 {offsets = [0, 0], sizes = [8, 128], strides = [1, 1]} : vector<8x512xf32> to vector<8x128xf32>
    %1008 = arith.negf %1007 : vector<8x128xf32>
    %1009 = math.exp %1008 : vector<8x128xf32>
    %cst_273 = arith.constant 1.000000e+00 : f32
    %1010 = vector.broadcast %cst_273 : f32 to vector<8x128xf32>
    %1011 = arith.addf %1010, %1009 : vector<8x128xf32>
    %1012 = arith.divf %1010, %1011 : vector<8x128xf32>
    %1013 = vector.extract_strided_slice %981 {offsets = [0, 128], sizes = [8, 128], strides = [1, 1]} : vector<8x512xf32> to vector<8x128xf32>
    %1014 = arith.negf %1013 : vector<8x128xf32>
    %1015 = math.exp %1014 : vector<8x128xf32>
    %cst_274 = arith.constant 1.000000e+00 : f32
    %1016 = vector.broadcast %cst_274 : f32 to vector<8x128xf32>
    %1017 = arith.addf %1016, %1015 : vector<8x128xf32>
    %1018 = arith.divf %1016, %1017 : vector<8x128xf32>
    %1019 = vector.extract_strided_slice %981 {offsets = [0, 256], sizes = [8, 128], strides = [1, 1]} : vector<8x512xf32> to vector<8x128xf32>
    %1020 = math.tanh %1019 : vector<8x128xf32>
    %1021 = vector.extract_strided_slice %981 {offsets = [0, 384], sizes = [8, 128], strides = [1, 1]} : vector<8x512xf32> to vector<8x128xf32>
    %1022 = arith.negf %1021 : vector<8x128xf32>
    %1023 = math.exp %1022 : vector<8x128xf32>
    %cst_275 = arith.constant 1.000000e+00 : f32
    %1024 = vector.broadcast %cst_275 : f32 to vector<8x128xf32>
    %1025 = arith.addf %1024, %1023 : vector<8x128xf32>
    %1026 = arith.divf %1024, %1025 : vector<8x128xf32>
    %1027 = arith.mulf %1018, %960 : vector<8x128xf32>
    %1028 = arith.mulf %1012, %1020 : vector<8x128xf32>
    %1029 = arith.addf %1027, %1028 : vector<8x128xf32>
    %1030 = math.tanh %1029 : vector<8x128xf32>
    %1031 = arith.mulf %1026, %1030 : vector<8x128xf32>
    %c6_i32_276 = arith.constant 6 : i32
    %1032 = arith.truncf %1006 : vector<8x128xf32> to vector<8x128xbf16>
    %c0_277 = arith.constant 0 : index
    %c0_278 = arith.constant 0 : index
    %1033 = vector.load %arg6[%c0_277, %c0_278] : memref<128x512xbf16, #tpu.memory_space<vmem>>, vector<128x512xbf16>
    %cst_279 = arith.constant dense<0.000000e+00> : vector<8x512xf32>
    %1034 = tpu.matmul %1032, %1033, %cst_279 {dimension_numbers = #tpu.dot_dimension_numbers<[1], [0], [0], [1], [0, 0, 1, 1], [], []>} : vector<8x128xbf16>, vector<128x512xbf16>, vector<8x512xf32> -> vector<8x512xf32>
    %1035 = arith.truncf %1031 : vector<8x128xf32> to vector<8x128xbf16>
    %c0_280 = arith.constant 0 : index
    %c0_281 = arith.constant 0 : index
    %1036 = vector.load %arg7[%c0_280, %c0_281] : memref<128x512xbf16, #tpu.memory_space<vmem>>, vector<128x512xbf16>
    %cst_282 = arith.constant dense<0.000000e+00> : vector<8x512xf32>
    %1037 = tpu.matmul %1035, %1036, %cst_282 {dimension_numbers = #tpu.dot_dimension_numbers<[1], [0], [0], [1], [0, 0, 1, 1], [], []>} : vector<8x128xbf16>, vector<128x512xbf16>, vector<8x512xf32> -> vector<8x512xf32>
    %c8_i32_283 = arith.constant 8 : i32
    %1038 = arith.muli %c6_i32_276, %c8_i32_283 : i32
    %1039 = tpu.assume_multiple %1038, 8 : i32
    %c7_i32_284 = arith.constant 7 : i32
    %1040 = arith.subi %c7_i32_284, %c6_i32_276 : i32
    %c8_i32_285 = arith.constant 8 : i32
    %1041 = arith.muli %1040, %c8_i32_285 : i32
    %1042 = tpu.assume_multiple %1041, 8 : i32
    %1043 = arith.index_cast %1039 : i32 to index
    %c0_286 = arith.constant 0 : index
    %1044 = vector.load %arg10[%1043, %c0_286] : memref<64x1024xbf16, #tpu.memory_space<vmem>>, vector<8x512xbf16>
    %1045 = arith.extf %1044 : vector<8x512xbf16> to vector<8x512xf32>
    %1046 = arith.addf %1034, %1045 : vector<8x512xf32>
    %1047 = arith.index_cast %1042 : i32 to index
    %c512_287 = arith.constant 512 : index
    %1048 = vector.load %arg10[%1047, %c512_287] : memref<64x1024xbf16, #tpu.memory_space<vmem>>, vector<8x512xbf16>
    %1049 = arith.extf %1048 : vector<8x512xbf16> to vector<8x512xf32>
    %1050 = arith.addf %1037, %1049 : vector<8x512xf32>
    %1051 = vector.extract_strided_slice %1046 {offsets = [0, 0], sizes = [8, 128], strides = [1, 1]} : vector<8x512xf32> to vector<8x128xf32>
    %1052 = arith.negf %1051 : vector<8x128xf32>
    %1053 = math.exp %1052 : vector<8x128xf32>
    %cst_288 = arith.constant 1.000000e+00 : f32
    %1054 = vector.broadcast %cst_288 : f32 to vector<8x128xf32>
    %1055 = arith.addf %1054, %1053 : vector<8x128xf32>
    %1056 = arith.divf %1054, %1055 : vector<8x128xf32>
    %1057 = vector.extract_strided_slice %1046 {offsets = [0, 128], sizes = [8, 128], strides = [1, 1]} : vector<8x512xf32> to vector<8x128xf32>
    %1058 = arith.negf %1057 : vector<8x128xf32>
    %1059 = math.exp %1058 : vector<8x128xf32>
    %cst_289 = arith.constant 1.000000e+00 : f32
    %1060 = vector.broadcast %cst_289 : f32 to vector<8x128xf32>
    %1061 = arith.addf %1060, %1059 : vector<8x128xf32>
    %1062 = arith.divf %1060, %1061 : vector<8x128xf32>
    %1063 = vector.extract_strided_slice %1046 {offsets = [0, 256], sizes = [8, 128], strides = [1, 1]} : vector<8x512xf32> to vector<8x128xf32>
    %1064 = math.tanh %1063 : vector<8x128xf32>
    %1065 = vector.extract_strided_slice %1046 {offsets = [0, 384], sizes = [8, 128], strides = [1, 1]} : vector<8x512xf32> to vector<8x128xf32>
    %1066 = arith.negf %1065 : vector<8x128xf32>
    %1067 = math.exp %1066 : vector<8x128xf32>
    %cst_290 = arith.constant 1.000000e+00 : f32
    %1068 = vector.broadcast %cst_290 : f32 to vector<8x128xf32>
    %1069 = arith.addf %1068, %1067 : vector<8x128xf32>
    %1070 = arith.divf %1068, %1069 : vector<8x128xf32>
    %1071 = arith.mulf %1062, %1004 : vector<8x128xf32>
    %1072 = arith.mulf %1056, %1064 : vector<8x128xf32>
    %1073 = arith.addf %1071, %1072 : vector<8x128xf32>
    %1074 = math.tanh %1073 : vector<8x128xf32>
    %1075 = arith.mulf %1070, %1074 : vector<8x128xf32>
    %1076 = vector.extract_strided_slice %1050 {offsets = [0, 0], sizes = [8, 128], strides = [1, 1]} : vector<8x512xf32> to vector<8x128xf32>
    %1077 = arith.negf %1076 : vector<8x128xf32>
    %1078 = math.exp %1077 : vector<8x128xf32>
    %cst_291 = arith.constant 1.000000e+00 : f32
    %1079 = vector.broadcast %cst_291 : f32 to vector<8x128xf32>
    %1080 = arith.addf %1079, %1078 : vector<8x128xf32>
    %1081 = arith.divf %1079, %1080 : vector<8x128xf32>
    %1082 = vector.extract_strided_slice %1050 {offsets = [0, 128], sizes = [8, 128], strides = [1, 1]} : vector<8x512xf32> to vector<8x128xf32>
    %1083 = arith.negf %1082 : vector<8x128xf32>
    %1084 = math.exp %1083 : vector<8x128xf32>
    %cst_292 = arith.constant 1.000000e+00 : f32
    %1085 = vector.broadcast %cst_292 : f32 to vector<8x128xf32>
    %1086 = arith.addf %1085, %1084 : vector<8x128xf32>
    %1087 = arith.divf %1085, %1086 : vector<8x128xf32>
    %1088 = vector.extract_strided_slice %1050 {offsets = [0, 256], sizes = [8, 128], strides = [1, 1]} : vector<8x512xf32> to vector<8x128xf32>
    %1089 = math.tanh %1088 : vector<8x128xf32>
    %1090 = vector.extract_strided_slice %1050 {offsets = [0, 384], sizes = [8, 128], strides = [1, 1]} : vector<8x512xf32> to vector<8x128xf32>
    %1091 = arith.negf %1090 : vector<8x128xf32>
    %1092 = math.exp %1091 : vector<8x128xf32>
    %cst_293 = arith.constant 1.000000e+00 : f32
    %1093 = vector.broadcast %cst_293 : f32 to vector<8x128xf32>
    %1094 = arith.addf %1093, %1092 : vector<8x128xf32>
    %1095 = arith.divf %1093, %1094 : vector<8x128xf32>
    %1096 = arith.mulf %1087, %1029 : vector<8x128xf32>
    %1097 = arith.mulf %1081, %1089 : vector<8x128xf32>
    %1098 = arith.addf %1096, %1097 : vector<8x128xf32>
    %1099 = math.tanh %1098 : vector<8x128xf32>
    %1100 = arith.mulf %1095, %1099 : vector<8x128xf32>
    %c7_i32_294 = arith.constant 7 : i32
    %1101 = arith.truncf %1075 : vector<8x128xf32> to vector<8x128xbf16>
    %c0_295 = arith.constant 0 : index
    %c0_296 = arith.constant 0 : index
    %1102 = vector.load %arg6[%c0_295, %c0_296] : memref<128x512xbf16, #tpu.memory_space<vmem>>, vector<128x512xbf16>
    %cst_297 = arith.constant dense<0.000000e+00> : vector<8x512xf32>
    %1103 = tpu.matmul %1101, %1102, %cst_297 {dimension_numbers = #tpu.dot_dimension_numbers<[1], [0], [0], [1], [0, 0, 1, 1], [], []>} : vector<8x128xbf16>, vector<128x512xbf16>, vector<8x512xf32> -> vector<8x512xf32>
    %1104 = arith.truncf %1100 : vector<8x128xf32> to vector<8x128xbf16>
    %c0_298 = arith.constant 0 : index
    %c0_299 = arith.constant 0 : index
    %1105 = vector.load %arg7[%c0_298, %c0_299] : memref<128x512xbf16, #tpu.memory_space<vmem>>, vector<128x512xbf16>
    %cst_300 = arith.constant dense<0.000000e+00> : vector<8x512xf32>
    %1106 = tpu.matmul %1104, %1105, %cst_300 {dimension_numbers = #tpu.dot_dimension_numbers<[1], [0], [0], [1], [0, 0, 1, 1], [], []>} : vector<8x128xbf16>, vector<128x512xbf16>, vector<8x512xf32> -> vector<8x512xf32>
    %c8_i32_301 = arith.constant 8 : i32
    %1107 = arith.muli %c7_i32_294, %c8_i32_301 : i32
    %1108 = tpu.assume_multiple %1107, 8 : i32
    %c7_i32_302 = arith.constant 7 : i32
    %1109 = arith.subi %c7_i32_302, %c7_i32_294 : i32
    %c8_i32_303 = arith.constant 8 : i32
    %1110 = arith.muli %1109, %c8_i32_303 : i32
    %1111 = tpu.assume_multiple %1110, 8 : i32
    %1112 = arith.index_cast %1108 : i32 to index
    %c0_304 = arith.constant 0 : index
    %1113 = vector.load %arg10[%1112, %c0_304] : memref<64x1024xbf16, #tpu.memory_space<vmem>>, vector<8x512xbf16>
    %1114 = arith.extf %1113 : vector<8x512xbf16> to vector<8x512xf32>
    %1115 = arith.addf %1103, %1114 : vector<8x512xf32>
    %1116 = arith.index_cast %1111 : i32 to index
    %c512_305 = arith.constant 512 : index
    %1117 = vector.load %arg10[%1116, %c512_305] : memref<64x1024xbf16, #tpu.memory_space<vmem>>, vector<8x512xbf16>
    %1118 = arith.extf %1117 : vector<8x512xbf16> to vector<8x512xf32>
    %1119 = arith.addf %1106, %1118 : vector<8x512xf32>
    %1120 = vector.extract_strided_slice %1115 {offsets = [0, 0], sizes = [8, 128], strides = [1, 1]} : vector<8x512xf32> to vector<8x128xf32>
    %1121 = arith.negf %1120 : vector<8x128xf32>
    %1122 = math.exp %1121 : vector<8x128xf32>
    %cst_306 = arith.constant 1.000000e+00 : f32
    %1123 = vector.broadcast %cst_306 : f32 to vector<8x128xf32>
    %1124 = arith.addf %1123, %1122 : vector<8x128xf32>
    %1125 = arith.divf %1123, %1124 : vector<8x128xf32>
    %1126 = vector.extract_strided_slice %1115 {offsets = [0, 128], sizes = [8, 128], strides = [1, 1]} : vector<8x512xf32> to vector<8x128xf32>
    %1127 = arith.negf %1126 : vector<8x128xf32>
    %1128 = math.exp %1127 : vector<8x128xf32>
    %cst_307 = arith.constant 1.000000e+00 : f32
    %1129 = vector.broadcast %cst_307 : f32 to vector<8x128xf32>
    %1130 = arith.addf %1129, %1128 : vector<8x128xf32>
    %1131 = arith.divf %1129, %1130 : vector<8x128xf32>
    %1132 = vector.extract_strided_slice %1115 {offsets = [0, 256], sizes = [8, 128], strides = [1, 1]} : vector<8x512xf32> to vector<8x128xf32>
    %1133 = math.tanh %1132 : vector<8x128xf32>
    %1134 = vector.extract_strided_slice %1115 {offsets = [0, 384], sizes = [8, 128], strides = [1, 1]} : vector<8x512xf32> to vector<8x128xf32>
    %1135 = arith.negf %1134 : vector<8x128xf32>
    %1136 = math.exp %1135 : vector<8x128xf32>
    %cst_308 = arith.constant 1.000000e+00 : f32
    %1137 = vector.broadcast %cst_308 : f32 to vector<8x128xf32>
    %1138 = arith.addf %1137, %1136 : vector<8x128xf32>
    %1139 = arith.divf %1137, %1138 : vector<8x128xf32>
    %1140 = arith.mulf %1131, %1073 : vector<8x128xf32>
    %1141 = arith.mulf %1125, %1133 : vector<8x128xf32>
    %1142 = arith.addf %1140, %1141 : vector<8x128xf32>
    %1143 = math.tanh %1142 : vector<8x128xf32>
    %1144 = arith.mulf %1139, %1143 : vector<8x128xf32>
    %1145 = vector.extract_strided_slice %1119 {offsets = [0, 0], sizes = [8, 128], strides = [1, 1]} : vector<8x512xf32> to vector<8x128xf32>
    %1146 = arith.negf %1145 : vector<8x128xf32>
    %1147 = math.exp %1146 : vector<8x128xf32>
    %cst_309 = arith.constant 1.000000e+00 : f32
    %1148 = vector.broadcast %cst_309 : f32 to vector<8x128xf32>
    %1149 = arith.addf %1148, %1147 : vector<8x128xf32>
    %1150 = arith.divf %1148, %1149 : vector<8x128xf32>
    %1151 = vector.extract_strided_slice %1119 {offsets = [0, 128], sizes = [8, 128], strides = [1, 1]} : vector<8x512xf32> to vector<8x128xf32>
    %1152 = arith.negf %1151 : vector<8x128xf32>
    %1153 = math.exp %1152 : vector<8x128xf32>
    %cst_310 = arith.constant 1.000000e+00 : f32
    %1154 = vector.broadcast %cst_310 : f32 to vector<8x128xf32>
    %1155 = arith.addf %1154, %1153 : vector<8x128xf32>
    %1156 = arith.divf %1154, %1155 : vector<8x128xf32>
    %1157 = vector.extract_strided_slice %1119 {offsets = [0, 256], sizes = [8, 128], strides = [1, 1]} : vector<8x512xf32> to vector<8x128xf32>
    %1158 = math.tanh %1157 : vector<8x128xf32>
    %1159 = vector.extract_strided_slice %1119 {offsets = [0, 384], sizes = [8, 128], strides = [1, 1]} : vector<8x512xf32> to vector<8x128xf32>
    %1160 = arith.negf %1159 : vector<8x128xf32>
    %1161 = math.exp %1160 : vector<8x128xf32>
    %cst_311 = arith.constant 1.000000e+00 : f32
    %1162 = vector.broadcast %cst_311 : f32 to vector<8x128xf32>
    %1163 = arith.addf %1162, %1161 : vector<8x128xf32>
    %1164 = arith.divf %1162, %1163 : vector<8x128xf32>
    %1165 = arith.mulf %1156, %1098 : vector<8x128xf32>
    %1166 = arith.mulf %1150, %1158 : vector<8x128xf32>
    %1167 = arith.addf %1165, %1166 : vector<8x128xf32>
    %1168 = math.tanh %1167 : vector<8x128xf32>
    %1169 = arith.mulf %1164, %1168 : vector<8x128xf32>
    %c8_i32_312 = arith.constant 8 : i32
    %c0_313 = arith.constant 0 : index
    %c0_314 = arith.constant 0 : index
    %1170 = vector.load %arg9[%c0_313, %c0_314] : memref<8x256xf32, #tpu.memory_space<vmem>>, vector<8x128xf32>
    tpu.vector_store %arg9[%c0_313, %c0_314], %1144 {strides = array<i32>} : memref<8x256xf32, #tpu.memory_space<vmem>>, vector<8x128xf32>,
    %c0_315 = arith.constant 0 : index
    %c128_316 = arith.constant 128 : index
    %1171 = vector.load %arg9[%c0_315, %c128_316] : memref<8x256xf32, #tpu.memory_space<vmem>>, vector<8x128xf32>
    tpu.vector_store %arg9[%c0_315, %c128_316], %1169 {strides = array<i32>} : memref<8x256xf32, #tpu.memory_space<vmem>>, vector<8x128xf32>,
    return
  }
}

</mosaic_0001>

<llo_original>
// kernel: sentiment_lstm_forward.1
$region0: #{sentiment_lstm_forward.1}
  #allocation0 [shape = 'u32[]', space=smem, size = 0x4, offset = 0x4, fixed_abs, tag = 'smem constant byte address 0x4 - core index']
  #allocation1 [shape = 'u32[144,128]{1,0:T(1,128)}', space=vmem, size = 0x12000, scoped, tag = 'internal scratch']
  #allocation2 [shape = 'bf16[64,1024]{1,0:T(8,128)(2,1)}', space=vmem, size = 0x20000, scoped, tag = 'scratch operand']
  #allocation3 [shape = 'bf16[64,256]{1,0:T(8,128)(2,1)}', space=vmem, size = 0x8000, scoped, tag = 'scratch operand']
  %s0 = inlined_call_operand.vmem [shape: bf16[64,128], index: 0, kind: input, shape index: {}]
  %s1 = inlined_call_operand.hbm [shape: bf16[128,1024], index: 1, kind: input, shape index: {}]
  %s2 = inlined_call_operand.hbm [shape: bf16[128,512], index: 2, kind: input, shape index: {}]
  %s3 = inlined_call_operand.hbm [shape: bf16[128,512], index: 3, kind: input, shape index: {}]
  %s4 = inlined_call_operand.vmem [shape: f32[1,1024], index: 4, kind: input, shape index: {}]
  %s5 = inlined_call_operand.hbm [shape: bf16[256,1024], index: 5, kind: input, shape index: {}]
  %s6 = inlined_call_operand.hbm [shape: bf16[128,512], index: 6, kind: input, shape index: {}]
  %s7 = inlined_call_operand.hbm [shape: bf16[128,512], index: 7, kind: input, shape index: {}]
  %s8 = inlined_call_operand.vmem [shape: f32[1,1024], index: 8, kind: input, shape index: {}]
  %s9 = inlined_call_operand.vmem [shape: f32[8,256], index: 9, kind: output, shape index: {}]
  %s10 = sld [smem:[#allocation0]]
  $region70: #{sentiment_lstm_forward.1} parent=0
    _
  %s12 = ssub.s32 1, %s10
  %s13 = scalar_select 0, %s12, %s10
  $region1: #{sentiment_lstm_forward.1} parent=0
    #allocation4 [shape = 'u8[262144]{0}', space=vmem, size = 0x40000, scoped, tag = 'input window, operand 1, single buffered']
    #allocation5 [shape = 's32[1]{0}', space=sflag, size = 0x4, scoped, tag = 'scoped memory for sentiment_lstm_forward.1']
    #allocation6 [shape = 'u8[131072]{0}', space=vmem, size = 0x20000, scoped, tag = 'input window, operand 2, single buffered']
    #allocation7 [shape = 's32[1]{0}', space=sflag, size = 0x4, scoped, tag = 'scoped memory for sentiment_lstm_forward.1']
    #allocation8 [shape = 'u8[131072]{0}', space=vmem, size = 0x20000, scoped, tag = 'input window, operand 3, single buffered']
    #allocation9 [shape = 'u8[524288]{0}', space=vmem, size = 0x80000, scoped, tag = 'input window, operand 5, single buffered']
    #allocation10 [shape = 's32[1]{0}', space=sflag, size = 0x4, scoped, tag = 'scoped memory for sentiment_lstm_forward.1']
    #allocation11 [shape = 'u8[131072]{0}', space=vmem, size = 0x20000, scoped, tag = 'input window, operand 6, single buffered']
    #allocation12 [shape = 'u8[131072]{0}', space=vmem, size = 0x20000, scoped, tag = 'input window, operand 7, single buffered']
    #allocation13 [shape = 's32[1]{0}', space=sflag, size = 0x4, scoped, tag = 'scoped memory for sentiment_lstm_forward.1']
    %14 = vsyncpa [#allocation5], 0
    %15 = vsyncpa [#allocation7], 0
    %16 = vsyncpa [#allocation10], 0
    %17 = vsyncpa [#allocation13], 0
    // Predicated region
    $region2: #{sentiment_lstm_forward.1} parent=1 // pred_check
      _
    $region3: #{sentiment_lstm_forward.1} parent=1 // pred_check_branch
      %19 = sbr.rel (0) target = $region5
    $region4: #{sentiment_lstm_forward.1} parent=1 // pred_region
      _
    $region5: #{sentiment_lstm_forward.1} parent=1 // pred_fallthru
      _
    // Predicated region
    $region6: #{sentiment_lstm_forward.1} parent=1 // pred_check
      _
    $region7: #{sentiment_lstm_forward.1} parent=1 // pred_check_branch
      %21 = sbr.rel (0) target = $region9
    $region8: #{sentiment_lstm_forward.1} parent=1 // pred_region
      %s23 = ssub.s32 8192, 8192
      %24 = vsyncadd [#allocation5], %s23
      %s25 = sshll.u32 [#allocation4], 4
      %s26 = int_to_ptr.vmem [resolvable:$true] %s25
      %31 = dma.hbm_to_vmem [thread:$0]  %s1, 8192, %s26, [#allocation5], 512, 512, 32
    $region9: #{sentiment_lstm_forward.1} parent=1 // pred_fallthru
      _
    // Predicated region
    $region10: #{sentiment_lstm_forward.1} parent=1 // pred_check
      _
    $region11: #{sentiment_lstm_forward.1} parent=1 // pred_check_branch
      %33 = sbr.rel (0) target = $region13
    $region12: #{sentiment_lstm_forward.1} parent=1 // pred_region
      %s35 = ssub.s32 4096, 4096
      %36 = vsyncadd [#allocation7], %s35
      %s37 = sshll.u32 [#allocation6], 4
      %s38 = int_to_ptr.vmem [resolvable:$true] %s37
      %43 = dma.hbm_to_vmem [thread:$0]  %s2, 4096, %s38, [#allocation7], 256, 256, 16
    $region13: #{sentiment_lstm_forward.1} parent=1 // pred_fallthru
      _
    // Predicated region
    $region14: #{sentiment_lstm_forward.1} parent=1 // pred_check
      _
    $region15: #{sentiment_lstm_forward.1} parent=1 // pred_check_branch
      %45 = sbr.rel (0) target = $region17
    $region16: #{sentiment_lstm_forward.1} parent=1 // pred_region
      %s47 = ssub.s32 4096, 4096
      %48 = vsyncadd [#allocation7], %s47
      %s49 = sshll.u32 [#allocation8], 4
      %s50 = int_to_ptr.vmem [resolvable:$true] %s49
      %55 = dma.hbm_to_vmem [thread:$0]  %s3, 4096, %s50, [#allocation7], 256, 256, 16
    $region17: #{sentiment_lstm_forward.1} parent=1 // pred_fallthru
      _
    // Predicated region
    $region18: #{sentiment_lstm_forward.1} parent=1 // pred_check
      _
    $region19: #{sentiment_lstm_forward.1} parent=1 // pred_check_branch
      %57 = sbr.rel (0) target = $region21
    $region20: #{sentiment_lstm_forward.1} parent=1 // pred_region
      _
    $region21: #{sentiment_lstm_forward.1} parent=1 // pred_fallthru
      _
    // Predicated region
    $region22: #{sentiment_lstm_forward.1} parent=1 // pred_check
      _
    $region23: #{sentiment_lstm_forward.1} parent=1 // pred_check_branch
      %59 = sbr.rel (0) target = $region25
    $region24: #{sentiment_lstm_forward.1} parent=1 // pred_region
      %s61 = ssub.s32 16384, 16384
      %62 = vsyncadd [#allocation10], %s61
      %s63 = sshll.u32 [#allocation9], 4
      %s64 = int_to_ptr.vmem [resolvable:$true] %s63
      %69 = dma.hbm_to_vmem [thread:$0]  %s5, 16384, %s64, [#allocation10], 512, 512, 32
    $region25: #{sentiment_lstm_forward.1} parent=1 // pred_fallthru
      _
    // Predicated region
    $region26: #{sentiment_lstm_forward.1} parent=1 // pred_check
      _
    $region27: #{sentiment_lstm_forward.1} parent=1 // pred_check_branch
      %71 = sbr.rel (0) target = $region29
    $region28: #{sentiment_lstm_forward.1} parent=1 // pred_region
      %s73 = ssub.s32 4096, 4096
      %74 = vsyncadd [#allocation10], %s73
      %s75 = sshll.u32 [#allocation11], 4
      %s76 = int_to_ptr.vmem [resolvable:$true] %s75
      %81 = dma.hbm_to_vmem [thread:$0]  %s6, 4096, %s76, [#allocation10], 256, 256, 16
    $region29: #{sentiment_lstm_forward.1} parent=1 // pred_fallthru
      _
    // Predicated region
    $region30: #{sentiment_lstm_forward.1} parent=1 // pred_check
      _
    $region31: #{sentiment_lstm_forward.1} parent=1 // pred_check_branch
      %83 = sbr.rel (0) target = $region33
    $region32: #{sentiment_lstm_forward.1} parent=1 // pred_region
      %s85 = ssub.s32 4096, 4096
      %86 = vsyncadd [#allocation13], %s85
      %s87 = sshll.u32 [#allocation12], 4
      %s88 = int_to_ptr.vmem [resolvable:$true] %s87
      %93 = dma.hbm_to_vmem [thread:$0]  %s7, 4096, %s88, [#allocation13], 256, 256, 16
    $region33: #{sentiment_lstm_forward.1} parent=1 // pred_fallthru
      _
    // Predicated region
    $region34: #{sentiment_lstm_forward.1} parent=1 // pred_check
      _
    $region35: #{sentiment_lstm_forward.1} parent=1 // pred_check_branch
      %95 = sbr.rel (0) target = $region37
    $region36: #{sentiment_lstm_forward.1} parent=1 // pred_region
      _
    $region37: #{sentiment_lstm_forward.1} parent=1 // pred_fallthru
      _
    // Predicated region
    $region38: #{sentiment_lstm_forward.1} parent=1 // pred_check
      _
    $region39: #{sentiment_lstm_forward.1} parent=1 // pred_check_branch
      %97 = sbr.rel (0) target = $region41
    $region40: #{sentiment_lstm_forward.1} parent=1 // pred_region
      %98 = dma.done [#allocation5], 8192
    $region41: #{sentiment_lstm_forward.1} parent=1 // pred_fallthru
      _
    // Predicated region
    $region42: #{sentiment_lstm_forward.1} parent=1 // pred_check
      _
    $region43: #{sentiment_lstm_forward.1} parent=1 // pred_check_branch
      %100 = sbr.rel (0) target = $region45
    $region44: #{sentiment_lstm_forward.1} parent=1 // pred_region
      %101 = dma.done [#allocation7], 4096
    $region45: #{sentiment_lstm_forward.1} parent=1 // pred_fallthru
      _
    // Predicated region
    $region46: #{sentiment_lstm_forward.1} parent=1 // pred_check
      _
    $region47: #{sentiment_lstm_forward.1} parent=1 // pred_check_branch
      %103 = sbr.rel (0) target = $region49
    $region48: #{sentiment_lstm_forward.1} parent=1 // pred_region
      %104 = dma.done [#allocation7], 4096
    $region49: #{sentiment_lstm_forward.1} parent=1 // pred_fallthru
      _
    // Predicated region
    $region50: #{sentiment_lstm_forward.1} parent=1 // pred_check
      _
    $region51: #{sentiment_lstm_forward.1} parent=1 // pred_check_branch
      %106 = sbr.rel (0) target = $region53
    $region52: #{sentiment_lstm_forward.1} parent=1 // pred_region
      %107 = dma.done [#allocation10], 16384
    $region53: #{sentiment_lstm_forward.1} parent=1 // pred_fallthru
      _
    // Predicated region
    $region54: #{sentiment_lstm_forward.1} parent=1 // pred_check
      _
    $region55: #{sentiment_lstm_forward.1} parent=1 // pred_check_branch
      %109 = sbr.rel (0) target = $region57
    $region56: #{sentiment_lstm_forward.1} parent=1 // pred_region
      %110 = dma.done [#allocation10], 4096
    $region57: #{sentiment_lstm_forward.1} parent=1 // pred_fallthru
      _
    // Predicated region
    $region58: #{sentiment_lstm_forward.1} parent=1 // pred_check
      _
    $region59: #{sentiment_lstm_forward.1} parent=1 // pred_check_branch
      %112 = sbr.rel (0) target = $region61
    $region60: #{sentiment_lstm_forward.1} parent=1 // pred_region
      %113 = dma.done [#allocation13], 4096
    $region61: #{sentiment_lstm_forward.1} parent=1 // pred_fallthru
      _
    %v115 = vld [vmem:[%s0] sm:$0xf]
    %v116 = vld [vmem:[%s0 + $0x4] sm:$0xf]
    %v117 = vld [vmem:[%s0 + $0x8] sm:$0xf]
    %v118 = vld [vmem:[%s0 + $0xc] sm:$0xf]
    %v119 = vld [vmem:[%s0 + $0x10] sm:$0xf]
    %v120 = vld [vmem:[%s0 + $0x14] sm:$0xf]
    %v121 = vld [vmem:[%s0 + $0x18] sm:$0xf]
    %v122 = vld [vmem:[%s0 + $0x1c] sm:$0xf]
    %v123 = vld [vmem:[#allocation4] sm:$0xff]
    %v124 = vld [vmem:[#allocation4 + $0x8] sm:$0xff]
    %v125 = vld [vmem:[#allocation4 + $0x10] sm:$0xff]
    %v126 = vld [vmem:[#allocation4 + $0x18] sm:$0xff]
    %v127 = vld [vmem:[#allocation4 + $0x20] sm:$0xff]
    %v128 = vld [vmem:[#allocation4 + $0x28] sm:$0xff]
    %v129 = vld [vmem:[#allocation4 + $0x30] sm:$0xff]
    %v130 = vld [vmem:[#allocation4 + $0x38] sm:$0xff]
    %v131 = vld [vmem:[#allocation4 + $0x40] sm:$0xff]
    %v132 = vld [vmem:[#allocation4 + $0x48] sm:$0xff]
    %v133 = vld [vmem:[#allocation4 + $0x50] sm:$0xff]
    %v134 = vld [vmem:[#allocation4 + $0x58] sm:$0xff]
    %v135 = vld [vmem:[#allocation4 + $0x60] sm:$0xff]
    %v136 = vld [vmem:[#allocation4 + $0x68] sm:$0xff]
    %v137 = vld [vmem:[#allocation4 + $0x70] sm:$0xff]
    %v138 = vld [vmem:[#allocation4 + $0x78] sm:$0xff]
    %v139 = vld [vmem:[#allocation4 + $0x80] sm:$0xff]
    %v140 = vld [vmem:[#allocation4 + $0x88] sm:$0xff]
    %v141 = vld [vmem:[#allocation4 + $0x90] sm:$0xff]
    %v142 = vld [vmem:[#allocation4 + $0x98] sm:$0xff]
    %v143 = vld [vmem:[#allocation4 + $0xa0] sm:$0xff]
    %v144 = vld [vmem:[#allocation4 + $0xa8] sm:$0xff]
    %v145 = vld [vmem:[#allocation4 + $0xb0] sm:$0xff]
    %v146 = vld [vmem:[#allocation4 + $0xb8] sm:$0xff]
    %v147 = vld [vmem:[#allocation4 + $0xc0] sm:$0xff]
    %v148 = vld [vmem:[#allocation4 + $0xc8] sm:$0xff]
    %v149 = vld [vmem:[#allocation4 + $0xd0] sm:$0xff]
    %v150 = vld [vmem:[#allocation4 + $0xd8] sm:$0xff]
    %v151 = vld [vmem:[#allocation4 + $0xe0] sm:$0xff]
    %v152 = vld [vmem:[#allocation4 + $0xe8] sm:$0xff]
    %v153 = vld [vmem:[#allocation4 + $0xf0] sm:$0xff]
    %v154 = vld [vmem:[#allocation4 + $0xf8] sm:$0xff]
    %v155 = vld [vmem:[#allocation4 + $0x100] sm:$0xff]
    %v156 = vld [vmem:[#allocation4 + $0x108] sm:$0xff]
    %v157 = vld [vmem:[#allocation4 + $0x110] sm:$0xff]
    %v158 = vld [vmem:[#allocation4 + $0x118] sm:$0xff]
    %v159 = vld [vmem:[#allocation4 + $0x120] sm:$0xff]
    %v160 = vld [vmem:[#allocation4 + $0x128] sm:$0xff]
    %v161 = vld [vmem:[#allocation4 + $0x130] sm:$0xff]
    %v162 = vld [vmem:[#allocation4 + $0x138] sm:$0xff]
    %v163 = vld [vmem:[#allocation4 + $0x140] sm:$0xff]
    %v164 = vld [vmem:[#allocation4 + $0x148] sm:$0xff]
    %v165 = vld [vmem:[#allocation4 + $0x150] sm:$0xff]
    %v166 = vld [vmem:[#allocation4 + $0x158] sm:$0xff]
    %v167 = vld [vmem:[#allocation4 + $0x160] sm:$0xff]
    %v168 = vld [vmem:[#allocation4 + $0x168] sm:$0xff]
    %v169 = vld [vmem:[#allocation4 + $0x170] sm:$0xff]
    %v170 = vld [vmem:[#allocation4 + $0x178] sm:$0xff]
    %v171 = vld [vmem:[#allocation4 + $0x180] sm:$0xff]
    %v172 = vld [vmem:[#allocation4 + $0x188] sm:$0xff]
    %v173 = vld [vmem:[#allocation4 + $0x190] sm:$0xff]
    %v174 = vld [vmem:[#allocation4 + $0x198] sm:$0xff]
    %v175 = vld [vmem:[#allocation4 + $0x1a0] sm:$0xff]
    %v176 = vld [vmem:[#allocation4 + $0x1a8] sm:$0xff]
    %v177 = vld [vmem:[#allocation4 + $0x1b0] sm:$0xff]
    %v178 = vld [vmem:[#allocation4 + $0x1b8] sm:$0xff]
    %v179 = vld [vmem:[#allocation4 + $0x1c0] sm:$0xff]
    %v180 = vld [vmem:[#allocation4 + $0x1c8] sm:$0xff]
    %v181 = vld [vmem:[#allocation4 + $0x1d0] sm:$0xff]
    %v182 = vld [vmem:[#allocation4 + $0x1d8] sm:$0xff]
    %v183 = vld [vmem:[#allocation4 + $0x1e0] sm:$0xff]
    %v184 = vld [vmem:[#allocation4 + $0x1e8] sm:$0xff]
    %v185 = vld [vmem:[#allocation4 + $0x1f0] sm:$0xff]
    %v186 = vld [vmem:[#allocation4 + $0x1f8] sm:$0xff]
    %v187 = vld [vmem:[%s4] sm:$0xff]
    %v189 = vlaneseq
    %v190 = vshrl.u32 %v189, 7
    %v191 = vsub.s32 0, %v190
    %v192 = vrot.slane %v187, %v191
    %v193 = vlaneseq
    %v194 = vshrl.u32 %v193, 7
    %v195 = vsub.s32 1, %v194
    %v196 = vrot.slane %v187, %v195
    %v197 = vlaneseq
    %v198 = vshrl.u32 %v197, 7
    %v199 = vsub.s32 2, %v198
    %v200 = vrot.slane %v187, %v199
    %v201 = vlaneseq
    %v202 = vshrl.u32 %v201, 7
    %v203 = vsub.s32 3, %v202
    %v204 = vrot.slane %v187, %v203
    %v205 = vlaneseq
    %v206 = vshrl.u32 %v205, 7
    %v207 = vsub.s32 4, %v206
    %v208 = vrot.slane %v187, %v207
    %v209 = vlaneseq
    %v210 = vshrl.u32 %v209, 7
    %v211 = vsub.s32 5, %v210
    %v212 = vrot.slane %v187, %v211
    %v213 = vlaneseq
    %v214 = vshrl.u32 %v213, 7
    %v215 = vsub.s32 6, %v214
    %v216 = vrot.slane %v187, %v215
    %v217 = vlaneseq
    %v218 = vshrl.u32 %v217, 7
    %v219 = vsub.s32 7, %v218
    %v220 = vrot.slane %v187, %v219
    %v237 = vunpack.c.l.b16 %v115
    %v238 = vunpack.c.l.b16 %v116
    %v239 = vunpack.c.l.b16 %v117
    %v240 = vunpack.c.l.b16 %v118
    %v241 = vunpack.c.l.b16 %v119
    %v242 = vunpack.c.l.b16 %v120
    %v243 = vunpack.c.l.b16 %v121
    %v244 = vunpack.c.l.b16 %v122
    %v245 = vpack.c.b16 %v238, %v237
    %v246 = vpack.c.b16 %v240, %v239
    %v247 = vpack.c.b16 %v242, %v241
    %v248 = vpack.c.b16 %v244, %v243
    %v317 = vunpack.c.l.b16 %v123
    %v318 = vunpack.c.h.b16 %v123
    %v319 = vunpack.c.l.b16 %v124
    %v320 = vunpack.c.h.b16 %v124
    %v321 = vunpack.c.l.b16 %v125
    %v322 = vunpack.c.h.b16 %v125
    %v323 = vunpack.c.l.b16 %v126
    %v324 = vunpack.c.h.b16 %v126
    %v325 = vunpack.c.l.b16 %v127
    %v326 = vunpack.c.h.b16 %v127
    %v327 = vunpack.c.l.b16 %v128
    %v328 = vunpack.c.h.b16 %v128
    %v329 = vunpack.c.l.b16 %v129
    %v330 = vunpack.c.h.b16 %v129
    %v331 = vunpack.c.l.b16 %v130
    %v332 = vunpack.c.h.b16 %v130
    %v333 = vunpack.c.l.b16 %v131
    %v334 = vunpack.c.h.b16 %v131
    %v335 = vunpack.c.l.b16 %v132
    %v336 = vunpack.c.h.b16 %v132
    %v337 = vunpack.c.l.b16 %v133
    %v338 = vunpack.c.h.b16 %v133
    %v339 = vunpack.c.l.b16 %v134
    %v340 = vunpack.c.h.b16 %v134
    %v341 = vunpack.c.l.b16 %v135
    %v342 = vunpack.c.h.b16 %v135
    %v343 = vunpack.c.l.b16 %v136
    %v344 = vunpack.c.h.b16 %v136
    %v345 = vunpack.c.l.b16 %v137
    %v346 = vunpack.c.h.b16 %v137
    %v347 = vunpack.c.l.b16 %v138
    %v348 = vunpack.c.h.b16 %v138
    %v349 = vunpack.c.l.b16 %v139
    %v350 = vunpack.c.h.b16 %v139
    %v351 = vunpack.c.l.b16 %v140
    %v352 = vunpack.c.h.b16 %v140
    %v353 = vunpack.c.l.b16 %v141
    %v354 = vunpack.c.h.b16 %v141
    %v355 = vunpack.c.l.b16 %v142
    %v356 = vunpack.c.h.b16 %v142
    %v357 = vunpack.c.l.b16 %v143
    %v358 = vunpack.c.h.b16 %v143
    %v359 = vunpack.c.l.b16 %v144
    %v360 = vunpack.c.h.b16 %v144
    %v361 = vunpack.c.l.b16 %v145
    %v362 = vunpack.c.h.b16 %v145
    %v363 = vunpack.c.l.b16 %v146
    %v364 = vunpack.c.h.b16 %v146
    %v365 = vunpack.c.l.b16 %v147
    %v366 = vunpack.c.h.b16 %v147
    %v367 = vunpack.c.l.b16 %v148
    %v368 = vunpack.c.h.b16 %v148
    %v369 = vunpack.c.l.b16 %v149
    %v370 = vunpack.c.h.b16 %v149
    %v371 = vunpack.c.l.b16 %v150
    %v372 = vunpack.c.h.b16 %v150
    %v373 = vunpack.c.l.b16 %v151
    %v374 = vunpack.c.h.b16 %v151
    %v375 = vunpack.c.l.b16 %v152
    %v376 = vunpack.c.h.b16 %v152
    %v377 = vunpack.c.l.b16 %v153
    %v378 = vunpack.c.h.b16 %v153
    %v379 = vunpack.c.l.b16 %v154
    %v380 = vunpack.c.h.b16 %v154
    %v381 = vunpack.c.l.b16 %v155
    %v382 = vunpack.c.h.b16 %v155
    %v383 = vunpack.c.l.b16 %v156
    %v384 = vunpack.c.h.b16 %v156
    %v385 = vunpack.c.l.b16 %v157
    %v386 = vunpack.c.h.b16 %v157
    %v387 = vunpack.c.l.b16 %v158
    %v388 = vunpack.c.h.b16 %v158
    %v389 = vunpack.c.l.b16 %v159
    %v390 = vunpack.c.h.b16 %v159
    %v391 = vunpack.c.l.b16 %v160
    %v392 = vunpack.c.h.b16 %v160
    %v393 = vunpack.c.l.b16 %v161
    %v394 = vunpack.c.h.b16 %v161
    %v395 = vunpack.c.l.b16 %v162
    %v396 = vunpack.c.h.b16 %v162
    %v397 = vunpack.c.l.b16 %v163
    %v398 = vunpack.c.h.b16 %v163
    %v399 = vunpack.c.l.b16 %v164
    %v400 = vunpack.c.h.b16 %v164
    %v401 = vunpack.c.l.b16 %v165
    %v402 = vunpack.c.h.b16 %v165
    %v403 = vunpack.c.l.b16 %v166
    %v404 = vunpack.c.h.b16 %v166
    %v405 = vunpack.c.l.b16 %v167
    %v406 = vunpack.c.h.b16 %v167
    %v407 = vunpack.c.l.b16 %v168
    %v408 = vunpack.c.h.b16 %v168
    %v409 = vunpack.c.l.b16 %v169
    %v410 = vunpack.c.h.b16 %v169
    %v411 = vunpack.c.l.b16 %v170
    %v412 = vunpack.c.h.b16 %v170
    %v413 = vunpack.c.l.b16 %v171
    %v414 = vunpack.c.h.b16 %v171
    %v415 = vunpack.c.l.b16 %v172
    %v416 = vunpack.c.h.b16 %v172
    %v417 = vunpack.c.l.b16 %v173
    %v418 = vunpack.c.h.b16 %v173
    %v419 = vunpack.c.l.b16 %v174
    %v420 = vunpack.c.h.b16 %v174
    %v421 = vunpack.c.l.b16 %v175
    %v422 = vunpack.c.h.b16 %v175
    %v423 = vunpack.c.l.b16 %v176
    %v424 = vunpack.c.h.b16 %v176
    %v425 = vunpack.c.l.b16 %v177
    %v426 = vunpack.c.h.b16 %v177
    %v427 = vunpack.c.l.b16 %v178
    %v428 = vunpack.c.h.b16 %v178
    %v429 = vunpack.c.l.b16 %v179
    %v430 = vunpack.c.h.b16 %v179
    %v431 = vunpack.c.l.b16 %v180
    %v432 = vunpack.c.h.b16 %v180
    %v433 = vunpack.c.l.b16 %v181
    %v434 = vunpack.c.h.b16 %v181
    %v435 = vunpack.c.l.b16 %v182
    %v436 = vunpack.c.h.b16 %v182
    %v437 = vunpack.c.l.b16 %v183
    %v438 = vunpack.c.h.b16 %v183
    %v439 = vunpack.c.l.b16 %v184
    %v440 = vunpack.c.h.b16 %v184
    %v441 = vunpack.c.l.b16 %v185
    %v442 = vunpack.c.h.b16 %v185
    %v443 = vunpack.c.l.b16 %v186
    %v444 = vunpack.c.h.b16 %v186
    %v445 = vpack.c.b16 %v325, %v317
    %v446 = vpack.c.b16 %v326, %v318
    %v447 = vpack.c.b16 %v327, %v319
    %v448 = vpack.c.b16 %v328, %v320
    %v449 = vpack.c.b16 %v329, %v321
    %v450 = vpack.c.b16 %v330, %v322
    %v451 = vpack.c.b16 %v331, %v323
    %v452 = vpack.c.b16 %v332, %v324
    %v453 = vpack.c.b16 %v341, %v333
    %v454 = vpack.c.b16 %v342, %v334
    %v455 = vpack.c.b16 %v343, %v335
    %v456 = vpack.c.b16 %v344, %v336
    %v457 = vpack.c.b16 %v345, %v337
    %v458 = vpack.c.b16 %v346, %v338
    %v459 = vpack.c.b16 %v347, %v339
    %v460 = vpack.c.b16 %v348, %v340
    %v461 = vpack.c.b16 %v357, %v349
    %v462 = vpack.c.b16 %v358, %v350
    %v463 = vpack.c.b16 %v359, %v351
    %v464 = vpack.c.b16 %v360, %v352
    %v465 = vpack.c.b16 %v361, %v353
    %v466 = vpack.c.b16 %v362, %v354
    %v467 = vpack.c.b16 %v363, %v355
    %v468 = vpack.c.b16 %v364, %v356
    %v469 = vpack.c.b16 %v373, %v365
    %v470 = vpack.c.b16 %v374, %v366
    %v471 = vpack.c.b16 %v375, %v367
    %v472 = vpack.c.b16 %v376, %v368
    %v473 = vpack.c.b16 %v377, %v369
    %v474 = vpack.c.b16 %v378, %v370
    %v475 = vpack.c.b16 %v379, %v371
    %v476 = vpack.c.b16 %v380, %v372
    %v477 = vpack.c.b16 %v389, %v381
    %v478 = vpack.c.b16 %v390, %v382
    %v479 = vpack.c.b16 %v391, %v383
    %v480 = vpack.c.b16 %v392, %v384
    %v481 = vpack.c.b16 %v393, %v385
    %v482 = vpack.c.b16 %v394, %v386
    %v483 = vpack.c.b16 %v395, %v387
    %v484 = vpack.c.b16 %v396, %v388
    %v485 = vpack.c.b16 %v405, %v397
    %v486 = vpack.c.b16 %v406, %v398
    %v487 = vpack.c.b16 %v407, %v399
    %v488 = vpack.c.b16 %v408, %v400
    %v489 = vpack.c.b16 %v409, %v401
    %v490 = vpack.c.b16 %v410, %v402
    %v491 = vpack.c.b16 %v411, %v403
    %v492 = vpack.c.b16 %v412, %v404
    %v493 = vpack.c.b16 %v421, %v413
    %v494 = vpack.c.b16 %v422, %v414
    %v495 = vpack.c.b16 %v423, %v415
    %v496 = vpack.c.b16 %v424, %v416
    %v497 = vpack.c.b16 %v425, %v417
    %v498 = vpack.c.b16 %v426, %v418
    %v499 = vpack.c.b16 %v427, %v419
    %v500 = vpack.c.b16 %v428, %v420
    %v501 = vpack.c.b16 %v437, %v429
    %v502 = vpack.c.b16 %v438, %v430
    %v503 = vpack.c.b16 %v439, %v431
    %v504 = vpack.c.b16 %v440, %v432
    %v505 = vpack.c.b16 %v441, %v433
    %v506 = vpack.c.b16 %v442, %v434
    %v507 = vpack.c.b16 %v443, %v435
    %v508 = vpack.c.b16 %v444, %v436
    %573 = vmatprep.subr.bf16.mxu0 %v502
    %574 = vmatpush1.bf16.msra.mxu0 %v501
    %575 = vmatprep.subr.bf16.mxu0 %v494
    %576 = vmatpush1.bf16.msra.mxu0 %v493
    %577 = vmatprep.subr.bf16.mxu0 %v486
    %578 = vmatpush1.bf16.msra.mxu0 %v485
    %579 = vmatprep.subr.bf16.mxu0 %v478
    %580 = vmatpush1.bf16.msra.mxu0 %v477
    %581 = vmatprep.subr.bf16.mxu0 %v470
    %582 = vmatpush1.bf16.msra.mxu0 %v469
    %583 = vmatprep.subr.bf16.mxu0 %v462
    %584 = vmatpush1.bf16.msra.mxu0 %v461
    %585 = vmatprep.subr.bf16.mxu0 %v454
    %586 = vmatpush1.bf16.msra.mxu0 %v453
    %587 = vmatprep.subr.bf16.mxu0 %v446
    %588 = vmatpush1.bf16.msra.mxu0 %v445
    %589 = vmatprep.subr.bf16.mxu0 0
    %590 = vmatpush2.bf16.msra.mxu0 0
    %591 = vmatprep.subr.bf16.mxu0 0
    %592 = vmatpush2.bf16.msra.mxu0 0
    %593 = vmatprep.subr.bf16.mxu0 0
    %594 = vmatpush2.bf16.msra.mxu0 0
    %595 = vmatprep.subr.bf16.mxu0 0
    %596 = vmatpush2.bf16.msra.mxu0 0
    %597 = vmatprep.subr.bf16.mxu0 0
    %598 = vmatpush2.bf16.msra.mxu0 0
    %599 = vmatprep.subr.bf16.mxu0 0
    %600 = vmatpush2.bf16.msra.mxu0 0
    %601 = vmatprep.subr.bf16.mxu0 0
    %602 = vmatpush2.bf16.msra.mxu0 0
    %603 = vmatprep.subr.bf16.mxu0 0
    %604 = vmatpush2.bf16.msra.mxu0 0
    %605 = vmatprep.mubr.bf16.mxu0 0
    %606 = vmatmul.mubr.bf16.gmra.mxu0 %v245
    %v607 = vpop.f32.mrf.mxu0
    %v608 = vadd.f32 %v192, %v607
    %v609 = vpop.f32.mrf.mxu0
    %v610 = vadd.f32 %v196, %v609
    %v611 = vpop.f32.mrf.mxu0
    %v612 = vadd.f32 %v192, %v611
    %v613 = vpop.f32.mrf.mxu0
    %v614 = vadd.f32 %v196, %v613
    %615 = vmatprep.mubr.bf16.mxu0 0
    %616 = vmatmul.mubr.bf16.gmra.mxu0 %v246
    %v617 = vpop.f32.mrf.mxu0
    %v618 = vadd.f32 %v192, %v617
    %v619 = vpop.f32.mrf.mxu0
    %v620 = vadd.f32 %v196, %v619
    %v621 = vpop.f32.mrf.mxu0
    %v622 = vadd.f32 %v192, %v621
    %v623 = vpop.f32.mrf.mxu0
    %v624 = vadd.f32 %v196, %v623
    %625 = vmatprep.mubr.bf16.mxu0 0
    %626 = vmatmul.mubr.bf16.gmra.mxu0 %v247
    %v627 = vpop.f32.mrf.mxu0
    %v628 = vadd.f32 %v192, %v627
    %v629 = vpop.f32.mrf.mxu0
    %v630 = vadd.f32 %v196, %v629
    %v631 = vpop.f32.mrf.mxu0
    %v632 = vadd.f32 %v192, %v631
    %v633 = vpop.f32.mrf.mxu0
    %v634 = vadd.f32 %v196, %v633
    %635 = vmatprep.mubr.bf16.mxu0 0
    %636 = vmatmul.mubr.bf16.gmra.mxu0 %v248
    %v637 = vpop.f32.mrf.mxu0
    %v638 = vadd.f32 %v192, %v637
    %v639 = vpop.f32.mrf.mxu0
    %v640 = vadd.f32 %v196, %v639
    %v641 = vpop.f32.mrf.mxu0
    %v642 = vadd.f32 %v192, %v641
    %v643 = vpop.f32.mrf.mxu0
    %v644 = vadd.f32 %v196, %v643
    %645 = vdwg.mxu0
    %646 = vmatprep.subr.bf16.mxu0 %v504
    %647 = vmatpush1.bf16.msra.mxu0 %v503
    %648 = vmatprep.subr.bf16.mxu0 %v496
    %649 = vmatpush1.bf16.msra.mxu0 %v495
    %650 = vmatprep.subr.bf16.mxu0 %v488
    %651 = vmatpush1.bf16.msra.mxu0 %v487
    %652 = vmatprep.subr.bf16.mxu0 %v480
    %653 = vmatpush1.bf16.msra.mxu0 %v479
    %654 = vmatprep.subr.bf16.mxu0 %v472
    %655 = vmatpush1.bf16.msra.mxu0 %v471
    %656 = vmatprep.subr.bf16.mxu0 %v464
    %657 = vmatpush1.bf16.msra.mxu0 %v463
    %658 = vmatprep.subr.bf16.mxu0 %v456
    %659 = vmatpush1.bf16.msra.mxu0 %v455
    %660 = vmatprep.subr.bf16.mxu0 %v448
    %661 = vmatpush1.bf16.msra.mxu0 %v447
    %662 = vmatprep.subr.bf16.mxu0 0
    %663 = vmatpush2.bf16.msra.mxu0 0
    %664 = vmatprep.subr.bf16.mxu0 0
    %665 = vmatpush2.bf16.msra.mxu0 0
    %666 = vmatprep.subr.bf16.mxu0 0
    %667 = vmatpush2.bf16.msra.mxu0 0
    %668 = vmatprep.subr.bf16.mxu0 0
    %669 = vmatpush2.bf16.msra.mxu0 0
    %670 = vmatprep.subr.bf16.mxu0 0
    %671 = vmatpush2.bf16.msra.mxu0 0
    %672 = vmatprep.subr.bf16.mxu0 0
    %673 = vmatpush2.bf16.msra.mxu0 0
    %674 = vmatprep.subr.bf16.mxu0 0
    %675 = vmatpush2.bf16.msra.mxu0 0
    %676 = vmatprep.subr.bf16.mxu0 0
    %677 = vmatpush2.bf16.msra.mxu0 0
    %678 = vmatprep.mubr.bf16.mxu0 0
    %679 = vmatmul.mubr.bf16.gmra.mxu0 %v245
    %v680 = vpop.f32.mrf.mxu0
    %v681 = vadd.f32 %v200, %v680
    %v682 = vpop.f32.mrf.mxu0
    %v683 = vadd.f32 %v204, %v682
    %v684 = vpop.f32.mrf.mxu0
    %v685 = vadd.f32 %v200, %v684
    %v686 = vpop.f32.mrf.mxu0
    %v687 = vadd.f32 %v204, %v686
    %688 = vmatprep.mubr.bf16.mxu0 0
    %689 = vmatmul.mubr.bf16.gmra.mxu0 %v246
    %v690 = vpop.f32.mrf.mxu0
    %v691 = vadd.f32 %v200, %v690
    %v692 = vpop.f32.mrf.mxu0
    %v693 = vadd.f32 %v204, %v692
    %v694 = vpop.f32.mrf.mxu0
    %v695 = vadd.f32 %v200, %v694
    %v696 = vpop.f32.mrf.mxu0
    %v697 = vadd.f32 %v204, %v696
    %698 = vmatprep.mubr.bf16.mxu0 0
    %699 = vmatmul.mubr.bf16.gmra.mxu0 %v247
    %v700 = vpop.f32.mrf.mxu0
    %v701 = vadd.f32 %v200, %v700
    %v702 = vpop.f32.mrf.mxu0
    %v703 = vadd.f32 %v204, %v702
    %v704 = vpop.f32.mrf.mxu0
    %v705 = vadd.f32 %v200, %v704
    %v706 = vpop.f32.mrf.mxu0
    %v707 = vadd.f32 %v204, %v706
    %708 = vmatprep.mubr.bf16.mxu0 0
    %709 = vmatmul.mubr.bf16.gmra.mxu0 %v248
    %v710 = vpop.f32.mrf.mxu0
    %v711 = vadd.f32 %v200, %v710
    %v712 = vpop.f32.mrf.mxu0
    %v713 = vadd.f32 %v204, %v712
    %v714 = vpop.f32.mrf.mxu0
    %v715 = vadd.f32 %v200, %v714
    %v716 = vpop.f32.mrf.mxu0
    %v717 = vadd.f32 %v204, %v716
    %718 = vdwg.mxu0
    %719 = vmatprep.subr.bf16.mxu0 %v506
    %720 = vmatpush1.bf16.msra.mxu0 %v505
    %721 = vmatprep.subr.bf16.mxu0 %v498
    %722 = vmatpush1.bf16.msra.mxu0 %v497
    %723 = vmatprep.subr.bf16.mxu0 %v490
    %724 = vmatpush1.bf16.msra.mxu0 %v489
    %725 = vmatprep.subr.bf16.mxu0 %v482
    %726 = vmatpush1.bf16.msra.mxu0 %v481
    %727 = vmatprep.subr.bf16.mxu0 %v474
    %728 = vmatpush1.bf16.msra.mxu0 %v473
    %729 = vmatprep.subr.bf16.mxu0 %v466
    %730 = vmatpush1.bf16.msra.mxu0 %v465
    %731 = vmatprep.subr.bf16.mxu0 %v458
    %732 = vmatpush1.bf16.msra.mxu0 %v457
    %733 = vmatprep.subr.bf16.mxu0 %v450
    %734 = vmatpush1.bf16.msra.mxu0 %v449
    %735 = vmatprep.subr.bf16.mxu0 0
    %736 = vmatpush2.bf16.msra.mxu0 0
    %737 = vmatprep.subr.bf16.mxu0 0
    %738 = vmatpush2.bf16.msra.mxu0 0
    %739 = vmatprep.subr.bf16.mxu0 0
    %740 = vmatpush2.bf16.msra.mxu0 0
    %741 = vmatprep.subr.bf16.mxu0 0
    %742 = vmatpush2.bf16.msra.mxu0 0
    %743 = vmatprep.subr.bf16.mxu0 0
    %744 = vmatpush2.bf16.msra.mxu0 0
    %745 = vmatprep.subr.bf16.mxu0 0
    %746 = vmatpush2.bf16.msra.mxu0 0
    %747 = vmatprep.subr.bf16.mxu0 0
    %748 = vmatpush2.bf16.msra.mxu0 0
    %749 = vmatprep.subr.bf16.mxu0 0
    %750 = vmatpush2.bf16.msra.mxu0 0
    %751 = vmatprep.mubr.bf16.mxu0 0
    %752 = vmatmul.mubr.bf16.gmra.mxu0 %v245
    %v753 = vpop.f32.mrf.mxu0
    %v754 = vadd.f32 %v208, %v753
    %v755 = vpop.f32.mrf.mxu0
    %v756 = vadd.f32 %v212, %v755
    %v757 = vpop.f32.mrf.mxu0
    %v758 = vadd.f32 %v208, %v757
    %v759 = vpop.f32.mrf.mxu0
    %v760 = vadd.f32 %v212, %v759
    %761 = vmatprep.mubr.bf16.mxu0 0
    %762 = vmatmul.mubr.bf16.gmra.mxu0 %v246
    %v763 = vpop.f32.mrf.mxu0
    %v764 = vadd.f32 %v208, %v763
    %v765 = vpop.f32.mrf.mxu0
    %v766 = vadd.f32 %v212, %v765
    %v767 = vpop.f32.mrf.mxu0
    %v768 = vadd.f32 %v208, %v767
    %v769 = vpop.f32.mrf.mxu0
    %v770 = vadd.f32 %v212, %v769
    %771 = vmatprep.mubr.bf16.mxu0 0
    %772 = vmatmul.mubr.bf16.gmra.mxu0 %v247
    %v773 = vpop.f32.mrf.mxu0
    %v774 = vadd.f32 %v208, %v773
    %v775 = vpop.f32.mrf.mxu0
    %v776 = vadd.f32 %v212, %v775
    %v777 = vpop.f32.mrf.mxu0
    %v778 = vadd.f32 %v208, %v777
    %v779 = vpop.f32.mrf.mxu0
    %v780 = vadd.f32 %v212, %v779
    %781 = vmatprep.mubr.bf16.mxu0 0
    %782 = vmatmul.mubr.bf16.gmra.mxu0 %v248
    %v783 = vpop.f32.mrf.mxu0
    %v784 = vadd.f32 %v208, %v783
    %v785 = vpop.f32.mrf.mxu0
    %v786 = vadd.f32 %v212, %v785
    %v787 = vpop.f32.mrf.mxu0
    %v788 = vadd.f32 %v208, %v787
    %v789 = vpop.f32.mrf.mxu0
    %v790 = vadd.f32 %v212, %v789
    %791 = vdwg.mxu0
    %792 = vmatprep.subr.bf16.mxu0 %v508
    %793 = vmatpush1.bf16.msra.mxu0 %v507
    %794 = vmatprep.subr.bf16.mxu0 %v500
    %795 = vmatpush1.bf16.msra.mxu0 %v499
    %796 = vmatprep.subr.bf16.mxu0 %v492
    %797 = vmatpush1.bf16.msra.mxu0 %v491
    %798 = vmatprep.subr.bf16.mxu0 %v484
    %799 = vmatpush1.bf16.msra.mxu0 %v483
    %800 = vmatprep.subr.bf16.mxu0 %v476
    %801 = vmatpush1.bf16.msra.mxu0 %v475
    %802 = vmatprep.subr.bf16.mxu0 %v468
    %803 = vmatpush1.bf16.msra.mxu0 %v467
    %804 = vmatprep.subr.bf16.mxu0 %v460
    %805 = vmatpush1.bf16.msra.mxu0 %v459
    %806 = vmatprep.subr.bf16.mxu0 %v452
    %807 = vmatpush1.bf16.msra.mxu0 %v451
    %808 = vmatprep.subr.bf16.mxu0 0
    %809 = vmatpush2.bf16.msra.mxu0 0
    %810 = vmatprep.subr.bf16.mxu0 0
    %811 = vmatpush2.bf16.msra.mxu0 0
    %812 = vmatprep.subr.bf16.mxu0 0
    %813 = vmatpush2.bf16.msra.mxu0 0
    %814 = vmatprep.subr.bf16.mxu0 0
    %815 = vmatpush2.bf16.msra.mxu0 0
    %816 = vmatprep.subr.bf16.mxu0 0
    %817 = vmatpush2.bf16.msra.mxu0 0
    %818 = vmatprep.subr.bf16.mxu0 0
    %819 = vmatpush2.bf16.msra.mxu0 0
    %820 = vmatprep.subr.bf16.mxu0 0
    %821 = vmatpush2.bf16.msra.mxu0 0
    %822 = vmatprep.subr.bf16.mxu0 0
    %823 = vmatpush2.bf16.msra.mxu0 0
    %824 = vmatprep.mubr.bf16.mxu0 0
    %825 = vmatmul.mubr.bf16.gmra.mxu0 %v245
    %v826 = vpop.f32.mrf.mxu0
    %v827 = vadd.f32 %v216, %v826
    %v828 = vpop.f32.mrf.mxu0
    %v829 = vadd.f32 %v220, %v828
    %v830 = vpop.f32.mrf.mxu0
    %v831 = vadd.f32 %v216, %v830
    %v832 = vpop.f32.mrf.mxu0
    %v833 = vadd.f32 %v220, %v832
    %834 = vmatprep.mubr.bf16.mxu0 0
    %835 = vmatmul.mubr.bf16.gmra.mxu0 %v246
    %v836 = vpop.f32.mrf.mxu0
    %v837 = vadd.f32 %v216, %v836
    %v838 = vpop.f32.mrf.mxu0
    %v839 = vadd.f32 %v220, %v838
    %v840 = vpop.f32.mrf.mxu0
    %v841 = vadd.f32 %v216, %v840
    %v842 = vpop.f32.mrf.mxu0
    %v843 = vadd.f32 %v220, %v842
    %844 = vmatprep.mubr.bf16.mxu0 0
    %845 = vmatmul.mubr.bf16.gmra.mxu0 %v247
    %v846 = vpop.f32.mrf.mxu0
    %v847 = vadd.f32 %v216, %v846
    %v848 = vpop.f32.mrf.mxu0
    %v849 = vadd.f32 %v220, %v848
    %v850 = vpop.f32.mrf.mxu0
    %v851 = vadd.f32 %v216, %v850
    %v852 = vpop.f32.mrf.mxu0
    %v853 = vadd.f32 %v220, %v852
    %854 = vmatprep.mubr.bf16.mxu0 0
    %855 = vmatmul.mubr.bf16.gmra.mxu0 %v248
    %v856 = vpop.f32.mrf.mxu0
    %v857 = vadd.f32 %v216, %v856
    %v858 = vpop.f32.mrf.mxu0
    %v859 = vadd.f32 %v220, %v858
    %v860 = vpop.f32.mrf.mxu0
    %v861 = vadd.f32 %v216, %v860
    %v862 = vpop.f32.mrf.mxu0
    %v863 = vadd.f32 %v220, %v862
    %864 = vdwg.mxu0
    %v865 = vpack.c.bf16 %v612, %v608
    %v866 = vpack.c.bf16 %v614, %v610
    %v867 = vpack.c.bf16 %v685, %v681
    %v868 = vpack.c.bf16 %v687, %v683
    %v869 = vpack.c.bf16 %v758, %v754
    %v870 = vpack.c.bf16 %v760, %v756
    %v871 = vpack.c.bf16 %v831, %v827
    %v872 = vpack.c.bf16 %v833, %v829
    %v873 = vpack.c.bf16 %v622, %v618
    %v874 = vpack.c.bf16 %v624, %v620
    %v875 = vpack.c.bf16 %v695, %v691
    %v876 = vpack.c.bf16 %v697, %v693
    %v877 = vpack.c.bf16 %v768, %v764
    %v878 = vpack.c.bf16 %v770, %v766
    %v879 = vpack.c.bf16 %v841, %v837
    %v880 = vpack.c.bf16 %v843, %v839
    %v881 = vpack.c.bf16 %v632, %v628
    %v882 = vpack.c.bf16 %v634, %v630
    %v883 = vpack.c.bf16 %v705, %v701
    %v884 = vpack.c.bf16 %v707, %v703
    %v885 = vpack.c.bf16 %v778, %v774
    %v886 = vpack.c.bf16 %v780, %v776
    %v887 = vpack.c.bf16 %v851, %v847
    %v888 = vpack.c.bf16 %v853, %v849
    %v889 = vpack.c.bf16 %v642, %v638
    %v890 = vpack.c.bf16 %v644, %v640
    %v891 = vpack.c.bf16 %v715, %v711
    %v892 = vpack.c.bf16 %v717, %v713
    %v893 = vpack.c.bf16 %v788, %v784
    %v894 = vpack.c.bf16 %v790, %v786
    %v895 = vpack.c.bf16 %v861, %v857
    %v896 = vpack.c.bf16 %v863, %v859
    %v929 = vunpack.c.l.b16 %v865
    %v930 = vunpack.c.l.b16 %v866
    %v931 = vunpack.c.l.b16 %v867
    %v932 = vunpack.c.l.b16 %v868
    %v933 = vunpack.c.l.b16 %v869
    %v934 = vunpack.c.l.b16 %v870
    %v935 = vunpack.c.l.b16 %v871
    %v936 = vunpack.c.l.b16 %v872
    %v937 = vunpack.c.h.b16 %v865
    %v938 = vunpack.c.h.b16 %v866
    %v939 = vunpack.c.h.b16 %v867
    %v940 = vunpack.c.h.b16 %v868
    %v941 = vunpack.c.h.b16 %v869
    %v942 = vunpack.c.h.b16 %v870
    %v943 = vunpack.c.h.b16 %v871
    %v944 = vunpack.c.h.b16 %v872
    %v945 = vunpack.c.l.b16 %v873
    %v946 = vunpack.c.l.b16 %v874
    %v947 = vunpack.c.l.b16 %v875
    %v948 = vunpack.c.l.b16 %v876
    %v949 = vunpack.c.l.b16 %v877
    %v950 = vunpack.c.l.b16 %v878
    %v951 = vunpack.c.l.b16 %v879
    %v952 = vunpack.c.l.b16 %v880
    %v953 = vunpack.c.h.b16 %v873
    %v954 = vunpack.c.h.b16 %v874
    %v955 = vunpack.c.h.b16 %v875
    %v956 = vunpack.c.h.b16 %v876
    %v957 = vunpack.c.h.b16 %v877
    %v958 = vunpack.c.h.b16 %v878
    %v959 = vunpack.c.h.b16 %v879
    %v960 = vunpack.c.h.b16 %v880
    %v961 = vunpack.c.l.b16 %v881
    %v962 = vunpack.c.l.b16 %v882
    %v963 = vunpack.c.l.b16 %v883
    %v964 = vunpack.c.l.b16 %v884
    %v965 = vunpack.c.l.b16 %v885
    %v966 = vunpack.c.l.b16 %v886
    %v967 = vunpack.c.l.b16 %v887
    %v968 = vunpack.c.l.b16 %v888
    %v969 = vunpack.c.h.b16 %v881
    %v970 = vunpack.c.h.b16 %v882
    %v971 = vunpack.c.h.b16 %v883
    %v972 = vunpack.c.h.b16 %v884
    %v973 = vunpack.c.h.b16 %v885
    %v974 = vunpack.c.h.b16 %v886
    %v975 = vunpack.c.h.b16 %v887
    %v976 = vunpack.c.h.b16 %v888
    %v977 = vunpack.c.l.b16 %v889
    %v978 = vunpack.c.l.b16 %v890
    %v979 = vunpack.c.l.b16 %v891
    %v980 = vunpack.c.l.b16 %v892
    %v981 = vunpack.c.l.b16 %v893
    %v982 = vunpack.c.l.b16 %v894
    %v983 = vunpack.c.l.b16 %v895
    %v984 = vunpack.c.l.b16 %v896
    %v985 = vunpack.c.h.b16 %v889
    %v986 = vunpack.c.h.b16 %v890
    %v987 = vunpack.c.h.b16 %v891
    %v988 = vunpack.c.h.b16 %v892
    %v989 = vunpack.c.h.b16 %v893
    %v990 = vunpack.c.h.b16 %v894
    %v991 = vunpack.c.h.b16 %v895
    %v992 = vunpack.c.h.b16 %v896
    %v993 = vpack.c.b16 %v930, %v929
    %v994 = vpack.c.b16 %v932, %v931
    %v995 = vpack.c.b16 %v934, %v933
    %v996 = vpack.c.b16 %v936, %v935
    %v997 = vpack.c.b16 %v938, %v937
    %v998 = vpack.c.b16 %v940, %v939
    %v999 = vpack.c.b16 %v942, %v941
    %v1000 = vpack.c.b16 %v944, %v943
    %v1001 = vpack.c.b16 %v946, %v945
    %v1002 = vpack.c.b16 %v948, %v947
    %v1003 = vpack.c.b16 %v950, %v949
    %v1004 = vpack.c.b16 %v952, %v951
    %v1005 = vpack.c.b16 %v954, %v953
    %v1006 = vpack.c.b16 %v956, %v955
    %v1007 = vpack.c.b16 %v958, %v957
    %v1008 = vpack.c.b16 %v960, %v959
    %v1009 = vpack.c.b16 %v962, %v961
    %v1010 = vpack.c.b16 %v964, %v963
    %v1011 = vpack.c.b16 %v966, %v965
    %v1012 = vpack.c.b16 %v968, %v967
    %v1013 = vpack.c.b16 %v970, %v969
    %v1014 = vpack.c.b16 %v972, %v971
    %v1015 = vpack.c.b16 %v974, %v973
    %v1016 = vpack.c.b16 %v976, %v975
    %v1017 = vpack.c.b16 %v978, %v977
    %v1018 = vpack.c.b16 %v980, %v979
    %v1019 = vpack.c.b16 %v982, %v981
    %v1020 = vpack.c.b16 %v984, %v983
    %v1021 = vpack.c.b16 %v986, %v985
    %v1022 = vpack.c.b16 %v988, %v987
    %v1023 = vpack.c.b16 %v990, %v989
    %v1024 = vpack.c.b16 %v992, %v991
    %1057 = vst [vmem:[#allocation2] sm:$0xff] %v993
    %1058 = vst [vmem:[#allocation2 + $0x8] sm:$0xff] %v994
    %1059 = vst [vmem:[#allocation2 + $0x10] sm:$0xff] %v995
    %1060 = vst [vmem:[#allocation2 + $0x18] sm:$0xff] %v996
    %1061 = vst [vmem:[#allocation2 + $0x20] sm:$0xff] %v997
    %1062 = vst [vmem:[#allocation2 + $0x28] sm:$0xff] %v998
    %1063 = vst [vmem:[#allocation2 + $0x30] sm:$0xff] %v999
    %1064 = vst [vmem:[#allocation2 + $0x38] sm:$0xff] %v1000
    %1065 = vst [vmem:[#allocation2 + $0x40] sm:$0xff] %v1001
    %1066 = vst [vmem:[#allocation2 + $0x48] sm:$0xff] %v1002
    %1067 = vst [vmem:[#allocation2 + $0x50] sm:$0xff] %v1003
    %1068 = vst [vmem:[#allocation2 + $0x58] sm:$0xff] %v1004
    %1069 = vst [vmem:[#allocation2 + $0x60] sm:$0xff] %v1005
    %1070 = vst [vmem:[#allocation2 + $0x68] sm:$0xff] %v1006
    %1071 = vst [vmem:[#allocation2 + $0x70] sm:$0xff] %v1007
    %1072 = vst [vmem:[#allocation2 + $0x78] sm:$0xff] %v1008
    %1073 = vst [vmem:[#allocation2 + $0x80] sm:$0xff] %v1009
    %1074 = vst [vmem:[#allocation2 + $0x88] sm:$0xff] %v1010
    %1075 = vst [vmem:[#allocation2 + $0x90] sm:$0xff] %v1011
    %1076 = vst [vmem:[#allocation2 + $0x98] sm:$0xff] %v1012
    %1077 = vst [vmem:[#allocation2 + $0xa0] sm:$0xff] %v1013
    %1078 = vst [vmem:[#allocation2 + $0xa8] sm:$0xff] %v1014
    %1079 = vst [vmem:[#allocation2 + $0xb0] sm:$0xff] %v1015
    %1080 = vst [vmem:[#allocation2 + $0xb8] sm:$0xff] %v1016
    %1081 = vst [vmem:[#allocation2 + $0xc0] sm:$0xff] %v1017
    %1082 = vst [vmem:[#allocation2 + $0xc8] sm:$0xff] %v1018
    %1083 = vst [vmem:[#allocation2 + $0xd0] sm:$0xff] %v1019
    %1084 = vst [vmem:[#allocation2 + $0xd8] sm:$0xff] %v1020
    %1085 = vst [vmem:[#allocation2 + $0xe0] sm:$0xff] %v1021
    %1086 = vst [vmem:[#allocation2 + $0xe8] sm:$0xff] %v1022
    %1087 = vst [vmem:[#allocation2 + $0xf0] sm:$0xff] %v1023
    %1088 = vst [vmem:[#allocation2 + $0xf8] sm:$0xff] %v1024
    %v1089 = vld [vmem:[#allocation6] sm:$0xff]
    %v1090 = vld [vmem:[#allocation6 + $0x8] sm:$0xff]
    %v1091 = vld [vmem:[#allocation6 + $0x10] sm:$0xff]
    %v1092 = vld [vmem:[#allocation6 + $0x18] sm:$0xff]
    %v1093 = vld [vmem:[#allocation6 + $0x20] sm:$0xff]
    %v1094 = vld [vmem:[#allocation6 + $0x28] sm:$0xff]
    %v1095 = vld [vmem:[#allocation6 + $0x30] sm:$0xff]
    %v1096 = vld [vmem:[#allocation6 + $0x38] sm:$0xff]
    %v1097 = vld [vmem:[#allocation6 + $0x40] sm:$0xff]
    %v1098 = vld [vmem:[#allocation6 + $0x48] sm:$0xff]
    %v1099 = vld [vmem:[#allocation6 + $0x50] sm:$0xff]
    %v1100 = vld [vmem:[#allocation6 + $0x58] sm:$0xff]
    %v1101 = vld [vmem:[#allocation6 + $0x60] sm:$0xff]
    %v1102 = vld [vmem:[#allocation6 + $0x68] sm:$0xff]
    %v1103 = vld [vmem:[#allocation6 + $0x70] sm:$0xff]
    %v1104 = vld [vmem:[#allocation6 + $0x78] sm:$0xff]
    %v1105 = vld [vmem:[#allocation6 + $0x80] sm:$0xff]
    %v1106 = vld [vmem:[#allocation6 + $0x88] sm:$0xff]
    %v1107 = vld [vmem:[#allocation6 + $0x90] sm:$0xff]
    %v1108 = vld [vmem:[#allocation6 + $0x98] sm:$0xff]
    %v1109 = vld [vmem:[#allocation6 + $0xa0] sm:$0xff]
    %v1110 = vld [vmem:[#allocation6 + $0xa8] sm:$0xff]
    %v1111 = vld [vmem:[#allocation6 + $0xb0] sm:$0xff]
    %v1112 = vld [vmem:[#allocation6 + $0xb8] sm:$0xff]
    %v1113 = vld [vmem:[#allocation6 + $0xc0] sm:$0xff]
    %v1114 = vld [vmem:[#allocation6 + $0xc8] sm:$0xff]
    %v1115 = vld [vmem:[#allocation6 + $0xd0] sm:$0xff]
    %v1116 = vld [vmem:[#allocation6 + $0xd8] sm:$0xff]
    %v1117 = vld [vmem:[#allocation6 + $0xe0] sm:$0xff]
    %v1118 = vld [vmem:[#allocation6 + $0xe8] sm:$0xff]
    %v1119 = vld [vmem:[#allocation6 + $0xf0] sm:$0xff]
    %v1120 = vld [vmem:[#allocation6 + $0xf8] sm:$0xff]
    %v1121 = vld [vmem:[#allocation8] sm:$0xff]
    %v1122 = vld [vmem:[#allocation8 + $0x8] sm:$0xff]
    %v1123 = vld [vmem:[#allocation8 + $0x10] sm:$0xff]
    %v1124 = vld [vmem:[#allocation8 + $0x18] sm:$0xff]
    %v1125 = vld [vmem:[#allocation8 + $0x20] sm:$0xff]
    %v1126 = vld [vmem:[#allocation8 + $0x28] sm:$0xff]
    %v1127 = vld [vmem:[#allocation8 + $0x30] sm:$0xff]
    %v1128 = vld [vmem:[#allocation8 + $0x38] sm:$0xff]
    %v1129 = vld [vmem:[#allocation8 + $0x40] sm:$0xff]
    %v1130 = vld [vmem:[#allocation8 + $0x48] sm:$0xff]
    %v1131 = vld [vmem:[#allocation8 + $0x50] sm:$0xff]
    %v1132 = vld [vmem:[#allocation8 + $0x58] sm:$0xff]
    %v1133 = vld [vmem:[#allocation8 + $0x60] sm:$0xff]
    %v1134 = vld [vmem:[#allocation8 + $0x68] sm:$0xff]
    %v1135 = vld [vmem:[#allocation8 + $0x70] sm:$0xff]
    %v1136 = vld [vmem:[#allocation8 + $0x78] sm:$0xff]
    %v1137 = vld [vmem:[#allocation8 + $0x80] sm:$0xff]
    %v1138 = vld [vmem:[#allocation8 + $0x88] sm:$0xff]
    %v1139 = vld [vmem:[#allocation8 + $0x90] sm:$0xff]
    %v1140 = vld [vmem:[#allocation8 + $0x98] sm:$0xff]
    %v1141 = vld [vmem:[#allocation8 + $0xa0] sm:$0xff]
    %v1142 = vld [vmem:[#allocation8 + $0xa8] sm:$0xff]
    %v1143 = vld [vmem:[#allocation8 + $0xb0] sm:$0xff]
    %v1144 = vld [vmem:[#allocation8 + $0xb8] sm:$0xff]
    %v1145 = vld [vmem:[#allocation8 + $0xc0] sm:$0xff]
    %v1146 = vld [vmem:[#allocation8 + $0xc8] sm:$0xff]
    %v1147 = vld [vmem:[#allocation8 + $0xd0] sm:$0xff]
    %v1148 = vld [vmem:[#allocation8 + $0xd8] sm:$0xff]
    %v1149 = vld [vmem:[#allocation8 + $0xe0] sm:$0xff]
    %v1150 = vld [vmem:[#allocation8 + $0xe8] sm:$0xff]
    %v1151 = vld [vmem:[#allocation8 + $0xf0] sm:$0xff]
    %v1152 = vld [vmem:[#allocation8 + $0xf8] sm:$0xff]
    %s1153 = smul.u32 0, 8
    %s1154 = smul.addr %s1153, 4
    %s1155 = scalar_lea.vmem [#allocation2], %s1154
    %v1156 = vld [vmem:[%s1155] sm:$0xff]
    %v1157 = vld [vmem:[%s1155 + $0x8] sm:$0xff]
    %v1158 = vunpack.c.l.bf16 %v1156
    %v1159 = vunpack.c.h.bf16 %v1156
    %v1160 = vunpack.c.l.bf16 %v1157
    %v1161 = vunpack.c.h.bf16 %v1157
    %v1194 = vunpack.c.l.b16 %v1089
    %v1195 = vunpack.c.h.b16 %v1089
    %v1196 = vunpack.c.l.b16 %v1090
    %v1197 = vunpack.c.h.b16 %v1090
    %v1198 = vunpack.c.l.b16 %v1091
    %v1199 = vunpack.c.h.b16 %v1091
    %v1200 = vunpack.c.l.b16 %v1092
    %v1201 = vunpack.c.h.b16 %v1092
    %v1202 = vunpack.c.l.b16 %v1093
    %v1203 = vunpack.c.h.b16 %v1093
    %v1204 = vunpack.c.l.b16 %v1094
    %v1205 = vunpack.c.h.b16 %v1094
    %v1206 = vunpack.c.l.b16 %v1095
    %v1207 = vunpack.c.h.b16 %v1095
    %v1208 = vunpack.c.l.b16 %v1096
    %v1209 = vunpack.c.h.b16 %v1096
    %v1210 = vunpack.c.l.b16 %v1097
    %v1211 = vunpack.c.h.b16 %v1097
    %v1212 = vunpack.c.l.b16 %v1098
    %v1213 = vunpack.c.h.b16 %v1098
    %v1214 = vunpack.c.l.b16 %v1099
    %v1215 = vunpack.c.h.b16 %v1099
    %v1216 = vunpack.c.l.b16 %v1100
    %v1217 = vunpack.c.h.b16 %v1100
    %v1218 = vunpack.c.l.b16 %v1101
    %v1219 = vunpack.c.h.b16 %v1101
    %v1220 = vunpack.c.l.b16 %v1102
    %v1221 = vunpack.c.h.b16 %v1102
    %v1222 = vunpack.c.l.b16 %v1103
    %v1223 = vunpack.c.h.b16 %v1103
    %v1224 = vunpack.c.l.b16 %v1104
    %v1225 = vunpack.c.h.b16 %v1104
    %v1226 = vunpack.c.l.b16 %v1105
    %v1227 = vunpack.c.h.b16 %v1105
    %v1228 = vunpack.c.l.b16 %v1106
    %v1229 = vunpack.c.h.b16 %v1106
    %v1230 = vunpack.c.l.b16 %v1107
    %v1231 = vunpack.c.h.b16 %v1107
    %v1232 = vunpack.c.l.b16 %v1108
    %v1233 = vunpack.c.h.b16 %v1108
    %v1234 = vunpack.c.l.b16 %v1109
    %v1235 = vunpack.c.h.b16 %v1109
    %v1236 = vunpack.c.l.b16 %v1110
    %v1237 = vunpack.c.h.b16 %v1110
    %v1238 = vunpack.c.l.b16 %v1111
    %v1239 = vunpack.c.h.b16 %v1111
    %v1240 = vunpack.c.l.b16 %v1112
    %v1241 = vunpack.c.h.b16 %v1112
    %v1242 = vunpack.c.l.b16 %v1113
    %v1243 = vunpack.c.h.b16 %v1113
    %v1244 = vunpack.c.l.b16 %v1114
    %v1245 = vunpack.c.h.b16 %v1114
    %v1246 = vunpack.c.l.b16 %v1115
    %v1247 = vunpack.c.h.b16 %v1115
    %v1248 = vunpack.c.l.b16 %v1116
    %v1249 = vunpack.c.h.b16 %v1116
    %v1250 = vunpack.c.l.b16 %v1117
    %v1251 = vunpack.c.h.b16 %v1117
    %v1252 = vunpack.c.l.b16 %v1118
    %v1253 = vunpack.c.h.b16 %v1118
    %v1254 = vunpack.c.l.b16 %v1119
    %v1255 = vunpack.c.h.b16 %v1119
    %v1256 = vunpack.c.l.b16 %v1120
    %v1257 = vunpack.c.h.b16 %v1120
    %v1258 = vpack.c.b16 %v1198, %v1194
    %v1259 = vpack.c.b16 %v1199, %v1195
    %v1260 = vpack.c.b16 %v1200, %v1196
    %v1261 = vpack.c.b16 %v1201, %v1197
    %v1262 = vpack.c.b16 %v1206, %v1202
    %v1263 = vpack.c.b16 %v1207, %v1203
    %v1264 = vpack.c.b16 %v1208, %v1204
    %v1265 = vpack.c.b16 %v1209, %v1205
    %v1266 = vpack.c.b16 %v1214, %v1210
    %v1267 = vpack.c.b16 %v1215, %v1211
    %v1268 = vpack.c.b16 %v1216, %v1212
    %v1269 = vpack.c.b16 %v1217, %v1213
    %v1270 = vpack.c.b16 %v1222, %v1218
    %v1271 = vpack.c.b16 %v1223, %v1219
    %v1272 = vpack.c.b16 %v1224, %v1220
    %v1273 = vpack.c.b16 %v1225, %v1221
    %v1274 = vpack.c.b16 %v1230, %v1226
    %v1275 = vpack.c.b16 %v1231, %v1227
    %v1276 = vpack.c.b16 %v1232, %v1228
    %v1277 = vpack.c.b16 %v1233, %v1229
    %v1278 = vpack.c.b16 %v1238, %v1234
    %v1279 = vpack.c.b16 %v1239, %v1235
    %v1280 = vpack.c.b16 %v1240, %v1236
    %v1281 = vpack.c.b16 %v1241, %v1237
    %v1282 = vpack.c.b16 %v1246, %v1242
    %v1283 = vpack.c.b16 %v1247, %v1243
    %v1284 = vpack.c.b16 %v1248, %v1244
    %v1285 = vpack.c.b16 %v1249, %v1245
    %v1286 = vpack.c.b16 %v1254, %v1250
    %v1287 = vpack.c.b16 %v1255, %v1251
    %v1288 = vpack.c.b16 %v1256, %v1252
    %v1289 = vpack.c.b16 %v1257, %v1253
    %1322 = vmatprep.subr.bf16.mxu0 %v1287
    %1323 = vmatpush1.bf16.msra.mxu0 %v1286
    %1324 = vmatprep.subr.bf16.mxu0 %v1283
    %1325 = vmatpush1.bf16.msra.mxu0 %v1282
    %1326 = vmatprep.subr.bf16.mxu0 %v1279
    %1327 = vmatpush1.bf16.msra.mxu0 %v1278
    %1328 = vmatprep.subr.bf16.mxu0 %v1275
    %1329 = vmatpush1.bf16.msra.mxu0 %v1274
    %1330 = vmatprep.subr.bf16.mxu0 %v1271
    %1331 = vmatpush1.bf16.msra.mxu0 %v1270
    %1332 = vmatprep.subr.bf16.mxu0 %v1267
    %1333 = vmatpush1.bf16.msra.mxu0 %v1266
    %1334 = vmatprep.subr.bf16.mxu0 %v1263
    %1335 = vmatpush1.bf16.msra.mxu0 %v1262
    %1336 = vmatprep.subr.bf16.mxu0 %v1259
    %1337 = vmatpush1.bf16.msra.mxu0 %v1258
    %1338 = vmatprep.subr.bf16.mxu0 0
    %1339 = vmatpush2.bf16.msra.mxu0 0
    %1340 = vmatprep.subr.bf16.mxu0 0
    %1341 = vmatpush2.bf16.msra.mxu0 0
    %1342 = vmatprep.subr.bf16.mxu0 0
    %1343 = vmatpush2.bf16.msra.mxu0 0
    %1344 = vmatprep.subr.bf16.mxu0 0
    %1345 = vmatpush2.bf16.msra.mxu0 0
    %1346 = vmatprep.subr.bf16.mxu0 0
    %1347 = vmatpush2.bf16.msra.mxu0 0
    %1348 = vmatprep.subr.bf16.mxu0 0
    %1349 = vmatpush2.bf16.msra.mxu0 0
    %1350 = vmatprep.subr.bf16.mxu0 0
    %1351 = vmatpush2.bf16.msra.mxu0 0
    %1352 = vmatprep.subr.bf16.mxu0 0
    %1353 = vmatpush2.bf16.msra.mxu0 0
    %1354 = vmatprep.mubr.bf16.mxu0 0
    %1355 = vmatmul.mubr.bf16.gmra.mxu0 0
    %v1356 = vpop.f32.mrf.mxu0
    %v1357 = vadd.f32 %v1158, %v1356
    %v1358 = vpop.f32.mrf.mxu0
    %v1359 = vadd.f32 %v1159, %v1358
    %v1360 = vpop.f32.mrf.mxu0
    %v1361 = vpop.f32.mrf.mxu0
    %1362 = vdwg.mxu0
    %1363 = vmatprep.subr.bf16.mxu0 %v1289
    %1364 = vmatpush1.bf16.msra.mxu0 %v1288
    %1365 = vmatprep.subr.bf16.mxu0 %v1285
    %1366 = vmatpush1.bf16.msra.mxu0 %v1284
    %1367 = vmatprep.subr.bf16.mxu0 %v1281
    %1368 = vmatpush1.bf16.msra.mxu0 %v1280
    %1369 = vmatprep.subr.bf16.mxu0 %v1277
    %1370 = vmatpush1.bf16.msra.mxu0 %v1276
    %1371 = vmatprep.subr.bf16.mxu0 %v1273
    %1372 = vmatpush1.bf16.msra.mxu0 %v1272
    %1373 = vmatprep.subr.bf16.mxu0 %v1269
    %1374 = vmatpush1.bf16.msra.mxu0 %v1268
    %1375 = vmatprep.subr.bf16.mxu0 %v1265
    %1376 = vmatpush1.bf16.msra.mxu0 %v1264
    %1377 = vmatprep.subr.bf16.mxu0 %v1261
    %1378 = vmatpush1.bf16.msra.mxu0 %v1260
    %1379 = vmatprep.subr.bf16.mxu0 0
    %1380 = vmatpush2.bf16.msra.mxu0 0
    %1381 = vmatprep.subr.bf16.mxu0 0
    %1382 = vmatpush2.bf16.msra.mxu0 0
    %1383 = vmatprep.subr.bf16.mxu0 0
    %1384 = vmatpush2.bf16.msra.mxu0 0
    %1385 = vmatprep.subr.bf16.mxu0 0
    %1386 = vmatpush2.bf16.msra.mxu0 0
    %1387 = vmatprep.subr.bf16.mxu0 0
    %1388 = vmatpush2.bf16.msra.mxu0 0
    %1389 = vmatprep.subr.bf16.mxu0 0
    %1390 = vmatpush2.bf16.msra.mxu0 0
    %1391 = vmatprep.subr.bf16.mxu0 0
    %1392 = vmatpush2.bf16.msra.mxu0 0
    %1393 = vmatprep.subr.bf16.mxu0 0
    %1394 = vmatpush2.bf16.msra.mxu0 0
    %1395 = vmatprep.mubr.bf16.mxu0 0
    %1396 = vmatmul.mubr.bf16.gmra.mxu0 0
    %v1397 = vpop.f32.mrf.mxu0
    %v1398 = vadd.f32 %v1160, %v1397
    %v1399 = vpop.f32.mrf.mxu0
    %v1400 = vadd.f32 %v1161, %v1399
    %v1401 = vpop.f32.mrf.mxu0
    %v1402 = vpop.f32.mrf.mxu0
    %1403 = vdwg.mxu0
    %s1404 = smul.u32 7, 8
    %s1405 = smul.addr %s1404, 4
    %s1406 = scalar_lea.vmem [#allocation2], %s1405
    %v1407 = vld [vmem:[%s1406 + $0x10] sm:$0xff]
    %v1408 = vld [vmem:[%s1406 + $0x18] sm:$0xff]
    %v1409 = vunpack.c.l.bf16 %v1407
    %v1410 = vunpack.c.h.bf16 %v1407
    %v1411 = vunpack.c.l.bf16 %v1408
    %v1412 = vunpack.c.h.bf16 %v1408
    %v1445 = vunpack.c.l.b16 %v1121
    %v1446 = vunpack.c.h.b16 %v1121
    %v1447 = vunpack.c.l.b16 %v1122
    %v1448 = vunpack.c.h.b16 %v1122
    %v1449 = vunpack.c.l.b16 %v1123
    %v1450 = vunpack.c.h.b16 %v1123
    %v1451 = vunpack.c.l.b16 %v1124
    %v1452 = vunpack.c.h.b16 %v1124
    %v1453 = vunpack.c.l.b16 %v1125
    %v1454 = vunpack.c.h.b16 %v1125
    %v1455 = vunpack.c.l.b16 %v1126
    %v1456 = vunpack.c.h.b16 %v1126
    %v1457 = vunpack.c.l.b16 %v1127
    %v1458 = vunpack.c.h.b16 %v1127
    %v1459 = vunpack.c.l.b16 %v1128
    %v1460 = vunpack.c.h.b16 %v1128
    %v1461 = vunpack.c.l.b16 %v1129
    %v1462 = vunpack.c.h.b16 %v1129
    %v1463 = vunpack.c.l.b16 %v1130
    %v1464 = vunpack.c.h.b16 %v1130
    %v1465 = vunpack.c.l.b16 %v1131
    %v1466 = vunpack.c.h.b16 %v1131
    %v1467 = vunpack.c.l.b16 %v1132
    %v1468 = vunpack.c.h.b16 %v1132
    %v1469 = vunpack.c.l.b16 %v1133
    %v1470 = vunpack.c.h.b16 %v1133
    %v1471 = vunpack.c.l.b16 %v1134
    %v1472 = vunpack.c.h.b16 %v1134
    %v1473 = vunpack.c.l.b16 %v1135
    %v1474 = vunpack.c.h.b16 %v1135
    %v1475 = vunpack.c.l.b16 %v1136
    %v1476 = vunpack.c.h.b16 %v1136
    %v1477 = vunpack.c.l.b16 %v1137
    %v1478 = vunpack.c.h.b16 %v1137
    %v1479 = vunpack.c.l.b16 %v1138
    %v1480 = vunpack.c.h.b16 %v1138
    %v1481 = vunpack.c.l.b16 %v1139
    %v1482 = vunpack.c.h.b16 %v1139
    %v1483 = vunpack.c.l.b16 %v1140
    %v1484 = vunpack.c.h.b16 %v1140
    %v1485 = vunpack.c.l.b16 %v1141
    %v1486 = vunpack.c.h.b16 %v1141
    %v1487 = vunpack.c.l.b16 %v1142
    %v1488 = vunpack.c.h.b16 %v1142
    %v1489 = vunpack.c.l.b16 %v1143
    %v1490 = vunpack.c.h.b16 %v1143
    %v1491 = vunpack.c.l.b16 %v1144
    %v1492 = vunpack.c.h.b16 %v1144
    %v1493 = vunpack.c.l.b16 %v1145
    %v1494 = vunpack.c.h.b16 %v1145
    %v1495 = vunpack.c.l.b16 %v1146
    %v1496 = vunpack.c.h.b16 %v1146
    %v1497 = vunpack.c.l.b16 %v1147
    %v1498 = vunpack.c.h.b16 %v1147
    %v1499 = vunpack.c.l.b16 %v1148
    %v1500 = vunpack.c.h.b16 %v1148
    %v1501 = vunpack.c.l.b16 %v1149
    %v1502 = vunpack.c.h.b16 %v1149
    %v1503 = vunpack.c.l.b16 %v1150
    %v1504 = vunpack.c.h.b16 %v1150
    %v1505 = vunpack.c.l.b16 %v1151
    %v1506 = vunpack.c.h.b16 %v1151
    %v1507 = vunpack.c.l.b16 %v1152
    %v1508 = vunpack.c.h.b16 %v1152
    %v1509 = vpack.c.b16 %v1449, %v1445
    %v1510 = vpack.c.b16 %v1450, %v1446
    %v1511 = vpack.c.b16 %v1451, %v1447
    %v1512 = vpack.c.b16 %v1452, %v1448
    %v1513 = vpack.c.b16 %v1457, %v1453
    %v1514 = vpack.c.b16 %v1458, %v1454
    %v1515 = vpack.c.b16 %v1459, %v1455
    %v1516 = vpack.c.b16 %v1460, %v1456
    %v1517 = vpack.c.b16 %v1465, %v1461
    %v1518 = vpack.c.b16 %v1466, %v1462
    %v1519 = vpack.c.b16 %v1467, %v1463
    %v1520 = vpack.c.b16 %v1468, %v1464
    %v1521 = vpack.c.b16 %v1473, %v1469
    %v1522 = vpack.c.b16 %v1474, %v1470
    %v1523 = vpack.c.b16 %v1475, %v1471
    %v1524 = vpack.c.b16 %v1476, %v1472
    %v1525 = vpack.c.b16 %v1481, %v1477
    %v1526 = vpack.c.b16 %v1482, %v1478
    %v1527 = vpack.c.b16 %v1483, %v1479
    %v1528 = vpack.c.b16 %v1484, %v1480
    %v1529 = vpack.c.b16 %v1489, %v1485
    %v1530 = vpack.c.b16 %v1490, %v1486
    %v1531 = vpack.c.b16 %v1491, %v1487
    %v1532 = vpack.c.b16 %v1492, %v1488
    %v1533 = vpack.c.b16 %v1497, %v1493
    %v1534 = vpack.c.b16 %v1498, %v1494
    %v1535 = vpack.c.b16 %v1499, %v1495
    %v1536 = vpack.c.b16 %v1500, %v1496
    %v1537 = vpack.c.b16 %v1505, %v1501
    %v1538 = vpack.c.b16 %v1506, %v1502
    %v1539 = vpack.c.b16 %v1507, %v1503
    %v1540 = vpack.c.b16 %v1508, %v1504
    %1573 = vmatprep.subr.bf16.mxu0 %v1538
    %1574 = vmatpush1.bf16.msra.mxu0 %v1537
    %1575 = vmatprep.subr.bf16.mxu0 %v1534
    %1576 = vmatpush1.bf16.msra.mxu0 %v1533
    %1577 = vmatprep.subr.bf16.mxu0 %v1530
    %1578 = vmatpush1.bf16.msra.mxu0 %v1529
    %1579 = vmatprep.subr.bf16.mxu0 %v1526
    %1580 = vmatpush1.bf16.msra.mxu0 %v1525
    %1581 = vmatprep.subr.bf16.mxu0 %v1522
    %1582 = vmatpush1.bf16.msra.mxu0 %v1521
    %1583 = vmatprep.subr.bf16.mxu0 %v1518
    %1584 = vmatpush1.bf16.msra.mxu0 %v1517
    %1585 = vmatprep.subr.bf16.mxu0 %v1514
    %1586 = vmatpush1.bf16.msra.mxu0 %v1513
    %1587 = vmatprep.subr.bf16.mxu0 %v1510
    %1588 = vmatpush1.bf16.msra.mxu0 %v1509
    %1589 = vmatprep.subr.bf16.mxu0 0
    %1590 = vmatpush2.bf16.msra.mxu0 0
    %1591 = vmatprep.subr.bf16.mxu0 0
    %1592 = vmatpush2.bf16.msra.mxu0 0
    %1593 = vmatprep.subr.bf16.mxu0 0
    %1594 = vmatpush2.bf16.msra.mxu0 0
    %1595 = vmatprep.subr.bf16.mxu0 0
    %1596 = vmatpush2.bf16.msra.mxu0 0
    %1597 = vmatprep.subr.bf16.mxu0 0
    %1598 = vmatpush2.bf16.msra.mxu0 0
    %1599 = vmatprep.subr.bf16.mxu0 0
    %1600 = vmatpush2.bf16.msra.mxu0 0
    %1601 = vmatprep.subr.bf16.mxu0 0
    %1602 = vmatpush2.bf16.msra.mxu0 0
    %1603 = vmatprep.subr.bf16.mxu0 0
    %1604 = vmatpush2.bf16.msra.mxu0 0
    %1605 = vmatprep.mubr.bf16.mxu0 0
    %1606 = vmatmul.mubr.bf16.gmra.mxu0 0
    %v1607 = vpop.f32.mrf.mxu0
    %v1608 = vadd.f32 %v1409, %v1607
    %v1609 = vpop.f32.mrf.mxu0
    %v1610 = vadd.f32 %v1410, %v1609
    %v1611 = vpop.f32.mrf.mxu0
    %v1612 = vpop.f32.mrf.mxu0
    %1613 = vdwg.mxu0
    %1614 = vmatprep.subr.bf16.mxu0 %v1540
    %1615 = vmatpush1.bf16.msra.mxu0 %v1539
    %1616 = vmatprep.subr.bf16.mxu0 %v1536
    %1617 = vmatpush1.bf16.msra.mxu0 %v1535
    %1618 = vmatprep.subr.bf16.mxu0 %v1532
    %1619 = vmatpush1.bf16.msra.mxu0 %v1531
    %1620 = vmatprep.subr.bf16.mxu0 %v1528
    %1621 = vmatpush1.bf16.msra.mxu0 %v1527
    %1622 = vmatprep.subr.bf16.mxu0 %v1524
    %1623 = vmatpush1.bf16.msra.mxu0 %v1523
    %1624 = vmatprep.subr.bf16.mxu0 %v1520
    %1625 = vmatpush1.bf16.msra.mxu0 %v1519
    %1626 = vmatprep.subr.bf16.mxu0 %v1516
    %1627 = vmatpush1.bf16.msra.mxu0 %v1515
    %1628 = vmatprep.subr.bf16.mxu0 %v1512
    %1629 = vmatpush1.bf16.msra.mxu0 %v1511
    %1630 = vmatprep.subr.bf16.mxu0 0
    %1631 = vmatpush2.bf16.msra.mxu0 0
    %1632 = vmatprep.subr.bf16.mxu0 0
    %1633 = vmatpush2.bf16.msra.mxu0 0
    %1634 = vmatprep.subr.bf16.mxu0 0
    %1635 = vmatpush2.bf16.msra.mxu0 0
    %1636 = vmatprep.subr.bf16.mxu0 0
    %1637 = vmatpush2.bf16.msra.mxu0 0
    %1638 = vmatprep.subr.bf16.mxu0 0
    %1639 = vmatpush2.bf16.msra.mxu0 0
    %1640 = vmatprep.subr.bf16.mxu0 0
    %1641 = vmatpush2.bf16.msra.mxu0 0
    %1642 = vmatprep.subr.bf16.mxu0 0
    %1643 = vmatpush2.bf16.msra.mxu0 0
    %1644 = vmatprep.subr.bf16.mxu0 0
    %1645 = vmatpush2.bf16.msra.mxu0 0
    %1646 = vmatprep.mubr.bf16.mxu0 0
    %1647 = vmatmul.mubr.bf16.gmra.mxu0 0
    %v1648 = vpop.f32.mrf.mxu0
    %v1649 = vadd.f32 %v1411, %v1648
    %v1650 = vpop.f32.mrf.mxu0
    %v1651 = vadd.f32 %v1412, %v1650
    %v1652 = vpop.f32.mrf.mxu0
    %v1653 = vpop.f32.mrf.mxu0
    %1654 = vdwg.mxu0
    %v1655 = vxor.u32 %v1357, 2147483648
    %v1656 = vmul.f32 %v1655, 1.442695
    %v1657 = vpow.pop %v1656
    %v1658 = vadd.f32 %v1657, 1.0
    %v1659 = vrcp.pop %v1658
    %v1660 = vmul.f32 1.0, %v1659
    %v1661 = vxor.u32 %v1359, 2147483648
    %v1662 = vmul.f32 %v1661, 1.442695
    %v1663 = vpow.pop %v1662
    %v1664 = vadd.f32 %v1663, 1.0
    %v1665 = vrcp.pop %v1664
    %v1666 = vmul.f32 1.0, %v1665
    %v1667 = vtanh.pop %v1398
    %v1668 = vxor.u32 %v1400, 2147483648
    %v1669 = vmul.f32 %v1668, 1.442695
    %v1670 = vpow.pop %v1669
    %v1671 = vadd.f32 %v1670, 1.0
    %v1672 = vrcp.pop %v1671
    %v1673 = vmul.f32 1.0, %v1672
    %v1674 = vmul.f32 %v1666, 0.0
    %v1675 = vmul.f32 %v1660, %v1667
    %v1676 = vadd.f32 %v1674, %v1675
    %v1677 = vtanh.pop %v1676
    %v1678 = vmul.f32 %v1673, %v1677
    %v1679 = vxor.u32 %v1608, 2147483648
    %v1680 = vmul.f32 %v1679, 1.442695
    %v1681 = vpow.pop %v1680
    %v1682 = vadd.f32 %v1681, 1.0
    %v1683 = vrcp.pop %v1682
    %v1684 = vmul.f32 1.0, %v1683
    %v1685 = vxor.u32 %v1610, 2147483648
    %v1686 = vmul.f32 %v1685, 1.442695
    %v1687 = vpow.pop %v1686
    %v1688 = vadd.f32 %v1687, 1.0
    %v1689 = vrcp.pop %v1688
    %v1690 = vmul.f32 1.0, %v1689
    %v1691 = vtanh.pop %v1649
    %v1692 = vxor.u32 %v1651, 2147483648
    %v1693 = vmul.f32 %v1692, 1.442695
    %v1694 = vpow.pop %v1693
    %v1695 = vadd.f32 %v1694, 1.0
    %v1696 = vrcp.pop %v1695
    %v1697 = vmul.f32 1.0, %v1696
    %v1698 = vmul.f32 %v1690, 0.0
    %v1699 = vmul.f32 %v1684, %v1691
    %v1700 = vadd.f32 %v1698, %v1699
    %v1701 = vtanh.pop %v1700
    %v1702 = vmul.f32 %v1697, %v1701
    %v1703 = vpack.c.bf16 %v1678, %v1678
    %s1704 = smul.u32 0, 2
    %s1705 = smul.addr %s1704, 4
    %s1706 = scalar_lea.vmem [#allocation3], %s1705
    %1707 = vst [vmem:[%s1706] sm:$0xf] %v1703
    %v1708 = vpack.c.bf16 %v1702, %v1702
    %s1709 = smul.u32 7, 2
    %s1710 = smul.addr %s1709, 4
    %s1711 = scalar_lea.vmem [#allocation3], %s1710
    %1712 = vst [vmem:[%s1711 + $0x4] sm:$0xf] %v1708
    %v1713 = vld [vmem:[#allocation6] sm:$0xff]
    %v1714 = vld [vmem:[#allocation6 + $0x8] sm:$0xff]
    %v1715 = vld [vmem:[#allocation6 + $0x10] sm:$0xff]
    %v1716 = vld [vmem:[#allocation6 + $0x18] sm:$0xff]
    %v1717 = vld [vmem:[#allocation6 + $0x20] sm:$0xff]
    %v1718 = vld [vmem:[#allocation6 + $0x28] sm:$0xff]
    %v1719 = vld [vmem:[#allocation6 + $0x30] sm:$0xff]
    %v1720 = vld [vmem:[#allocation6 + $0x38] sm:$0xff]
    %v1721 = vld [vmem:[#allocation6 + $0x40] sm:$0xff]
    %v1722 = vld [vmem:[#allocation6 + $0x48] sm:$0xff]
    %v1723 = vld [vmem:[#allocation6 + $0x50] sm:$0xff]
    %v1724 = vld [vmem:[#allocation6 + $0x58] sm:$0xff]
    %v1725 = vld [vmem:[#allocation6 + $0x60] sm:$0xff]
    %v1726 = vld [vmem:[#allocation6 + $0x68] sm:$0xff]
    %v1727 = vld [vmem:[#allocation6 + $0x70] sm:$0xff]
    %v1728 = vld [vmem:[#allocation6 + $0x78] sm:$0xff]
    %v1729 = vld [vmem:[#allocation6 + $0x80] sm:$0xff]
    %v1730 = vld [vmem:[#allocation6 + $0x88] sm:$0xff]
    %v1731 = vld [vmem:[#allocation6 + $0x90] sm:$0xff]
    %v1732 = vld [vmem:[#allocation6 + $0x98] sm:$0xff]
    %v1733 = vld [vmem:[#allocation6 + $0xa0] sm:$0xff]
    %v1734 = vld [vmem:[#allocation6 + $0xa8] sm:$0xff]
    %v1735 = vld [vmem:[#allocation6 + $0xb0] sm:$0xff]
    %v1736 = vld [vmem:[#allocation6 + $0xb8] sm:$0xff]
    %v1737 = vld [vmem:[#allocation6 + $0xc0] sm:$0xff]
    %v1738 = vld [vmem:[#allocation6 + $0xc8] sm:$0xff]
    %v1739 = vld [vmem:[#allocation6 + $0xd0] sm:$0xff]
    %v1740 = vld [vmem:[#allocation6 + $0xd8] sm:$0xff]
    %v1741 = vld [vmem:[#allocation6 + $0xe0] sm:$0xff]
    %v1742 = vld [vmem:[#allocation6 + $0xe8] sm:$0xff]
    %v1743 = vld [vmem:[#allocation6 + $0xf0] sm:$0xff]
    %v1744 = vld [vmem:[#allocation6 + $0xf8] sm:$0xff]
    %v1745 = vld [vmem:[#allocation8] sm:$0xff]
    %v1746 = vld [vmem:[#allocation8 + $0x8] sm:$0xff]
    %v1747 = vld [vmem:[#allocation8 + $0x10] sm:$0xff]
    %v1748 = vld [vmem:[#allocation8 + $0x18] sm:$0xff]
    %v1749 = vld [vmem:[#allocation8 + $0x20] sm:$0xff]
    %v1750 = vld [vmem:[#allocation8 + $0x28] sm:$0xff]
    %v1751 = vld [vmem:[#allocation8 + $0x30] sm:$0xff]
    %v1752 = vld [vmem:[#allocation8 + $0x38] sm:$0xff]
    %v1753 = vld [vmem:[#allocation8 + $0x40] sm:$0xff]
    %v1754 = vld [vmem:[#allocation8 + $0x48] sm:$0xff]
    %v1755 = vld [vmem:[#allocation8 + $0x50] sm:$0xff]
    %v1756 = vld [vmem:[#allocation8 + $0x58] sm:$0xff]
    %v1757 = vld [vmem:[#allocation8 + $0x60] sm:$0xff]
    %v1758 = vld [vmem:[#allocation8 + $0x68] sm:$0xff]
    %v1759 = vld [vmem:[#allocation8 + $0x70] sm:$0xff]
    %v1760 = vld [vmem:[#allocation8 + $0x78] sm:$0xff]
    %v1761 = vld [vmem:[#allocation8 + $0x80] sm:$0xff]
    %v1762 = vld [vmem:[#allocation8 + $0x88] sm:$0xff]
    %v1763 = vld [vmem:[#allocation8 + $0x90] sm:$0xff]
    %v1764 = vld [vmem:[#allocation8 + $0x98] sm:$0xff]
    %v1765 = vld [vmem:[#allocation8 + $0xa0] sm:$0xff]
    %v1766 = vld [vmem:[#allocation8 + $0xa8] sm:$0xff]
    %v1767 = vld [vmem:[#allocation8 + $0xb0] sm:$0xff]
    %v1768 = vld [vmem:[#allocation8 + $0xb8] sm:$0xff]
    %v1769 = vld [vmem:[#allocation8 + $0xc0] sm:$0xff]
    %v1770 = vld [vmem:[#allocation8 + $0xc8] sm:$0xff]
    %v1771 = vld [vmem:[#allocation8 + $0xd0] sm:$0xff]
    %v1772 = vld [vmem:[#allocation8 + $0xd8] sm:$0xff]
    %v1773 = vld [vmem:[#allocation8 + $0xe0] sm:$0xff]
    %v1774 = vld [vmem:[#allocation8 + $0xe8] sm:$0xff]
    %v1775 = vld [vmem:[#allocation8 + $0xf0] sm:$0xff]
    %v1776 = vld [vmem:[#allocation8 + $0xf8] sm:$0xff]
    %s1777 = smul.u32 1, 8
    %s1778 = smul.addr %s1777, 4
    %s1779 = scalar_lea.vmem [#allocation2], %s1778
    %v1780 = vld [vmem:[%s1779] sm:$0xff]
    %v1781 = vld [vmem:[%s1779 + $0x8] sm:$0xff]
    %v1782 = vunpack.c.l.bf16 %v1780
    %v1783 = vunpack.c.h.bf16 %v1780
    %v1784 = vunpack.c.l.bf16 %v1781
    %v1785 = vunpack.c.h.bf16 %v1781
    %v1818 = vunpack.c.l.b16 %v1713
    %v1819 = vunpack.c.h.b16 %v1713
    %v1820 = vunpack.c.l.b16 %v1714
    %v1821 = vunpack.c.h.b16 %v1714
    %v1822 = vunpack.c.l.b16 %v1715
    %v1823 = vunpack.c.h.b16 %v1715
    %v1824 = vunpack.c.l.b16 %v1716
    %v1825 = vunpack.c.h.b16 %v1716
    %v1826 = vunpack.c.l.b16 %v1717
    %v1827 = vunpack.c.h.b16 %v1717
    %v1828 = vunpack.c.l.b16 %v1718
    %v1829 = vunpack.c.h.b16 %v1718
    %v1830 = vunpack.c.l.b16 %v1719
    %v1831 = vunpack.c.h.b16 %v1719
    %v1832 = vunpack.c.l.b16 %v1720
    %v1833 = vunpack.c.h.b16 %v1720
    %v1834 = vunpack.c.l.b16 %v1721
    %v1835 = vunpack.c.h.b16 %v1721
    %v1836 = vunpack.c.l.b16 %v1722
    %v1837 = vunpack.c.h.b16 %v1722
    %v1838 = vunpack.c.l.b16 %v1723
    %v1839 = vunpack.c.h.b16 %v1723
    %v1840 = vunpack.c.l.b16 %v1724
    %v1841 = vunpack.c.h.b16 %v1724
    %v1842 = vunpack.c.l.b16 %v1725
    %v1843 = vunpack.c.h.b16 %v1725
    %v1844 = vunpack.c.l.b16 %v1726
    %v1845 = vunpack.c.h.b16 %v1726
    %v1846 = vunpack.c.l.b16 %v1727
    %v1847 = vunpack.c.h.b16 %v1727
    %v1848 = vunpack.c.l.b16 %v1728
    %v1849 = vunpack.c.h.b16 %v1728
    %v1850 = vunpack.c.l.b16 %v1729
    %v1851 = vunpack.c.h.b16 %v1729
    %v1852 = vunpack.c.l.b16 %v1730
    %v1853 = vunpack.c.h.b16 %v1730
    %v1854 = vunpack.c.l.b16 %v1731
    %v1855 = vunpack.c.h.b16 %v1731
    %v1856 = vunpack.c.l.b16 %v1732
    %v1857 = vunpack.c.h.b16 %v1732
    %v1858 = vunpack.c.l.b16 %v1733
    %v1859 = vunpack.c.h.b16 %v1733
    %v1860 = vunpack.c.l.b16 %v1734
    %v1861 = vunpack.c.h.b16 %v1734
    %v1862 = vunpack.c.l.b16 %v1735
    %v1863 = vunpack.c.h.b16 %v1735
    %v1864 = vunpack.c.l.b16 %v1736
    %v1865 = vunpack.c.h.b16 %v1736
    %v1866 = vunpack.c.l.b16 %v1737
    %v1867 = vunpack.c.h.b16 %v1737
    %v1868 = vunpack.c.l.b16 %v1738
    %v1869 = vunpack.c.h.b16 %v1738
    %v1870 = vunpack.c.l.b16 %v1739
    %v1871 = vunpack.c.h.b16 %v1739
    %v1872 = vunpack.c.l.b16 %v1740
    %v1873 = vunpack.c.h.b16 %v1740
    %v1874 = vunpack.c.l.b16 %v1741
    %v1875 = vunpack.c.h.b16 %v1741
    %v1876 = vunpack.c.l.b16 %v1742
    %v1877 = vunpack.c.h.b16 %v1742
    %v1878 = vunpack.c.l.b16 %v1743
    %v1879 = vunpack.c.h.b16 %v1743
    %v1880 = vunpack.c.l.b16 %v1744
    %v1881 = vunpack.c.h.b16 %v1744
    %v1882 = vpack.c.b16 %v1822, %v1818
    %v1883 = vpack.c.b16 %v1823, %v1819
    %v1884 = vpack.c.b16 %v1824, %v1820
    %v1885 = vpack.c.b16 %v1825, %v1821
    %v1886 = vpack.c.b16 %v1830, %v1826
    %v1887 = vpack.c.b16 %v1831, %v1827
    %v1888 = vpack.c.b16 %v1832, %v1828
    %v1889 = vpack.c.b16 %v1833, %v1829
    %v1890 = vpack.c.b16 %v1838, %v1834
    %v1891 = vpack.c.b16 %v1839, %v1835
    %v1892 = vpack.c.b16 %v1840, %v1836
    %v1893 = vpack.c.b16 %v1841, %v1837
    %v1894 = vpack.c.b16 %v1846, %v1842
    %v1895 = vpack.c.b16 %v1847, %v1843
    %v1896 = vpack.c.b16 %v1848, %v1844
    %v1897 = vpack.c.b16 %v1849, %v1845
    %v1898 = vpack.c.b16 %v1854, %v1850
    %v1899 = vpack.c.b16 %v1855, %v1851
    %v1900 = vpack.c.b16 %v1856, %v1852
    %v1901 = vpack.c.b16 %v1857, %v1853
    %v1902 = vpack.c.b16 %v1862, %v1858
    %v1903 = vpack.c.b16 %v1863, %v1859
    %v1904 = vpack.c.b16 %v1864, %v1860
    %v1905 = vpack.c.b16 %v1865, %v1861
    %v1906 = vpack.c.b16 %v1870, %v1866
    %v1907 = vpack.c.b16 %v1871, %v1867
    %v1908 = vpack.c.b16 %v1872, %v1868
    %v1909 = vpack.c.b16 %v1873, %v1869
    %v1910 = vpack.c.b16 %v1878, %v1874
    %v1911 = vpack.c.b16 %v1879, %v1875
    %v1912 = vpack.c.b16 %v1880, %v1876
    %v1913 = vpack.c.b16 %v1881, %v1877
    %1946 = vmatprep.subr.bf16.mxu0 %v1911
    %1947 = vmatpush1.bf16.msra.mxu0 %v1910
    %1948 = vmatprep.subr.bf16.mxu0 %v1907
    %1949 = vmatpush1.bf16.msra.mxu0 %v1906
    %1950 = vmatprep.subr.bf16.mxu0 %v1903
    %1951 = vmatpush1.bf16.msra.mxu0 %v1902
    %1952 = vmatprep.subr.bf16.mxu0 %v1899
    %1953 = vmatpush1.bf16.msra.mxu0 %v1898
    %1954 = vmatprep.subr.bf16.mxu0 %v1895
    %1955 = vmatpush1.bf16.msra.mxu0 %v1894
    %1956 = vmatprep.subr.bf16.mxu0 %v1891
    %1957 = vmatpush1.bf16.msra.mxu0 %v1890
    %1958 = vmatprep.subr.bf16.mxu0 %v1887
    %1959 = vmatpush1.bf16.msra.mxu0 %v1886
    %1960 = vmatprep.subr.bf16.mxu0 %v1883
    %1961 = vmatpush1.bf16.msra.mxu0 %v1882
    %1962 = vmatprep.subr.bf16.mxu0 0
    %1963 = vmatpush2.bf16.msra.mxu0 0
    %1964 = vmatprep.subr.bf16.mxu0 0
    %1965 = vmatpush2.bf16.msra.mxu0 0
    %1966 = vmatprep.subr.bf16.mxu0 0
    %1967 = vmatpush2.bf16.msra.mxu0 0
    %1968 = vmatprep.subr.bf16.mxu0 0
    %1969 = vmatpush2.bf16.msra.mxu0 0
    %1970 = vmatprep.subr.bf16.mxu0 0
    %1971 = vmatpush2.bf16.msra.mxu0 0
    %1972 = vmatprep.subr.bf16.mxu0 0
    %1973 = vmatpush2.bf16.msra.mxu0 0
    %1974 = vmatprep.subr.bf16.mxu0 0
    %1975 = vmatpush2.bf16.msra.mxu0 0
    %1976 = vmatprep.subr.bf16.mxu0 0
    %1977 = vmatpush2.bf16.msra.mxu0 0
    %1978 = vmatprep.mubr.bf16.mxu0 0
    %1979 = vmatmul.mubr.bf16.gmra.mxu0 %v1703
    %v1980 = vpop.f32.mrf.mxu0
    %v1981 = vadd.f32 %v1782, %v1980
    %v1982 = vpop.f32.mrf.mxu0
    %v1983 = vadd.f32 %v1783, %v1982
    %v1984 = vpop.f32.mrf.mxu0
    %v1985 = vpop.f32.mrf.mxu0
    %1986 = vdwg.mxu0
    %1987 = vmatprep.subr.bf16.mxu0 %v1913
    %1988 = vmatpush1.bf16.msra.mxu0 %v1912
    %1989 = vmatprep.subr.bf16.mxu0 %v1909
    %1990 = vmatpush1.bf16.msra.mxu0 %v1908
    %1991 = vmatprep.subr.bf16.mxu0 %v1905
    %1992 = vmatpush1.bf16.msra.mxu0 %v1904
    %1993 = vmatprep.subr.bf16.mxu0 %v1901
    %1994 = vmatpush1.bf16.msra.mxu0 %v1900
    %1995 = vmatprep.subr.bf16.mxu0 %v1897
    %1996 = vmatpush1.bf16.msra.mxu0 %v1896
    %1997 = vmatprep.subr.bf16.mxu0 %v1893
    %1998 = vmatpush1.bf16.msra.mxu0 %v1892
    %1999 = vmatprep.subr.bf16.mxu0 %v1889
    %2000 = vmatpush1.bf16.msra.mxu0 %v1888
    %2001 = vmatprep.subr.bf16.mxu0 %v1885
    %2002 = vmatpush1.bf16.msra.mxu0 %v1884
    %2003 = vmatprep.subr.bf16.mxu0 0
    %2004 = vmatpush2.bf16.msra.mxu0 0
    %2005 = vmatprep.subr.bf16.mxu0 0
    %2006 = vmatpush2.bf16.msra.mxu0 0
    %2007 = vmatprep.subr.bf16.mxu0 0
    %2008 = vmatpush2.bf16.msra.mxu0 0
    %2009 = vmatprep.subr.bf16.mxu0 0
    %2010 = vmatpush2.bf16.msra.mxu0 0
    %2011 = vmatprep.subr.bf16.mxu0 0
    %2012 = vmatpush2.bf16.msra.mxu0 0
    %2013 = vmatprep.subr.bf16.mxu0 0
    %2014 = vmatpush2.bf16.msra.mxu0 0
    %2015 = vmatprep.subr.bf16.mxu0 0
    %2016 = vmatpush2.bf16.msra.mxu0 0
    %2017 = vmatprep.subr.bf16.mxu0 0
    %2018 = vmatpush2.bf16.msra.mxu0 0
    %2019 = vmatprep.mubr.bf16.mxu0 0
    %2020 = vmatmul.mubr.bf16.gmra.mxu0 %v1703
    %v2021 = vpop.f32.mrf.mxu0
    %v2022 = vadd.f32 %v1784, %v2021
    %v2023 = vpop.f32.mrf.mxu0
    %v2024 = vadd.f32 %v1785, %v2023
    %v2025 = vpop.f32.mrf.mxu0
    %v2026 = vpop.f32.mrf.mxu0
    %2027 = vdwg.mxu0
    %s2028 = smul.u32 6, 8
    %s2029 = smul.addr %s2028, 4
    %s2030 = scalar_lea.vmem [#allocation2], %s2029
    %v2031 = vld [vmem:[%s2030 + $0x10] sm:$0xff]
    %v2032 = vld [vmem:[%s2030 + $0x18] sm:$0xff]
    %v2033 = vunpack.c.l.bf16 %v2031
    %v2034 = vunpack.c.h.bf16 %v2031
    %v2035 = vunpack.c.l.bf16 %v2032
    %v2036 = vunpack.c.h.bf16 %v2032
    %v2069 = vunpack.c.l.b16 %v1745
    %v2070 = vunpack.c.h.b16 %v1745
    %v2071 = vunpack.c.l.b16 %v1746
    %v2072 = vunpack.c.h.b16 %v1746
    %v2073 = vunpack.c.l.b16 %v1747
    %v2074 = vunpack.c.h.b16 %v1747
    %v2075 = vunpack.c.l.b16 %v1748
    %v2076 = vunpack.c.h.b16 %v1748
    %v2077 = vunpack.c.l.b16 %v1749
    %v2078 = vunpack.c.h.b16 %v1749
    %v2079 = vunpack.c.l.b16 %v1750
    %v2080 = vunpack.c.h.b16 %v1750
    %v2081 = vunpack.c.l.b16 %v1751
    %v2082 = vunpack.c.h.b16 %v1751
    %v2083 = vunpack.c.l.b16 %v1752
    %v2084 = vunpack.c.h.b16 %v1752
    %v2085 = vunpack.c.l.b16 %v1753
    %v2086 = vunpack.c.h.b16 %v1753
    %v2087 = vunpack.c.l.b16 %v1754
    %v2088 = vunpack.c.h.b16 %v1754
    %v2089 = vunpack.c.l.b16 %v1755
    %v2090 = vunpack.c.h.b16 %v1755
    %v2091 = vunpack.c.l.b16 %v1756
    %v2092 = vunpack.c.h.b16 %v1756
    %v2093 = vunpack.c.l.b16 %v1757
    %v2094 = vunpack.c.h.b16 %v1757
    %v2095 = vunpack.c.l.b16 %v1758
    %v2096 = vunpack.c.h.b16 %v1758
    %v2097 = vunpack.c.l.b16 %v1759
    %v2098 = vunpack.c.h.b16 %v1759
    %v2099 = vunpack.c.l.b16 %v1760
    %v2100 = vunpack.c.h.b16 %v1760
    %v2101 = vunpack.c.l.b16 %v1761
    %v2102 = vunpack.c.h.b16 %v1761
    %v2103 = vunpack.c.l.b16 %v1762
    %v2104 = vunpack.c.h.b16 %v1762
    %v2105 = vunpack.c.l.b16 %v1763
    %v2106 = vunpack.c.h.b16 %v1763
    %v2107 = vunpack.c.l.b16 %v1764
    %v2108 = vunpack.c.h.b16 %v1764
    %v2109 = vunpack.c.l.b16 %v1765
    %v2110 = vunpack.c.h.b16 %v1765
    %v2111 = vunpack.c.l.b16 %v1766
    %v2112 = vunpack.c.h.b16 %v1766
    %v2113 = vunpack.c.l.b16 %v1767
    %v2114 = vunpack.c.h.b16 %v1767
    %v2115 = vunpack.c.l.b16 %v1768
    %v2116 = vunpack.c.h.b16 %v1768
    %v2117 = vunpack.c.l.b16 %v1769
    %v2118 = vunpack.c.h.b16 %v1769
    %v2119 = vunpack.c.l.b16 %v1770
    %v2120 = vunpack.c.h.b16 %v1770
    %v2121 = vunpack.c.l.b16 %v1771
    %v2122 = vunpack.c.h.b16 %v1771
    %v2123 = vunpack.c.l.b16 %v1772
    %v2124 = vunpack.c.h.b16 %v1772
    %v2125 = vunpack.c.l.b16 %v1773
    %v2126 = vunpack.c.h.b16 %v1773
    %v2127 = vunpack.c.l.b16 %v1774
    %v2128 = vunpack.c.h.b16 %v1774
    %v2129 = vunpack.c.l.b16 %v1775
    %v2130 = vunpack.c.h.b16 %v1775
    %v2131 = vunpack.c.l.b16 %v1776
    %v2132 = vunpack.c.h.b16 %v1776
    %v2133 = vpack.c.b16 %v2073, %v2069
    %v2134 = vpack.c.b16 %v2074, %v2070
    %v2135 = vpack.c.b16 %v2075, %v2071
    %v2136 = vpack.c.b16 %v2076, %v2072
    %v2137 = vpack.c.b16 %v2081, %v2077
    %v2138 = vpack.c.b16 %v2082, %v2078
    %v2139 = vpack.c.b16 %v2083, %v2079
    %v2140 = vpack.c.b16 %v2084, %v2080
    %v2141 = vpack.c.b16 %v2089, %v2085
    %v2142 = vpack.c.b16 %v2090, %v2086
    %v2143 = vpack.c.b16 %v2091, %v2087
    %v2144 = vpack.c.b16 %v2092, %v2088
    %v2145 = vpack.c.b16 %v2097, %v2093
    %v2146 = vpack.c.b16 %v2098, %v2094
    %v2147 = vpack.c.b16 %v2099, %v2095
    %v2148 = vpack.c.b16 %v2100, %v2096
    %v2149 = vpack.c.b16 %v2105, %v2101
    %v2150 = vpack.c.b16 %v2106, %v2102
    %v2151 = vpack.c.b16 %v2107, %v2103
    %v2152 = vpack.c.b16 %v2108, %v2104
    %v2153 = vpack.c.b16 %v2113, %v2109
    %v2154 = vpack.c.b16 %v2114, %v2110
    %v2155 = vpack.c.b16 %v2115, %v2111
    %v2156 = vpack.c.b16 %v2116, %v2112
    %v2157 = vpack.c.b16 %v2121, %v2117
    %v2158 = vpack.c.b16 %v2122, %v2118
    %v2159 = vpack.c.b16 %v2123, %v2119
    %v2160 = vpack.c.b16 %v2124, %v2120
    %v2161 = vpack.c.b16 %v2129, %v2125
    %v2162 = vpack.c.b16 %v2130, %v2126
    %v2163 = vpack.c.b16 %v2131, %v2127
    %v2164 = vpack.c.b16 %v2132, %v2128
    %2197 = vmatprep.subr.bf16.mxu0 %v2162
    %2198 = vmatpush1.bf16.msra.mxu0 %v2161
    %2199 = vmatprep.subr.bf16.mxu0 %v2158
    %2200 = vmatpush1.bf16.msra.mxu0 %v2157
    %2201 = vmatprep.subr.bf16.mxu0 %v2154
    %2202 = vmatpush1.bf16.msra.mxu0 %v2153
    %2203 = vmatprep.subr.bf16.mxu0 %v2150
    %2204 = vmatpush1.bf16.msra.mxu0 %v2149
    %2205 = vmatprep.subr.bf16.mxu0 %v2146
    %2206 = vmatpush1.bf16.msra.mxu0 %v2145
    %2207 = vmatprep.subr.bf16.mxu0 %v2142
    %2208 = vmatpush1.bf16.msra.mxu0 %v2141
    %2209 = vmatprep.subr.bf16.mxu0 %v2138
    %2210 = vmatpush1.bf16.msra.mxu0 %v2137
    %2211 = vmatprep.subr.bf16.mxu0 %v2134
    %2212 = vmatpush1.bf16.msra.mxu0 %v2133
    %2213 = vmatprep.subr.bf16.mxu0 0
    %2214 = vmatpush2.bf16.msra.mxu0 0
    %2215 = vmatprep.subr.bf16.mxu0 0
    %2216 = vmatpush2.bf16.msra.mxu0 0
    %2217 = vmatprep.subr.bf16.mxu0 0
    %2218 = vmatpush2.bf16.msra.mxu0 0
    %2219 = vmatprep.subr.bf16.mxu0 0
    %2220 = vmatpush2.bf16.msra.mxu0 0
    %2221 = vmatprep.subr.bf16.mxu0 0
    %2222 = vmatpush2.bf16.msra.mxu0 0
    %2223 = vmatprep.subr.bf16.mxu0 0
    %2224 = vmatpush2.bf16.msra.mxu0 0
    %2225 = vmatprep.subr.bf16.mxu0 0
    %2226 = vmatpush2.bf16.msra.mxu0 0
    %2227 = vmatprep.subr.bf16.mxu0 0
    %2228 = vmatpush2.bf16.msra.mxu0 0
    %2229 = vmatprep.mubr.bf16.mxu0 0
    %2230 = vmatmul.mubr.bf16.gmra.mxu0 %v1708
    %v2231 = vpop.f32.mrf.mxu0
    %v2232 = vadd.f32 %v2033, %v2231
    %v2233 = vpop.f32.mrf.mxu0
    %v2234 = vadd.f32 %v2034, %v2233
    %v2235 = vpop.f32.mrf.mxu0
    %v2236 = vpop.f32.mrf.mxu0
    %2237 = vdwg.mxu0
    %2238 = vmatprep.subr.bf16.mxu0 %v2164
    %2239 = vmatpush1.bf16.msra.mxu0 %v2163
    %2240 = vmatprep.subr.bf16.mxu0 %v2160
    %2241 = vmatpush1.bf16.msra.mxu0 %v2159
    %2242 = vmatprep.subr.bf16.mxu0 %v2156
    %2243 = vmatpush1.bf16.msra.mxu0 %v2155
    %2244 = vmatprep.subr.bf16.mxu0 %v2152
    %2245 = vmatpush1.bf16.msra.mxu0 %v2151
    %2246 = vmatprep.subr.bf16.mxu0 %v2148
    %2247 = vmatpush1.bf16.msra.mxu0 %v2147
    %2248 = vmatprep.subr.bf16.mxu0 %v2144
    %2249 = vmatpush1.bf16.msra.mxu0 %v2143
    %2250 = vmatprep.subr.bf16.mxu0 %v2140
    %2251 = vmatpush1.bf16.msra.mxu0 %v2139
    %2252 = vmatprep.subr.bf16.mxu0 %v2136
    %2253 = vmatpush1.bf16.msra.mxu0 %v2135
    %2254 = vmatprep.subr.bf16.mxu0 0
    %2255 = vmatpush2.bf16.msra.mxu0 0
    %2256 = vmatprep.subr.bf16.mxu0 0
    %2257 = vmatpush2.bf16.msra.mxu0 0
    %2258 = vmatprep.subr.bf16.mxu0 0
    %2259 = vmatpush2.bf16.msra.mxu0 0
    %2260 = vmatprep.subr.bf16.mxu0 0
    %2261 = vmatpush2.bf16.msra.mxu0 0
    %2262 = vmatprep.subr.bf16.mxu0 0
    %2263 = vmatpush2.bf16.msra.mxu0 0
    %2264 = vmatprep.subr.bf16.mxu0 0
    %2265 = vmatpush2.bf16.msra.mxu0 0
    %2266 = vmatprep.subr.bf16.mxu0 0
    %2267 = vmatpush2.bf16.msra.mxu0 0
    %2268 = vmatprep.subr.bf16.mxu0 0
    %2269 = vmatpush2.bf16.msra.mxu0 0
    %2270 = vmatprep.mubr.bf16.mxu0 0
    %2271 = vmatmul.mubr.bf16.gmra.mxu0 %v1708
    %v2272 = vpop.f32.mrf.mxu0
    %v2273 = vadd.f32 %v2035, %v2272
    %v2274 = vpop.f32.mrf.mxu0
    %v2275 = vadd.f32 %v2036, %v2274
    %v2276 = vpop.f32.mrf.mxu0
    %v2277 = vpop.f32.mrf.mxu0
    %2278 = vdwg.mxu0
    %v2279 = vxor.u32 %v1981, 2147483648
    %v2280 = vmul.f32 %v2279, 1.442695
    %v2281 = vpow.pop %v2280
    %v2282 = vadd.f32 %v2281, 1.0
    %v2283 = vrcp.pop %v2282
    %v2284 = vmul.f32 1.0, %v2283
    %v2285 = vxor.u32 %v1983, 2147483648
    %v2286 = vmul.f32 %v2285, 1.442695
    %v2287 = vpow.pop %v2286
    %v2288 = vadd.f32 %v2287, 1.0
    %v2289 = vrcp.pop %v2288
    %v2290 = vmul.f32 1.0, %v2289
    %v2291 = vtanh.pop %v2022
    %v2292 = vxor.u32 %v2024, 2147483648
    %v2293 = vmul.f32 %v2292, 1.442695
    %v2294 = vpow.pop %v2293
    %v2295 = vadd.f32 %v2294, 1.0
    %v2296 = vrcp.pop %v2295
    %v2297 = vmul.f32 1.0, %v2296
    %v2298 = vmul.f32 %v2290, %v1676
    %v2299 = vmul.f32 %v2284, %v2291
    %v2300 = vadd.f32 %v2298, %v2299
    %v2301 = vtanh.pop %v2300
    %v2302 = vmul.f32 %v2297, %v2301
    %v2303 = vxor.u32 %v2232, 2147483648
    %v2304 = vmul.f32 %v2303, 1.442695
    %v2305 = vpow.pop %v2304
    %v2306 = vadd.f32 %v2305, 1.0
    %v2307 = vrcp.pop %v2306
    %v2308 = vmul.f32 1.0, %v2307
    %v2309 = vxor.u32 %v2234, 2147483648
    %v2310 = vmul.f32 %v2309, 1.442695
    %v2311 = vpow.pop %v2310
    %v2312 = vadd.f32 %v2311, 1.0
    %v2313 = vrcp.pop %v2312
    %v2314 = vmul.f32 1.0, %v2313
    %v2315 = vtanh.pop %v2273
    %v2316 = vxor.u32 %v2275, 2147483648
    %v2317 = vmul.f32 %v2316, 1.442695
    %v2318 = vpow.pop %v2317
    %v2319 = vadd.f32 %v2318, 1.0
    %v2320 = vrcp.pop %v2319
    %v2321 = vmul.f32 1.0, %v2320
    %v2322 = vmul.f32 %v2314, %v1700
    %v2323 = vmul.f32 %v2308, %v2315
    %v2324 = vadd.f32 %v2322, %v2323
    %v2325 = vtanh.pop %v2324
    %v2326 = vmul.f32 %v2321, %v2325
    %v2327 = vpack.c.bf16 %v2302, %v2302
    %s2328 = smul.u32 1, 2
    %s2329 = smul.addr %s2328, 4
    %s2330 = scalar_lea.vmem [#allocation3], %s2329
    %2331 = vst [vmem:[%s2330] sm:$0xf] %v2327
    %v2332 = vpack.c.bf16 %v2326, %v2326
    %s2333 = smul.u32 6, 2
    %s2334 = smul.addr %s2333, 4
    %s2335 = scalar_lea.vmem [#allocation3], %s2334
    %2336 = vst [vmem:[%s2335 + $0x4] sm:$0xf] %v2332
    %v2337 = vld [vmem:[#allocation6] sm:$0xff]
    %v2338 = vld [vmem:[#allocation6 + $0x8] sm:$0xff]
    %v2339 = vld [vmem:[#allocation6 + $0x10] sm:$0xff]
    %v2340 = vld [vmem:[#allocation6 + $0x18] sm:$0xff]
    %v2341 = vld [vmem:[#allocation6 + $0x20] sm:$0xff]
    %v2342 = vld [vmem:[#allocation6 + $0x28] sm:$0xff]
    %v2343 = vld [vmem:[#allocation6 + $0x30] sm:$0xff]
    %v2344 = vld [vmem:[#allocation6 + $0x38] sm:$0xff]
    %v2345 = vld [vmem:[#allocation6 + $0x40] sm:$0xff]
    %v2346 = vld [vmem:[#allocation6 + $0x48] sm:$0xff]
    %v2347 = vld [vmem:[#allocation6 + $0x50] sm:$0xff]
    %v2348 = vld [vmem:[#allocation6 + $0x58] sm:$0xff]
    %v2349 = vld [vmem:[#allocation6 + $0x60] sm:$0xff]
    %v2350 = vld [vmem:[#allocation6 + $0x68] sm:$0xff]
    %v2351 = vld [vmem:[#allocation6 + $0x70] sm:$0xff]
    %v2352 = vld [vmem:[#allocation6 + $0x78] sm:$0xff]
    %v2353 = vld [vmem:[#allocation6 + $0x80] sm:$0xff]
    %v2354 = vld [vmem:[#allocation6 + $0x88] sm:$0xff]
    %v2355 = vld [vmem:[#allocation6 + $0x90] sm:$0xff]
    %v2356 = vld [vmem:[#allocation6 + $0x98] sm:$0xff]
    %v2357 = vld [vmem:[#allocation6 + $0xa0] sm:$0xff]
    %v2358 = vld [vmem:[#allocation6 + $0xa8] sm:$0xff]
    %v2359 = vld [vmem:[#allocation6 + $0xb0] sm:$0xff]
    %v2360 = vld [vmem:[#allocation6 + $0xb8] sm:$0xff]
    %v2361 = vld [vmem:[#allocation6 + $0xc0] sm:$0xff]
    %v2362 = vld [vmem:[#allocation6 + $0xc8] sm:$0xff]
    %v2363 = vld [vmem:[#allocation6 + $0xd0] sm:$0xff]
    %v2364 = vld [vmem:[#allocation6 + $0xd8] sm:$0xff]
    %v2365 = vld [vmem:[#allocation6 + $0xe0] sm:$0xff]
    %v2366 = vld [vmem:[#allocation6 + $0xe8] sm:$0xff]
    %v2367 = vld [vmem:[#allocation6 + $0xf0] sm:$0xff]
    %v2368 = vld [vmem:[#allocation6 + $0xf8] sm:$0xff]
    %v2369 = vld [vmem:[#allocation8] sm:$0xff]
    %v2370 = vld [vmem:[#allocation8 + $0x8] sm:$0xff]
    %v2371 = vld [vmem:[#allocation8 + $0x10] sm:$0xff]
    %v2372 = vld [vmem:[#allocation8 + $0x18] sm:$0xff]
    %v2373 = vld [vmem:[#allocation8 + $0x20] sm:$0xff]
    %v2374 = vld [vmem:[#allocation8 + $0x28] sm:$0xff]
    %v2375 = vld [vmem:[#allocation8 + $0x30] sm:$0xff]
    %v2376 = vld [vmem:[#allocation8 + $0x38] sm:$0xff]
    %v2377 = vld [vmem:[#allocation8 + $0x40] sm:$0xff]
    %v2378 = vld [vmem:[#allocation8 + $0x48] sm:$0xff]
    %v2379 = vld [vmem:[#allocation8 + $0x50] sm:$0xff]
    %v2380 = vld [vmem:[#allocation8 + $0x58] sm:$0xff]
    %v2381 = vld [vmem:[#allocation8 + $0x60] sm:$0xff]
    %v2382 = vld [vmem:[#allocation8 + $0x68] sm:$0xff]
    %v2383 = vld [vmem:[#allocation8 + $0x70] sm:$0xff]
    %v2384 = vld [vmem:[#allocation8 + $0x78] sm:$0xff]
    %v2385 = vld [vmem:[#allocation8 + $0x80] sm:$0xff]
    %v2386 = vld [vmem:[#allocation8 + $0x88] sm:$0xff]
    %v2387 = vld [vmem:[#allocation8 + $0x90] sm:$0xff]
    %v2388 = vld [vmem:[#allocation8 + $0x98] sm:$0xff]
    %v2389 = vld [vmem:[#allocation8 + $0xa0] sm:$0xff]
    %v2390 = vld [vmem:[#allocation8 + $0xa8] sm:$0xff]
    %v2391 = vld [vmem:[#allocation8 + $0xb0] sm:$0xff]
    %v2392 = vld [vmem:[#allocation8 + $0xb8] sm:$0xff]
    %v2393 = vld [vmem:[#allocation8 + $0xc0] sm:$0xff]
    %v2394 = vld [vmem:[#allocation8 + $0xc8] sm:$0xff]
    %v2395 = vld [vmem:[#allocation8 + $0xd0] sm:$0xff]
    %v2396 = vld [vmem:[#allocation8 + $0xd8] sm:$0xff]
    %v2397 = vld [vmem:[#allocation8 + $0xe0] sm:$0xff]
    %v2398 = vld [vmem:[#allocation8 + $0xe8] sm:$0xff]
    %v2399 = vld [vmem:[#allocation8 + $0xf0] sm:$0xff]
    %v2400 = vld [vmem:[#allocation8 + $0xf8] sm:$0xff]
    %s2401 = smul.u32 2, 8
    %s2402 = smul.addr %s2401, 4
    %s2403 = scalar_lea.vmem [#allocation2], %s2402
    %v2404 = vld [vmem:[%s2403] sm:$0xff]
    %v2405 = vld [vmem:[%s2403 + $0x8] sm:$0xff]
    %v2406 = vunpack.c.l.bf16 %v2404
    %v2407 = vunpack.c.h.bf16 %v2404
    %v2408 = vunpack.c.l.bf16 %v2405
    %v2409 = vunpack.c.h.bf16 %v2405
    %v2442 = vunpack.c.l.b16 %v2337
    %v2443 = vunpack.c.h.b16 %v2337
    %v2444 = vunpack.c.l.b16 %v2338
    %v2445 = vunpack.c.h.b16 %v2338
    %v2446 = vunpack.c.l.b16 %v2339
    %v2447 = vunpack.c.h.b16 %v2339
    %v2448 = vunpack.c.l.b16 %v2340
    %v2449 = vunpack.c.h.b16 %v2340
    %v2450 = vunpack.c.l.b16 %v2341
    %v2451 = vunpack.c.h.b16 %v2341
    %v2452 = vunpack.c.l.b16 %v2342
    %v2453 = vunpack.c.h.b16 %v2342
    %v2454 = vunpack.c.l.b16 %v2343
    %v2455 = vunpack.c.h.b16 %v2343
    %v2456 = vunpack.c.l.b16 %v2344
    %v2457 = vunpack.c.h.b16 %v2344
    %v2458 = vunpack.c.l.b16 %v2345
    %v2459 = vunpack.c.h.b16 %v2345
    %v2460 = vunpack.c.l.b16 %v2346
    %v2461 = vunpack.c.h.b16 %v2346
    %v2462 = vunpack.c.l.b16 %v2347
    %v2463 = vunpack.c.h.b16 %v2347
    %v2464 = vunpack.c.l.b16 %v2348
    %v2465 = vunpack.c.h.b16 %v2348
    %v2466 = vunpack.c.l.b16 %v2349
    %v2467 = vunpack.c.h.b16 %v2349
    %v2468 = vunpack.c.l.b16 %v2350
    %v2469 = vunpack.c.h.b16 %v2350
    %v2470 = vunpack.c.l.b16 %v2351
    %v2471 = vunpack.c.h.b16 %v2351
    %v2472 = vunpack.c.l.b16 %v2352
    %v2473 = vunpack.c.h.b16 %v2352
    %v2474 = vunpack.c.l.b16 %v2353
    %v2475 = vunpack.c.h.b16 %v2353
    %v2476 = vunpack.c.l.b16 %v2354
    %v2477 = vunpack.c.h.b16 %v2354
    %v2478 = vunpack.c.l.b16 %v2355
    %v2479 = vunpack.c.h.b16 %v2355
    %v2480 = vunpack.c.l.b16 %v2356
    %v2481 = vunpack.c.h.b16 %v2356
    %v2482 = vunpack.c.l.b16 %v2357
    %v2483 = vunpack.c.h.b16 %v2357
    %v2484 = vunpack.c.l.b16 %v2358
    %v2485 = vunpack.c.h.b16 %v2358
    %v2486 = vunpack.c.l.b16 %v2359
    %v2487 = vunpack.c.h.b16 %v2359
    %v2488 = vunpack.c.l.b16 %v2360
    %v2489 = vunpack.c.h.b16 %v2360
    %v2490 = vunpack.c.l.b16 %v2361
    %v2491 = vunpack.c.h.b16 %v2361
    %v2492 = vunpack.c.l.b16 %v2362
    %v2493 = vunpack.c.h.b16 %v2362
    %v2494 = vunpack.c.l.b16 %v2363
    %v2495 = vunpack.c.h.b16 %v2363
    %v2496 = vunpack.c.l.b16 %v2364
    %v2497 = vunpack.c.h.b16 %v2364
    %v2498 = vunpack.c.l.b16 %v2365
    %v2499 = vunpack.c.h.b16 %v2365
    %v2500 = vunpack.c.l.b16 %v2366
    %v2501 = vunpack.c.h.b16 %v2366
    %v2502 = vunpack.c.l.b16 %v2367
    %v2503 = vunpack.c.h.b16 %v2367
    %v2504 = vunpack.c.l.b16 %v2368
    %v2505 = vunpack.c.h.b16 %v2368
    %v2506 = vpack.c.b16 %v2446, %v2442
    %v2507 = vpack.c.b16 %v2447, %v2443
    %v2508 = vpack.c.b16 %v2448, %v2444
    %v2509 = vpack.c.b16 %v2449, %v2445
    %v2510 = vpack.c.b16 %v2454, %v2450
    %v2511 = vpack.c.b16 %v2455, %v2451
    %v2512 = vpack.c.b16 %v2456, %v2452
    %v2513 = vpack.c.b16 %v2457, %v2453
    %v2514 = vpack.c.b16 %v2462, %v2458
    %v2515 = vpack.c.b16 %v2463, %v2459
    %v2516 = vpack.c.b16 %v2464, %v2460
    %v2517 = vpack.c.b16 %v2465, %v2461
    %v2518 = vpack.c.b16 %v2470, %v2466
    %v2519 = vpack.c.b16 %v2471, %v2467
    %v2520 = vpack.c.b16 %v2472, %v2468
    %v2521 = vpack.c.b16 %v2473, %v2469
    %v2522 = vpack.c.b16 %v2478, %v2474
    %v2523 = vpack.c.b16 %v2479, %v2475
    %v2524 = vpack.c.b16 %v2480, %v2476
    %v2525 = vpack.c.b16 %v2481, %v2477
    %v2526 = vpack.c.b16 %v2486, %v2482
    %v2527 = vpack.c.b16 %v2487, %v2483
    %v2528 = vpack.c.b16 %v2488, %v2484
    %v2529 = vpack.c.b16 %v2489, %v2485
    %v2530 = vpack.c.b16 %v2494, %v2490
    %v2531 = vpack.c.b16 %v2495, %v2491
    %v2532 = vpack.c.b16 %v2496, %v2492
    %v2533 = vpack.c.b16 %v2497, %v2493
    %v2534 = vpack.c.b16 %v2502, %v2498
    %v2535 = vpack.c.b16 %v2503, %v2499
    %v2536 = vpack.c.b16 %v2504, %v2500
    %v2537 = vpack.c.b16 %v2505, %v2501
    %2570 = vmatprep.subr.bf16.mxu0 %v2535
    %2571 = vmatpush1.bf16.msra.mxu0 %v2534
    %2572 = vmatprep.subr.bf16.mxu0 %v2531
    %2573 = vmatpush1.bf16.msra.mxu0 %v2530
    %2574 = vmatprep.subr.bf16.mxu0 %v2527
    %2575 = vmatpush1.bf16.msra.mxu0 %v2526
    %2576 = vmatprep.subr.bf16.mxu0 %v2523
    %2577 = vmatpush1.bf16.msra.mxu0 %v2522
    %2578 = vmatprep.subr.bf16.mxu0 %v2519
    %2579 = vmatpush1.bf16.msra.mxu0 %v2518
    %2580 = vmatprep.subr.bf16.mxu0 %v2515
    %2581 = vmatpush1.bf16.msra.mxu0 %v2514
    %2582 = vmatprep.subr.bf16.mxu0 %v2511
    %2583 = vmatpush1.bf16.msra.mxu0 %v2510
    %2584 = vmatprep.subr.bf16.mxu0 %v2507
    %2585 = vmatpush1.bf16.msra.mxu0 %v2506
    %2586 = vmatprep.subr.bf16.mxu0 0
    %2587 = vmatpush2.bf16.msra.mxu0 0
    %2588 = vmatprep.subr.bf16.mxu0 0
    %2589 = vmatpush2.bf16.msra.mxu0 0
    %2590 = vmatprep.subr.bf16.mxu0 0
    %2591 = vmatpush2.bf16.msra.mxu0 0
    %2592 = vmatprep.subr.bf16.mxu0 0
    %2593 = vmatpush2.bf16.msra.mxu0 0
    %2594 = vmatprep.subr.bf16.mxu0 0
    %2595 = vmatpush2.bf16.msra.mxu0 0
    %2596 = vmatprep.subr.bf16.mxu0 0
    %2597 = vmatpush2.bf16.msra.mxu0 0
    %2598 = vmatprep.subr.bf16.mxu0 0
    %2599 = vmatpush2.bf16.msra.mxu0 0
    %2600 = vmatprep.subr.bf16.mxu0 0
    %2601 = vmatpush2.bf16.msra.mxu0 0
    %2602 = vmatprep.mubr.bf16.mxu0 0
    %2603 = vmatmul.mubr.bf16.gmra.mxu0 %v2327
    %v2604 = vpop.f32.mrf.mxu0
    %v2605 = vadd.f32 %v2406, %v2604
    %v2606 = vpop.f32.mrf.mxu0
    %v2607 = vadd.f32 %v2407, %v2606
    %v2608 = vpop.f32.mrf.mxu0
    %v2609 = vpop.f32.mrf.mxu0
    %2610 = vdwg.mxu0
    %2611 = vmatprep.subr.bf16.mxu0 %v2537
    %2612 = vmatpush1.bf16.msra.mxu0 %v2536
    %2613 = vmatprep.subr.bf16.mxu0 %v2533
    %2614 = vmatpush1.bf16.msra.mxu0 %v2532
    %2615 = vmatprep.subr.bf16.mxu0 %v2529
    %2616 = vmatpush1.bf16.msra.mxu0 %v2528
    %2617 = vmatprep.subr.bf16.mxu0 %v2525
    %2618 = vmatpush1.bf16.msra.mxu0 %v2524
    %2619 = vmatprep.subr.bf16.mxu0 %v2521
    %2620 = vmatpush1.bf16.msra.mxu0 %v2520
    %2621 = vmatprep.subr.bf16.mxu0 %v2517
    %2622 = vmatpush1.bf16.msra.mxu0 %v2516
    %2623 = vmatprep.subr.bf16.mxu0 %v2513
    %2624 = vmatpush1.bf16.msra.mxu0 %v2512
    %2625 = vmatprep.subr.bf16.mxu0 %v2509
    %2626 = vmatpush1.bf16.msra.mxu0 %v2508
    %2627 = vmatprep.subr.bf16.mxu0 0
    %2628 = vmatpush2.bf16.msra.mxu0 0
    %2629 = vmatprep.subr.bf16.mxu0 0
    %2630 = vmatpush2.bf16.msra.mxu0 0
    %2631 = vmatprep.subr.bf16.mxu0 0
    %2632 = vmatpush2.bf16.msra.mxu0 0
    %2633 = vmatprep.subr.bf16.mxu0 0
    %2634 = vmatpush2.bf16.msra.mxu0 0
    %2635 = vmatprep.subr.bf16.mxu0 0
    %2636 = vmatpush2.bf16.msra.mxu0 0
    %2637 = vmatprep.subr.bf16.mxu0 0
    %2638 = vmatpush2.bf16.msra.mxu0 0
    %2639 = vmatprep.subr.bf16.mxu0 0
    %2640 = vmatpush2.bf16.msra.mxu0 0
    %2641 = vmatprep.subr.bf16.mxu0 0
    %2642 = vmatpush2.bf16.msra.mxu0 0
    %2643 = vmatprep.mubr.bf16.mxu0 0
    %2644 = vmatmul.mubr.bf16.gmra.mxu0 %v2327
    %v2645 = vpop.f32.mrf.mxu0
    %v2646 = vadd.f32 %v2408, %v2645
    %v2647 = vpop.f32.mrf.mxu0
    %v2648 = vadd.f32 %v2409, %v2647
    %v2649 = vpop.f32.mrf.mxu0
    %v2650 = vpop.f32.mrf.mxu0
    %2651 = vdwg.mxu0
    %s2652 = smul.u32 5, 8
    %s2653 = smul.addr %s2652, 4
    %s2654 = scalar_lea.vmem [#allocation2], %s2653
    %v2655 = vld [vmem:[%s2654 + $0x10] sm:$0xff]
    %v2656 = vld [vmem:[%s2654 + $0x18] sm:$0xff]
    %v2657 = vunpack.c.l.bf16 %v2655
    %v2658 = vunpack.c.h.bf16 %v2655
    %v2659 = vunpack.c.l.bf16 %v2656
    %v2660 = vunpack.c.h.bf16 %v2656
    %v2693 = vunpack.c.l.b16 %v2369
    %v2694 = vunpack.c.h.b16 %v2369
    %v2695 = vunpack.c.l.b16 %v2370
    %v2696 = vunpack.c.h.b16 %v2370
    %v2697 = vunpack.c.l.b16 %v2371
    %v2698 = vunpack.c.h.b16 %v2371
    %v2699 = vunpack.c.l.b16 %v2372
    %v2700 = vunpack.c.h.b16 %v2372
    %v2701 = vunpack.c.l.b16 %v2373
    %v2702 = vunpack.c.h.b16 %v2373
    %v2703 = vunpack.c.l.b16 %v2374
    %v2704 = vunpack.c.h.b16 %v2374
    %v2705 = vunpack.c.l.b16 %v2375
    %v2706 = vunpack.c.h.b16 %v2375
    %v2707 = vunpack.c.l.b16 %v2376
    %v2708 = vunpack.c.h.b16 %v2376
    %v2709 = vunpack.c.l.b16 %v2377
    %v2710 = vunpack.c.h.b16 %v2377
    %v2711 = vunpack.c.l.b16 %v2378
    %v2712 = vunpack.c.h.b16 %v2378
    %v2713 = vunpack.c.l.b16 %v2379
    %v2714 = vunpack.c.h.b16 %v2379
    %v2715 = vunpack.c.l.b16 %v2380
    %v2716 = vunpack.c.h.b16 %v2380
    %v2717 = vunpack.c.l.b16 %v2381
    %v2718 = vunpack.c.h.b16 %v2381
    %v2719 = vunpack.c.l.b16 %v2382
    %v2720 = vunpack.c.h.b16 %v2382
    %v2721 = vunpack.c.l.b16 %v2383
    %v2722 = vunpack.c.h.b16 %v2383
    %v2723 = vunpack.c.l.b16 %v2384
    %v2724 = vunpack.c.h.b16 %v2384
    %v2725 = vunpack.c.l.b16 %v2385
    %v2726 = vunpack.c.h.b16 %v2385
    %v2727 = vunpack.c.l.b16 %v2386
    %v2728 = vunpack.c.h.b16 %v2386
    %v2729 = vunpack.c.l.b16 %v2387
    %v2730 = vunpack.c.h.b16 %v2387
    %v2731 = vunpack.c.l.b16 %v2388
    %v2732 = vunpack.c.h.b16 %v2388
    %v2733 = vunpack.c.l.b16 %v2389
    %v2734 = vunpack.c.h.b16 %v2389
    %v2735 = vunpack.c.l.b16 %v2390
    %v2736 = vunpack.c.h.b16 %v2390
    %v2737 = vunpack.c.l.b16 %v2391
    %v2738 = vunpack.c.h.b16 %v2391
    %v2739 = vunpack.c.l.b16 %v2392
    %v2740 = vunpack.c.h.b16 %v2392
    %v2741 = vunpack.c.l.b16 %v2393
    %v2742 = vunpack.c.h.b16 %v2393
    %v2743 = vunpack.c.l.b16 %v2394
    %v2744 = vunpack.c.h.b16 %v2394
    %v2745 = vunpack.c.l.b16 %v2395
    %v2746 = vunpack.c.h.b16 %v2395
    %v2747 = vunpack.c.l.b16 %v2396
    %v2748 = vunpack.c.h.b16 %v2396
    %v2749 = vunpack.c.l.b16 %v2397
    %v2750 = vunpack.c.h.b16 %v2397
    %v2751 = vunpack.c.l.b16 %v2398
    %v2752 = vunpack.c.h.b16 %v2398
    %v2753 = vunpack.c.l.b16 %v2399
    %v2754 = vunpack.c.h.b16 %v2399
    %v2755 = vunpack.c.l.b16 %v2400
    %v2756 = vunpack.c.h.b16 %v2400
    %v2757 = vpack.c.b16 %v2697, %v2693
    %v2758 = vpack.c.b16 %v2698, %v2694
    %v2759 = vpack.c.b16 %v2699, %v2695
    %v2760 = vpack.c.b16 %v2700, %v2696
    %v2761 = vpack.c.b16 %v2705, %v2701
    %v2762 = vpack.c.b16 %v2706, %v2702
    %v2763 = vpack.c.b16 %v2707, %v2703
    %v2764 = vpack.c.b16 %v2708, %v2704
    %v2765 = vpack.c.b16 %v2713, %v2709
    %v2766 = vpack.c.b16 %v2714, %v2710
    %v2767 = vpack.c.b16 %v2715, %v2711
    %v2768 = vpack.c.b16 %v2716, %v2712
    %v2769 = vpack.c.b16 %v2721, %v2717
    %v2770 = vpack.c.b16 %v2722, %v2718
    %v2771 = vpack.c.b16 %v2723, %v2719
    %v2772 = vpack.c.b16 %v2724, %v2720
    %v2773 = vpack.c.b16 %v2729, %v2725
    %v2774 = vpack.c.b16 %v2730, %v2726
    %v2775 = vpack.c.b16 %v2731, %v2727
    %v2776 = vpack.c.b16 %v2732, %v2728
    %v2777 = vpack.c.b16 %v2737, %v2733
    %v2778 = vpack.c.b16 %v2738, %v2734
    %v2779 = vpack.c.b16 %v2739, %v2735
    %v2780 = vpack.c.b16 %v2740, %v2736
    %v2781 = vpack.c.b16 %v2745, %v2741
    %v2782 = vpack.c.b16 %v2746, %v2742
    %v2783 = vpack.c.b16 %v2747, %v2743
    %v2784 = vpack.c.b16 %v2748, %v2744
    %v2785 = vpack.c.b16 %v2753, %v2749
    %v2786 = vpack.c.b16 %v2754, %v2750
    %v2787 = vpack.c.b16 %v2755, %v2751
    %v2788 = vpack.c.b16 %v2756, %v2752
    %2821 = vmatprep.subr.bf16.mxu0 %v2786
    %2822 = vmatpush1.bf16.msra.mxu0 %v2785
    %2823 = vmatprep.subr.bf16.mxu0 %v2782
    %2824 = vmatpush1.bf16.msra.mxu0 %v2781
    %2825 = vmatprep.subr.bf16.mxu0 %v2778
    %2826 = vmatpush1.bf16.msra.mxu0 %v2777
    %2827 = vmatprep.subr.bf16.mxu0 %v2774
    %2828 = vmatpush1.bf16.msra.mxu0 %v2773
    %2829 = vmatprep.subr.bf16.mxu0 %v2770
    %2830 = vmatpush1.bf16.msra.mxu0 %v2769
    %2831 = vmatprep.subr.bf16.mxu0 %v2766
    %2832 = vmatpush1.bf16.msra.mxu0 %v2765
    %2833 = vmatprep.subr.bf16.mxu0 %v2762
    %2834 = vmatpush1.bf16.msra.mxu0 %v2761
    %2835 = vmatprep.subr.bf16.mxu0 %v2758
    %2836 = vmatpush1.bf16.msra.mxu0 %v2757
    %2837 = vmatprep.subr.bf16.mxu0 0
    %2838 = vmatpush2.bf16.msra.mxu0 0
    %2839 = vmatprep.subr.bf16.mxu0 0
    %2840 = vmatpush2.bf16.msra.mxu0 0
    %2841 = vmatprep.subr.bf16.mxu0 0
    %2842 = vmatpush2.bf16.msra.mxu0 0
    %2843 = vmatprep.subr.bf16.mxu0 0
    %2844 = vmatpush2.bf16.msra.mxu0 0
    %2845 = vmatprep.subr.bf16.mxu0 0
    %2846 = vmatpush2.bf16.msra.mxu0 0
    %2847 = vmatprep.subr.bf16.mxu0 0
    %2848 = vmatpush2.bf16.msra.mxu0 0
    %2849 = vmatprep.subr.bf16.mxu0 0
    %2850 = vmatpush2.bf16.msra.mxu0 0
    %2851 = vmatprep.subr.bf16.mxu0 0
    %2852 = vmatpush2.bf16.msra.mxu0 0
    %2853 = vmatprep.mubr.bf16.mxu0 0
    %2854 = vmatmul.mubr.bf16.gmra.mxu0 %v2332
    %v2855 = vpop.f32.mrf.mxu0
    %v2856 = vadd.f32 %v2657, %v2855
    %v2857 = vpop.f32.mrf.mxu0
    %v2858 = vadd.f32 %v2658, %v2857
    %v2859 = vpop.f32.mrf.mxu0
    %v2860 = vpop.f32.mrf.mxu0
    %2861 = vdwg.mxu0
    %2862 = vmatprep.subr.bf16.mxu0 %v2788
    %2863 = vmatpush1.bf16.msra.mxu0 %v2787
    %2864 = vmatprep.subr.bf16.mxu0 %v2784
    %2865 = vmatpush1.bf16.msra.mxu0 %v2783
    %2866 = vmatprep.subr.bf16.mxu0 %v2780
    %2867 = vmatpush1.bf16.msra.mxu0 %v2779
    %2868 = vmatprep.subr.bf16.mxu0 %v2776
    %2869 = vmatpush1.bf16.msra.mxu0 %v2775
    %2870 = vmatprep.subr.bf16.mxu0 %v2772
    %2871 = vmatpush1.bf16.msra.mxu0 %v2771
    %2872 = vmatprep.subr.bf16.mxu0 %v2768
    %2873 = vmatpush1.bf16.msra.mxu0 %v2767
    %2874 = vmatprep.subr.bf16.mxu0 %v2764
    %2875 = vmatpush1.bf16.msra.mxu0 %v2763
    %2876 = vmatprep.subr.bf16.mxu0 %v2760
    %2877 = vmatpush1.bf16.msra.mxu0 %v2759
    %2878 = vmatprep.subr.bf16.mxu0 0
    %2879 = vmatpush2.bf16.msra.mxu0 0
    %2880 = vmatprep.subr.bf16.mxu0 0
    %2881 = vmatpush2.bf16.msra.mxu0 0
    %2882 = vmatprep.subr.bf16.mxu0 0
    %2883 = vmatpush2.bf16.msra.mxu0 0
    %2884 = vmatprep.subr.bf16.mxu0 0
    %2885 = vmatpush2.bf16.msra.mxu0 0
    %2886 = vmatprep.subr.bf16.mxu0 0
    %2887 = vmatpush2.bf16.msra.mxu0 0
    %2888 = vmatprep.subr.bf16.mxu0 0
    %2889 = vmatpush2.bf16.msra.mxu0 0
    %2890 = vmatprep.subr.bf16.mxu0 0
    %2891 = vmatpush2.bf16.msra.mxu0 0
    %2892 = vmatprep.subr.bf16.mxu0 0
    %2893 = vmatpush2.bf16.msra.mxu0 0
    %2894 = vmatprep.mubr.bf16.mxu0 0
    %2895 = vmatmul.mubr.bf16.gmra.mxu0 %v2332
    %v2896 = vpop.f32.mrf.mxu0
    %v2897 = vadd.f32 %v2659, %v2896
    %v2898 = vpop.f32.mrf.mxu0
    %v2899 = vadd.f32 %v2660, %v2898
    %v2900 = vpop.f32.mrf.mxu0
    %v2901 = vpop.f32.mrf.mxu0
    %2902 = vdwg.mxu0
    %v2903 = vxor.u32 %v2605, 2147483648
    %v2904 = vmul.f32 %v2903, 1.442695
    %v2905 = vpow.pop %v2904
    %v2906 = vadd.f32 %v2905, 1.0
    %v2907 = vrcp.pop %v2906
    %v2908 = vmul.f32 1.0, %v2907
    %v2909 = vxor.u32 %v2607, 2147483648
    %v2910 = vmul.f32 %v2909, 1.442695
    %v2911 = vpow.pop %v2910
    %v2912 = vadd.f32 %v2911, 1.0
    %v2913 = vrcp.pop %v2912
    %v2914 = vmul.f32 1.0, %v2913
    %v2915 = vtanh.pop %v2646
    %v2916 = vxor.u32 %v2648, 2147483648
    %v2917 = vmul.f32 %v2916, 1.442695
    %v2918 = vpow.pop %v2917
    %v2919 = vadd.f32 %v2918, 1.0
    %v2920 = vrcp.pop %v2919
    %v2921 = vmul.f32 1.0, %v2920
    %v2922 = vmul.f32 %v2914, %v2300
    %v2923 = vmul.f32 %v2908, %v2915
    %v2924 = vadd.f32 %v2922, %v2923
    %v2925 = vtanh.pop %v2924
    %v2926 = vmul.f32 %v2921, %v2925
    %v2927 = vxor.u32 %v2856, 2147483648
    %v2928 = vmul.f32 %v2927, 1.442695
    %v2929 = vpow.pop %v2928
    %v2930 = vadd.f32 %v2929, 1.0
    %v2931 = vrcp.pop %v2930
    %v2932 = vmul.f32 1.0, %v2931
    %v2933 = vxor.u32 %v2858, 2147483648
    %v2934 = vmul.f32 %v2933, 1.442695
    %v2935 = vpow.pop %v2934
    %v2936 = vadd.f32 %v2935, 1.0
    %v2937 = vrcp.pop %v2936
    %v2938 = vmul.f32 1.0, %v2937
    %v2939 = vtanh.pop %v2897
    %v2940 = vxor.u32 %v2899, 2147483648
    %v2941 = vmul.f32 %v2940, 1.442695
    %v2942 = vpow.pop %v2941
    %v2943 = vadd.f32 %v2942, 1.0
    %v2944 = vrcp.pop %v2943
    %v2945 = vmul.f32 1.0, %v2944
    %v2946 = vmul.f32 %v2938, %v2324
    %v2947 = vmul.f32 %v2932, %v2939
    %v2948 = vadd.f32 %v2946, %v2947
    %v2949 = vtanh.pop %v2948
    %v2950 = vmul.f32 %v2945, %v2949
    %v2951 = vpack.c.bf16 %v2926, %v2926
    %s2952 = smul.u32 2, 2
    %s2953 = smul.addr %s2952, 4
    %s2954 = scalar_lea.vmem [#allocation3], %s2953
    %2955 = vst [vmem:[%s2954] sm:$0xf] %v2951
    %v2956 = vpack.c.bf16 %v2950, %v2950
    %s2957 = smul.u32 5, 2
    %s2958 = smul.addr %s2957, 4
    %s2959 = scalar_lea.vmem [#allocation3], %s2958
    %2960 = vst [vmem:[%s2959 + $0x4] sm:$0xf] %v2956
    %v2961 = vld [vmem:[#allocation6] sm:$0xff]
    %v2962 = vld [vmem:[#allocation6 + $0x8] sm:$0xff]
    %v2963 = vld [vmem:[#allocation6 + $0x10] sm:$0xff]
    %v2964 = vld [vmem:[#allocation6 + $0x18] sm:$0xff]
    %v2965 = vld [vmem:[#allocation6 + $0x20] sm:$0xff]
    %v2966 = vld [vmem:[#allocation6 + $0x28] sm:$0xff]
    %v2967 = vld [vmem:[#allocation6 + $0x30] sm:$0xff]
    %v2968 = vld [vmem:[#allocation6 + $0x38] sm:$0xff]
    %v2969 = vld [vmem:[#allocation6 + $0x40] sm:$0xff]
    %v2970 = vld [vmem:[#allocation6 + $0x48] sm:$0xff]
    %v2971 = vld [vmem:[#allocation6 + $0x50] sm:$0xff]
    %v2972 = vld [vmem:[#allocation6 + $0x58] sm:$0xff]
    %v2973 = vld [vmem:[#allocation6 + $0x60] sm:$0xff]
    %v2974 = vld [vmem:[#allocation6 + $0x68] sm:$0xff]
    %v2975 = vld [vmem:[#allocation6 + $0x70] sm:$0xff]
    %v2976 = vld [vmem:[#allocation6 + $0x78] sm:$0xff]
    %v2977 = vld [vmem:[#allocation6 + $0x80] sm:$0xff]
    %v2978 = vld [vmem:[#allocation6 + $0x88] sm:$0xff]
    %v2979 = vld [vmem:[#allocation6 + $0x90] sm:$0xff]
    %v2980 = vld [vmem:[#allocation6 + $0x98] sm:$0xff]
    %v2981 = vld [vmem:[#allocation6 + $0xa0] sm:$0xff]
    %v2982 = vld [vmem:[#allocation6 + $0xa8] sm:$0xff]
    %v2983 = vld [vmem:[#allocation6 + $0xb0] sm:$0xff]
    %v2984 = vld [vmem:[#allocation6 + $0xb8] sm:$0xff]
    %v2985 = vld [vmem:[#allocation6 + $0xc0] sm:$0xff]
    %v2986 = vld [vmem:[#allocation6 + $0xc8] sm:$0xff]
    %v2987 = vld [vmem:[#allocation6 + $0xd0] sm:$0xff]
    %v2988 = vld [vmem:[#allocation6 + $0xd8] sm:$0xff]
    %v2989 = vld [vmem:[#allocation6 + $0xe0] sm:$0xff]
    %v2990 = vld [vmem:[#allocation6 + $0xe8] sm:$0xff]
    %v2991 = vld [vmem:[#allocation6 + $0xf0] sm:$0xff]
    %v2992 = vld [vmem:[#allocation6 + $0xf8] sm:$0xff]
    %v2993 = vld [vmem:[#allocation8] sm:$0xff]
    %v2994 = vld [vmem:[#allocation8 + $0x8] sm:$0xff]
    %v2995 = vld [vmem:[#allocation8 + $0x10] sm:$0xff]
    %v2996 = vld [vmem:[#allocation8 + $0x18] sm:$0xff]
    %v2997 = vld [vmem:[#allocation8 + $0x20] sm:$0xff]
    %v2998 = vld [vmem:[#allocation8 + $0x28] sm:$0xff]
    %v2999 = vld [vmem:[#allocation8 + $0x30] sm:$0xff]
    %v3000 = vld [vmem:[#allocation8 + $0x38] sm:$0xff]
    %v3001 = vld [vmem:[#allocation8 + $0x40] sm:$0xff]
    %v3002 = vld [vmem:[#allocation8 + $0x48] sm:$0xff]
    %v3003 = vld [vmem:[#allocation8 + $0x50] sm:$0xff]
    %v3004 = vld [vmem:[#allocation8 + $0x58] sm:$0xff]
    %v3005 = vld [vmem:[#allocation8 + $0x60] sm:$0xff]
    %v3006 = vld [vmem:[#allocation8 + $0x68] sm:$0xff]
    %v3007 = vld [vmem:[#allocation8 + $0x70] sm:$0xff]
    %v3008 = vld [vmem:[#allocation8 + $0x78] sm:$0xff]
    %v3009 = vld [vmem:[#allocation8 + $0x80] sm:$0xff]
    %v3010 = vld [vmem:[#allocation8 + $0x88] sm:$0xff]
    %v3011 = vld [vmem:[#allocation8 + $0x90] sm:$0xff]
    %v3012 = vld [vmem:[#allocation8 + $0x98] sm:$0xff]
    %v3013 = vld [vmem:[#allocation8 + $0xa0] sm:$0xff]
    %v3014 = vld [vmem:[#allocation8 + $0xa8] sm:$0xff]
    %v3015 = vld [vmem:[#allocation8 + $0xb0] sm:$0xff]
    %v3016 = vld [vmem:[#allocation8 + $0xb8] sm:$0xff]
    %v3017 = vld [vmem:[#allocation8 + $0xc0] sm:$0xff]
    %v3018 = vld [vmem:[#allocation8 + $0xc8] sm:$0xff]
    %v3019 = vld [vmem:[#allocation8 + $0xd0] sm:$0xff]
    %v3020 = vld [vmem:[#allocation8 + $0xd8] sm:$0xff]
    %v3021 = vld [vmem:[#allocation8 + $0xe0] sm:$0xff]
    %v3022 = vld [vmem:[#allocation8 + $0xe8] sm:$0xff]
    %v3023 = vld [vmem:[#allocation8 + $0xf0] sm:$0xff]
    %v3024 = vld [vmem:[#allocation8 + $0xf8] sm:$0xff]
    %s3025 = smul.u32 3, 8
    %s3026 = smul.addr %s3025, 4
    %s3027 = scalar_lea.vmem [#allocation2], %s3026
    %v3028 = vld [vmem:[%s3027] sm:$0xff]
    %v3029 = vld [vmem:[%s3027 + $0x8] sm:$0xff]
    %v3030 = vunpack.c.l.bf16 %v3028
    %v3031 = vunpack.c.h.bf16 %v3028
    %v3032 = vunpack.c.l.bf16 %v3029
    %v3033 = vunpack.c.h.bf16 %v3029
    %v3066 = vunpack.c.l.b16 %v2961
    %v3067 = vunpack.c.h.b16 %v2961
    %v3068 = vunpack.c.l.b16 %v2962
    %v3069 = vunpack.c.h.b16 %v2962
    %v3070 = vunpack.c.l.b16 %v2963
    %v3071 = vunpack.c.h.b16 %v2963
    %v3072 = vunpack.c.l.b16 %v2964
    %v3073 = vunpack.c.h.b16 %v2964
    %v3074 = vunpack.c.l.b16 %v2965
    %v3075 = vunpack.c.h.b16 %v2965
    %v3076 = vunpack.c.l.b16 %v2966
    %v3077 = vunpack.c.h.b16 %v2966
    %v3078 = vunpack.c.l.b16 %v2967
    %v3079 = vunpack.c.h.b16 %v2967
    %v3080 = vunpack.c.l.b16 %v2968
    %v3081 = vunpack.c.h.b16 %v2968
    %v3082 = vunpack.c.l.b16 %v2969
    %v3083 = vunpack.c.h.b16 %v2969
    %v3084 = vunpack.c.l.b16 %v2970
    %v3085 = vunpack.c.h.b16 %v2970
    %v3086 = vunpack.c.l.b16 %v2971
    %v3087 = vunpack.c.h.b16 %v2971
    %v3088 = vunpack.c.l.b16 %v2972
    %v3089 = vunpack.c.h.b16 %v2972
    %v3090 = vunpack.c.l.b16 %v2973
    %v3091 = vunpack.c.h.b16 %v2973
    %v3092 = vunpack.c.l.b16 %v2974
    %v3093 = vunpack.c.h.b16 %v2974
    %v3094 = vunpack.c.l.b16 %v2975
    %v3095 = vunpack.c.h.b16 %v2975
    %v3096 = vunpack.c.l.b16 %v2976
    %v3097 = vunpack.c.h.b16 %v2976
    %v3098 = vunpack.c.l.b16 %v2977
    %v3099 = vunpack.c.h.b16 %v2977
    %v3100 = vunpack.c.l.b16 %v2978
    %v3101 = vunpack.c.h.b16 %v2978
    %v3102 = vunpack.c.l.b16 %v2979
    %v3103 = vunpack.c.h.b16 %v2979
    %v3104 = vunpack.c.l.b16 %v2980
    %v3105 = vunpack.c.h.b16 %v2980
    %v3106 = vunpack.c.l.b16 %v2981
    %v3107 = vunpack.c.h.b16 %v2981
    %v3108 = vunpack.c.l.b16 %v2982
    %v3109 = vunpack.c.h.b16 %v2982
    %v3110 = vunpack.c.l.b16 %v2983
    %v3111 = vunpack.c.h.b16 %v2983
    %v3112 = vunpack.c.l.b16 %v2984
    %v3113 = vunpack.c.h.b16 %v2984
    %v3114 = vunpack.c.l.b16 %v2985
    %v3115 = vunpack.c.h.b16 %v2985
    %v3116 = vunpack.c.l.b16 %v2986
    %v3117 = vunpack.c.h.b16 %v2986
    %v3118 = vunpack.c.l.b16 %v2987
    %v3119 = vunpack.c.h.b16 %v2987
    %v3120 = vunpack.c.l.b16 %v2988
    %v3121 = vunpack.c.h.b16 %v2988
    %v3122 = vunpack.c.l.b16 %v2989
    %v3123 = vunpack.c.h.b16 %v2989
    %v3124 = vunpack.c.l.b16 %v2990
    %v3125 = vunpack.c.h.b16 %v2990
    %v3126 = vunpack.c.l.b16 %v2991
    %v3127 = vunpack.c.h.b16 %v2991
    %v3128 = vunpack.c.l.b16 %v2992
    %v3129 = vunpack.c.h.b16 %v2992
    %v3130 = vpack.c.b16 %v3070, %v3066
    %v3131 = vpack.c.b16 %v3071, %v3067
    %v3132 = vpack.c.b16 %v3072, %v3068
    %v3133 = vpack.c.b16 %v3073, %v3069
    %v3134 = vpack.c.b16 %v3078, %v3074
    %v3135 = vpack.c.b16 %v3079, %v3075
    %v3136 = vpack.c.b16 %v3080, %v3076
    %v3137 = vpack.c.b16 %v3081, %v3077
    %v3138 = vpack.c.b16 %v3086, %v3082
    %v3139 = vpack.c.b16 %v3087, %v3083
    %v3140 = vpack.c.b16 %v3088, %v3084
    %v3141 = vpack.c.b16 %v3089, %v3085
    %v3142 = vpack.c.b16 %v3094, %v3090
    %v3143 = vpack.c.b16 %v3095, %v3091
    %v3144 = vpack.c.b16 %v3096, %v3092
    %v3145 = vpack.c.b16 %v3097, %v3093
    %v3146 = vpack.c.b16 %v3102, %v3098
    %v3147 = vpack.c.b16 %v3103, %v3099
    %v3148 = vpack.c.b16 %v3104, %v3100
    %v3149 = vpack.c.b16 %v3105, %v3101
    %v3150 = vpack.c.b16 %v3110, %v3106
    %v3151 = vpack.c.b16 %v3111, %v3107
    %v3152 = vpack.c.b16 %v3112, %v3108
    %v3153 = vpack.c.b16 %v3113, %v3109
    %v3154 = vpack.c.b16 %v3118, %v3114
    %v3155 = vpack.c.b16 %v3119, %v3115
    %v3156 = vpack.c.b16 %v3120, %v3116
    %v3157 = vpack.c.b16 %v3121, %v3117
    %v3158 = vpack.c.b16 %v3126, %v3122
    %v3159 = vpack.c.b16 %v3127, %v3123
    %v3160 = vpack.c.b16 %v3128, %v3124
    %v3161 = vpack.c.b16 %v3129, %v3125
    %3194 = vmatprep.subr.bf16.mxu0 %v3159
    %3195 = vmatpush1.bf16.msra.mxu0 %v3158
    %3196 = vmatprep.subr.bf16.mxu0 %v3155
    %3197 = vmatpush1.bf16.msra.mxu0 %v3154
    %3198 = vmatprep.subr.bf16.mxu0 %v3151
    %3199 = vmatpush1.bf16.msra.mxu0 %v3150
    %3200 = vmatprep.subr.bf16.mxu0 %v3147
    %3201 = vmatpush1.bf16.msra.mxu0 %v3146
    %3202 = vmatprep.subr.bf16.mxu0 %v3143
    %3203 = vmatpush1.bf16.msra.mxu0 %v3142
    %3204 = vmatprep.subr.bf16.mxu0 %v3139
    %3205 = vmatpush1.bf16.msra.mxu0 %v3138
    %3206 = vmatprep.subr.bf16.mxu0 %v3135
    %3207 = vmatpush1.bf16.msra.mxu0 %v3134
    %3208 = vmatprep.subr.bf16.mxu0 %v3131
    %3209 = vmatpush1.bf16.msra.mxu0 %v3130
    %3210 = vmatprep.subr.bf16.mxu0 0
    %3211 = vmatpush2.bf16.msra.mxu0 0
    %3212 = vmatprep.subr.bf16.mxu0 0
    %3213 = vmatpush2.bf16.msra.mxu0 0
    %3214 = vmatprep.subr.bf16.mxu0 0
    %3215 = vmatpush2.bf16.msra.mxu0 0
    %3216 = vmatprep.subr.bf16.mxu0 0
    %3217 = vmatpush2.bf16.msra.mxu0 0
    %3218 = vmatprep.subr.bf16.mxu0 0
    %3219 = vmatpush2.bf16.msra.mxu0 0
    %3220 = vmatprep.subr.bf16.mxu0 0
    %3221 = vmatpush2.bf16.msra.mxu0 0
    %3222 = vmatprep.subr.bf16.mxu0 0
    %3223 = vmatpush2.bf16.msra.mxu0 0
    %3224 = vmatprep.subr.bf16.mxu0 0
    %3225 = vmatpush2.bf16.msra.mxu0 0
    %3226 = vmatprep.mubr.bf16.mxu0 0
    %3227 = vmatmul.mubr.bf16.gmra.mxu0 %v2951
    %v3228 = vpop.f32.mrf.mxu0
    %v3229 = vadd.f32 %v3030, %v3228
    %v3230 = vpop.f32.mrf.mxu0
    %v3231 = vadd.f32 %v3031, %v3230
    %v3232 = vpop.f32.mrf.mxu0
    %v3233 = vpop.f32.mrf.mxu0
    %3234 = vdwg.mxu0
    %3235 = vmatprep.subr.bf16.mxu0 %v3161
    %3236 = vmatpush1.bf16.msra.mxu0 %v3160
    %3237 = vmatprep.subr.bf16.mxu0 %v3157
    %3238 = vmatpush1.bf16.msra.mxu0 %v3156
    %3239 = vmatprep.subr.bf16.mxu0 %v3153
    %3240 = vmatpush1.bf16.msra.mxu0 %v3152
    %3241 = vmatprep.subr.bf16.mxu0 %v3149
    %3242 = vmatpush1.bf16.msra.mxu0 %v3148
    %3243 = vmatprep.subr.bf16.mxu0 %v3145
    %3244 = vmatpush1.bf16.msra.mxu0 %v3144
    %3245 = vmatprep.subr.bf16.mxu0 %v3141
    %3246 = vmatpush1.bf16.msra.mxu0 %v3140
    %3247 = vmatprep.subr.bf16.mxu0 %v3137
    %3248 = vmatpush1.bf16.msra.mxu0 %v3136
    %3249 = vmatprep.subr.bf16.mxu0 %v3133
    %3250 = vmatpush1.bf16.msra.mxu0 %v3132
    %3251 = vmatprep.subr.bf16.mxu0 0
    %3252 = vmatpush2.bf16.msra.mxu0 0
    %3253 = vmatprep.subr.bf16.mxu0 0
    %3254 = vmatpush2.bf16.msra.mxu0 0
    %3255 = vmatprep.subr.bf16.mxu0 0
    %3256 = vmatpush2.bf16.msra.mxu0 0
    %3257 = vmatprep.subr.bf16.mxu0 0
    %3258 = vmatpush2.bf16.msra.mxu0 0
    %3259 = vmatprep.subr.bf16.mxu0 0
    %3260 = vmatpush2.bf16.msra.mxu0 0
    %3261 = vmatprep.subr.bf16.mxu0 0
    %3262 = vmatpush2.bf16.msra.mxu0 0
    %3263 = vmatprep.subr.bf16.mxu0 0
    %3264 = vmatpush2.bf16.msra.mxu0 0
    %3265 = vmatprep.subr.bf16.mxu0 0
    %3266 = vmatpush2.bf16.msra.mxu0 0
    %3267 = vmatprep.mubr.bf16.mxu0 0
    %3268 = vmatmul.mubr.bf16.gmra.mxu0 %v2951
    %v3269 = vpop.f32.mrf.mxu0
    %v3270 = vadd.f32 %v3032, %v3269
    %v3271 = vpop.f32.mrf.mxu0
    %v3272 = vadd.f32 %v3033, %v3271
    %v3273 = vpop.f32.mrf.mxu0
    %v3274 = vpop.f32.mrf.mxu0
    %3275 = vdwg.mxu0
    %s3276 = smul.u32 4, 8
    %s3277 = smul.addr %s3276, 4
    %s3278 = scalar_lea.vmem [#allocation2], %s3277
    %v3279 = vld [vmem:[%s3278 + $0x10] sm:$0xff]
    %v3280 = vld [vmem:[%s3278 + $0x18] sm:$0xff]
    %v3281 = vunpack.c.l.bf16 %v3279
    %v3282 = vunpack.c.h.bf16 %v3279
    %v3283 = vunpack.c.l.bf16 %v3280
    %v3284 = vunpack.c.h.bf16 %v3280
    %v3317 = vunpack.c.l.b16 %v2993
    %v3318 = vunpack.c.h.b16 %v2993
    %v3319 = vunpack.c.l.b16 %v2994
    %v3320 = vunpack.c.h.b16 %v2994
    %v3321 = vunpack.c.l.b16 %v2995
    %v3322 = vunpack.c.h.b16 %v2995
    %v3323 = vunpack.c.l.b16 %v2996
    %v3324 = vunpack.c.h.b16 %v2996
    %v3325 = vunpack.c.l.b16 %v2997
    %v3326 = vunpack.c.h.b16 %v2997
    %v3327 = vunpack.c.l.b16 %v2998
    %v3328 = vunpack.c.h.b16 %v2998
    %v3329 = vunpack.c.l.b16 %v2999
    %v3330 = vunpack.c.h.b16 %v2999
    %v3331 = vunpack.c.l.b16 %v3000
    %v3332 = vunpack.c.h.b16 %v3000
    %v3333 = vunpack.c.l.b16 %v3001
    %v3334 = vunpack.c.h.b16 %v3001
    %v3335 = vunpack.c.l.b16 %v3002
    %v3336 = vunpack.c.h.b16 %v3002
    %v3337 = vunpack.c.l.b16 %v3003
    %v3338 = vunpack.c.h.b16 %v3003
    %v3339 = vunpack.c.l.b16 %v3004
    %v3340 = vunpack.c.h.b16 %v3004
    %v3341 = vunpack.c.l.b16 %v3005
    %v3342 = vunpack.c.h.b16 %v3005
    %v3343 = vunpack.c.l.b16 %v3006
    %v3344 = vunpack.c.h.b16 %v3006
    %v3345 = vunpack.c.l.b16 %v3007
    %v3346 = vunpack.c.h.b16 %v3007
    %v3347 = vunpack.c.l.b16 %v3008
    %v3348 = vunpack.c.h.b16 %v3008
    %v3349 = vunpack.c.l.b16 %v3009
    %v3350 = vunpack.c.h.b16 %v3009
    %v3351 = vunpack.c.l.b16 %v3010
    %v3352 = vunpack.c.h.b16 %v3010
    %v3353 = vunpack.c.l.b16 %v3011
    %v3354 = vunpack.c.h.b16 %v3011
    %v3355 = vunpack.c.l.b16 %v3012
    %v3356 = vunpack.c.h.b16 %v3012
    %v3357 = vunpack.c.l.b16 %v3013
    %v3358 = vunpack.c.h.b16 %v3013
    %v3359 = vunpack.c.l.b16 %v3014
    %v3360 = vunpack.c.h.b16 %v3014
    %v3361 = vunpack.c.l.b16 %v3015
    %v3362 = vunpack.c.h.b16 %v3015
    %v3363 = vunpack.c.l.b16 %v3016
    %v3364 = vunpack.c.h.b16 %v3016
    %v3365 = vunpack.c.l.b16 %v3017
    %v3366 = vunpack.c.h.b16 %v3017
    %v3367 = vunpack.c.l.b16 %v3018
    %v3368 = vunpack.c.h.b16 %v3018
    %v3369 = vunpack.c.l.b16 %v3019
    %v3370 = vunpack.c.h.b16 %v3019
    %v3371 = vunpack.c.l.b16 %v3020
    %v3372 = vunpack.c.h.b16 %v3020
    %v3373 = vunpack.c.l.b16 %v3021
    %v3374 = vunpack.c.h.b16 %v3021
    %v3375 = vunpack.c.l.b16 %v3022
    %v3376 = vunpack.c.h.b16 %v3022
    %v3377 = vunpack.c.l.b16 %v3023
    %v3378 = vunpack.c.h.b16 %v3023
    %v3379 = vunpack.c.l.b16 %v3024
    %v3380 = vunpack.c.h.b16 %v3024
    %v3381 = vpack.c.b16 %v3321, %v3317
    %v3382 = vpack.c.b16 %v3322, %v3318
    %v3383 = vpack.c.b16 %v3323, %v3319
    %v3384 = vpack.c.b16 %v3324, %v3320
    %v3385 = vpack.c.b16 %v3329, %v3325
    %v3386 = vpack.c.b16 %v3330, %v3326
    %v3387 = vpack.c.b16 %v3331, %v3327
    %v3388 = vpack.c.b16 %v3332, %v3328
    %v3389 = vpack.c.b16 %v3337, %v3333
    %v3390 = vpack.c.b16 %v3338, %v3334
    %v3391 = vpack.c.b16 %v3339, %v3335
    %v3392 = vpack.c.b16 %v3340, %v3336
    %v3393 = vpack.c.b16 %v3345, %v3341
    %v3394 = vpack.c.b16 %v3346, %v3342
    %v3395 = vpack.c.b16 %v3347, %v3343
    %v3396 = vpack.c.b16 %v3348, %v3344
    %v3397 = vpack.c.b16 %v3353, %v3349
    %v3398 = vpack.c.b16 %v3354, %v3350
    %v3399 = vpack.c.b16 %v3355, %v3351
    %v3400 = vpack.c.b16 %v3356, %v3352
    %v3401 = vpack.c.b16 %v3361, %v3357
    %v3402 = vpack.c.b16 %v3362, %v3358
    %v3403 = vpack.c.b16 %v3363, %v3359
    %v3404 = vpack.c.b16 %v3364, %v3360
    %v3405 = vpack.c.b16 %v3369, %v3365
    %v3406 = vpack.c.b16 %v3370, %v3366
    %v3407 = vpack.c.b16 %v3371, %v3367
    %v3408 = vpack.c.b16 %v3372, %v3368
    %v3409 = vpack.c.b16 %v3377, %v3373
    %v3410 = vpack.c.b16 %v3378, %v3374
    %v3411 = vpack.c.b16 %v3379, %v3375
    %v3412 = vpack.c.b16 %v3380, %v3376
    %3445 = vmatprep.subr.bf16.mxu0 %v3410
    %3446 = vmatpush1.bf16.msra.mxu0 %v3409
    %3447 = vmatprep.subr.bf16.mxu0 %v3406
    %3448 = vmatpush1.bf16.msra.mxu0 %v3405
    %3449 = vmatprep.subr.bf16.mxu0 %v3402
    %3450 = vmatpush1.bf16.msra.mxu0 %v3401
    %3451 = vmatprep.subr.bf16.mxu0 %v3398
    %3452 = vmatpush1.bf16.msra.mxu0 %v3397
    %3453 = vmatprep.subr.bf16.mxu0 %v3394
    %3454 = vmatpush1.bf16.msra.mxu0 %v3393
    %3455 = vmatprep.subr.bf16.mxu0 %v3390
    %3456 = vmatpush1.bf16.msra.mxu0 %v3389
    %3457 = vmatprep.subr.bf16.mxu0 %v3386
    %3458 = vmatpush1.bf16.msra.mxu0 %v3385
    %3459 = vmatprep.subr.bf16.mxu0 %v3382
    %3460 = vmatpush1.bf16.msra.mxu0 %v3381
    %3461 = vmatprep.subr.bf16.mxu0 0
    %3462 = vmatpush2.bf16.msra.mxu0 0
    %3463 = vmatprep.subr.bf16.mxu0 0
    %3464 = vmatpush2.bf16.msra.mxu0 0
    %3465 = vmatprep.subr.bf16.mxu0 0
    %3466 = vmatpush2.bf16.msra.mxu0 0
    %3467 = vmatprep.subr.bf16.mxu0 0
    %3468 = vmatpush2.bf16.msra.mxu0 0
    %3469 = vmatprep.subr.bf16.mxu0 0
    %3470 = vmatpush2.bf16.msra.mxu0 0
    %3471 = vmatprep.subr.bf16.mxu0 0
    %3472 = vmatpush2.bf16.msra.mxu0 0
    %3473 = vmatprep.subr.bf16.mxu0 0
    %3474 = vmatpush2.bf16.msra.mxu0 0
    %3475 = vmatprep.subr.bf16.mxu0 0
    %3476 = vmatpush2.bf16.msra.mxu0 0
    %3477 = vmatprep.mubr.bf16.mxu0 0
    %3478 = vmatmul.mubr.bf16.gmra.mxu0 %v2956
    %v3479 = vpop.f32.mrf.mxu0
    %v3480 = vadd.f32 %v3281, %v3479
    %v3481 = vpop.f32.mrf.mxu0
    %v3482 = vadd.f32 %v3282, %v3481
    %v3483 = vpop.f32.mrf.mxu0
    %v3484 = vpop.f32.mrf.mxu0
    %3485 = vdwg.mxu0
    %3486 = vmatprep.subr.bf16.mxu0 %v3412
    %3487 = vmatpush1.bf16.msra.mxu0 %v3411
    %3488 = vmatprep.subr.bf16.mxu0 %v3408
    %3489 = vmatpush1.bf16.msra.mxu0 %v3407
    %3490 = vmatprep.subr.bf16.mxu0 %v3404
    %3491 = vmatpush1.bf16.msra.mxu0 %v3403
    %3492 = vmatprep.subr.bf16.mxu0 %v3400
    %3493 = vmatpush1.bf16.msra.mxu0 %v3399
    %3494 = vmatprep.subr.bf16.mxu0 %v3396
    %3495 = vmatpush1.bf16.msra.mxu0 %v3395
    %3496 = vmatprep.subr.bf16.mxu0 %v3392
    %3497 = vmatpush1.bf16.msra.mxu0 %v3391
    %3498 = vmatprep.subr.bf16.mxu0 %v3388
    %3499 = vmatpush1.bf16.msra.mxu0 %v3387
    %3500 = vmatprep.subr.bf16.mxu0 %v3384
    %3501 = vmatpush1.bf16.msra.mxu0 %v3383
    %3502 = vmatprep.subr.bf16.mxu0 0
    %3503 = vmatpush2.bf16.msra.mxu0 0
    %3504 = vmatprep.subr.bf16.mxu0 0
    %3505 = vmatpush2.bf16.msra.mxu0 0
    %3506 = vmatprep.subr.bf16.mxu0 0
    %3507 = vmatpush2.bf16.msra.mxu0 0
    %3508 = vmatprep.subr.bf16.mxu0 0
    %3509 = vmatpush2.bf16.msra.mxu0 0
    %3510 = vmatprep.subr.bf16.mxu0 0
    %3511 = vmatpush2.bf16.msra.mxu0 0
    %3512 = vmatprep.subr.bf16.mxu0 0
    %3513 = vmatpush2.bf16.msra.mxu0 0
    %3514 = vmatprep.subr.bf16.mxu0 0
    %3515 = vmatpush2.bf16.msra.mxu0 0
    %3516 = vmatprep.subr.bf16.mxu0 0
    %3517 = vmatpush2.bf16.msra.mxu0 0
    %3518 = vmatprep.mubr.bf16.mxu0 0
    %3519 = vmatmul.mubr.bf16.gmra.mxu0 %v2956
    %v3520 = vpop.f32.mrf.mxu0
    %v3521 = vadd.f32 %v3283, %v3520
    %v3522 = vpop.f32.mrf.mxu0
    %v3523 = vadd.f32 %v3284, %v3522
    %v3524 = vpop.f32.mrf.mxu0
    %v3525 = vpop.f32.mrf.mxu0
    %3526 = vdwg.mxu0
    %v3527 = vxor.u32 %v3229, 2147483648
    %v3528 = vmul.f32 %v3527, 1.442695
    %v3529 = vpow.pop %v3528
    %v3530 = vadd.f32 %v3529, 1.0
    %v3531 = vrcp.pop %v3530
    %v3532 = vmul.f32 1.0, %v3531
    %v3533 = vxor.u32 %v3231, 2147483648
    %v3534 = vmul.f32 %v3533, 1.442695
    %v3535 = vpow.pop %v3534
    %v3536 = vadd.f32 %v3535, 1.0
    %v3537 = vrcp.pop %v3536
    %v3538 = vmul.f32 1.0, %v3537
    %v3539 = vtanh.pop %v3270
    %v3540 = vxor.u32 %v3272, 2147483648
    %v3541 = vmul.f32 %v3540, 1.442695
    %v3542 = vpow.pop %v3541
    %v3543 = vadd.f32 %v3542, 1.0
    %v3544 = vrcp.pop %v3543
    %v3545 = vmul.f32 1.0, %v3544
    %v3546 = vmul.f32 %v3538, %v2924
    %v3547 = vmul.f32 %v3532, %v3539
    %v3548 = vadd.f32 %v3546, %v3547
    %v3549 = vtanh.pop %v3548
    %v3550 = vmul.f32 %v3545, %v3549
    %v3551 = vxor.u32 %v3480, 2147483648
    %v3552 = vmul.f32 %v3551, 1.442695
    %v3553 = vpow.pop %v3552
    %v3554 = vadd.f32 %v3553, 1.0
    %v3555 = vrcp.pop %v3554
    %v3556 = vmul.f32 1.0, %v3555
    %v3557 = vxor.u32 %v3482, 2147483648
    %v3558 = vmul.f32 %v3557, 1.442695
    %v3559 = vpow.pop %v3558
    %v3560 = vadd.f32 %v3559, 1.0
    %v3561 = vrcp.pop %v3560
    %v3562 = vmul.f32 1.0, %v3561
    %v3563 = vtanh.pop %v3521
    %v3564 = vxor.u32 %v3523, 2147483648
    %v3565 = vmul.f32 %v3564, 1.442695
    %v3566 = vpow.pop %v3565
    %v3567 = vadd.f32 %v3566, 1.0
    %v3568 = vrcp.pop %v3567
    %v3569 = vmul.f32 1.0, %v3568
    %v3570 = vmul.f32 %v3562, %v2948
    %v3571 = vmul.f32 %v3556, %v3563
    %v3572 = vadd.f32 %v3570, %v3571
    %v3573 = vtanh.pop %v3572
    %v3574 = vmul.f32 %v3569, %v3573
    %v3575 = vpack.c.bf16 %v3550, %v3550
    %s3576 = smul.u32 3, 2
    %s3577 = smul.addr %s3576, 4
    %s3578 = scalar_lea.vmem [#allocation3], %s3577
    %3579 = vst [vmem:[%s3578] sm:$0xf] %v3575
    %v3580 = vpack.c.bf16 %v3574, %v3574
    %s3581 = smul.u32 4, 2
    %s3582 = smul.addr %s3581, 4
    %s3583 = scalar_lea.vmem [#allocation3], %s3582
    %3584 = vst [vmem:[%s3583 + $0x4] sm:$0xf] %v3580
    %v3585 = vld [vmem:[#allocation6] sm:$0xff]
    %v3586 = vld [vmem:[#allocation6 + $0x8] sm:$0xff]
    %v3587 = vld [vmem:[#allocation6 + $0x10] sm:$0xff]
    %v3588 = vld [vmem:[#allocation6 + $0x18] sm:$0xff]
    %v3589 = vld [vmem:[#allocation6 + $0x20] sm:$0xff]
    %v3590 = vld [vmem:[#allocation6 + $0x28] sm:$0xff]
    %v3591 = vld [vmem:[#allocation6 + $0x30] sm:$0xff]
    %v3592 = vld [vmem:[#allocation6 + $0x38] sm:$0xff]
    %v3593 = vld [vmem:[#allocation6 + $0x40] sm:$0xff]
    %v3594 = vld [vmem:[#allocation6 + $0x48] sm:$0xff]
    %v3595 = vld [vmem:[#allocation6 + $0x50] sm:$0xff]
    %v3596 = vld [vmem:[#allocation6 + $0x58] sm:$0xff]
    %v3597 = vld [vmem:[#allocation6 + $0x60] sm:$0xff]
    %v3598 = vld [vmem:[#allocation6 + $0x68] sm:$0xff]
    %v3599 = vld [vmem:[#allocation6 + $0x70] sm:$0xff]
    %v3600 = vld [vmem:[#allocation6 + $0x78] sm:$0xff]
    %v3601 = vld [vmem:[#allocation6 + $0x80] sm:$0xff]
    %v3602 = vld [vmem:[#allocation6 + $0x88] sm:$0xff]
    %v3603 = vld [vmem:[#allocation6 + $0x90] sm:$0xff]
    %v3604 = vld [vmem:[#allocation6 + $0x98] sm:$0xff]
    %v3605 = vld [vmem:[#allocation6 + $0xa0] sm:$0xff]
    %v3606 = vld [vmem:[#allocation6 + $0xa8] sm:$0xff]
    %v3607 = vld [vmem:[#allocation6 + $0xb0] sm:$0xff]
    %v3608 = vld [vmem:[#allocation6 + $0xb8] sm:$0xff]
    %v3609 = vld [vmem:[#allocation6 + $0xc0] sm:$0xff]
    %v3610 = vld [vmem:[#allocation6 + $0xc8] sm:$0xff]
    %v3611 = vld [vmem:[#allocation6 + $0xd0] sm:$0xff]
    %v3612 = vld [vmem:[#allocation6 + $0xd8] sm:$0xff]
    %v3613 = vld [vmem:[#allocation6 + $0xe0] sm:$0xff]
    %v3614 = vld [vmem:[#allocation6 + $0xe8] sm:$0xff]
    %v3615 = vld [vmem:[#allocation6 + $0xf0] sm:$0xff]
    %v3616 = vld [vmem:[#allocation6 + $0xf8] sm:$0xff]
    %v3617 = vld [vmem:[#allocation8] sm:$0xff]
    %v3618 = vld [vmem:[#allocation8 + $0x8] sm:$0xff]
    %v3619 = vld [vmem:[#allocation8 + $0x10] sm:$0xff]
    %v3620 = vld [vmem:[#allocation8 + $0x18] sm:$0xff]
    %v3621 = vld [vmem:[#allocation8 + $0x20] sm:$0xff]
    %v3622 = vld [vmem:[#allocation8 + $0x28] sm:$0xff]
    %v3623 = vld [vmem:[#allocation8 + $0x30] sm:$0xff]
    %v3624 = vld [vmem:[#allocation8 + $0x38] sm:$0xff]
    %v3625 = vld [vmem:[#allocation8 + $0x40] sm:$0xff]
    %v3626 = vld [vmem:[#allocation8 + $0x48] sm:$0xff]
    %v3627 = vld [vmem:[#allocation8 + $0x50] sm:$0xff]
    %v3628 = vld [vmem:[#allocation8 + $0x58] sm:$0xff]
    %v3629 = vld [vmem:[#allocation8 + $0x60] sm:$0xff]
    %v3630 = vld [vmem:[#allocation8 + $0x68] sm:$0xff]
    %v3631 = vld [vmem:[#allocation8 + $0x70] sm:$0xff]
    %v3632 = vld [vmem:[#allocation8 + $0x78] sm:$0xff]
    %v3633 = vld [vmem:[#allocation8 + $0x80] sm:$0xff]
    %v3634 = vld [vmem:[#allocation8 + $0x88] sm:$0xff]
    %v3635 = vld [vmem:[#allocation8 + $0x90] sm:$0xff]
    %v3636 = vld [vmem:[#allocation8 + $0x98] sm:$0xff]
    %v3637 = vld [vmem:[#allocation8 + $0xa0] sm:$0xff]
    %v3638 = vld [vmem:[#allocation8 + $0xa8] sm:$0xff]
    %v3639 = vld [vmem:[#allocation8 + $0xb0] sm:$0xff]
    %v3640 = vld [vmem:[#allocation8 + $0xb8] sm:$0xff]
    %v3641 = vld [vmem:[#allocation8 + $0xc0] sm:$0xff]
    %v3642 = vld [vmem:[#allocation8 + $0xc8] sm:$0xff]
    %v3643 = vld [vmem:[#allocation8 + $0xd0] sm:$0xff]
    %v3644 = vld [vmem:[#allocation8 + $0xd8] sm:$0xff]
    %v3645 = vld [vmem:[#allocation8 + $0xe0] sm:$0xff]
    %v3646 = vld [vmem:[#allocation8 + $0xe8] sm:$0xff]
    %v3647 = vld [vmem:[#allocation8 + $0xf0] sm:$0xff]
    %v3648 = vld [vmem:[#allocation8 + $0xf8] sm:$0xff]
    %v3649 = vld [vmem:[%s3278] sm:$0xff]
    %v3650 = vld [vmem:[%s3278 + $0x8] sm:$0xff]
    %v3651 = vunpack.c.l.bf16 %v3649
    %v3652 = vunpack.c.h.bf16 %v3649
    %v3653 = vunpack.c.l.bf16 %v3650
    %v3654 = vunpack.c.h.bf16 %v3650
    %v3687 = vunpack.c.l.b16 %v3585
    %v3688 = vunpack.c.h.b16 %v3585
    %v3689 = vunpack.c.l.b16 %v3586
    %v3690 = vunpack.c.h.b16 %v3586
    %v3691 = vunpack.c.l.b16 %v3587
    %v3692 = vunpack.c.h.b16 %v3587
    %v3693 = vunpack.c.l.b16 %v3588
    %v3694 = vunpack.c.h.b16 %v3588
    %v3695 = vunpack.c.l.b16 %v3589
    %v3696 = vunpack.c.h.b16 %v3589
    %v3697 = vunpack.c.l.b16 %v3590
    %v3698 = vunpack.c.h.b16 %v3590
    %v3699 = vunpack.c.l.b16 %v3591
    %v3700 = vunpack.c.h.b16 %v3591
    %v3701 = vunpack.c.l.b16 %v3592
    %v3702 = vunpack.c.h.b16 %v3592
    %v3703 = vunpack.c.l.b16 %v3593
    %v3704 = vunpack.c.h.b16 %v3593
    %v3705 = vunpack.c.l.b16 %v3594
    %v3706 = vunpack.c.h.b16 %v3594
    %v3707 = vunpack.c.l.b16 %v3595
    %v3708 = vunpack.c.h.b16 %v3595
    %v3709 = vunpack.c.l.b16 %v3596
    %v3710 = vunpack.c.h.b16 %v3596
    %v3711 = vunpack.c.l.b16 %v3597
    %v3712 = vunpack.c.h.b16 %v3597
    %v3713 = vunpack.c.l.b16 %v3598
    %v3714 = vunpack.c.h.b16 %v3598
    %v3715 = vunpack.c.l.b16 %v3599
    %v3716 = vunpack.c.h.b16 %v3599
    %v3717 = vunpack.c.l.b16 %v3600
    %v3718 = vunpack.c.h.b16 %v3600
    %v3719 = vunpack.c.l.b16 %v3601
    %v3720 = vunpack.c.h.b16 %v3601
    %v3721 = vunpack.c.l.b16 %v3602
    %v3722 = vunpack.c.h.b16 %v3602
    %v3723 = vunpack.c.l.b16 %v3603
    %v3724 = vunpack.c.h.b16 %v3603
    %v3725 = vunpack.c.l.b16 %v3604
    %v3726 = vunpack.c.h.b16 %v3604
    %v3727 = vunpack.c.l.b16 %v3605
    %v3728 = vunpack.c.h.b16 %v3605
    %v3729 = vunpack.c.l.b16 %v3606
    %v3730 = vunpack.c.h.b16 %v3606
    %v3731 = vunpack.c.l.b16 %v3607
    %v3732 = vunpack.c.h.b16 %v3607
    %v3733 = vunpack.c.l.b16 %v3608
    %v3734 = vunpack.c.h.b16 %v3608
    %v3735 = vunpack.c.l.b16 %v3609
    %v3736 = vunpack.c.h.b16 %v3609
    %v3737 = vunpack.c.l.b16 %v3610
    %v3738 = vunpack.c.h.b16 %v3610
    %v3739 = vunpack.c.l.b16 %v3611
    %v3740 = vunpack.c.h.b16 %v3611
    %v3741 = vunpack.c.l.b16 %v3612
    %v3742 = vunpack.c.h.b16 %v3612
    %v3743 = vunpack.c.l.b16 %v3613
    %v3744 = vunpack.c.h.b16 %v3613
    %v3745 = vunpack.c.l.b16 %v3614
    %v3746 = vunpack.c.h.b16 %v3614
    %v3747 = vunpack.c.l.b16 %v3615
    %v3748 = vunpack.c.h.b16 %v3615
    %v3749 = vunpack.c.l.b16 %v3616
    %v3750 = vunpack.c.h.b16 %v3616
    %v3751 = vpack.c.b16 %v3691, %v3687
    %v3752 = vpack.c.b16 %v3692, %v3688
    %v3753 = vpack.c.b16 %v3693, %v3689
    %v3754 = vpack.c.b16 %v3694, %v3690
    %v3755 = vpack.c.b16 %v3699, %v3695
    %v3756 = vpack.c.b16 %v3700, %v3696
    %v3757 = vpack.c.b16 %v3701, %v3697
    %v3758 = vpack.c.b16 %v3702, %v3698
    %v3759 = vpack.c.b16 %v3707, %v3703
    %v3760 = vpack.c.b16 %v3708, %v3704
    %v3761 = vpack.c.b16 %v3709, %v3705
    %v3762 = vpack.c.b16 %v3710, %v3706
    %v3763 = vpack.c.b16 %v3715, %v3711
    %v3764 = vpack.c.b16 %v3716, %v3712
    %v3765 = vpack.c.b16 %v3717, %v3713
    %v3766 = vpack.c.b16 %v3718, %v3714
    %v3767 = vpack.c.b16 %v3723, %v3719
    %v3768 = vpack.c.b16 %v3724, %v3720
    %v3769 = vpack.c.b16 %v3725, %v3721
    %v3770 = vpack.c.b16 %v3726, %v3722
    %v3771 = vpack.c.b16 %v3731, %v3727
    %v3772 = vpack.c.b16 %v3732, %v3728
    %v3773 = vpack.c.b16 %v3733, %v3729
    %v3774 = vpack.c.b16 %v3734, %v3730
    %v3775 = vpack.c.b16 %v3739, %v3735
    %v3776 = vpack.c.b16 %v3740, %v3736
    %v3777 = vpack.c.b16 %v3741, %v3737
    %v3778 = vpack.c.b16 %v3742, %v3738
    %v3779 = vpack.c.b16 %v3747, %v3743
    %v3780 = vpack.c.b16 %v3748, %v3744
    %v3781 = vpack.c.b16 %v3749, %v3745
    %v3782 = vpack.c.b16 %v3750, %v3746
    %3815 = vmatprep.subr.bf16.mxu0 %v3780
    %3816 = vmatpush1.bf16.msra.mxu0 %v3779
    %3817 = vmatprep.subr.bf16.mxu0 %v3776
    %3818 = vmatpush1.bf16.msra.mxu0 %v3775
    %3819 = vmatprep.subr.bf16.mxu0 %v3772
    %3820 = vmatpush1.bf16.msra.mxu0 %v3771
    %3821 = vmatprep.subr.bf16.mxu0 %v3768
    %3822 = vmatpush1.bf16.msra.mxu0 %v3767
    %3823 = vmatprep.subr.bf16.mxu0 %v3764
    %3824 = vmatpush1.bf16.msra.mxu0 %v3763
    %3825 = vmatprep.subr.bf16.mxu0 %v3760
    %3826 = vmatpush1.bf16.msra.mxu0 %v3759
    %3827 = vmatprep.subr.bf16.mxu0 %v3756
    %3828 = vmatpush1.bf16.msra.mxu0 %v3755
    %3829 = vmatprep.subr.bf16.mxu0 %v3752
    %3830 = vmatpush1.bf16.msra.mxu0 %v3751
    %3831 = vmatprep.subr.bf16.mxu0 0
    %3832 = vmatpush2.bf16.msra.mxu0 0
    %3833 = vmatprep.subr.bf16.mxu0 0
    %3834 = vmatpush2.bf16.msra.mxu0 0
    %3835 = vmatprep.subr.bf16.mxu0 0
    %3836 = vmatpush2.bf16.msra.mxu0 0
    %3837 = vmatprep.subr.bf16.mxu0 0
    %3838 = vmatpush2.bf16.msra.mxu0 0
    %3839 = vmatprep.subr.bf16.mxu0 0
    %3840 = vmatpush2.bf16.msra.mxu0 0
    %3841 = vmatprep.subr.bf16.mxu0 0
    %3842 = vmatpush2.bf16.msra.mxu0 0
    %3843 = vmatprep.subr.bf16.mxu0 0
    %3844 = vmatpush2.bf16.msra.mxu0 0
    %3845 = vmatprep.subr.bf16.mxu0 0
    %3846 = vmatpush2.bf16.msra.mxu0 0
    %3847 = vmatprep.mubr.bf16.mxu0 0
    %3848 = vmatmul.mubr.bf16.gmra.mxu0 %v3575
    %v3849 = vpop.f32.mrf.mxu0
    %v3850 = vadd.f32 %v3651, %v3849
    %v3851 = vpop.f32.mrf.mxu0
    %v3852 = vadd.f32 %v3652, %v3851
    %v3853 = vpop.f32.mrf.mxu0
    %v3854 = vpop.f32.mrf.mxu0
    %3855 = vdwg.mxu0
    %3856 = vmatprep.subr.bf16.mxu0 %v3782
    %3857 = vmatpush1.bf16.msra.mxu0 %v3781
    %3858 = vmatprep.subr.bf16.mxu0 %v3778
    %3859 = vmatpush1.bf16.msra.mxu0 %v3777
    %3860 = vmatprep.subr.bf16.mxu0 %v3774
    %3861 = vmatpush1.bf16.msra.mxu0 %v3773
    %3862 = vmatprep.subr.bf16.mxu0 %v3770
    %3863 = vmatpush1.bf16.msra.mxu0 %v3769
    %3864 = vmatprep.subr.bf16.mxu0 %v3766
    %3865 = vmatpush1.bf16.msra.mxu0 %v3765
    %3866 = vmatprep.subr.bf16.mxu0 %v3762
    %3867 = vmatpush1.bf16.msra.mxu0 %v3761
    %3868 = vmatprep.subr.bf16.mxu0 %v3758
    %3869 = vmatpush1.bf16.msra.mxu0 %v3757
    %3870 = vmatprep.subr.bf16.mxu0 %v3754
    %3871 = vmatpush1.bf16.msra.mxu0 %v3753
    %3872 = vmatprep.subr.bf16.mxu0 0
    %3873 = vmatpush2.bf16.msra.mxu0 0
    %3874 = vmatprep.subr.bf16.mxu0 0
    %3875 = vmatpush2.bf16.msra.mxu0 0
    %3876 = vmatprep.subr.bf16.mxu0 0
    %3877 = vmatpush2.bf16.msra.mxu0 0
    %3878 = vmatprep.subr.bf16.mxu0 0
    %3879 = vmatpush2.bf16.msra.mxu0 0
    %3880 = vmatprep.subr.bf16.mxu0 0
    %3881 = vmatpush2.bf16.msra.mxu0 0
    %3882 = vmatprep.subr.bf16.mxu0 0
    %3883 = vmatpush2.bf16.msra.mxu0 0
    %3884 = vmatprep.subr.bf16.mxu0 0
    %3885 = vmatpush2.bf16.msra.mxu0 0
    %3886 = vmatprep.subr.bf16.mxu0 0
    %3887 = vmatpush2.bf16.msra.mxu0 0
    %3888 = vmatprep.mubr.bf16.mxu0 0
    %3889 = vmatmul.mubr.bf16.gmra.mxu0 %v3575
    %v3890 = vpop.f32.mrf.mxu0
    %v3891 = vadd.f32 %v3653, %v3890
    %v3892 = vpop.f32.mrf.mxu0
    %v3893 = vadd.f32 %v3654, %v3892
    %v3894 = vpop.f32.mrf.mxu0
    %v3895 = vpop.f32.mrf.mxu0
    %3896 = vdwg.mxu0
    %v3897 = vld [vmem:[%s3027 + $0x10] sm:$0xff]
    %v3898 = vld [vmem:[%s3027 + $0x18] sm:$0xff]
    %v3899 = vunpack.c.l.bf16 %v3897
    %v3900 = vunpack.c.h.bf16 %v3897
    %v3901 = vunpack.c.l.bf16 %v3898
    %v3902 = vunpack.c.h.bf16 %v3898
    %v3935 = vunpack.c.l.b16 %v3617
    %v3936 = vunpack.c.h.b16 %v3617
    %v3937 = vunpack.c.l.b16 %v3618
    %v3938 = vunpack.c.h.b16 %v3618
    %v3939 = vunpack.c.l.b16 %v3619
    %v3940 = vunpack.c.h.b16 %v3619
    %v3941 = vunpack.c.l.b16 %v3620
    %v3942 = vunpack.c.h.b16 %v3620
    %v3943 = vunpack.c.l.b16 %v3621
    %v3944 = vunpack.c.h.b16 %v3621
    %v3945 = vunpack.c.l.b16 %v3622
    %v3946 = vunpack.c.h.b16 %v3622
    %v3947 = vunpack.c.l.b16 %v3623
    %v3948 = vunpack.c.h.b16 %v3623
    %v3949 = vunpack.c.l.b16 %v3624
    %v3950 = vunpack.c.h.b16 %v3624
    %v3951 = vunpack.c.l.b16 %v3625
    %v3952 = vunpack.c.h.b16 %v3625
    %v3953 = vunpack.c.l.b16 %v3626
    %v3954 = vunpack.c.h.b16 %v3626
    %v3955 = vunpack.c.l.b16 %v3627
    %v3956 = vunpack.c.h.b16 %v3627
    %v3957 = vunpack.c.l.b16 %v3628
    %v3958 = vunpack.c.h.b16 %v3628
    %v3959 = vunpack.c.l.b16 %v3629
    %v3960 = vunpack.c.h.b16 %v3629
    %v3961 = vunpack.c.l.b16 %v3630
    %v3962 = vunpack.c.h.b16 %v3630
    %v3963 = vunpack.c.l.b16 %v3631
    %v3964 = vunpack.c.h.b16 %v3631
    %v3965 = vunpack.c.l.b16 %v3632
    %v3966 = vunpack.c.h.b16 %v3632
    %v3967 = vunpack.c.l.b16 %v3633
    %v3968 = vunpack.c.h.b16 %v3633
    %v3969 = vunpack.c.l.b16 %v3634
    %v3970 = vunpack.c.h.b16 %v3634
    %v3971 = vunpack.c.l.b16 %v3635
    %v3972 = vunpack.c.h.b16 %v3635
    %v3973 = vunpack.c.l.b16 %v3636
    %v3974 = vunpack.c.h.b16 %v3636
    %v3975 = vunpack.c.l.b16 %v3637
    %v3976 = vunpack.c.h.b16 %v3637
    %v3977 = vunpack.c.l.b16 %v3638
    %v3978 = vunpack.c.h.b16 %v3638
    %v3979 = vunpack.c.l.b16 %v3639
    %v3980 = vunpack.c.h.b16 %v3639
    %v3981 = vunpack.c.l.b16 %v3640
    %v3982 = vunpack.c.h.b16 %v3640
    %v3983 = vunpack.c.l.b16 %v3641
    %v3984 = vunpack.c.h.b16 %v3641
    %v3985 = vunpack.c.l.b16 %v3642
    %v3986 = vunpack.c.h.b16 %v3642
    %v3987 = vunpack.c.l.b16 %v3643
    %v3988 = vunpack.c.h.b16 %v3643
    %v3989 = vunpack.c.l.b16 %v3644
    %v3990 = vunpack.c.h.b16 %v3644
    %v3991 = vunpack.c.l.b16 %v3645
    %v3992 = vunpack.c.h.b16 %v3645
    %v3993 = vunpack.c.l.b16 %v3646
    %v3994 = vunpack.c.h.b16 %v3646
    %v3995 = vunpack.c.l.b16 %v3647
    %v3996 = vunpack.c.h.b16 %v3647
    %v3997 = vunpack.c.l.b16 %v3648
    %v3998 = vunpack.c.h.b16 %v3648
    %v3999 = vpack.c.b16 %v3939, %v3935
    %v4000 = vpack.c.b16 %v3940, %v3936
    %v4001 = vpack.c.b16 %v3941, %v3937
    %v4002 = vpack.c.b16 %v3942, %v3938
    %v4003 = vpack.c.b16 %v3947, %v3943
    %v4004 = vpack.c.b16 %v3948, %v3944
    %v4005 = vpack.c.b16 %v3949, %v3945
    %v4006 = vpack.c.b16 %v3950, %v3946
    %v4007 = vpack.c.b16 %v3955, %v3951
    %v4008 = vpack.c.b16 %v3956, %v3952
    %v4009 = vpack.c.b16 %v3957, %v3953
    %v4010 = vpack.c.b16 %v3958, %v3954
    %v4011 = vpack.c.b16 %v3963, %v3959
    %v4012 = vpack.c.b16 %v3964, %v3960
    %v4013 = vpack.c.b16 %v3965, %v3961
    %v4014 = vpack.c.b16 %v3966, %v3962
    %v4015 = vpack.c.b16 %v3971, %v3967
    %v4016 = vpack.c.b16 %v3972, %v3968
    %v4017 = vpack.c.b16 %v3973, %v3969
    %v4018 = vpack.c.b16 %v3974, %v3970
    %v4019 = vpack.c.b16 %v3979, %v3975
    %v4020 = vpack.c.b16 %v3980, %v3976
    %v4021 = vpack.c.b16 %v3981, %v3977
    %v4022 = vpack.c.b16 %v3982, %v3978
    %v4023 = vpack.c.b16 %v3987, %v3983
    %v4024 = vpack.c.b16 %v3988, %v3984
    %v4025 = vpack.c.b16 %v3989, %v3985
    %v4026 = vpack.c.b16 %v3990, %v3986
    %v4027 = vpack.c.b16 %v3995, %v3991
    %v4028 = vpack.c.b16 %v3996, %v3992
    %v4029 = vpack.c.b16 %v3997, %v3993
    %v4030 = vpack.c.b16 %v3998, %v3994
    %4063 = vmatprep.subr.bf16.mxu0 %v4028
    %4064 = vmatpush1.bf16.msra.mxu0 %v4027
    %4065 = vmatprep.subr.bf16.mxu0 %v4024
    %4066 = vmatpush1.bf16.msra.mxu0 %v4023
    %4067 = vmatprep.subr.bf16.mxu0 %v4020
    %4068 = vmatpush1.bf16.msra.mxu0 %v4019
    %4069 = vmatprep.subr.bf16.mxu0 %v4016
    %4070 = vmatpush1.bf16.msra.mxu0 %v4015
    %4071 = vmatprep.subr.bf16.mxu0 %v4012
    %4072 = vmatpush1.bf16.msra.mxu0 %v4011
    %4073 = vmatprep.subr.bf16.mxu0 %v4008
    %4074 = vmatpush1.bf16.msra.mxu0 %v4007
    %4075 = vmatprep.subr.bf16.mxu0 %v4004
    %4076 = vmatpush1.bf16.msra.mxu0 %v4003
    %4077 = vmatprep.subr.bf16.mxu0 %v4000
    %4078 = vmatpush1.bf16.msra.mxu0 %v3999
    %4079 = vmatprep.subr.bf16.mxu0 0
    %4080 = vmatpush2.bf16.msra.mxu0 0
    %4081 = vmatprep.subr.bf16.mxu0 0
    %4082 = vmatpush2.bf16.msra.mxu0 0
    %4083 = vmatprep.subr.bf16.mxu0 0
    %4084 = vmatpush2.bf16.msra.mxu0 0
    %4085 = vmatprep.subr.bf16.mxu0 0
    %4086 = vmatpush2.bf16.msra.mxu0 0
    %4087 = vmatprep.subr.bf16.mxu0 0
    %4088 = vmatpush2.bf16.msra.mxu0 0
    %4089 = vmatprep.subr.bf16.mxu0 0
    %4090 = vmatpush2.bf16.msra.mxu0 0
    %4091 = vmatprep.subr.bf16.mxu0 0
    %4092 = vmatpush2.bf16.msra.mxu0 0
    %4093 = vmatprep.subr.bf16.mxu0 0
    %4094 = vmatpush2.bf16.msra.mxu0 0
    %4095 = vmatprep.mubr.bf16.mxu0 0
    %4096 = vmatmul.mubr.bf16.gmra.mxu0 %v3580
    %v4097 = vpop.f32.mrf.mxu0
    %v4098 = vadd.f32 %v3899, %v4097
    %v4099 = vpop.f32.mrf.mxu0
    %v4100 = vadd.f32 %v3900, %v4099
    %v4101 = vpop.f32.mrf.mxu0
    %v4102 = vpop.f32.mrf.mxu0
    %4103 = vdwg.mxu0
    %4104 = vmatprep.subr.bf16.mxu0 %v4030
    %4105 = vmatpush1.bf16.msra.mxu0 %v4029
    %4106 = vmatprep.subr.bf16.mxu0 %v4026
    %4107 = vmatpush1.bf16.msra.mxu0 %v4025
    %4108 = vmatprep.subr.bf16.mxu0 %v4022
    %4109 = vmatpush1.bf16.msra.mxu0 %v4021
    %4110 = vmatprep.subr.bf16.mxu0 %v4018
    %4111 = vmatpush1.bf16.msra.mxu0 %v4017
    %4112 = vmatprep.subr.bf16.mxu0 %v4014
    %4113 = vmatpush1.bf16.msra.mxu0 %v4013
    %4114 = vmatprep.subr.bf16.mxu0 %v4010
    %4115 = vmatpush1.bf16.msra.mxu0 %v4009
    %4116 = vmatprep.subr.bf16.mxu0 %v4006
    %4117 = vmatpush1.bf16.msra.mxu0 %v4005
    %4118 = vmatprep.subr.bf16.mxu0 %v4002
    %4119 = vmatpush1.bf16.msra.mxu0 %v4001
    %4120 = vmatprep.subr.bf16.mxu0 0
    %4121 = vmatpush2.bf16.msra.mxu0 0
    %4122 = vmatprep.subr.bf16.mxu0 0
    %4123 = vmatpush2.bf16.msra.mxu0 0
    %4124 = vmatprep.subr.bf16.mxu0 0
    %4125 = vmatpush2.bf16.msra.mxu0 0
    %4126 = vmatprep.subr.bf16.mxu0 0
    %4127 = vmatpush2.bf16.msra.mxu0 0
    %4128 = vmatprep.subr.bf16.mxu0 0
    %4129 = vmatpush2.bf16.msra.mxu0 0
    %4130 = vmatprep.subr.bf16.mxu0 0
    %4131 = vmatpush2.bf16.msra.mxu0 0
    %4132 = vmatprep.subr.bf16.mxu0 0
    %4133 = vmatpush2.bf16.msra.mxu0 0
    %4134 = vmatprep.subr.bf16.mxu0 0
    %4135 = vmatpush2.bf16.msra.mxu0 0
    %4136 = vmatprep.mubr.bf16.mxu0 0
    %4137 = vmatmul.mubr.bf16.gmra.mxu0 %v3580
    %v4138 = vpop.f32.mrf.mxu0
    %v4139 = vadd.f32 %v3901, %v4138
    %v4140 = vpop.f32.mrf.mxu0
    %v4141 = vadd.f32 %v3902, %v4140
    %v4142 = vpop.f32.mrf.mxu0
    %v4143 = vpop.f32.mrf.mxu0
    %4144 = vdwg.mxu0
    %v4145 = vxor.u32 %v3850, 2147483648
    %v4146 = vmul.f32 %v4145, 1.442695
    %v4147 = vpow.pop %v4146
    %v4148 = vadd.f32 %v4147, 1.0
    %v4149 = vrcp.pop %v4148
    %v4150 = vmul.f32 1.0, %v4149
    %v4151 = vxor.u32 %v3852, 2147483648
    %v4152 = vmul.f32 %v4151, 1.442695
    %v4153 = vpow.pop %v4152
    %v4154 = vadd.f32 %v4153, 1.0
    %v4155 = vrcp.pop %v4154
    %v4156 = vmul.f32 1.0, %v4155
    %v4157 = vtanh.pop %v3891
    %v4158 = vxor.u32 %v3893, 2147483648
    %v4159 = vmul.f32 %v4158, 1.442695
    %v4160 = vpow.pop %v4159
    %v4161 = vadd.f32 %v4160, 1.0
    %v4162 = vrcp.pop %v4161
    %v4163 = vmul.f32 1.0, %v4162
    %v4164 = vmul.f32 %v4156, %v3548
    %v4165 = vmul.f32 %v4150, %v4157
    %v4166 = vadd.f32 %v4164, %v4165
    %v4167 = vtanh.pop %v4166
    %v4168 = vmul.f32 %v4163, %v4167
    %v4169 = vxor.u32 %v4098, 2147483648
    %v4170 = vmul.f32 %v4169, 1.442695
    %v4171 = vpow.pop %v4170
    %v4172 = vadd.f32 %v4171, 1.0
    %v4173 = vrcp.pop %v4172
    %v4174 = vmul.f32 1.0, %v4173
    %v4175 = vxor.u32 %v4100, 2147483648
    %v4176 = vmul.f32 %v4175, 1.442695
    %v4177 = vpow.pop %v4176
    %v4178 = vadd.f32 %v4177, 1.0
    %v4179 = vrcp.pop %v4178
    %v4180 = vmul.f32 1.0, %v4179
    %v4181 = vtanh.pop %v4139
    %v4182 = vxor.u32 %v4141, 2147483648
    %v4183 = vmul.f32 %v4182, 1.442695
    %v4184 = vpow.pop %v4183
    %v4185 = vadd.f32 %v4184, 1.0
    %v4186 = vrcp.pop %v4185
    %v4187 = vmul.f32 1.0, %v4186
    %v4188 = vmul.f32 %v4180, %v3572
    %v4189 = vmul.f32 %v4174, %v4181
    %v4190 = vadd.f32 %v4188, %v4189
    %v4191 = vtanh.pop %v4190
    %v4192 = vmul.f32 %v4187, %v4191
    %v4193 = vpack.c.bf16 %v4168, %v4168
    %4194 = vst [vmem:[%s3583] sm:$0xf] %v4193
    %v4195 = vpack.c.bf16 %v4192, %v4192
    %4196 = vst [vmem:[%s3578 + $0x4] sm:$0xf] %v4195
    %v4197 = vld [vmem:[#allocation6] sm:$0xff]
    %v4198 = vld [vmem:[#allocation6 + $0x8] sm:$0xff]
    %v4199 = vld [vmem:[#allocation6 + $0x10] sm:$0xff]
    %v4200 = vld [vmem:[#allocation6 + $0x18] sm:$0xff]
    %v4201 = vld [vmem:[#allocation6 + $0x20] sm:$0xff]
    %v4202 = vld [vmem:[#allocation6 + $0x28] sm:$0xff]
    %v4203 = vld [vmem:[#allocation6 + $0x30] sm:$0xff]
    %v4204 = vld [vmem:[#allocation6 + $0x38] sm:$0xff]
    %v4205 = vld [vmem:[#allocation6 + $0x40] sm:$0xff]
    %v4206 = vld [vmem:[#allocation6 + $0x48] sm:$0xff]
    %v4207 = vld [vmem:[#allocation6 + $0x50] sm:$0xff]
    %v4208 = vld [vmem:[#allocation6 + $0x58] sm:$0xff]
    %v4209 = vld [vmem:[#allocation6 + $0x60] sm:$0xff]
    %v4210 = vld [vmem:[#allocation6 + $0x68] sm:$0xff]
    %v4211 = vld [vmem:[#allocation6 + $0x70] sm:$0xff]
    %v4212 = vld [vmem:[#allocation6 + $0x78] sm:$0xff]
    %v4213 = vld [vmem:[#allocation6 + $0x80] sm:$0xff]
    %v4214 = vld [vmem:[#allocation6 + $0x88] sm:$0xff]
    %v4215 = vld [vmem:[#allocation6 + $0x90] sm:$0xff]
    %v4216 = vld [vmem:[#allocation6 + $0x98] sm:$0xff]
    %v4217 = vld [vmem:[#allocation6 + $0xa0] sm:$0xff]
    %v4218 = vld [vmem:[#allocation6 + $0xa8] sm:$0xff]
    %v4219 = vld [vmem:[#allocation6 + $0xb0] sm:$0xff]
    %v4220 = vld [vmem:[#allocation6 + $0xb8] sm:$0xff]
    %v4221 = vld [vmem:[#allocation6 + $0xc0] sm:$0xff]
    %v4222 = vld [vmem:[#allocation6 + $0xc8] sm:$0xff]
    %v4223 = vld [vmem:[#allocation6 + $0xd0] sm:$0xff]
    %v4224 = vld [vmem:[#allocation6 + $0xd8] sm:$0xff]
    %v4225 = vld [vmem:[#allocation6 + $0xe0] sm:$0xff]
    %v4226 = vld [vmem:[#allocation6 + $0xe8] sm:$0xff]
    %v4227 = vld [vmem:[#allocation6 + $0xf0] sm:$0xff]
    %v4228 = vld [vmem:[#allocation6 + $0xf8] sm:$0xff]
    %v4229 = vld [vmem:[#allocation8] sm:$0xff]
    %v4230 = vld [vmem:[#allocation8 + $0x8] sm:$0xff]
    %v4231 = vld [vmem:[#allocation8 + $0x10] sm:$0xff]
    %v4232 = vld [vmem:[#allocation8 + $0x18] sm:$0xff]
    %v4233 = vld [vmem:[#allocation8 + $0x20] sm:$0xff]
    %v4234 = vld [vmem:[#allocation8 + $0x28] sm:$0xff]
    %v4235 = vld [vmem:[#allocation8 + $0x30] sm:$0xff]
    %v4236 = vld [vmem:[#allocation8 + $0x38] sm:$0xff]
    %v4237 = vld [vmem:[#allocation8 + $0x40] sm:$0xff]
    %v4238 = vld [vmem:[#allocation8 + $0x48] sm:$0xff]
    %v4239 = vld [vmem:[#allocation8 + $0x50] sm:$0xff]
    %v4240 = vld [vmem:[#allocation8 + $0x58] sm:$0xff]
    %v4241 = vld [vmem:[#allocation8 + $0x60] sm:$0xff]
    %v4242 = vld [vmem:[#allocation8 + $0x68] sm:$0xff]
    %v4243 = vld [vmem:[#allocation8 + $0x70] sm:$0xff]
    %v4244 = vld [vmem:[#allocation8 + $0x78] sm:$0xff]
    %v4245 = vld [vmem:[#allocation8 + $0x80] sm:$0xff]
    %v4246 = vld [vmem:[#allocation8 + $0x88] sm:$0xff]
    %v4247 = vld [vmem:[#allocation8 + $0x90] sm:$0xff]
    %v4248 = vld [vmem:[#allocation8 + $0x98] sm:$0xff]
    %v4249 = vld [vmem:[#allocation8 + $0xa0] sm:$0xff]
    %v4250 = vld [vmem:[#allocation8 + $0xa8] sm:$0xff]
    %v4251 = vld [vmem:[#allocation8 + $0xb0] sm:$0xff]
    %v4252 = vld [vmem:[#allocation8 + $0xb8] sm:$0xff]
    %v4253 = vld [vmem:[#allocation8 + $0xc0] sm:$0xff]
    %v4254 = vld [vmem:[#allocation8 + $0xc8] sm:$0xff]
    %v4255 = vld [vmem:[#allocation8 + $0xd0] sm:$0xff]
    %v4256 = vld [vmem:[#allocation8 + $0xd8] sm:$0xff]
    %v4257 = vld [vmem:[#allocation8 + $0xe0] sm:$0xff]
    %v4258 = vld [vmem:[#allocation8 + $0xe8] sm:$0xff]
    %v4259 = vld [vmem:[#allocation8 + $0xf0] sm:$0xff]
    %v4260 = vld [vmem:[#allocation8 + $0xf8] sm:$0xff]
    %v4261 = vld [vmem:[%s2654] sm:$0xff]
    %v4262 = vld [vmem:[%s2654 + $0x8] sm:$0xff]
    %v4263 = vunpack.c.l.bf16 %v4261
    %v4264 = vunpack.c.h.bf16 %v4261
    %v4265 = vunpack.c.l.bf16 %v4262
    %v4266 = vunpack.c.h.bf16 %v4262
    %v4299 = vunpack.c.l.b16 %v4197
    %v4300 = vunpack.c.h.b16 %v4197
    %v4301 = vunpack.c.l.b16 %v4198
    %v4302 = vunpack.c.h.b16 %v4198
    %v4303 = vunpack.c.l.b16 %v4199
    %v4304 = vunpack.c.h.b16 %v4199
    %v4305 = vunpack.c.l.b16 %v4200
    %v4306 = vunpack.c.h.b16 %v4200
    %v4307 = vunpack.c.l.b16 %v4201
    %v4308 = vunpack.c.h.b16 %v4201
    %v4309 = vunpack.c.l.b16 %v4202
    %v4310 = vunpack.c.h.b16 %v4202
    %v4311 = vunpack.c.l.b16 %v4203
    %v4312 = vunpack.c.h.b16 %v4203
    %v4313 = vunpack.c.l.b16 %v4204
    %v4314 = vunpack.c.h.b16 %v4204
    %v4315 = vunpack.c.l.b16 %v4205
    %v4316 = vunpack.c.h.b16 %v4205
    %v4317 = vunpack.c.l.b16 %v4206
    %v4318 = vunpack.c.h.b16 %v4206
    %v4319 = vunpack.c.l.b16 %v4207
    %v4320 = vunpack.c.h.b16 %v4207
    %v4321 = vunpack.c.l.b16 %v4208
    %v4322 = vunpack.c.h.b16 %v4208
    %v4323 = vunpack.c.l.b16 %v4209
    %v4324 = vunpack.c.h.b16 %v4209
    %v4325 = vunpack.c.l.b16 %v4210
    %v4326 = vunpack.c.h.b16 %v4210
    %v4327 = vunpack.c.l.b16 %v4211
    %v4328 = vunpack.c.h.b16 %v4211
    %v4329 = vunpack.c.l.b16 %v4212
    %v4330 = vunpack.c.h.b16 %v4212
    %v4331 = vunpack.c.l.b16 %v4213
    %v4332 = vunpack.c.h.b16 %v4213
    %v4333 = vunpack.c.l.b16 %v4214
    %v4334 = vunpack.c.h.b16 %v4214
    %v4335 = vunpack.c.l.b16 %v4215
    %v4336 = vunpack.c.h.b16 %v4215
    %v4337 = vunpack.c.l.b16 %v4216
    %v4338 = vunpack.c.h.b16 %v4216
    %v4339 = vunpack.c.l.b16 %v4217
    %v4340 = vunpack.c.h.b16 %v4217
    %v4341 = vunpack.c.l.b16 %v4218
    %v4342 = vunpack.c.h.b16 %v4218
    %v4343 = vunpack.c.l.b16 %v4219
    %v4344 = vunpack.c.h.b16 %v4219
    %v4345 = vunpack.c.l.b16 %v4220
    %v4346 = vunpack.c.h.b16 %v4220
    %v4347 = vunpack.c.l.b16 %v4221
    %v4348 = vunpack.c.h.b16 %v4221
    %v4349 = vunpack.c.l.b16 %v4222
    %v4350 = vunpack.c.h.b16 %v4222
    %v4351 = vunpack.c.l.b16 %v4223
    %v4352 = vunpack.c.h.b16 %v4223
    %v4353 = vunpack.c.l.b16 %v4224
    %v4354 = vunpack.c.h.b16 %v4224
    %v4355 = vunpack.c.l.b16 %v4225
    %v4356 = vunpack.c.h.b16 %v4225
    %v4357 = vunpack.c.l.b16 %v4226
    %v4358 = vunpack.c.h.b16 %v4226
    %v4359 = vunpack.c.l.b16 %v4227
    %v4360 = vunpack.c.h.b16 %v4227
    %v4361 = vunpack.c.l.b16 %v4228
    %v4362 = vunpack.c.h.b16 %v4228
    %v4363 = vpack.c.b16 %v4303, %v4299
    %v4364 = vpack.c.b16 %v4304, %v4300
    %v4365 = vpack.c.b16 %v4305, %v4301
    %v4366 = vpack.c.b16 %v4306, %v4302
    %v4367 = vpack.c.b16 %v4311, %v4307
    %v4368 = vpack.c.b16 %v4312, %v4308
    %v4369 = vpack.c.b16 %v4313, %v4309
    %v4370 = vpack.c.b16 %v4314, %v4310
    %v4371 = vpack.c.b16 %v4319, %v4315
    %v4372 = vpack.c.b16 %v4320, %v4316
    %v4373 = vpack.c.b16 %v4321, %v4317
    %v4374 = vpack.c.b16 %v4322, %v4318
    %v4375 = vpack.c.b16 %v4327, %v4323
    %v4376 = vpack.c.b16 %v4328, %v4324
    %v4377 = vpack.c.b16 %v4329, %v4325
    %v4378 = vpack.c.b16 %v4330, %v4326
    %v4379 = vpack.c.b16 %v4335, %v4331
    %v4380 = vpack.c.b16 %v4336, %v4332
    %v4381 = vpack.c.b16 %v4337, %v4333
    %v4382 = vpack.c.b16 %v4338, %v4334
    %v4383 = vpack.c.b16 %v4343, %v4339
    %v4384 = vpack.c.b16 %v4344, %v4340
    %v4385 = vpack.c.b16 %v4345, %v4341
    %v4386 = vpack.c.b16 %v4346, %v4342
    %v4387 = vpack.c.b16 %v4351, %v4347
    %v4388 = vpack.c.b16 %v4352, %v4348
    %v4389 = vpack.c.b16 %v4353, %v4349
    %v4390 = vpack.c.b16 %v4354, %v4350
    %v4391 = vpack.c.b16 %v4359, %v4355
    %v4392 = vpack.c.b16 %v4360, %v4356
    %v4393 = vpack.c.b16 %v4361, %v4357
    %v4394 = vpack.c.b16 %v4362, %v4358
    %4427 = vmatprep.subr.bf16.mxu0 %v4392
    %4428 = vmatpush1.bf16.msra.mxu0 %v4391
    %4429 = vmatprep.subr.bf16.mxu0 %v4388
    %4430 = vmatpush1.bf16.msra.mxu0 %v4387
    %4431 = vmatprep.subr.bf16.mxu0 %v4384
    %4432 = vmatpush1.bf16.msra.mxu0 %v4383
    %4433 = vmatprep.subr.bf16.mxu0 %v4380
    %4434 = vmatpush1.bf16.msra.mxu0 %v4379
    %4435 = vmatprep.subr.bf16.mxu0 %v4376
    %4436 = vmatpush1.bf16.msra.mxu0 %v4375
    %4437 = vmatprep.subr.bf16.mxu0 %v4372
    %4438 = vmatpush1.bf16.msra.mxu0 %v4371
    %4439 = vmatprep.subr.bf16.mxu0 %v4368
    %4440 = vmatpush1.bf16.msra.mxu0 %v4367
    %4441 = vmatprep.subr.bf16.mxu0 %v4364
    %4442 = vmatpush1.bf16.msra.mxu0 %v4363
    %4443 = vmatprep.subr.bf16.mxu0 0
    %4444 = vmatpush2.bf16.msra.mxu0 0
    %4445 = vmatprep.subr.bf16.mxu0 0
    %4446 = vmatpush2.bf16.msra.mxu0 0
    %4447 = vmatprep.subr.bf16.mxu0 0
    %4448 = vmatpush2.bf16.msra.mxu0 0
    %4449 = vmatprep.subr.bf16.mxu0 0
    %4450 = vmatpush2.bf16.msra.mxu0 0
    %4451 = vmatprep.subr.bf16.mxu0 0
    %4452 = vmatpush2.bf16.msra.mxu0 0
    %4453 = vmatprep.subr.bf16.mxu0 0
    %4454 = vmatpush2.bf16.msra.mxu0 0
    %4455 = vmatprep.subr.bf16.mxu0 0
    %4456 = vmatpush2.bf16.msra.mxu0 0
    %4457 = vmatprep.subr.bf16.mxu0 0
    %4458 = vmatpush2.bf16.msra.mxu0 0
    %4459 = vmatprep.mubr.bf16.mxu0 0
    %4460 = vmatmul.mubr.bf16.gmra.mxu0 %v4193
    %v4461 = vpop.f32.mrf.mxu0
    %v4462 = vadd.f32 %v4263, %v4461
    %v4463 = vpop.f32.mrf.mxu0
    %v4464 = vadd.f32 %v4264, %v4463
    %v4465 = vpop.f32.mrf.mxu0
    %v4466 = vpop.f32.mrf.mxu0
    %4467 = vdwg.mxu0
    %4468 = vmatprep.subr.bf16.mxu0 %v4394
    %4469 = vmatpush1.bf16.msra.mxu0 %v4393
    %4470 = vmatprep.subr.bf16.mxu0 %v4390
    %4471 = vmatpush1.bf16.msra.mxu0 %v4389
    %4472 = vmatprep.subr.bf16.mxu0 %v4386
    %4473 = vmatpush1.bf16.msra.mxu0 %v4385
    %4474 = vmatprep.subr.bf16.mxu0 %v4382
    %4475 = vmatpush1.bf16.msra.mxu0 %v4381
    %4476 = vmatprep.subr.bf16.mxu0 %v4378
    %4477 = vmatpush1.bf16.msra.mxu0 %v4377
    %4478 = vmatprep.subr.bf16.mxu0 %v4374
    %4479 = vmatpush1.bf16.msra.mxu0 %v4373
    %4480 = vmatprep.subr.bf16.mxu0 %v4370
    %4481 = vmatpush1.bf16.msra.mxu0 %v4369
    %4482 = vmatprep.subr.bf16.mxu0 %v4366
    %4483 = vmatpush1.bf16.msra.mxu0 %v4365
    %4484 = vmatprep.subr.bf16.mxu0 0
    %4485 = vmatpush2.bf16.msra.mxu0 0
    %4486 = vmatprep.subr.bf16.mxu0 0
    %4487 = vmatpush2.bf16.msra.mxu0 0
    %4488 = vmatprep.subr.bf16.mxu0 0
    %4489 = vmatpush2.bf16.msra.mxu0 0
    %4490 = vmatprep.subr.bf16.mxu0 0
    %4491 = vmatpush2.bf16.msra.mxu0 0
    %4492 = vmatprep.subr.bf16.mxu0 0
    %4493 = vmatpush2.bf16.msra.mxu0 0
    %4494 = vmatprep.subr.bf16.mxu0 0
    %4495 = vmatpush2.bf16.msra.mxu0 0
    %4496 = vmatprep.subr.bf16.mxu0 0
    %4497 = vmatpush2.bf16.msra.mxu0 0
    %4498 = vmatprep.subr.bf16.mxu0 0
    %4499 = vmatpush2.bf16.msra.mxu0 0
    %4500 = vmatprep.mubr.bf16.mxu0 0
    %4501 = vmatmul.mubr.bf16.gmra.mxu0 %v4193
    %v4502 = vpop.f32.mrf.mxu0
    %v4503 = vadd.f32 %v4265, %v4502
    %v4504 = vpop.f32.mrf.mxu0
    %v4505 = vadd.f32 %v4266, %v4504
    %v4506 = vpop.f32.mrf.mxu0
    %v4507 = vpop.f32.mrf.mxu0
    %4508 = vdwg.mxu0
    %v4509 = vld [vmem:[%s2403 + $0x10] sm:$0xff]
    %v4510 = vld [vmem:[%s2403 + $0x18] sm:$0xff]
    %v4511 = vunpack.c.l.bf16 %v4509
    %v4512 = vunpack.c.h.bf16 %v4509
    %v4513 = vunpack.c.l.bf16 %v4510
    %v4514 = vunpack.c.h.bf16 %v4510
    %v4547 = vunpack.c.l.b16 %v4229
    %v4548 = vunpack.c.h.b16 %v4229
    %v4549 = vunpack.c.l.b16 %v4230
    %v4550 = vunpack.c.h.b16 %v4230
    %v4551 = vunpack.c.l.b16 %v4231
    %v4552 = vunpack.c.h.b16 %v4231
    %v4553 = vunpack.c.l.b16 %v4232
    %v4554 = vunpack.c.h.b16 %v4232
    %v4555 = vunpack.c.l.b16 %v4233
    %v4556 = vunpack.c.h.b16 %v4233
    %v4557 = vunpack.c.l.b16 %v4234
    %v4558 = vunpack.c.h.b16 %v4234
    %v4559 = vunpack.c.l.b16 %v4235
    %v4560 = vunpack.c.h.b16 %v4235
    %v4561 = vunpack.c.l.b16 %v4236
    %v4562 = vunpack.c.h.b16 %v4236
    %v4563 = vunpack.c.l.b16 %v4237
    %v4564 = vunpack.c.h.b16 %v4237
    %v4565 = vunpack.c.l.b16 %v4238
    %v4566 = vunpack.c.h.b16 %v4238
    %v4567 = vunpack.c.l.b16 %v4239
    %v4568 = vunpack.c.h.b16 %v4239
    %v4569 = vunpack.c.l.b16 %v4240
    %v4570 = vunpack.c.h.b16 %v4240
    %v4571 = vunpack.c.l.b16 %v4241
    %v4572 = vunpack.c.h.b16 %v4241
    %v4573 = vunpack.c.l.b16 %v4242
    %v4574 = vunpack.c.h.b16 %v4242
    %v4575 = vunpack.c.l.b16 %v4243
    %v4576 = vunpack.c.h.b16 %v4243
    %v4577 = vunpack.c.l.b16 %v4244
    %v4578 = vunpack.c.h.b16 %v4244
    %v4579 = vunpack.c.l.b16 %v4245
    %v4580 = vunpack.c.h.b16 %v4245
    %v4581 = vunpack.c.l.b16 %v4246
    %v4582 = vunpack.c.h.b16 %v4246
    %v4583 = vunpack.c.l.b16 %v4247
    %v4584 = vunpack.c.h.b16 %v4247
    %v4585 = vunpack.c.l.b16 %v4248
    %v4586 = vunpack.c.h.b16 %v4248
    %v4587 = vunpack.c.l.b16 %v4249
    %v4588 = vunpack.c.h.b16 %v4249
    %v4589 = vunpack.c.l.b16 %v4250
    %v4590 = vunpack.c.h.b16 %v4250
    %v4591 = vunpack.c.l.b16 %v4251
    %v4592 = vunpack.c.h.b16 %v4251
    %v4593 = vunpack.c.l.b16 %v4252
    %v4594 = vunpack.c.h.b16 %v4252
    %v4595 = vunpack.c.l.b16 %v4253
    %v4596 = vunpack.c.h.b16 %v4253
    %v4597 = vunpack.c.l.b16 %v4254
    %v4598 = vunpack.c.h.b16 %v4254
    %v4599 = vunpack.c.l.b16 %v4255
    %v4600 = vunpack.c.h.b16 %v4255
    %v4601 = vunpack.c.l.b16 %v4256
    %v4602 = vunpack.c.h.b16 %v4256
    %v4603 = vunpack.c.l.b16 %v4257
    %v4604 = vunpack.c.h.b16 %v4257
    %v4605 = vunpack.c.l.b16 %v4258
    %v4606 = vunpack.c.h.b16 %v4258
    %v4607 = vunpack.c.l.b16 %v4259
    %v4608 = vunpack.c.h.b16 %v4259
    %v4609 = vunpack.c.l.b16 %v4260
    %v4610 = vunpack.c.h.b16 %v4260
    %v4611 = vpack.c.b16 %v4551, %v4547
    %v4612 = vpack.c.b16 %v4552, %v4548
    %v4613 = vpack.c.b16 %v4553, %v4549
    %v4614 = vpack.c.b16 %v4554, %v4550
    %v4615 = vpack.c.b16 %v4559, %v4555
    %v4616 = vpack.c.b16 %v4560, %v4556
    %v4617 = vpack.c.b16 %v4561, %v4557
    %v4618 = vpack.c.b16 %v4562, %v4558
    %v4619 = vpack.c.b16 %v4567, %v4563
    %v4620 = vpack.c.b16 %v4568, %v4564
    %v4621 = vpack.c.b16 %v4569, %v4565
    %v4622 = vpack.c.b16 %v4570, %v4566
    %v4623 = vpack.c.b16 %v4575, %v4571
    %v4624 = vpack.c.b16 %v4576, %v4572
    %v4625 = vpack.c.b16 %v4577, %v4573
    %v4626 = vpack.c.b16 %v4578, %v4574
    %v4627 = vpack.c.b16 %v4583, %v4579
    %v4628 = vpack.c.b16 %v4584, %v4580
    %v4629 = vpack.c.b16 %v4585, %v4581
    %v4630 = vpack.c.b16 %v4586, %v4582
    %v4631 = vpack.c.b16 %v4591, %v4587
    %v4632 = vpack.c.b16 %v4592, %v4588
    %v4633 = vpack.c.b16 %v4593, %v4589
    %v4634 = vpack.c.b16 %v4594, %v4590
    %v4635 = vpack.c.b16 %v4599, %v4595
    %v4636 = vpack.c.b16 %v4600, %v4596
    %v4637 = vpack.c.b16 %v4601, %v4597
    %v4638 = vpack.c.b16 %v4602, %v4598
    %v4639 = vpack.c.b16 %v4607, %v4603
    %v4640 = vpack.c.b16 %v4608, %v4604
    %v4641 = vpack.c.b16 %v4609, %v4605
    %v4642 = vpack.c.b16 %v4610, %v4606
    %4675 = vmatprep.subr.bf16.mxu0 %v4640
    %4676 = vmatpush1.bf16.msra.mxu0 %v4639
    %4677 = vmatprep.subr.bf16.mxu0 %v4636
    %4678 = vmatpush1.bf16.msra.mxu0 %v4635
    %4679 = vmatprep.subr.bf16.mxu0 %v4632
    %4680 = vmatpush1.bf16.msra.mxu0 %v4631
    %4681 = vmatprep.subr.bf16.mxu0 %v4628
    %4682 = vmatpush1.bf16.msra.mxu0 %v4627
    %4683 = vmatprep.subr.bf16.mxu0 %v4624
    %4684 = vmatpush1.bf16.msra.mxu0 %v4623
    %4685 = vmatprep.subr.bf16.mxu0 %v4620
    %4686 = vmatpush1.bf16.msra.mxu0 %v4619
    %4687 = vmatprep.subr.bf16.mxu0 %v4616
    %4688 = vmatpush1.bf16.msra.mxu0 %v4615
    %4689 = vmatprep.subr.bf16.mxu0 %v4612
    %4690 = vmatpush1.bf16.msra.mxu0 %v4611
    %4691 = vmatprep.subr.bf16.mxu0 0
    %4692 = vmatpush2.bf16.msra.mxu0 0
    %4693 = vmatprep.subr.bf16.mxu0 0
    %4694 = vmatpush2.bf16.msra.mxu0 0
    %4695 = vmatprep.subr.bf16.mxu0 0
    %4696 = vmatpush2.bf16.msra.mxu0 0
    %4697 = vmatprep.subr.bf16.mxu0 0
    %4698 = vmatpush2.bf16.msra.mxu0 0
    %4699 = vmatprep.subr.bf16.mxu0 0
    %4700 = vmatpush2.bf16.msra.mxu0 0
    %4701 = vmatprep.subr.bf16.mxu0 0
    %4702 = vmatpush2.bf16.msra.mxu0 0
    %4703 = vmatprep.subr.bf16.mxu0 0
    %4704 = vmatpush2.bf16.msra.mxu0 0
    %4705 = vmatprep.subr.bf16.mxu0 0
    %4706 = vmatpush2.bf16.msra.mxu0 0
    %4707 = vmatprep.mubr.bf16.mxu0 0
    %4708 = vmatmul.mubr.bf16.gmra.mxu0 %v4195
    %v4709 = vpop.f32.mrf.mxu0
    %v4710 = vadd.f32 %v4511, %v4709
    %v4711 = vpop.f32.mrf.mxu0
    %v4712 = vadd.f32 %v4512, %v4711
    %v4713 = vpop.f32.mrf.mxu0
    %v4714 = vpop.f32.mrf.mxu0
    %4715 = vdwg.mxu0
    %4716 = vmatprep.subr.bf16.mxu0 %v4642
    %4717 = vmatpush1.bf16.msra.mxu0 %v4641
    %4718 = vmatprep.subr.bf16.mxu0 %v4638
    %4719 = vmatpush1.bf16.msra.mxu0 %v4637
    %4720 = vmatprep.subr.bf16.mxu0 %v4634
    %4721 = vmatpush1.bf16.msra.mxu0 %v4633
    %4722 = vmatprep.subr.bf16.mxu0 %v4630
    %4723 = vmatpush1.bf16.msra.mxu0 %v4629
    %4724 = vmatprep.subr.bf16.mxu0 %v4626
    %4725 = vmatpush1.bf16.msra.mxu0 %v4625
    %4726 = vmatprep.subr.bf16.mxu0 %v4622
    %4727 = vmatpush1.bf16.msra.mxu0 %v4621
    %4728 = vmatprep.subr.bf16.mxu0 %v4618
    %4729 = vmatpush1.bf16.msra.mxu0 %v4617
    %4730 = vmatprep.subr.bf16.mxu0 %v4614
    %4731 = vmatpush1.bf16.msra.mxu0 %v4613
    %4732 = vmatprep.subr.bf16.mxu0 0
    %4733 = vmatpush2.bf16.msra.mxu0 0
    %4734 = vmatprep.subr.bf16.mxu0 0
    %4735 = vmatpush2.bf16.msra.mxu0 0
    %4736 = vmatprep.subr.bf16.mxu0 0
    %4737 = vmatpush2.bf16.msra.mxu0 0
    %4738 = vmatprep.subr.bf16.mxu0 0
    %4739 = vmatpush2.bf16.msra.mxu0 0
    %4740 = vmatprep.subr.bf16.mxu0 0
    %4741 = vmatpush2.bf16.msra.mxu0 0
    %4742 = vmatprep.subr.bf16.mxu0 0
    %4743 = vmatpush2.bf16.msra.mxu0 0
    %4744 = vmatprep.subr.bf16.mxu0 0
    %4745 = vmatpush2.bf16.msra.mxu0 0
    %4746 = vmatprep.subr.bf16.mxu0 0
    %4747 = vmatpush2.bf16.msra.mxu0 0
    %4748 = vmatprep.mubr.bf16.mxu0 0
    %4749 = vmatmul.mubr.bf16.gmra.mxu0 %v4195
    %v4750 = vpop.f32.mrf.mxu0
    %v4751 = vadd.f32 %v4513, %v4750
    %v4752 = vpop.f32.mrf.mxu0
    %v4753 = vadd.f32 %v4514, %v4752
    %v4754 = vpop.f32.mrf.mxu0
    %v4755 = vpop.f32.mrf.mxu0
    %4756 = vdwg.mxu0
    %v4757 = vxor.u32 %v4462, 2147483648
    %v4758 = vmul.f32 %v4757, 1.442695
    %v4759 = vpow.pop %v4758
    %v4760 = vadd.f32 %v4759, 1.0
    %v4761 = vrcp.pop %v4760
    %v4762 = vmul.f32 1.0, %v4761
    %v4763 = vxor.u32 %v4464, 2147483648
    %v4764 = vmul.f32 %v4763, 1.442695
    %v4765 = vpow.pop %v4764
    %v4766 = vadd.f32 %v4765, 1.0
    %v4767 = vrcp.pop %v4766
    %v4768 = vmul.f32 1.0, %v4767
    %v4769 = vtanh.pop %v4503
    %v4770 = vxor.u32 %v4505, 2147483648
    %v4771 = vmul.f32 %v4770, 1.442695
    %v4772 = vpow.pop %v4771
    %v4773 = vadd.f32 %v4772, 1.0
    %v4774 = vrcp.pop %v4773
    %v4775 = vmul.f32 1.0, %v4774
    %v4776 = vmul.f32 %v4768, %v4166
    %v4777 = vmul.f32 %v4762, %v4769
    %v4778 = vadd.f32 %v4776, %v4777
    %v4779 = vtanh.pop %v4778
    %v4780 = vmul.f32 %v4775, %v4779
    %v4781 = vxor.u32 %v4710, 2147483648
    %v4782 = vmul.f32 %v4781, 1.442695
    %v4783 = vpow.pop %v4782
    %v4784 = vadd.f32 %v4783, 1.0
    %v4785 = vrcp.pop %v4784
    %v4786 = vmul.f32 1.0, %v4785
    %v4787 = vxor.u32 %v4712, 2147483648
    %v4788 = vmul.f32 %v4787, 1.442695
    %v4789 = vpow.pop %v4788
    %v4790 = vadd.f32 %v4789, 1.0
    %v4791 = vrcp.pop %v4790
    %v4792 = vmul.f32 1.0, %v4791
    %v4793 = vtanh.pop %v4751
    %v4794 = vxor.u32 %v4753, 2147483648
    %v4795 = vmul.f32 %v4794, 1.442695
    %v4796 = vpow.pop %v4795
    %v4797 = vadd.f32 %v4796, 1.0
    %v4798 = vrcp.pop %v4797
    %v4799 = vmul.f32 1.0, %v4798
    %v4800 = vmul.f32 %v4792, %v4190
    %v4801 = vmul.f32 %v4786, %v4793
    %v4802 = vadd.f32 %v4800, %v4801
    %v4803 = vtanh.pop %v4802
    %v4804 = vmul.f32 %v4799, %v4803
    %v4805 = vpack.c.bf16 %v4780, %v4780
    %4806 = vst [vmem:[%s2959] sm:$0xf] %v4805
    %v4807 = vpack.c.bf16 %v4804, %v4804
    %4808 = vst [vmem:[%s2954 + $0x4] sm:$0xf] %v4807
    %v4809 = vld [vmem:[#allocation6] sm:$0xff]
    %v4810 = vld [vmem:[#allocation6 + $0x8] sm:$0xff]
    %v4811 = vld [vmem:[#allocation6 + $0x10] sm:$0xff]
    %v4812 = vld [vmem:[#allocation6 + $0x18] sm:$0xff]
    %v4813 = vld [vmem:[#allocation6 + $0x20] sm:$0xff]
    %v4814 = vld [vmem:[#allocation6 + $0x28] sm:$0xff]
    %v4815 = vld [vmem:[#allocation6 + $0x30] sm:$0xff]
    %v4816 = vld [vmem:[#allocation6 + $0x38] sm:$0xff]
    %v4817 = vld [vmem:[#allocation6 + $0x40] sm:$0xff]
    %v4818 = vld [vmem:[#allocation6 + $0x48] sm:$0xff]
    %v4819 = vld [vmem:[#allocation6 + $0x50] sm:$0xff]
    %v4820 = vld [vmem:[#allocation6 + $0x58] sm:$0xff]
    %v4821 = vld [vmem:[#allocation6 + $0x60] sm:$0xff]
    %v4822 = vld [vmem:[#allocation6 + $0x68] sm:$0xff]
    %v4823 = vld [vmem:[#allocation6 + $0x70] sm:$0xff]
    %v4824 = vld [vmem:[#allocation6 + $0x78] sm:$0xff]
    %v4825 = vld [vmem:[#allocation6 + $0x80] sm:$0xff]
    %v4826 = vld [vmem:[#allocation6 + $0x88] sm:$0xff]
    %v4827 = vld [vmem:[#allocation6 + $0x90] sm:$0xff]
    %v4828 = vld [vmem:[#allocation6 + $0x98] sm:$0xff]
    %v4829 = vld [vmem:[#allocation6 + $0xa0] sm:$0xff]
    %v4830 = vld [vmem:[#allocation6 + $0xa8] sm:$0xff]
    %v4831 = vld [vmem:[#allocation6 + $0xb0] sm:$0xff]
    %v4832 = vld [vmem:[#allocation6 + $0xb8] sm:$0xff]
    %v4833 = vld [vmem:[#allocation6 + $0xc0] sm:$0xff]
    %v4834 = vld [vmem:[#allocation6 + $0xc8] sm:$0xff]
    %v4835 = vld [vmem:[#allocation6 + $0xd0] sm:$0xff]
    %v4836 = vld [vmem:[#allocation6 + $0xd8] sm:$0xff]
    %v4837 = vld [vmem:[#allocation6 + $0xe0] sm:$0xff]
    %v4838 = vld [vmem:[#allocation6 + $0xe8] sm:$0xff]
    %v4839 = vld [vmem:[#allocation6 + $0xf0] sm:$0xff]
    %v4840 = vld [vmem:[#allocation6 + $0xf8] sm:$0xff]
    %v4841 = vld [vmem:[#allocation8] sm:$0xff]
    %v4842 = vld [vmem:[#allocation8 + $0x8] sm:$0xff]
    %v4843 = vld [vmem:[#allocation8 + $0x10] sm:$0xff]
    %v4844 = vld [vmem:[#allocation8 + $0x18] sm:$0xff]
    %v4845 = vld [vmem:[#allocation8 + $0x20] sm:$0xff]
    %v4846 = vld [vmem:[#allocation8 + $0x28] sm:$0xff]
    %v4847 = vld [vmem:[#allocation8 + $0x30] sm:$0xff]
    %v4848 = vld [vmem:[#allocation8 + $0x38] sm:$0xff]
    %v4849 = vld [vmem:[#allocation8 + $0x40] sm:$0xff]
    %v4850 = vld [vmem:[#allocation8 + $0x48] sm:$0xff]
    %v4851 = vld [vmem:[#allocation8 + $0x50] sm:$0xff]
    %v4852 = vld [vmem:[#allocation8 + $0x58] sm:$0xff]
    %v4853 = vld [vmem:[#allocation8 + $0x60] sm:$0xff]
    %v4854 = vld [vmem:[#allocation8 + $0x68] sm:$0xff]
    %v4855 = vld [vmem:[#allocation8 + $0x70] sm:$0xff]
    %v4856 = vld [vmem:[#allocation8 + $0x78] sm:$0xff]
    %v4857 = vld [vmem:[#allocation8 + $0x80] sm:$0xff]
    %v4858 = vld [vmem:[#allocation8 + $0x88] sm:$0xff]
    %v4859 = vld [vmem:[#allocation8 + $0x90] sm:$0xff]
    %v4860 = vld [vmem:[#allocation8 + $0x98] sm:$0xff]
    %v4861 = vld [vmem:[#allocation8 + $0xa0] sm:$0xff]
    %v4862 = vld [vmem:[#allocation8 + $0xa8] sm:$0xff]
    %v4863 = vld [vmem:[#allocation8 + $0xb0] sm:$0xff]
    %v4864 = vld [vmem:[#allocation8 + $0xb8] sm:$0xff]
    %v4865 = vld [vmem:[#allocation8 + $0xc0] sm:$0xff]
    %v4866 = vld [vmem:[#allocation8 + $0xc8] sm:$0xff]
    %v4867 = vld [vmem:[#allocation8 + $0xd0] sm:$0xff]
    %v4868 = vld [vmem:[#allocation8 + $0xd8] sm:$0xff]
    %v4869 = vld [vmem:[#allocation8 + $0xe0] sm:$0xff]
    %v4870 = vld [vmem:[#allocation8 + $0xe8] sm:$0xff]
    %v4871 = vld [vmem:[#allocation8 + $0xf0] sm:$0xff]
    %v4872 = vld [vmem:[#allocation8 + $0xf8] sm:$0xff]
    %v4873 = vld [vmem:[%s2030] sm:$0xff]
    %v4874 = vld [vmem:[%s2030 + $0x8] sm:$0xff]
    %v4875 = vunpack.c.l.bf16 %v4873
    %v4876 = vunpack.c.h.bf16 %v4873
    %v4877 = vunpack.c.l.bf16 %v4874
    %v4878 = vunpack.c.h.bf16 %v4874
    %v4911 = vunpack.c.l.b16 %v4809
    %v4912 = vunpack.c.h.b16 %v4809
    %v4913 = vunpack.c.l.b16 %v4810
    %v4914 = vunpack.c.h.b16 %v4810
    %v4915 = vunpack.c.l.b16 %v4811
    %v4916 = vunpack.c.h.b16 %v4811
    %v4917 = vunpack.c.l.b16 %v4812
    %v4918 = vunpack.c.h.b16 %v4812
    %v4919 = vunpack.c.l.b16 %v4813
    %v4920 = vunpack.c.h.b16 %v4813
    %v4921 = vunpack.c.l.b16 %v4814
    %v4922 = vunpack.c.h.b16 %v4814
    %v4923 = vunpack.c.l.b16 %v4815
    %v4924 = vunpack.c.h.b16 %v4815
    %v4925 = vunpack.c.l.b16 %v4816
    %v4926 = vunpack.c.h.b16 %v4816
    %v4927 = vunpack.c.l.b16 %v4817
    %v4928 = vunpack.c.h.b16 %v4817
    %v4929 = vunpack.c.l.b16 %v4818
    %v4930 = vunpack.c.h.b16 %v4818
    %v4931 = vunpack.c.l.b16 %v4819
    %v4932 = vunpack.c.h.b16 %v4819
    %v4933 = vunpack.c.l.b16 %v4820
    %v4934 = vunpack.c.h.b16 %v4820
    %v4935 = vunpack.c.l.b16 %v4821
    %v4936 = vunpack.c.h.b16 %v4821
    %v4937 = vunpack.c.l.b16 %v4822
    %v4938 = vunpack.c.h.b16 %v4822
    %v4939 = vunpack.c.l.b16 %v4823
    %v4940 = vunpack.c.h.b16 %v4823
    %v4941 = vunpack.c.l.b16 %v4824
    %v4942 = vunpack.c.h.b16 %v4824
    %v4943 = vunpack.c.l.b16 %v4825
    %v4944 = vunpack.c.h.b16 %v4825
    %v4945 = vunpack.c.l.b16 %v4826
    %v4946 = vunpack.c.h.b16 %v4826
    %v4947 = vunpack.c.l.b16 %v4827
    %v4948 = vunpack.c.h.b16 %v4827
    %v4949 = vunpack.c.l.b16 %v4828
    %v4950 = vunpack.c.h.b16 %v4828
    %v4951 = vunpack.c.l.b16 %v4829
    %v4952 = vunpack.c.h.b16 %v4829
    %v4953 = vunpack.c.l.b16 %v4830
    %v4954 = vunpack.c.h.b16 %v4830
    %v4955 = vunpack.c.l.b16 %v4831
    %v4956 = vunpack.c.h.b16 %v4831
    %v4957 = vunpack.c.l.b16 %v4832
    %v4958 = vunpack.c.h.b16 %v4832
    %v4959 = vunpack.c.l.b16 %v4833
    %v4960 = vunpack.c.h.b16 %v4833
    %v4961 = vunpack.c.l.b16 %v4834
    %v4962 = vunpack.c.h.b16 %v4834
    %v4963 = vunpack.c.l.b16 %v4835
    %v4964 = vunpack.c.h.b16 %v4835
    %v4965 = vunpack.c.l.b16 %v4836
    %v4966 = vunpack.c.h.b16 %v4836
    %v4967 = vunpack.c.l.b16 %v4837
    %v4968 = vunpack.c.h.b16 %v4837
    %v4969 = vunpack.c.l.b16 %v4838
    %v4970 = vunpack.c.h.b16 %v4838
    %v4971 = vunpack.c.l.b16 %v4839
    %v4972 = vunpack.c.h.b16 %v4839
    %v4973 = vunpack.c.l.b16 %v4840
    %v4974 = vunpack.c.h.b16 %v4840
    %v4975 = vpack.c.b16 %v4915, %v4911
    %v4976 = vpack.c.b16 %v4916, %v4912
    %v4977 = vpack.c.b16 %v4917, %v4913
    %v4978 = vpack.c.b16 %v4918, %v4914
    %v4979 = vpack.c.b16 %v4923, %v4919
    %v4980 = vpack.c.b16 %v4924, %v4920
    %v4981 = vpack.c.b16 %v4925, %v4921
    %v4982 = vpack.c.b16 %v4926, %v4922
    %v4983 = vpack.c.b16 %v4931, %v4927
    %v4984 = vpack.c.b16 %v4932, %v4928
    %v4985 = vpack.c.b16 %v4933, %v4929
    %v4986 = vpack.c.b16 %v4934, %v4930
    %v4987 = vpack.c.b16 %v4939, %v4935
    %v4988 = vpack.c.b16 %v4940, %v4936
    %v4989 = vpack.c.b16 %v4941, %v4937
    %v4990 = vpack.c.b16 %v4942, %v4938
    %v4991 = vpack.c.b16 %v4947, %v4943
    %v4992 = vpack.c.b16 %v4948, %v4944
    %v4993 = vpack.c.b16 %v4949, %v4945
    %v4994 = vpack.c.b16 %v4950, %v4946
    %v4995 = vpack.c.b16 %v4955, %v4951
    %v4996 = vpack.c.b16 %v4956, %v4952
    %v4997 = vpack.c.b16 %v4957, %v4953
    %v4998 = vpack.c.b16 %v4958, %v4954
    %v4999 = vpack.c.b16 %v4963, %v4959
    %v5000 = vpack.c.b16 %v4964, %v4960
    %v5001 = vpack.c.b16 %v4965, %v4961
    %v5002 = vpack.c.b16 %v4966, %v4962
    %v5003 = vpack.c.b16 %v4971, %v4967
    %v5004 = vpack.c.b16 %v4972, %v4968
    %v5005 = vpack.c.b16 %v4973, %v4969
    %v5006 = vpack.c.b16 %v4974, %v4970
    %5039 = vmatprep.subr.bf16.mxu0 %v5004
    %5040 = vmatpush1.bf16.msra.mxu0 %v5003
    %5041 = vmatprep.subr.bf16.mxu0 %v5000
    %5042 = vmatpush1.bf16.msra.mxu0 %v4999
    %5043 = vmatprep.subr.bf16.mxu0 %v4996
    %5044 = vmatpush1.bf16.msra.mxu0 %v4995
    %5045 = vmatprep.subr.bf16.mxu0 %v4992
    %5046 = vmatpush1.bf16.msra.mxu0 %v4991
    %5047 = vmatprep.subr.bf16.mxu0 %v4988
    %5048 = vmatpush1.bf16.msra.mxu0 %v4987
    %5049 = vmatprep.subr.bf16.mxu0 %v4984
    %5050 = vmatpush1.bf16.msra.mxu0 %v4983
    %5051 = vmatprep.subr.bf16.mxu0 %v4980
    %5052 = vmatpush1.bf16.msra.mxu0 %v4979
    %5053 = vmatprep.subr.bf16.mxu0 %v4976
    %5054 = vmatpush1.bf16.msra.mxu0 %v4975
    %5055 = vmatprep.subr.bf16.mxu0 0
    %5056 = vmatpush2.bf16.msra.mxu0 0
    %5057 = vmatprep.subr.bf16.mxu0 0
    %5058 = vmatpush2.bf16.msra.mxu0 0
    %5059 = vmatprep.subr.bf16.mxu0 0
    %5060 = vmatpush2.bf16.msra.mxu0 0
    %5061 = vmatprep.subr.bf16.mxu0 0
    %5062 = vmatpush2.bf16.msra.mxu0 0
    %5063 = vmatprep.subr.bf16.mxu0 0
    %5064 = vmatpush2.bf16.msra.mxu0 0
    %5065 = vmatprep.subr.bf16.mxu0 0
    %5066 = vmatpush2.bf16.msra.mxu0 0
    %5067 = vmatprep.subr.bf16.mxu0 0
    %5068 = vmatpush2.bf16.msra.mxu0 0
    %5069 = vmatprep.subr.bf16.mxu0 0
    %5070 = vmatpush2.bf16.msra.mxu0 0
    %5071 = vmatprep.mubr.bf16.mxu0 0
    %5072 = vmatmul.mubr.bf16.gmra.mxu0 %v4805
    %v5073 = vpop.f32.mrf.mxu0
    %v5074 = vadd.f32 %v4875, %v5073
    %v5075 = vpop.f32.mrf.mxu0
    %v5076 = vadd.f32 %v4876, %v5075
    %v5077 = vpop.f32.mrf.mxu0
    %v5078 = vpop.f32.mrf.mxu0
    %5079 = vdwg.mxu0
    %5080 = vmatprep.subr.bf16.mxu0 %v5006
    %5081 = vmatpush1.bf16.msra.mxu0 %v5005
    %5082 = vmatprep.subr.bf16.mxu0 %v5002
    %5083 = vmatpush1.bf16.msra.mxu0 %v5001
    %5084 = vmatprep.subr.bf16.mxu0 %v4998
    %5085 = vmatpush1.bf16.msra.mxu0 %v4997
    %5086 = vmatprep.subr.bf16.mxu0 %v4994
    %5087 = vmatpush1.bf16.msra.mxu0 %v4993
    %5088 = vmatprep.subr.bf16.mxu0 %v4990
    %5089 = vmatpush1.bf16.msra.mxu0 %v4989
    %5090 = vmatprep.subr.bf16.mxu0 %v4986
    %5091 = vmatpush1.bf16.msra.mxu0 %v4985
    %5092 = vmatprep.subr.bf16.mxu0 %v4982
    %5093 = vmatpush1.bf16.msra.mxu0 %v4981
    %5094 = vmatprep.subr.bf16.mxu0 %v4978
    %5095 = vmatpush1.bf16.msra.mxu0 %v4977
    %5096 = vmatprep.subr.bf16.mxu0 0
    %5097 = vmatpush2.bf16.msra.mxu0 0
    %5098 = vmatprep.subr.bf16.mxu0 0
    %5099 = vmatpush2.bf16.msra.mxu0 0
    %5100 = vmatprep.subr.bf16.mxu0 0
    %5101 = vmatpush2.bf16.msra.mxu0 0
    %5102 = vmatprep.subr.bf16.mxu0 0
    %5103 = vmatpush2.bf16.msra.mxu0 0
    %5104 = vmatprep.subr.bf16.mxu0 0
    %5105 = vmatpush2.bf16.msra.mxu0 0
    %5106 = vmatprep.subr.bf16.mxu0 0
    %5107 = vmatpush2.bf16.msra.mxu0 0
    %5108 = vmatprep.subr.bf16.mxu0 0
    %5109 = vmatpush2.bf16.msra.mxu0 0
    %5110 = vmatprep.subr.bf16.mxu0 0
    %5111 = vmatpush2.bf16.msra.mxu0 0
    %5112 = vmatprep.mubr.bf16.mxu0 0
    %5113 = vmatmul.mubr.bf16.gmra.mxu0 %v4805
    %v5114 = vpop.f32.mrf.mxu0
    %v5115 = vadd.f32 %v4877, %v5114
    %v5116 = vpop.f32.mrf.mxu0
    %v5117 = vadd.f32 %v4878, %v5116
    %v5118 = vpop.f32.mrf.mxu0
    %v5119 = vpop.f32.mrf.mxu0
    %5120 = vdwg.mxu0
    %v5121 = vld [vmem:[%s1779 + $0x10] sm:$0xff]
    %v5122 = vld [vmem:[%s1779 + $0x18] sm:$0xff]
    %v5123 = vunpack.c.l.bf16 %v5121
    %v5124 = vunpack.c.h.bf16 %v5121
    %v5125 = vunpack.c.l.bf16 %v5122
    %v5126 = vunpack.c.h.bf16 %v5122
    %v5159 = vunpack.c.l.b16 %v4841
    %v5160 = vunpack.c.h.b16 %v4841
    %v5161 = vunpack.c.l.b16 %v4842
    %v5162 = vunpack.c.h.b16 %v4842
    %v5163 = vunpack.c.l.b16 %v4843
    %v5164 = vunpack.c.h.b16 %v4843
    %v5165 = vunpack.c.l.b16 %v4844
    %v5166 = vunpack.c.h.b16 %v4844
    %v5167 = vunpack.c.l.b16 %v4845
    %v5168 = vunpack.c.h.b16 %v4845
    %v5169 = vunpack.c.l.b16 %v4846
    %v5170 = vunpack.c.h.b16 %v4846
    %v5171 = vunpack.c.l.b16 %v4847
    %v5172 = vunpack.c.h.b16 %v4847
    %v5173 = vunpack.c.l.b16 %v4848
    %v5174 = vunpack.c.h.b16 %v4848
    %v5175 = vunpack.c.l.b16 %v4849
    %v5176 = vunpack.c.h.b16 %v4849
    %v5177 = vunpack.c.l.b16 %v4850
    %v5178 = vunpack.c.h.b16 %v4850
    %v5179 = vunpack.c.l.b16 %v4851
    %v5180 = vunpack.c.h.b16 %v4851
    %v5181 = vunpack.c.l.b16 %v4852
    %v5182 = vunpack.c.h.b16 %v4852
    %v5183 = vunpack.c.l.b16 %v4853
    %v5184 = vunpack.c.h.b16 %v4853
    %v5185 = vunpack.c.l.b16 %v4854
    %v5186 = vunpack.c.h.b16 %v4854
    %v5187 = vunpack.c.l.b16 %v4855
    %v5188 = vunpack.c.h.b16 %v4855
    %v5189 = vunpack.c.l.b16 %v4856
    %v5190 = vunpack.c.h.b16 %v4856
    %v5191 = vunpack.c.l.b16 %v4857
    %v5192 = vunpack.c.h.b16 %v4857
    %v5193 = vunpack.c.l.b16 %v4858
    %v5194 = vunpack.c.h.b16 %v4858
    %v5195 = vunpack.c.l.b16 %v4859
    %v5196 = vunpack.c.h.b16 %v4859
    %v5197 = vunpack.c.l.b16 %v4860
    %v5198 = vunpack.c.h.b16 %v4860
    %v5199 = vunpack.c.l.b16 %v4861
    %v5200 = vunpack.c.h.b16 %v4861
    %v5201 = vunpack.c.l.b16 %v4862
    %v5202 = vunpack.c.h.b16 %v4862
    %v5203 = vunpack.c.l.b16 %v4863
    %v5204 = vunpack.c.h.b16 %v4863
    %v5205 = vunpack.c.l.b16 %v4864
    %v5206 = vunpack.c.h.b16 %v4864
    %v5207 = vunpack.c.l.b16 %v4865
    %v5208 = vunpack.c.h.b16 %v4865
    %v5209 = vunpack.c.l.b16 %v4866
    %v5210 = vunpack.c.h.b16 %v4866
    %v5211 = vunpack.c.l.b16 %v4867
    %v5212 = vunpack.c.h.b16 %v4867
    %v5213 = vunpack.c.l.b16 %v4868
    %v5214 = vunpack.c.h.b16 %v4868
    %v5215 = vunpack.c.l.b16 %v4869
    %v5216 = vunpack.c.h.b16 %v4869
    %v5217 = vunpack.c.l.b16 %v4870
    %v5218 = vunpack.c.h.b16 %v4870
    %v5219 = vunpack.c.l.b16 %v4871
    %v5220 = vunpack.c.h.b16 %v4871
    %v5221 = vunpack.c.l.b16 %v4872
    %v5222 = vunpack.c.h.b16 %v4872
    %v5223 = vpack.c.b16 %v5163, %v5159
    %v5224 = vpack.c.b16 %v5164, %v5160
    %v5225 = vpack.c.b16 %v5165, %v5161
    %v5226 = vpack.c.b16 %v5166, %v5162
    %v5227 = vpack.c.b16 %v5171, %v5167
    %v5228 = vpack.c.b16 %v5172, %v5168
    %v5229 = vpack.c.b16 %v5173, %v5169
    %v5230 = vpack.c.b16 %v5174, %v5170
    %v5231 = vpack.c.b16 %v5179, %v5175
    %v5232 = vpack.c.b16 %v5180, %v5176
    %v5233 = vpack.c.b16 %v5181, %v5177
    %v5234 = vpack.c.b16 %v5182, %v5178
    %v5235 = vpack.c.b16 %v5187, %v5183
    %v5236 = vpack.c.b16 %v5188, %v5184
    %v5237 = vpack.c.b16 %v5189, %v5185
    %v5238 = vpack.c.b16 %v5190, %v5186
    %v5239 = vpack.c.b16 %v5195, %v5191
    %v5240 = vpack.c.b16 %v5196, %v5192
    %v5241 = vpack.c.b16 %v5197, %v5193
    %v5242 = vpack.c.b16 %v5198, %v5194
    %v5243 = vpack.c.b16 %v5203, %v5199
    %v5244 = vpack.c.b16 %v5204, %v5200
    %v5245 = vpack.c.b16 %v5205, %v5201
    %v5246 = vpack.c.b16 %v5206, %v5202
    %v5247 = vpack.c.b16 %v5211, %v5207
    %v5248 = vpack.c.b16 %v5212, %v5208
    %v5249 = vpack.c.b16 %v5213, %v5209
    %v5250 = vpack.c.b16 %v5214, %v5210
    %v5251 = vpack.c.b16 %v5219, %v5215
    %v5252 = vpack.c.b16 %v5220, %v5216
    %v5253 = vpack.c.b16 %v5221, %v5217
    %v5254 = vpack.c.b16 %v5222, %v5218
    %5287 = vmatprep.subr.bf16.mxu0 %v5252
    %5288 = vmatpush1.bf16.msra.mxu0 %v5251
    %5289 = vmatprep.subr.bf16.mxu0 %v5248
    %5290 = vmatpush1.bf16.msra.mxu0 %v5247
    %5291 = vmatprep.subr.bf16.mxu0 %v5244
    %5292 = vmatpush1.bf16.msra.mxu0 %v5243
    %5293 = vmatprep.subr.bf16.mxu0 %v5240
    %5294 = vmatpush1.bf16.msra.mxu0 %v5239
    %5295 = vmatprep.subr.bf16.mxu0 %v5236
    %5296 = vmatpush1.bf16.msra.mxu0 %v5235
    %5297 = vmatprep.subr.bf16.mxu0 %v5232
    %5298 = vmatpush1.bf16.msra.mxu0 %v5231
    %5299 = vmatprep.subr.bf16.mxu0 %v5228
    %5300 = vmatpush1.bf16.msra.mxu0 %v5227
    %5301 = vmatprep.subr.bf16.mxu0 %v5224
    %5302 = vmatpush1.bf16.msra.mxu0 %v5223
    %5303 = vmatprep.subr.bf16.mxu0 0
    %5304 = vmatpush2.bf16.msra.mxu0 0
    %5305 = vmatprep.subr.bf16.mxu0 0
    %5306 = vmatpush2.bf16.msra.mxu0 0
    %5307 = vmatprep.subr.bf16.mxu0 0
    %5308 = vmatpush2.bf16.msra.mxu0 0
    %5309 = vmatprep.subr.bf16.mxu0 0
    %5310 = vmatpush2.bf16.msra.mxu0 0
    %5311 = vmatprep.subr.bf16.mxu0 0
    %5312 = vmatpush2.bf16.msra.mxu0 0
    %5313 = vmatprep.subr.bf16.mxu0 0
    %5314 = vmatpush2.bf16.msra.mxu0 0
    %5315 = vmatprep.subr.bf16.mxu0 0
    %5316 = vmatpush2.bf16.msra.mxu0 0
    %5317 = vmatprep.subr.bf16.mxu0 0
    %5318 = vmatpush2.bf16.msra.mxu0 0
    %5319 = vmatprep.mubr.bf16.mxu0 0
    %5320 = vmatmul.mubr.bf16.gmra.mxu0 %v4807
    %v5321 = vpop.f32.mrf.mxu0
    %v5322 = vadd.f32 %v5123, %v5321
    %v5323 = vpop.f32.mrf.mxu0
    %v5324 = vadd.f32 %v5124, %v5323
    %v5325 = vpop.f32.mrf.mxu0
    %v5326 = vpop.f32.mrf.mxu0
    %5327 = vdwg.mxu0
    %5328 = vmatprep.subr.bf16.mxu0 %v5254
    %5329 = vmatpush1.bf16.msra.mxu0 %v5253
    %5330 = vmatprep.subr.bf16.mxu0 %v5250
    %5331 = vmatpush1.bf16.msra.mxu0 %v5249
    %5332 = vmatprep.subr.bf16.mxu0 %v5246
    %5333 = vmatpush1.bf16.msra.mxu0 %v5245
    %5334 = vmatprep.subr.bf16.mxu0 %v5242
    %5335 = vmatpush1.bf16.msra.mxu0 %v5241
    %5336 = vmatprep.subr.bf16.mxu0 %v5238
    %5337 = vmatpush1.bf16.msra.mxu0 %v5237
    %5338 = vmatprep.subr.bf16.mxu0 %v5234
    %5339 = vmatpush1.bf16.msra.mxu0 %v5233
    %5340 = vmatprep.subr.bf16.mxu0 %v5230
    %5341 = vmatpush1.bf16.msra.mxu0 %v5229
    %5342 = vmatprep.subr.bf16.mxu0 %v5226
    %5343 = vmatpush1.bf16.msra.mxu0 %v5225
    %5344 = vmatprep.subr.bf16.mxu0 0
    %5345 = vmatpush2.bf16.msra.mxu0 0
    %5346 = vmatprep.subr.bf16.mxu0 0
    %5347 = vmatpush2.bf16.msra.mxu0 0
    %5348 = vmatprep.subr.bf16.mxu0 0
    %5349 = vmatpush2.bf16.msra.mxu0 0
    %5350 = vmatprep.subr.bf16.mxu0 0
    %5351 = vmatpush2.bf16.msra.mxu0 0
    %5352 = vmatprep.subr.bf16.mxu0 0
    %5353 = vmatpush2.bf16.msra.mxu0 0
    %5354 = vmatprep.subr.bf16.mxu0 0
    %5355 = vmatpush2.bf16.msra.mxu0 0
    %5356 = vmatprep.subr.bf16.mxu0 0
    %5357 = vmatpush2.bf16.msra.mxu0 0
    %5358 = vmatprep.subr.bf16.mxu0 0
    %5359 = vmatpush2.bf16.msra.mxu0 0
    %5360 = vmatprep.mubr.bf16.mxu0 0
    %5361 = vmatmul.mubr.bf16.gmra.mxu0 %v4807
    %v5362 = vpop.f32.mrf.mxu0
    %v5363 = vadd.f32 %v5125, %v5362
    %v5364 = vpop.f32.mrf.mxu0
    %v5365 = vadd.f32 %v5126, %v5364
    %v5366 = vpop.f32.mrf.mxu0
    %v5367 = vpop.f32.mrf.mxu0
    %5368 = vdwg.mxu0
    %v5369 = vxor.u32 %v5074, 2147483648
    %v5370 = vmul.f32 %v5369, 1.442695
    %v5371 = vpow.pop %v5370
    %v5372 = vadd.f32 %v5371, 1.0
    %v5373 = vrcp.pop %v5372
    %v5374 = vmul.f32 1.0, %v5373
    %v5375 = vxor.u32 %v5076, 2147483648
    %v5376 = vmul.f32 %v5375, 1.442695
    %v5377 = vpow.pop %v5376
    %v5378 = vadd.f32 %v5377, 1.0
    %v5379 = vrcp.pop %v5378
    %v5380 = vmul.f32 1.0, %v5379
    %v5381 = vtanh.pop %v5115
    %v5382 = vxor.u32 %v5117, 2147483648
    %v5383 = vmul.f32 %v5382, 1.442695
    %v5384 = vpow.pop %v5383
    %v5385 = vadd.f32 %v5384, 1.0
    %v5386 = vrcp.pop %v5385
    %v5387 = vmul.f32 1.0, %v5386
    %v5388 = vmul.f32 %v5380, %v4778
    %v5389 = vmul.f32 %v5374, %v5381
    %v5390 = vadd.f32 %v5388, %v5389
    %v5391 = vtanh.pop %v5390
    %v5392 = vmul.f32 %v5387, %v5391
    %v5393 = vxor.u32 %v5322, 2147483648
    %v5394 = vmul.f32 %v5393, 1.442695
    %v5395 = vpow.pop %v5394
    %v5396 = vadd.f32 %v5395, 1.0
    %v5397 = vrcp.pop %v5396
    %v5398 = vmul.f32 1.0, %v5397
    %v5399 = vxor.u32 %v5324, 2147483648
    %v5400 = vmul.f32 %v5399, 1.442695
    %v5401 = vpow.pop %v5400
    %v5402 = vadd.f32 %v5401, 1.0
    %v5403 = vrcp.pop %v5402
    %v5404 = vmul.f32 1.0, %v5403
    %v5405 = vtanh.pop %v5363
    %v5406 = vxor.u32 %v5365, 2147483648
    %v5407 = vmul.f32 %v5406, 1.442695
    %v5408 = vpow.pop %v5407
    %v5409 = vadd.f32 %v5408, 1.0
    %v5410 = vrcp.pop %v5409
    %v5411 = vmul.f32 1.0, %v5410
    %v5412 = vmul.f32 %v5404, %v4802
    %v5413 = vmul.f32 %v5398, %v5405
    %v5414 = vadd.f32 %v5412, %v5413
    %v5415 = vtanh.pop %v5414
    %v5416 = vmul.f32 %v5411, %v5415
    %v5417 = vpack.c.bf16 %v5392, %v5392
    %5418 = vst [vmem:[%s2335] sm:$0xf] %v5417
    %v5419 = vpack.c.bf16 %v5416, %v5416
    %5420 = vst [vmem:[%s2330 + $0x4] sm:$0xf] %v5419
    %v5421 = vld [vmem:[#allocation6] sm:$0xff]
    %v5422 = vld [vmem:[#allocation6 + $0x8] sm:$0xff]
    %v5423 = vld [vmem:[#allocation6 + $0x10] sm:$0xff]
    %v5424 = vld [vmem:[#allocation6 + $0x18] sm:$0xff]
    %v5425 = vld [vmem:[#allocation6 + $0x20] sm:$0xff]
    %v5426 = vld [vmem:[#allocation6 + $0x28] sm:$0xff]
    %v5427 = vld [vmem:[#allocation6 + $0x30] sm:$0xff]
    %v5428 = vld [vmem:[#allocation6 + $0x38] sm:$0xff]
    %v5429 = vld [vmem:[#allocation6 + $0x40] sm:$0xff]
    %v5430 = vld [vmem:[#allocation6 + $0x48] sm:$0xff]
    %v5431 = vld [vmem:[#allocation6 + $0x50] sm:$0xff]
    %v5432 = vld [vmem:[#allocation6 + $0x58] sm:$0xff]
    %v5433 = vld [vmem:[#allocation6 + $0x60] sm:$0xff]
    %v5434 = vld [vmem:[#allocation6 + $0x68] sm:$0xff]
    %v5435 = vld [vmem:[#allocation6 + $0x70] sm:$0xff]
    %v5436 = vld [vmem:[#allocation6 + $0x78] sm:$0xff]
    %v5437 = vld [vmem:[#allocation6 + $0x80] sm:$0xff]
    %v5438 = vld [vmem:[#allocation6 + $0x88] sm:$0xff]
    %v5439 = vld [vmem:[#allocation6 + $0x90] sm:$0xff]
    %v5440 = vld [vmem:[#allocation6 + $0x98] sm:$0xff]
    %v5441 = vld [vmem:[#allocation6 + $0xa0] sm:$0xff]
    %v5442 = vld [vmem:[#allocation6 + $0xa8] sm:$0xff]
    %v5443 = vld [vmem:[#allocation6 + $0xb0] sm:$0xff]
    %v5444 = vld [vmem:[#allocation6 + $0xb8] sm:$0xff]
    %v5445 = vld [vmem:[#allocation6 + $0xc0] sm:$0xff]
    %v5446 = vld [vmem:[#allocation6 + $0xc8] sm:$0xff]
    %v5447 = vld [vmem:[#allocation6 + $0xd0] sm:$0xff]
    %v5448 = vld [vmem:[#allocation6 + $0xd8] sm:$0xff]
    %v5449 = vld [vmem:[#allocation6 + $0xe0] sm:$0xff]
    %v5450 = vld [vmem:[#allocation6 + $0xe8] sm:$0xff]
    %v5451 = vld [vmem:[#allocation6 + $0xf0] sm:$0xff]
    %v5452 = vld [vmem:[#allocation6 + $0xf8] sm:$0xff]
    %v5453 = vld [vmem:[#allocation8] sm:$0xff]
    %v5454 = vld [vmem:[#allocation8 + $0x8] sm:$0xff]
    %v5455 = vld [vmem:[#allocation8 + $0x10] sm:$0xff]
    %v5456 = vld [vmem:[#allocation8 + $0x18] sm:$0xff]
    %v5457 = vld [vmem:[#allocation8 + $0x20] sm:$0xff]
    %v5458 = vld [vmem:[#allocation8 + $0x28] sm:$0xff]
    %v5459 = vld [vmem:[#allocation8 + $0x30] sm:$0xff]
    %v5460 = vld [vmem:[#allocation8 + $0x38] sm:$0xff]
    %v5461 = vld [vmem:[#allocation8 + $0x40] sm:$0xff]
    %v5462 = vld [vmem:[#allocation8 + $0x48] sm:$0xff]
    %v5463 = vld [vmem:[#allocation8 + $0x50] sm:$0xff]
    %v5464 = vld [vmem:[#allocation8 + $0x58] sm:$0xff]
    %v5465 = vld [vmem:[#allocation8 + $0x60] sm:$0xff]
    %v5466 = vld [vmem:[#allocation8 + $0x68] sm:$0xff]
    %v5467 = vld [vmem:[#allocation8 + $0x70] sm:$0xff]
    %v5468 = vld [vmem:[#allocation8 + $0x78] sm:$0xff]
    %v5469 = vld [vmem:[#allocation8 + $0x80] sm:$0xff]
    %v5470 = vld [vmem:[#allocation8 + $0x88] sm:$0xff]
    %v5471 = vld [vmem:[#allocation8 + $0x90] sm:$0xff]
    %v5472 = vld [vmem:[#allocation8 + $0x98] sm:$0xff]
    %v5473 = vld [vmem:[#allocation8 + $0xa0] sm:$0xff]
    %v5474 = vld [vmem:[#allocation8 + $0xa8] sm:$0xff]
    %v5475 = vld [vmem:[#allocation8 + $0xb0] sm:$0xff]
    %v5476 = vld [vmem:[#allocation8 + $0xb8] sm:$0xff]
    %v5477 = vld [vmem:[#allocation8 + $0xc0] sm:$0xff]
    %v5478 = vld [vmem:[#allocation8 + $0xc8] sm:$0xff]
    %v5479 = vld [vmem:[#allocation8 + $0xd0] sm:$0xff]
    %v5480 = vld [vmem:[#allocation8 + $0xd8] sm:$0xff]
    %v5481 = vld [vmem:[#allocation8 + $0xe0] sm:$0xff]
    %v5482 = vld [vmem:[#allocation8 + $0xe8] sm:$0xff]
    %v5483 = vld [vmem:[#allocation8 + $0xf0] sm:$0xff]
    %v5484 = vld [vmem:[#allocation8 + $0xf8] sm:$0xff]
    %v5485 = vld [vmem:[%s1406] sm:$0xff]
    %v5486 = vld [vmem:[%s1406 + $0x8] sm:$0xff]
    %v5487 = vunpack.c.l.bf16 %v5485
    %v5488 = vunpack.c.h.bf16 %v5485
    %v5489 = vunpack.c.l.bf16 %v5486
    %v5490 = vunpack.c.h.bf16 %v5486
    %v5523 = vunpack.c.l.b16 %v5421
    %v5524 = vunpack.c.h.b16 %v5421
    %v5525 = vunpack.c.l.b16 %v5422
    %v5526 = vunpack.c.h.b16 %v5422
    %v5527 = vunpack.c.l.b16 %v5423
    %v5528 = vunpack.c.h.b16 %v5423
    %v5529 = vunpack.c.l.b16 %v5424
    %v5530 = vunpack.c.h.b16 %v5424
    %v5531 = vunpack.c.l.b16 %v5425
    %v5532 = vunpack.c.h.b16 %v5425
    %v5533 = vunpack.c.l.b16 %v5426
    %v5534 = vunpack.c.h.b16 %v5426
    %v5535 = vunpack.c.l.b16 %v5427
    %v5536 = vunpack.c.h.b16 %v5427
    %v5537 = vunpack.c.l.b16 %v5428
    %v5538 = vunpack.c.h.b16 %v5428
    %v5539 = vunpack.c.l.b16 %v5429
    %v5540 = vunpack.c.h.b16 %v5429
    %v5541 = vunpack.c.l.b16 %v5430
    %v5542 = vunpack.c.h.b16 %v5430
    %v5543 = vunpack.c.l.b16 %v5431
    %v5544 = vunpack.c.h.b16 %v5431
    %v5545 = vunpack.c.l.b16 %v5432
    %v5546 = vunpack.c.h.b16 %v5432
    %v5547 = vunpack.c.l.b16 %v5433
    %v5548 = vunpack.c.h.b16 %v5433
    %v5549 = vunpack.c.l.b16 %v5434
    %v5550 = vunpack.c.h.b16 %v5434
    %v5551 = vunpack.c.l.b16 %v5435
    %v5552 = vunpack.c.h.b16 %v5435
    %v5553 = vunpack.c.l.b16 %v5436
    %v5554 = vunpack.c.h.b16 %v5436
    %v5555 = vunpack.c.l.b16 %v5437
    %v5556 = vunpack.c.h.b16 %v5437
    %v5557 = vunpack.c.l.b16 %v5438
    %v5558 = vunpack.c.h.b16 %v5438
    %v5559 = vunpack.c.l.b16 %v5439
    %v5560 = vunpack.c.h.b16 %v5439
    %v5561 = vunpack.c.l.b16 %v5440
    %v5562 = vunpack.c.h.b16 %v5440
    %v5563 = vunpack.c.l.b16 %v5441
    %v5564 = vunpack.c.h.b16 %v5441
    %v5565 = vunpack.c.l.b16 %v5442
    %v5566 = vunpack.c.h.b16 %v5442
    %v5567 = vunpack.c.l.b16 %v5443
    %v5568 = vunpack.c.h.b16 %v5443
    %v5569 = vunpack.c.l.b16 %v5444
    %v5570 = vunpack.c.h.b16 %v5444
    %v5571 = vunpack.c.l.b16 %v5445
    %v5572 = vunpack.c.h.b16 %v5445
    %v5573 = vunpack.c.l.b16 %v5446
    %v5574 = vunpack.c.h.b16 %v5446
    %v5575 = vunpack.c.l.b16 %v5447
    %v5576 = vunpack.c.h.b16 %v5447
    %v5577 = vunpack.c.l.b16 %v5448
    %v5578 = vunpack.c.h.b16 %v5448
    %v5579 = vunpack.c.l.b16 %v5449
    %v5580 = vunpack.c.h.b16 %v5449
    %v5581 = vunpack.c.l.b16 %v5450
    %v5582 = vunpack.c.h.b16 %v5450
    %v5583 = vunpack.c.l.b16 %v5451
    %v5584 = vunpack.c.h.b16 %v5451
    %v5585 = vunpack.c.l.b16 %v5452
    %v5586 = vunpack.c.h.b16 %v5452
    %v5587 = vpack.c.b16 %v5527, %v5523
    %v5588 = vpack.c.b16 %v5528, %v5524
    %v5589 = vpack.c.b16 %v5529, %v5525
    %v5590 = vpack.c.b16 %v5530, %v5526
    %v5591 = vpack.c.b16 %v5535, %v5531
    %v5592 = vpack.c.b16 %v5536, %v5532
    %v5593 = vpack.c.b16 %v5537, %v5533
    %v5594 = vpack.c.b16 %v5538, %v5534
    %v5595 = vpack.c.b16 %v5543, %v5539
    %v5596 = vpack.c.b16 %v5544, %v5540
    %v5597 = vpack.c.b16 %v5545, %v5541
    %v5598 = vpack.c.b16 %v5546, %v5542
    %v5599 = vpack.c.b16 %v5551, %v5547
    %v5600 = vpack.c.b16 %v5552, %v5548
    %v5601 = vpack.c.b16 %v5553, %v5549
    %v5602 = vpack.c.b16 %v5554, %v5550
    %v5603 = vpack.c.b16 %v5559, %v5555
    %v5604 = vpack.c.b16 %v5560, %v5556
    %v5605 = vpack.c.b16 %v5561, %v5557
    %v5606 = vpack.c.b16 %v5562, %v5558
    %v5607 = vpack.c.b16 %v5567, %v5563
    %v5608 = vpack.c.b16 %v5568, %v5564
    %v5609 = vpack.c.b16 %v5569, %v5565
    %v5610 = vpack.c.b16 %v5570, %v5566
    %v5611 = vpack.c.b16 %v5575, %v5571
    %v5612 = vpack.c.b16 %v5576, %v5572
    %v5613 = vpack.c.b16 %v5577, %v5573
    %v5614 = vpack.c.b16 %v5578, %v5574
    %v5615 = vpack.c.b16 %v5583, %v5579
    %v5616 = vpack.c.b16 %v5584, %v5580
    %v5617 = vpack.c.b16 %v5585, %v5581
    %v5618 = vpack.c.b16 %v5586, %v5582
    %5651 = vmatprep.subr.bf16.mxu0 %v5616
    %5652 = vmatpush1.bf16.msra.mxu0 %v5615
    %5653 = vmatprep.subr.bf16.mxu0 %v5612
    %5654 = vmatpush1.bf16.msra.mxu0 %v5611
    %5655 = vmatprep.subr.bf16.mxu0 %v5608
    %5656 = vmatpush1.bf16.msra.mxu0 %v5607
    %5657 = vmatprep.subr.bf16.mxu0 %v5604
    %5658 = vmatpush1.bf16.msra.mxu0 %v5603
    %5659 = vmatprep.subr.bf16.mxu0 %v5600
    %5660 = vmatpush1.bf16.msra.mxu0 %v5599
    %5661 = vmatprep.subr.bf16.mxu0 %v5596
    %5662 = vmatpush1.bf16.msra.mxu0 %v5595
    %5663 = vmatprep.subr.bf16.mxu0 %v5592
    %5664 = vmatpush1.bf16.msra.mxu0 %v5591
    %5665 = vmatprep.subr.bf16.mxu0 %v5588
    %5666 = vmatpush1.bf16.msra.mxu0 %v5587
    %5667 = vmatprep.subr.bf16.mxu0 0
    %5668 = vmatpush2.bf16.msra.mxu0 0
    %5669 = vmatprep.subr.bf16.mxu0 0
    %5670 = vmatpush2.bf16.msra.mxu0 0
    %5671 = vmatprep.subr.bf16.mxu0 0
    %5672 = vmatpush2.bf16.msra.mxu0 0
    %5673 = vmatprep.subr.bf16.mxu0 0
    %5674 = vmatpush2.bf16.msra.mxu0 0
    %5675 = vmatprep.subr.bf16.mxu0 0
    %5676 = vmatpush2.bf16.msra.mxu0 0
    %5677 = vmatprep.subr.bf16.mxu0 0
    %5678 = vmatpush2.bf16.msra.mxu0 0
    %5679 = vmatprep.subr.bf16.mxu0 0
    %5680 = vmatpush2.bf16.msra.mxu0 0
    %5681 = vmatprep.subr.bf16.mxu0 0
    %5682 = vmatpush2.bf16.msra.mxu0 0
    %5683 = vmatprep.mubr.bf16.mxu0 0
    %5684 = vmatmul.mubr.bf16.gmra.mxu0 %v5417
    %v5685 = vpop.f32.mrf.mxu0
    %v5686 = vadd.f32 %v5487, %v5685
    %v5687 = vpop.f32.mrf.mxu0
    %v5688 = vadd.f32 %v5488, %v5687
    %v5689 = vpop.f32.mrf.mxu0
    %v5690 = vpop.f32.mrf.mxu0
    %5691 = vdwg.mxu0
    %5692 = vmatprep.subr.bf16.mxu0 %v5618
    %5693 = vmatpush1.bf16.msra.mxu0 %v5617
    %5694 = vmatprep.subr.bf16.mxu0 %v5614
    %5695 = vmatpush1.bf16.msra.mxu0 %v5613
    %5696 = vmatprep.subr.bf16.mxu0 %v5610
    %5697 = vmatpush1.bf16.msra.mxu0 %v5609
    %5698 = vmatprep.subr.bf16.mxu0 %v5606
    %5699 = vmatpush1.bf16.msra.mxu0 %v5605
    %5700 = vmatprep.subr.bf16.mxu0 %v5602
    %5701 = vmatpush1.bf16.msra.mxu0 %v5601
    %5702 = vmatprep.subr.bf16.mxu0 %v5598
    %5703 = vmatpush1.bf16.msra.mxu0 %v5597
    %5704 = vmatprep.subr.bf16.mxu0 %v5594
    %5705 = vmatpush1.bf16.msra.mxu0 %v5593
    %5706 = vmatprep.subr.bf16.mxu0 %v5590
    %5707 = vmatpush1.bf16.msra.mxu0 %v5589
    %5708 = vmatprep.subr.bf16.mxu0 0
    %5709 = vmatpush2.bf16.msra.mxu0 0
    %5710 = vmatprep.subr.bf16.mxu0 0
    %5711 = vmatpush2.bf16.msra.mxu0 0
    %5712 = vmatprep.subr.bf16.mxu0 0
    %5713 = vmatpush2.bf16.msra.mxu0 0
    %5714 = vmatprep.subr.bf16.mxu0 0
    %5715 = vmatpush2.bf16.msra.mxu0 0
    %5716 = vmatprep.subr.bf16.mxu0 0
    %5717 = vmatpush2.bf16.msra.mxu0 0
    %5718 = vmatprep.subr.bf16.mxu0 0
    %5719 = vmatpush2.bf16.msra.mxu0 0
    %5720 = vmatprep.subr.bf16.mxu0 0
    %5721 = vmatpush2.bf16.msra.mxu0 0
    %5722 = vmatprep.subr.bf16.mxu0 0
    %5723 = vmatpush2.bf16.msra.mxu0 0
    %5724 = vmatprep.mubr.bf16.mxu0 0
    %5725 = vmatmul.mubr.bf16.gmra.mxu0 %v5417
    %v5726 = vpop.f32.mrf.mxu0
    %v5727 = vadd.f32 %v5489, %v5726
    %v5728 = vpop.f32.mrf.mxu0
    %v5729 = vadd.f32 %v5490, %v5728
    %v5730 = vpop.f32.mrf.mxu0
    %v5731 = vpop.f32.mrf.mxu0
    %5732 = vdwg.mxu0
    %v5733 = vld [vmem:[%s1155 + $0x10] sm:$0xff]
    %v5734 = vld [vmem:[%s1155 + $0x18] sm:$0xff]
    %v5735 = vunpack.c.l.bf16 %v5733
    %v5736 = vunpack.c.h.bf16 %v5733
    %v5737 = vunpack.c.l.bf16 %v5734
    %v5738 = vunpack.c.h.bf16 %v5734
    %v5771 = vunpack.c.l.b16 %v5453
    %v5772 = vunpack.c.h.b16 %v5453
    %v5773 = vunpack.c.l.b16 %v5454
    %v5774 = vunpack.c.h.b16 %v5454
    %v5775 = vunpack.c.l.b16 %v5455
    %v5776 = vunpack.c.h.b16 %v5455
    %v5777 = vunpack.c.l.b16 %v5456
    %v5778 = vunpack.c.h.b16 %v5456
    %v5779 = vunpack.c.l.b16 %v5457
    %v5780 = vunpack.c.h.b16 %v5457
    %v5781 = vunpack.c.l.b16 %v5458
    %v5782 = vunpack.c.h.b16 %v5458
    %v5783 = vunpack.c.l.b16 %v5459
    %v5784 = vunpack.c.h.b16 %v5459
    %v5785 = vunpack.c.l.b16 %v5460
    %v5786 = vunpack.c.h.b16 %v5460
    %v5787 = vunpack.c.l.b16 %v5461
    %v5788 = vunpack.c.h.b16 %v5461
    %v5789 = vunpack.c.l.b16 %v5462
    %v5790 = vunpack.c.h.b16 %v5462
    %v5791 = vunpack.c.l.b16 %v5463
    %v5792 = vunpack.c.h.b16 %v5463
    %v5793 = vunpack.c.l.b16 %v5464
    %v5794 = vunpack.c.h.b16 %v5464
    %v5795 = vunpack.c.l.b16 %v5465
    %v5796 = vunpack.c.h.b16 %v5465
    %v5797 = vunpack.c.l.b16 %v5466
    %v5798 = vunpack.c.h.b16 %v5466
    %v5799 = vunpack.c.l.b16 %v5467
    %v5800 = vunpack.c.h.b16 %v5467
    %v5801 = vunpack.c.l.b16 %v5468
    %v5802 = vunpack.c.h.b16 %v5468
    %v5803 = vunpack.c.l.b16 %v5469
    %v5804 = vunpack.c.h.b16 %v5469
    %v5805 = vunpack.c.l.b16 %v5470
    %v5806 = vunpack.c.h.b16 %v5470
    %v5807 = vunpack.c.l.b16 %v5471
    %v5808 = vunpack.c.h.b16 %v5471
    %v5809 = vunpack.c.l.b16 %v5472
    %v5810 = vunpack.c.h.b16 %v5472
    %v5811 = vunpack.c.l.b16 %v5473
    %v5812 = vunpack.c.h.b16 %v5473
    %v5813 = vunpack.c.l.b16 %v5474
    %v5814 = vunpack.c.h.b16 %v5474
    %v5815 = vunpack.c.l.b16 %v5475
    %v5816 = vunpack.c.h.b16 %v5475
    %v5817 = vunpack.c.l.b16 %v5476
    %v5818 = vunpack.c.h.b16 %v5476
    %v5819 = vunpack.c.l.b16 %v5477
    %v5820 = vunpack.c.h.b16 %v5477
    %v5821 = vunpack.c.l.b16 %v5478
    %v5822 = vunpack.c.h.b16 %v5478
    %v5823 = vunpack.c.l.b16 %v5479
    %v5824 = vunpack.c.h.b16 %v5479
    %v5825 = vunpack.c.l.b16 %v5480
    %v5826 = vunpack.c.h.b16 %v5480
    %v5827 = vunpack.c.l.b16 %v5481
    %v5828 = vunpack.c.h.b16 %v5481
    %v5829 = vunpack.c.l.b16 %v5482
    %v5830 = vunpack.c.h.b16 %v5482
    %v5831 = vunpack.c.l.b16 %v5483
    %v5832 = vunpack.c.h.b16 %v5483
    %v5833 = vunpack.c.l.b16 %v5484
    %v5834 = vunpack.c.h.b16 %v5484
    %v5835 = vpack.c.b16 %v5775, %v5771
    %v5836 = vpack.c.b16 %v5776, %v5772
    %v5837 = vpack.c.b16 %v5777, %v5773
    %v5838 = vpack.c.b16 %v5778, %v5774
    %v5839 = vpack.c.b16 %v5783, %v5779
    %v5840 = vpack.c.b16 %v5784, %v5780
    %v5841 = vpack.c.b16 %v5785, %v5781
    %v5842 = vpack.c.b16 %v5786, %v5782
    %v5843 = vpack.c.b16 %v5791, %v5787
    %v5844 = vpack.c.b16 %v5792, %v5788
    %v5845 = vpack.c.b16 %v5793, %v5789
    %v5846 = vpack.c.b16 %v5794, %v5790
    %v5847 = vpack.c.b16 %v5799, %v5795
    %v5848 = vpack.c.b16 %v5800, %v5796
    %v5849 = vpack.c.b16 %v5801, %v5797
    %v5850 = vpack.c.b16 %v5802, %v5798
    %v5851 = vpack.c.b16 %v5807, %v5803
    %v5852 = vpack.c.b16 %v5808, %v5804
    %v5853 = vpack.c.b16 %v5809, %v5805
    %v5854 = vpack.c.b16 %v5810, %v5806
    %v5855 = vpack.c.b16 %v5815, %v5811
    %v5856 = vpack.c.b16 %v5816, %v5812
    %v5857 = vpack.c.b16 %v5817, %v5813
    %v5858 = vpack.c.b16 %v5818, %v5814
    %v5859 = vpack.c.b16 %v5823, %v5819
    %v5860 = vpack.c.b16 %v5824, %v5820
    %v5861 = vpack.c.b16 %v5825, %v5821
    %v5862 = vpack.c.b16 %v5826, %v5822
    %v5863 = vpack.c.b16 %v5831, %v5827
    %v5864 = vpack.c.b16 %v5832, %v5828
    %v5865 = vpack.c.b16 %v5833, %v5829
    %v5866 = vpack.c.b16 %v5834, %v5830
    %5899 = vmatprep.subr.bf16.mxu0 %v5864
    %5900 = vmatpush1.bf16.msra.mxu0 %v5863
    %5901 = vmatprep.subr.bf16.mxu0 %v5860
    %5902 = vmatpush1.bf16.msra.mxu0 %v5859
    %5903 = vmatprep.subr.bf16.mxu0 %v5856
    %5904 = vmatpush1.bf16.msra.mxu0 %v5855
    %5905 = vmatprep.subr.bf16.mxu0 %v5852
    %5906 = vmatpush1.bf16.msra.mxu0 %v5851
    %5907 = vmatprep.subr.bf16.mxu0 %v5848
    %5908 = vmatpush1.bf16.msra.mxu0 %v5847
    %5909 = vmatprep.subr.bf16.mxu0 %v5844
    %5910 = vmatpush1.bf16.msra.mxu0 %v5843
    %5911 = vmatprep.subr.bf16.mxu0 %v5840
    %5912 = vmatpush1.bf16.msra.mxu0 %v5839
    %5913 = vmatprep.subr.bf16.mxu0 %v5836
    %5914 = vmatpush1.bf16.msra.mxu0 %v5835
    %5915 = vmatprep.subr.bf16.mxu0 0
    %5916 = vmatpush2.bf16.msra.mxu0 0
    %5917 = vmatprep.subr.bf16.mxu0 0
    %5918 = vmatpush2.bf16.msra.mxu0 0
    %5919 = vmatprep.subr.bf16.mxu0 0
    %5920 = vmatpush2.bf16.msra.mxu0 0
    %5921 = vmatprep.subr.bf16.mxu0 0
    %5922 = vmatpush2.bf16.msra.mxu0 0
    %5923 = vmatprep.subr.bf16.mxu0 0
    %5924 = vmatpush2.bf16.msra.mxu0 0
    %5925 = vmatprep.subr.bf16.mxu0 0
    %5926 = vmatpush2.bf16.msra.mxu0 0
    %5927 = vmatprep.subr.bf16.mxu0 0
    %5928 = vmatpush2.bf16.msra.mxu0 0
    %5929 = vmatprep.subr.bf16.mxu0 0
    %5930 = vmatpush2.bf16.msra.mxu0 0
    %5931 = vmatprep.mubr.bf16.mxu0 0
    %5932 = vmatmul.mubr.bf16.gmra.mxu0 %v5419
    %v5933 = vpop.f32.mrf.mxu0
    %v5934 = vadd.f32 %v5735, %v5933
    %v5935 = vpop.f32.mrf.mxu0
    %v5936 = vadd.f32 %v5736, %v5935
    %v5937 = vpop.f32.mrf.mxu0
    %v5938 = vpop.f32.mrf.mxu0
    %5939 = vdwg.mxu0
    %5940 = vmatprep.subr.bf16.mxu0 %v5866
    %5941 = vmatpush1.bf16.msra.mxu0 %v5865
    %5942 = vmatprep.subr.bf16.mxu0 %v5862
    %5943 = vmatpush1.bf16.msra.mxu0 %v5861
    %5944 = vmatprep.subr.bf16.mxu0 %v5858
    %5945 = vmatpush1.bf16.msra.mxu0 %v5857
    %5946 = vmatprep.subr.bf16.mxu0 %v5854
    %5947 = vmatpush1.bf16.msra.mxu0 %v5853
    %5948 = vmatprep.subr.bf16.mxu0 %v5850
    %5949 = vmatpush1.bf16.msra.mxu0 %v5849
    %5950 = vmatprep.subr.bf16.mxu0 %v5846
    %5951 = vmatpush1.bf16.msra.mxu0 %v5845
    %5952 = vmatprep.subr.bf16.mxu0 %v5842
    %5953 = vmatpush1.bf16.msra.mxu0 %v5841
    %5954 = vmatprep.subr.bf16.mxu0 %v5838
    %5955 = vmatpush1.bf16.msra.mxu0 %v5837
    %5956 = vmatprep.subr.bf16.mxu0 0
    %5957 = vmatpush2.bf16.msra.mxu0 0
    %5958 = vmatprep.subr.bf16.mxu0 0
    %5959 = vmatpush2.bf16.msra.mxu0 0
    %5960 = vmatprep.subr.bf16.mxu0 0
    %5961 = vmatpush2.bf16.msra.mxu0 0
    %5962 = vmatprep.subr.bf16.mxu0 0
    %5963 = vmatpush2.bf16.msra.mxu0 0
    %5964 = vmatprep.subr.bf16.mxu0 0
    %5965 = vmatpush2.bf16.msra.mxu0 0
    %5966 = vmatprep.subr.bf16.mxu0 0
    %5967 = vmatpush2.bf16.msra.mxu0 0
    %5968 = vmatprep.subr.bf16.mxu0 0
    %5969 = vmatpush2.bf16.msra.mxu0 0
    %5970 = vmatprep.subr.bf16.mxu0 0
    %5971 = vmatpush2.bf16.msra.mxu0 0
    %5972 = vmatprep.mubr.bf16.mxu0 0
    %5973 = vmatmul.mubr.bf16.gmra.mxu0 %v5419
    %v5974 = vpop.f32.mrf.mxu0
    %v5975 = vadd.f32 %v5737, %v5974
    %v5976 = vpop.f32.mrf.mxu0
    %v5977 = vadd.f32 %v5738, %v5976
    %v5978 = vpop.f32.mrf.mxu0
    %v5979 = vpop.f32.mrf.mxu0
    %5980 = vdwg.mxu0
    %v5981 = vxor.u32 %v5686, 2147483648
    %v5982 = vmul.f32 %v5981, 1.442695
    %v5983 = vpow.pop %v5982
    %v5984 = vadd.f32 %v5983, 1.0
    %v5985 = vrcp.pop %v5984
    %v5986 = vmul.f32 1.0, %v5985
    %v5987 = vxor.u32 %v5688, 2147483648
    %v5988 = vmul.f32 %v5987, 1.442695
    %v5989 = vpow.pop %v5988
    %v5990 = vadd.f32 %v5989, 1.0
    %v5991 = vrcp.pop %v5990
    %v5992 = vmul.f32 1.0, %v5991
    %v5993 = vtanh.pop %v5727
    %v5994 = vxor.u32 %v5729, 2147483648
    %v5995 = vmul.f32 %v5994, 1.442695
    %v5996 = vpow.pop %v5995
    %v5997 = vadd.f32 %v5996, 1.0
    %v5998 = vrcp.pop %v5997
    %v5999 = vmul.f32 1.0, %v5998
    %v6000 = vmul.f32 %v5992, %v5390
    %v6001 = vmul.f32 %v5986, %v5993
    %v6002 = vadd.f32 %v6000, %v6001
    %v6003 = vtanh.pop %v6002
    %v6004 = vmul.f32 %v5999, %v6003
    %v6005 = vxor.u32 %v5934, 2147483648
    %v6006 = vmul.f32 %v6005, 1.442695
    %v6007 = vpow.pop %v6006
    %v6008 = vadd.f32 %v6007, 1.0
    %v6009 = vrcp.pop %v6008
    %v6010 = vmul.f32 1.0, %v6009
    %v6011 = vxor.u32 %v5936, 2147483648
    %v6012 = vmul.f32 %v6011, 1.442695
    %v6013 = vpow.pop %v6012
    %v6014 = vadd.f32 %v6013, 1.0
    %v6015 = vrcp.pop %v6014
    %v6016 = vmul.f32 1.0, %v6015
    %v6017 = vtanh.pop %v5975
    %v6018 = vxor.u32 %v5977, 2147483648
    %v6019 = vmul.f32 %v6018, 1.442695
    %v6020 = vpow.pop %v6019
    %v6021 = vadd.f32 %v6020, 1.0
    %v6022 = vrcp.pop %v6021
    %v6023 = vmul.f32 1.0, %v6022
    %v6024 = vmul.f32 %v6016, %v5414
    %v6025 = vmul.f32 %v6010, %v6017
    %v6026 = vadd.f32 %v6024, %v6025
    %v6027 = vtanh.pop %v6026
    %v6028 = vmul.f32 %v6023, %v6027
    %v6029 = vpack.c.bf16 %v6004, %v6004
    %6030 = vst [vmem:[%s1711] sm:$0xf] %v6029
    %v6031 = vpack.c.bf16 %v6028, %v6028
    %6032 = vst [vmem:[%s1706 + $0x4] sm:$0xf] %v6031
    %v6033 = vld [vmem:[#allocation3] sm:$0xff]
    %v6034 = vld [vmem:[#allocation3 + $0x8] sm:$0xff]
    %v6035 = vld [vmem:[#allocation3 + $0x10] sm:$0xff]
    %v6036 = vld [vmem:[#allocation3 + $0x18] sm:$0xff]
    %v6037 = vld [vmem:[#allocation3 + $0x20] sm:$0xff]
    %v6038 = vld [vmem:[#allocation3 + $0x28] sm:$0xff]
    %v6039 = vld [vmem:[#allocation3 + $0x30] sm:$0xff]
    %v6040 = vld [vmem:[#allocation3 + $0x38] sm:$0xff]
    %v6041 = vld [vmem:[#allocation9] sm:$0xff]
    %v6042 = vld [vmem:[#allocation9 + $0x8] sm:$0xff]
    %v6043 = vld [vmem:[#allocation9 + $0x10] sm:$0xff]
    %v6044 = vld [vmem:[#allocation9 + $0x18] sm:$0xff]
    %v6045 = vld [vmem:[#allocation9 + $0x20] sm:$0xff]
    %v6046 = vld [vmem:[#allocation9 + $0x28] sm:$0xff]
    %v6047 = vld [vmem:[#allocation9 + $0x30] sm:$0xff]
    %v6048 = vld [vmem:[#allocation9 + $0x38] sm:$0xff]
    %v6049 = vld [vmem:[#allocation9 + $0x40] sm:$0xff]
    %v6050 = vld [vmem:[#allocation9 + $0x48] sm:$0xff]
    %v6051 = vld [vmem:[#allocation9 + $0x50] sm:$0xff]
    %v6052 = vld [vmem:[#allocation9 + $0x58] sm:$0xff]
    %v6053 = vld [vmem:[#allocation9 + $0x60] sm:$0xff]
    %v6054 = vld [vmem:[#allocation9 + $0x68] sm:$0xff]
    %v6055 = vld [vmem:[#allocation9 + $0x70] sm:$0xff]
    %v6056 = vld [vmem:[#allocation9 + $0x78] sm:$0xff]
    %v6057 = vld [vmem:[#allocation9 + $0x80] sm:$0xff]
    %v6058 = vld [vmem:[#allocation9 + $0x88] sm:$0xff]
    %v6059 = vld [vmem:[#allocation9 + $0x90] sm:$0xff]
    %v6060 = vld [vmem:[#allocation9 + $0x98] sm:$0xff]
    %v6061 = vld [vmem:[#allocation9 + $0xa0] sm:$0xff]
    %v6062 = vld [vmem:[#allocation9 + $0xa8] sm:$0xff]
    %v6063 = vld [vmem:[#allocation9 + $0xb0] sm:$0xff]
    %v6064 = vld [vmem:[#allocation9 + $0xb8] sm:$0xff]
    %v6065 = vld [vmem:[#allocation9 + $0xc0] sm:$0xff]
    %v6066 = vld [vmem:[#allocation9 + $0xc8] sm:$0xff]
    %v6067 = vld [vmem:[#allocation9 + $0xd0] sm:$0xff]
    %v6068 = vld [vmem:[#allocation9 + $0xd8] sm:$0xff]
    %v6069 = vld [vmem:[#allocation9 + $0xe0] sm:$0xff]
    %v6070 = vld [vmem:[#allocation9 + $0xe8] sm:$0xff]
    %v6071 = vld [vmem:[#allocation9 + $0xf0] sm:$0xff]
    %v6072 = vld [vmem:[#allocation9 + $0xf8] sm:$0xff]
    %v6073 = vld [vmem:[#allocation9 + $0x100] sm:$0xff]
    %v6074 = vld [vmem:[#allocation9 + $0x108] sm:$0xff]
    %v6075 = vld [vmem:[#allocation9 + $0x110] sm:$0xff]
    %v6076 = vld [vmem:[#allocation9 + $0x118] sm:$0xff]
    %v6077 = vld [vmem:[#allocation9 + $0x120] sm:$0xff]
    %v6078 = vld [vmem:[#allocation9 + $0x128] sm:$0xff]
    %v6079 = vld [vmem:[#allocation9 + $0x130] sm:$0xff]
    %v6080 = vld [vmem:[#allocation9 + $0x138] sm:$0xff]
    %v6081 = vld [vmem:[#allocation9 + $0x140] sm:$0xff]
    %v6082 = vld [vmem:[#allocation9 + $0x148] sm:$0xff]
    %v6083 = vld [vmem:[#allocation9 + $0x150] sm:$0xff]
    %v6084 = vld [vmem:[#allocation9 + $0x158] sm:$0xff]
    %v6085 = vld [vmem:[#allocation9 + $0x160] sm:$0xff]
    %v6086 = vld [vmem:[#allocation9 + $0x168] sm:$0xff]
    %v6087 = vld [vmem:[#allocation9 + $0x170] sm:$0xff]
    %v6088 = vld [vmem:[#allocation9 + $0x178] sm:$0xff]
    %v6089 = vld [vmem:[#allocation9 + $0x180] sm:$0xff]
    %v6090 = vld [vmem:[#allocation9 + $0x188] sm:$0xff]
    %v6091 = vld [vmem:[#allocation9 + $0x190] sm:$0xff]
    %v6092 = vld [vmem:[#allocation9 + $0x198] sm:$0xff]
    %v6093 = vld [vmem:[#allocation9 + $0x1a0] sm:$0xff]
    %v6094 = vld [vmem:[#allocation9 + $0x1a8] sm:$0xff]
    %v6095 = vld [vmem:[#allocation9 + $0x1b0] sm:$0xff]
    %v6096 = vld [vmem:[#allocation9 + $0x1b8] sm:$0xff]
    %v6097 = vld [vmem:[#allocation9 + $0x1c0] sm:$0xff]
    %v6098 = vld [vmem:[#allocation9 + $0x1c8] sm:$0xff]
    %v6099 = vld [vmem:[#allocation9 + $0x1d0] sm:$0xff]
    %v6100 = vld [vmem:[#allocation9 + $0x1d8] sm:$0xff]
    %v6101 = vld [vmem:[#allocation9 + $0x1e0] sm:$0xff]
    %v6102 = vld [vmem:[#allocation9 + $0x1e8] sm:$0xff]
    %v6103 = vld [vmem:[#allocation9 + $0x1f0] sm:$0xff]
    %v6104 = vld [vmem:[#allocation9 + $0x1f8] sm:$0xff]
    %v6105 = vld [vmem:[#allocation9 + $0x200] sm:$0xff]
    %v6106 = vld [vmem:[#allocation9 + $0x208] sm:$0xff]
    %v6107 = vld [vmem:[#allocation9 + $0x210] sm:$0xff]
    %v6108 = vld [vmem:[#allocation9 + $0x218] sm:$0xff]
    %v6109 = vld [vmem:[#allocation9 + $0x220] sm:$0xff]
    %v6110 = vld [vmem:[#allocation9 + $0x228] sm:$0xff]
    %v6111 = vld [vmem:[#allocation9 + $0x230] sm:$0xff]
    %v6112 = vld [vmem:[#allocation9 + $0x238] sm:$0xff]
    %v6113 = vld [vmem:[#allocation9 + $0x240] sm:$0xff]
    %v6114 = vld [vmem:[#allocation9 + $0x248] sm:$0xff]
    %v6115 = vld [vmem:[#allocation9 + $0x250] sm:$0xff]
    %v6116 = vld [vmem:[#allocation9 + $0x258] sm:$0xff]
    %v6117 = vld [vmem:[#allocation9 + $0x260] sm:$0xff]
    %v6118 = vld [vmem:[#allocation9 + $0x268] sm:$0xff]
    %v6119 = vld [vmem:[#allocation9 + $0x270] sm:$0xff]
    %v6120 = vld [vmem:[#allocation9 + $0x278] sm:$0xff]
    %v6121 = vld [vmem:[#allocation9 + $0x280] sm:$0xff]
    %v6122 = vld [vmem:[#allocation9 + $0x288] sm:$0xff]
    %v6123 = vld [vmem:[#allocation9 + $0x290] sm:$0xff]
    %v6124 = vld [vmem:[#allocation9 + $0x298] sm:$0xff]
    %v6125 = vld [vmem:[#allocation9 + $0x2a0] sm:$0xff]
    %v6126 = vld [vmem:[#allocation9 + $0x2a8] sm:$0xff]
    %v6127 = vld [vmem:[#allocation9 + $0x2b0] sm:$0xff]
    %v6128 = vld [vmem:[#allocation9 + $0x2b8] sm:$0xff]
    %v6129 = vld [vmem:[#allocation9 + $0x2c0] sm:$0xff]
    %v6130 = vld [vmem:[#allocation9 + $0x2c8] sm:$0xff]
    %v6131 = vld [vmem:[#allocation9 + $0x2d0] sm:$0xff]
    %v6132 = vld [vmem:[#allocation9 + $0x2d8] sm:$0xff]
    %v6133 = vld [vmem:[#allocation9 + $0x2e0] sm:$0xff]
    %v6134 = vld [vmem:[#allocation9 + $0x2e8] sm:$0xff]
    %v6135 = vld [vmem:[#allocation9 + $0x2f0] sm:$0xff]
    %v6136 = vld [vmem:[#allocation9 + $0x2f8] sm:$0xff]
    %v6137 = vld [vmem:[#allocation9 + $0x300] sm:$0xff]
    %v6138 = vld [vmem:[#allocation9 + $0x308] sm:$0xff]
    %v6139 = vld [vmem:[#allocation9 + $0x310] sm:$0xff]
    %v6140 = vld [vmem:[#allocation9 + $0x318] sm:$0xff]
    %v6141 = vld [vmem:[#allocation9 + $0x320] sm:$0xff]
    %v6142 = vld [vmem:[#allocation9 + $0x328] sm:$0xff]
    %v6143 = vld [vmem:[#allocation9 + $0x330] sm:$0xff]
    %v6144 = vld [vmem:[#allocation9 + $0x338] sm:$0xff]
    %v6145 = vld [vmem:[#allocation9 + $0x340] sm:$0xff]
    %v6146 = vld [vmem:[#allocation9 + $0x348] sm:$0xff]
    %v6147 = vld [vmem:[#allocation9 + $0x350] sm:$0xff]
    %v6148 = vld [vmem:[#allocation9 + $0x358] sm:$0xff]
    %v6149 = vld [vmem:[#allocation9 + $0x360] sm:$0xff]
    %v6150 = vld [vmem:[#allocation9 + $0x368] sm:$0xff]
    %v6151 = vld [vmem:[#allocation9 + $0x370] sm:$0xff]
    %v6152 = vld [vmem:[#allocation9 + $0x378] sm:$0xff]
    %v6153 = vld [vmem:[#allocation9 + $0x380] sm:$0xff]
    %v6154 = vld [vmem:[#allocation9 + $0x388] sm:$0xff]
    %v6155 = vld [vmem:[#allocation9 + $0x390] sm:$0xff]
    %v6156 = vld [vmem:[#allocation9 + $0x398] sm:$0xff]
    %v6157 = vld [vmem:[#allocation9 + $0x3a0] sm:$0xff]
    %v6158 = vld [vmem:[#allocation9 + $0x3a8] sm:$0xff]
    %v6159 = vld [vmem:[#allocation9 + $0x3b0] sm:$0xff]
    %v6160 = vld [vmem:[#allocation9 + $0x3b8] sm:$0xff]
    %v6161 = vld [vmem:[#allocation9 + $0x3c0] sm:$0xff]
    %v6162 = vld [vmem:[#allocation9 + $0x3c8] sm:$0xff]
    %v6163 = vld [vmem:[#allocation9 + $0x3d0] sm:$0xff]
    %v6164 = vld [vmem:[#allocation9 + $0x3d8] sm:$0xff]
    %v6165 = vld [vmem:[#allocation9 + $0x3e0] sm:$0xff]
    %v6166 = vld [vmem:[#allocation9 + $0x3e8] sm:$0xff]
    %v6167 = vld [vmem:[#allocation9 + $0x3f0] sm:$0xff]
    %v6168 = vld [vmem:[#allocation9 + $0x3f8] sm:$0xff]
    %v6169 = vld [vmem:[%s8] sm:$0xff]
    %v6171 = vlaneseq
    %v6172 = vshrl.u32 %v6171, 7
    %v6173 = vsub.s32 0, %v6172
    %v6174 = vrot.slane %v6169, %v6173
    %v6175 = vlaneseq
    %v6176 = vshrl.u32 %v6175, 7
    %v6177 = vsub.s32 1, %v6176
    %v6178 = vrot.slane %v6169, %v6177
    %v6179 = vlaneseq
    %v6180 = vshrl.u32 %v6179, 7
    %v6181 = vsub.s32 2, %v6180
    %v6182 = vrot.slane %v6169, %v6181
    %v6183 = vlaneseq
    %v6184 = vshrl.u32 %v6183, 7
    %v6185 = vsub.s32 3, %v6184
    %v6186 = vrot.slane %v6169, %v6185
    %v6187 = vlaneseq
    %v6188 = vshrl.u32 %v6187, 7
    %v6189 = vsub.s32 4, %v6188
    %v6190 = vrot.slane %v6169, %v6189
    %v6191 = vlaneseq
    %v6192 = vshrl.u32 %v6191, 7
    %v6193 = vsub.s32 5, %v6192
    %v6194 = vrot.slane %v6169, %v6193
    %v6195 = vlaneseq
    %v6196 = vshrl.u32 %v6195, 7
    %v6197 = vsub.s32 6, %v6196
    %v6198 = vrot.slane %v6169, %v6197
    %v6199 = vlaneseq
    %v6200 = vshrl.u32 %v6199, 7
    %v6201 = vsub.s32 7, %v6200
    %v6202 = vrot.slane %v6169, %v6201
    %v6219 = vunpack.c.l.b16 %v6033
    %v6220 = vunpack.c.h.b16 %v6033
    %v6221 = vunpack.c.l.b16 %v6034
    %v6222 = vunpack.c.h.b16 %v6034
    %v6223 = vunpack.c.l.b16 %v6035
    %v6224 = vunpack.c.h.b16 %v6035
    %v6225 = vunpack.c.l.b16 %v6036
    %v6226 = vunpack.c.h.b16 %v6036
    %v6227 = vunpack.c.l.b16 %v6037
    %v6228 = vunpack.c.h.b16 %v6037
    %v6229 = vunpack.c.l.b16 %v6038
    %v6230 = vunpack.c.h.b16 %v6038
    %v6231 = vunpack.c.l.b16 %v6039
    %v6232 = vunpack.c.h.b16 %v6039
    %v6233 = vunpack.c.l.b16 %v6040
    %v6234 = vunpack.c.h.b16 %v6040
    %v6235 = vpack.c.b16 %v6221, %v6219
    %v6236 = vpack.c.b16 %v6222, %v6220
    %v6237 = vpack.c.b16 %v6225, %v6223
    %v6238 = vpack.c.b16 %v6226, %v6224
    %v6239 = vpack.c.b16 %v6229, %v6227
    %v6240 = vpack.c.b16 %v6230, %v6228
    %v6241 = vpack.c.b16 %v6233, %v6231
    %v6242 = vpack.c.b16 %v6234, %v6232
    %v6379 = vunpack.c.l.b16 %v6041
    %v6380 = vunpack.c.h.b16 %v6041
    %v6381 = vunpack.c.l.b16 %v6042
    %v6382 = vunpack.c.h.b16 %v6042
    %v6383 = vunpack.c.l.b16 %v6043
    %v6384 = vunpack.c.h.b16 %v6043
    %v6385 = vunpack.c.l.b16 %v6044
    %v6386 = vunpack.c.h.b16 %v6044
    %v6387 = vunpack.c.l.b16 %v6045
    %v6388 = vunpack.c.h.b16 %v6045
    %v6389 = vunpack.c.l.b16 %v6046
    %v6390 = vunpack.c.h.b16 %v6046
    %v6391 = vunpack.c.l.b16 %v6047
    %v6392 = vunpack.c.h.b16 %v6047
    %v6393 = vunpack.c.l.b16 %v6048
    %v6394 = vunpack.c.h.b16 %v6048
    %v6395 = vunpack.c.l.b16 %v6049
    %v6396 = vunpack.c.h.b16 %v6049
    %v6397 = vunpack.c.l.b16 %v6050
    %v6398 = vunpack.c.h.b16 %v6050
    %v6399 = vunpack.c.l.b16 %v6051
    %v6400 = vunpack.c.h.b16 %v6051
    %v6401 = vunpack.c.l.b16 %v6052
    %v6402 = vunpack.c.h.b16 %v6052
    %v6403 = vunpack.c.l.b16 %v6053
    %v6404 = vunpack.c.h.b16 %v6053
    %v6405 = vunpack.c.l.b16 %v6054
    %v6406 = vunpack.c.h.b16 %v6054
    %v6407 = vunpack.c.l.b16 %v6055
    %v6408 = vunpack.c.h.b16 %v6055
    %v6409 = vunpack.c.l.b16 %v6056
    %v6410 = vunpack.c.h.b16 %v6056
    %v6411 = vunpack.c.l.b16 %v6057
    %v6412 = vunpack.c.h.b16 %v6057
    %v6413 = vunpack.c.l.b16 %v6058
    %v6414 = vunpack.c.h.b16 %v6058
    %v6415 = vunpack.c.l.b16 %v6059
    %v6416 = vunpack.c.h.b16 %v6059
    %v6417 = vunpack.c.l.b16 %v6060
    %v6418 = vunpack.c.h.b16 %v6060
    %v6419 = vunpack.c.l.b16 %v6061
    %v6420 = vunpack.c.h.b16 %v6061
    %v6421 = vunpack.c.l.b16 %v6062
    %v6422 = vunpack.c.h.b16 %v6062
    %v6423 = vunpack.c.l.b16 %v6063
    %v6424 = vunpack.c.h.b16 %v6063
    %v6425 = vunpack.c.l.b16 %v6064
    %v6426 = vunpack.c.h.b16 %v6064
    %v6427 = vunpack.c.l.b16 %v6065
    %v6428 = vunpack.c.h.b16 %v6065
    %v6429 = vunpack.c.l.b16 %v6066
    %v6430 = vunpack.c.h.b16 %v6066
    %v6431 = vunpack.c.l.b16 %v6067
    %v6432 = vunpack.c.h.b16 %v6067
    %v6433 = vunpack.c.l.b16 %v6068
    %v6434 = vunpack.c.h.b16 %v6068
    %v6435 = vunpack.c.l.b16 %v6069
    %v6436 = vunpack.c.h.b16 %v6069
    %v6437 = vunpack.c.l.b16 %v6070
    %v6438 = vunpack.c.h.b16 %v6070
    %v6439 = vunpack.c.l.b16 %v6071
    %v6440 = vunpack.c.h.b16 %v6071
    %v6441 = vunpack.c.l.b16 %v6072
    %v6442 = vunpack.c.h.b16 %v6072
    %v6443 = vunpack.c.l.b16 %v6073
    %v6444 = vunpack.c.h.b16 %v6073
    %v6445 = vunpack.c.l.b16 %v6074
    %v6446 = vunpack.c.h.b16 %v6074
    %v6447 = vunpack.c.l.b16 %v6075
    %v6448 = vunpack.c.h.b16 %v6075
    %v6449 = vunpack.c.l.b16 %v6076
    %v6450 = vunpack.c.h.b16 %v6076
    %v6451 = vunpack.c.l.b16 %v6077
    %v6452 = vunpack.c.h.b16 %v6077
    %v6453 = vunpack.c.l.b16 %v6078
    %v6454 = vunpack.c.h.b16 %v6078
    %v6455 = vunpack.c.l.b16 %v6079
    %v6456 = vunpack.c.h.b16 %v6079
    %v6457 = vunpack.c.l.b16 %v6080
    %v6458 = vunpack.c.h.b16 %v6080
    %v6459 = vunpack.c.l.b16 %v6081
    %v6460 = vunpack.c.h.b16 %v6081
    %v6461 = vunpack.c.l.b16 %v6082
    %v6462 = vunpack.c.h.b16 %v6082
    %v6463 = vunpack.c.l.b16 %v6083
    %v6464 = vunpack.c.h.b16 %v6083
    %v6465 = vunpack.c.l.b16 %v6084
    %v6466 = vunpack.c.h.b16 %v6084
    %v6467 = vunpack.c.l.b16 %v6085
    %v6468 = vunpack.c.h.b16 %v6085
    %v6469 = vunpack.c.l.b16 %v6086
    %v6470 = vunpack.c.h.b16 %v6086
    %v6471 = vunpack.c.l.b16 %v6087
    %v6472 = vunpack.c.h.b16 %v6087
    %v6473 = vunpack.c.l.b16 %v6088
    %v6474 = vunpack.c.h.b16 %v6088
    %v6475 = vunpack.c.l.b16 %v6089
    %v6476 = vunpack.c.h.b16 %v6089
    %v6477 = vunpack.c.l.b16 %v6090
    %v6478 = vunpack.c.h.b16 %v6090
    %v6479 = vunpack.c.l.b16 %v6091
    %v6480 = vunpack.c.h.b16 %v6091
    %v6481 = vunpack.c.l.b16 %v6092
    %v6482 = vunpack.c.h.b16 %v6092
    %v6483 = vunpack.c.l.b16 %v6093
    %v6484 = vunpack.c.h.b16 %v6093
    %v6485 = vunpack.c.l.b16 %v6094
    %v6486 = vunpack.c.h.b16 %v6094
    %v6487 = vunpack.c.l.b16 %v6095
    %v6488 = vunpack.c.h.b16 %v6095
    %v6489 = vunpack.c.l.b16 %v6096
    %v6490 = vunpack.c.h.b16 %v6096
    %v6491 = vunpack.c.l.b16 %v6097
    %v6492 = vunpack.c.h.b16 %v6097
    %v6493 = vunpack.c.l.b16 %v6098
    %v6494 = vunpack.c.h.b16 %v6098
    %v6495 = vunpack.c.l.b16 %v6099
    %v6496 = vunpack.c.h.b16 %v6099
    %v6497 = vunpack.c.l.b16 %v6100
    %v6498 = vunpack.c.h.b16 %v6100
    %v6499 = vunpack.c.l.b16 %v6101
    %v6500 = vunpack.c.h.b16 %v6101
    %v6501 = vunpack.c.l.b16 %v6102
    %v6502 = vunpack.c.h.b16 %v6102
    %v6503 = vunpack.c.l.b16 %v6103
    %v6504 = vunpack.c.h.b16 %v6103
    %v6505 = vunpack.c.l.b16 %v6104
    %v6506 = vunpack.c.h.b16 %v6104
    %v6507 = vunpack.c.l.b16 %v6105
    %v6508 = vunpack.c.h.b16 %v6105
    %v6509 = vunpack.c.l.b16 %v6106
    %v6510 = vunpack.c.h.b16 %v6106
    %v6511 = vunpack.c.l.b16 %v6107
    %v6512 = vunpack.c.h.b16 %v6107
    %v6513 = vunpack.c.l.b16 %v6108
    %v6514 = vunpack.c.h.b16 %v6108
    %v6515 = vunpack.c.l.b16 %v6109
    %v6516 = vunpack.c.h.b16 %v6109
    %v6517 = vunpack.c.l.b16 %v6110
    %v6518 = vunpack.c.h.b16 %v6110
    %v6519 = vunpack.c.l.b16 %v6111
    %v6520 = vunpack.c.h.b16 %v6111
    %v6521 = vunpack.c.l.b16 %v6112
    %v6522 = vunpack.c.h.b16 %v6112
    %v6523 = vunpack.c.l.b16 %v6113
    %v6524 = vunpack.c.h.b16 %v6113
    %v6525 = vunpack.c.l.b16 %v6114
    %v6526 = vunpack.c.h.b16 %v6114
    %v6527 = vunpack.c.l.b16 %v6115
    %v6528 = vunpack.c.h.b16 %v6115
    %v6529 = vunpack.c.l.b16 %v6116
    %v6530 = vunpack.c.h.b16 %v6116
    %v6531 = vunpack.c.l.b16 %v6117
    %v6532 = vunpack.c.h.b16 %v6117
    %v6533 = vunpack.c.l.b16 %v6118
    %v6534 = vunpack.c.h.b16 %v6118
    %v6535 = vunpack.c.l.b16 %v6119
    %v6536 = vunpack.c.h.b16 %v6119
    %v6537 = vunpack.c.l.b16 %v6120
    %v6538 = vunpack.c.h.b16 %v6120
    %v6539 = vunpack.c.l.b16 %v6121
    %v6540 = vunpack.c.h.b16 %v6121
    %v6541 = vunpack.c.l.b16 %v6122
    %v6542 = vunpack.c.h.b16 %v6122
    %v6543 = vunpack.c.l.b16 %v6123
    %v6544 = vunpack.c.h.b16 %v6123
    %v6545 = vunpack.c.l.b16 %v6124
    %v6546 = vunpack.c.h.b16 %v6124
    %v6547 = vunpack.c.l.b16 %v6125
    %v6548 = vunpack.c.h.b16 %v6125
    %v6549 = vunpack.c.l.b16 %v6126
    %v6550 = vunpack.c.h.b16 %v6126
    %v6551 = vunpack.c.l.b16 %v6127
    %v6552 = vunpack.c.h.b16 %v6127
    %v6553 = vunpack.c.l.b16 %v6128
    %v6554 = vunpack.c.h.b16 %v6128
    %v6555 = vunpack.c.l.b16 %v6129
    %v6556 = vunpack.c.h.b16 %v6129
    %v6557 = vunpack.c.l.b16 %v6130
    %v6558 = vunpack.c.h.b16 %v6130
    %v6559 = vunpack.c.l.b16 %v6131
    %v6560 = vunpack.c.h.b16 %v6131
    %v6561 = vunpack.c.l.b16 %v6132
    %v6562 = vunpack.c.h.b16 %v6132
    %v6563 = vunpack.c.l.b16 %v6133
    %v6564 = vunpack.c.h.b16 %v6133
    %v6565 = vunpack.c.l.b16 %v6134
    %v6566 = vunpack.c.h.b16 %v6134
    %v6567 = vunpack.c.l.b16 %v6135
    %v6568 = vunpack.c.h.b16 %v6135
    %v6569 = vunpack.c.l.b16 %v6136
    %v6570 = vunpack.c.h.b16 %v6136
    %v6571 = vunpack.c.l.b16 %v6137
    %v6572 = vunpack.c.h.b16 %v6137
    %v6573 = vunpack.c.l.b16 %v6138
    %v6574 = vunpack.c.h.b16 %v6138
    %v6575 = vunpack.c.l.b16 %v6139
    %v6576 = vunpack.c.h.b16 %v6139
    %v6577 = vunpack.c.l.b16 %v6140
    %v6578 = vunpack.c.h.b16 %v6140
    %v6579 = vunpack.c.l.b16 %v6141
    %v6580 = vunpack.c.h.b16 %v6141
    %v6581 = vunpack.c.l.b16 %v6142
    %v6582 = vunpack.c.h.b16 %v6142
    %v6583 = vunpack.c.l.b16 %v6143
    %v6584 = vunpack.c.h.b16 %v6143
    %v6585 = vunpack.c.l.b16 %v6144
    %v6586 = vunpack.c.h.b16 %v6144
    %v6587 = vunpack.c.l.b16 %v6145
    %v6588 = vunpack.c.h.b16 %v6145
    %v6589 = vunpack.c.l.b16 %v6146
    %v6590 = vunpack.c.h.b16 %v6146
    %v6591 = vunpack.c.l.b16 %v6147
    %v6592 = vunpack.c.h.b16 %v6147
    %v6593 = vunpack.c.l.b16 %v6148
    %v6594 = vunpack.c.h.b16 %v6148
    %v6595 = vunpack.c.l.b16 %v6149
    %v6596 = vunpack.c.h.b16 %v6149
    %v6597 = vunpack.c.l.b16 %v6150
    %v6598 = vunpack.c.h.b16 %v6150
    %v6599 = vunpack.c.l.b16 %v6151
    %v6600 = vunpack.c.h.b16 %v6151
    %v6601 = vunpack.c.l.b16 %v6152
    %v6602 = vunpack.c.h.b16 %v6152
    %v6603 = vunpack.c.l.b16 %v6153
    %v6604 = vunpack.c.h.b16 %v6153
    %v6605 = vunpack.c.l.b16 %v6154
    %v6606 = vunpack.c.h.b16 %v6154
    %v6607 = vunpack.c.l.b16 %v6155
    %v6608 = vunpack.c.h.b16 %v6155
    %v6609 = vunpack.c.l.b16 %v6156
    %v6610 = vunpack.c.h.b16 %v6156
    %v6611 = vunpack.c.l.b16 %v6157
    %v6612 = vunpack.c.h.b16 %v6157
    %v6613 = vunpack.c.l.b16 %v6158
    %v6614 = vunpack.c.h.b16 %v6158
    %v6615 = vunpack.c.l.b16 %v6159
    %v6616 = vunpack.c.h.b16 %v6159
    %v6617 = vunpack.c.l.b16 %v6160
    %v6618 = vunpack.c.h.b16 %v6160
    %v6619 = vunpack.c.l.b16 %v6161
    %v6620 = vunpack.c.h.b16 %v6161
    %v6621 = vunpack.c.l.b16 %v6162
    %v6622 = vunpack.c.h.b16 %v6162
    %v6623 = vunpack.c.l.b16 %v6163
    %v6624 = vunpack.c.h.b16 %v6163
    %v6625 = vunpack.c.l.b16 %v6164
    %v6626 = vunpack.c.h.b16 %v6164
    %v6627 = vunpack.c.l.b16 %v6165
    %v6628 = vunpack.c.h.b16 %v6165
    %v6629 = vunpack.c.l.b16 %v6166
    %v6630 = vunpack.c.h.b16 %v6166
    %v6631 = vunpack.c.l.b16 %v6167
    %v6632 = vunpack.c.h.b16 %v6167
    %v6633 = vunpack.c.l.b16 %v6168
    %v6634 = vunpack.c.h.b16 %v6168
    %v6635 = vpack.c.b16 %v6387, %v6379
    %v6636 = vpack.c.b16 %v6388, %v6380
    %v6637 = vpack.c.b16 %v6389, %v6381
    %v6638 = vpack.c.b16 %v6390, %v6382
    %v6639 = vpack.c.b16 %v6391, %v6383
    %v6640 = vpack.c.b16 %v6392, %v6384
    %v6641 = vpack.c.b16 %v6393, %v6385
    %v6642 = vpack.c.b16 %v6394, %v6386
    %v6643 = vpack.c.b16 %v6403, %v6395
    %v6644 = vpack.c.b16 %v6404, %v6396
    %v6645 = vpack.c.b16 %v6405, %v6397
    %v6646 = vpack.c.b16 %v6406, %v6398
    %v6647 = vpack.c.b16 %v6407, %v6399
    %v6648 = vpack.c.b16 %v6408, %v6400
    %v6649 = vpack.c.b16 %v6409, %v6401
    %v6650 = vpack.c.b16 %v6410, %v6402
    %v6651 = vpack.c.b16 %v6419, %v6411
    %v6652 = vpack.c.b16 %v6420, %v6412
    %v6653 = vpack.c.b16 %v6421, %v6413
    %v6654 = vpack.c.b16 %v6422, %v6414
    %v6655 = vpack.c.b16 %v6423, %v6415
    %v6656 = vpack.c.b16 %v6424, %v6416
    %v6657 = vpack.c.b16 %v6425, %v6417
    %v6658 = vpack.c.b16 %v6426, %v6418
    %v6659 = vpack.c.b16 %v6435, %v6427
    %v6660 = vpack.c.b16 %v6436, %v6428
    %v6661 = vpack.c.b16 %v6437, %v6429
    %v6662 = vpack.c.b16 %v6438, %v6430
    %v6663 = vpack.c.b16 %v6439, %v6431
    %v6664 = vpack.c.b16 %v6440, %v6432
    %v6665 = vpack.c.b16 %v6441, %v6433
    %v6666 = vpack.c.b16 %v6442, %v6434
    %v6667 = vpack.c.b16 %v6451, %v6443
    %v6668 = vpack.c.b16 %v6452, %v6444
    %v6669 = vpack.c.b16 %v6453, %v6445
    %v6670 = vpack.c.b16 %v6454, %v6446
    %v6671 = vpack.c.b16 %v6455, %v6447
    %v6672 = vpack.c.b16 %v6456, %v6448
    %v6673 = vpack.c.b16 %v6457, %v6449
    %v6674 = vpack.c.b16 %v6458, %v6450
    %v6675 = vpack.c.b16 %v6467, %v6459
    %v6676 = vpack.c.b16 %v6468, %v6460
    %v6677 = vpack.c.b16 %v6469, %v6461
    %v6678 = vpack.c.b16 %v6470, %v6462
    %v6679 = vpack.c.b16 %v6471, %v6463
    %v6680 = vpack.c.b16 %v6472, %v6464
    %v6681 = vpack.c.b16 %v6473, %v6465
    %v6682 = vpack.c.b16 %v6474, %v6466
    %v6683 = vpack.c.b16 %v6483, %v6475
    %v6684 = vpack.c.b16 %v6484, %v6476
    %v6685 = vpack.c.b16 %v6485, %v6477
    %v6686 = vpack.c.b16 %v6486, %v6478
    %v6687 = vpack.c.b16 %v6487, %v6479
    %v6688 = vpack.c.b16 %v6488, %v6480
    %v6689 = vpack.c.b16 %v6489, %v6481
    %v6690 = vpack.c.b16 %v6490, %v6482
    %v6691 = vpack.c.b16 %v6499, %v6491
    %v6692 = vpack.c.b16 %v6500, %v6492
    %v6693 = vpack.c.b16 %v6501, %v6493
    %v6694 = vpack.c.b16 %v6502, %v6494
    %v6695 = vpack.c.b16 %v6503, %v6495
    %v6696 = vpack.c.b16 %v6504, %v6496
    %v6697 = vpack.c.b16 %v6505, %v6497
    %v6698 = vpack.c.b16 %v6506, %v6498
    %v6699 = vpack.c.b16 %v6515, %v6507
    %v6700 = vpack.c.b16 %v6516, %v6508
    %v6701 = vpack.c.b16 %v6517, %v6509
    %v6702 = vpack.c.b16 %v6518, %v6510
    %v6703 = vpack.c.b16 %v6519, %v6511
    %v6704 = vpack.c.b16 %v6520, %v6512
    %v6705 = vpack.c.b16 %v6521, %v6513
    %v6706 = vpack.c.b16 %v6522, %v6514
    %v6707 = vpack.c.b16 %v6531, %v6523
    %v6708 = vpack.c.b16 %v6532, %v6524
    %v6709 = vpack.c.b16 %v6533, %v6525
    %v6710 = vpack.c.b16 %v6534, %v6526
    %v6711 = vpack.c.b16 %v6535, %v6527
    %v6712 = vpack.c.b16 %v6536, %v6528
    %v6713 = vpack.c.b16 %v6537, %v6529
    %v6714 = vpack.c.b16 %v6538, %v6530
    %v6715 = vpack.c.b16 %v6547, %v6539
    %v6716 = vpack.c.b16 %v6548, %v6540
    %v6717 = vpack.c.b16 %v6549, %v6541
    %v6718 = vpack.c.b16 %v6550, %v6542
    %v6719 = vpack.c.b16 %v6551, %v6543
    %v6720 = vpack.c.b16 %v6552, %v6544
    %v6721 = vpack.c.b16 %v6553, %v6545
    %v6722 = vpack.c.b16 %v6554, %v6546
    %v6723 = vpack.c.b16 %v6563, %v6555
    %v6724 = vpack.c.b16 %v6564, %v6556
    %v6725 = vpack.c.b16 %v6565, %v6557
    %v6726 = vpack.c.b16 %v6566, %v6558
    %v6727 = vpack.c.b16 %v6567, %v6559
    %v6728 = vpack.c.b16 %v6568, %v6560
    %v6729 = vpack.c.b16 %v6569, %v6561
    %v6730 = vpack.c.b16 %v6570, %v6562
    %v6731 = vpack.c.b16 %v6579, %v6571
    %v6732 = vpack.c.b16 %v6580, %v6572
    %v6733 = vpack.c.b16 %v6581, %v6573
    %v6734 = vpack.c.b16 %v6582, %v6574
    %v6735 = vpack.c.b16 %v6583, %v6575
    %v6736 = vpack.c.b16 %v6584, %v6576
    %v6737 = vpack.c.b16 %v6585, %v6577
    %v6738 = vpack.c.b16 %v6586, %v6578
    %v6739 = vpack.c.b16 %v6595, %v6587
    %v6740 = vpack.c.b16 %v6596, %v6588
    %v6741 = vpack.c.b16 %v6597, %v6589
    %v6742 = vpack.c.b16 %v6598, %v6590
    %v6743 = vpack.c.b16 %v6599, %v6591
    %v6744 = vpack.c.b16 %v6600, %v6592
    %v6745 = vpack.c.b16 %v6601, %v6593
    %v6746 = vpack.c.b16 %v6602, %v6594
    %v6747 = vpack.c.b16 %v6611, %v6603
    %v6748 = vpack.c.b16 %v6612, %v6604
    %v6749 = vpack.c.b16 %v6613, %v6605
    %v6750 = vpack.c.b16 %v6614, %v6606
    %v6751 = vpack.c.b16 %v6615, %v6607
    %v6752 = vpack.c.b16 %v6616, %v6608
    %v6753 = vpack.c.b16 %v6617, %v6609
    %v6754 = vpack.c.b16 %v6618, %v6610
    %v6755 = vpack.c.b16 %v6627, %v6619
    %v6756 = vpack.c.b16 %v6628, %v6620
    %v6757 = vpack.c.b16 %v6629, %v6621
    %v6758 = vpack.c.b16 %v6630, %v6622
    %v6759 = vpack.c.b16 %v6631, %v6623
    %v6760 = vpack.c.b16 %v6632, %v6624
    %v6761 = vpack.c.b16 %v6633, %v6625
    %v6762 = vpack.c.b16 %v6634, %v6626
    %6891 = vmatprep.subr.bf16.mxu0 %v6692
    %6892 = vmatpush1.bf16.msra.mxu0 %v6691
    %6893 = vmatprep.subr.bf16.mxu0 %v6684
    %6894 = vmatpush1.bf16.msra.mxu0 %v6683
    %6895 = vmatprep.subr.bf16.mxu0 %v6676
    %6896 = vmatpush1.bf16.msra.mxu0 %v6675
    %6897 = vmatprep.subr.bf16.mxu0 %v6668
    %6898 = vmatpush1.bf16.msra.mxu0 %v6667
    %6899 = vmatprep.subr.bf16.mxu0 %v6660
    %6900 = vmatpush1.bf16.msra.mxu0 %v6659
    %6901 = vmatprep.subr.bf16.mxu0 %v6652
    %6902 = vmatpush1.bf16.msra.mxu0 %v6651
    %6903 = vmatprep.subr.bf16.mxu0 %v6644
    %6904 = vmatpush1.bf16.msra.mxu0 %v6643
    %6905 = vmatprep.subr.bf16.mxu0 %v6636
    %6906 = vmatpush1.bf16.msra.mxu0 %v6635
    %6907 = vmatprep.subr.bf16.mxu0 %v6756
    %6908 = vmatpush2.bf16.msra.mxu0 %v6755
    %6909 = vmatprep.subr.bf16.mxu0 %v6748
    %6910 = vmatpush2.bf16.msra.mxu0 %v6747
    %6911 = vmatprep.subr.bf16.mxu0 %v6740
    %6912 = vmatpush2.bf16.msra.mxu0 %v6739
    %6913 = vmatprep.subr.bf16.mxu0 %v6732
    %6914 = vmatpush2.bf16.msra.mxu0 %v6731
    %6915 = vmatprep.subr.bf16.mxu0 %v6724
    %6916 = vmatpush2.bf16.msra.mxu0 %v6723
    %6917 = vmatprep.subr.bf16.mxu0 %v6716
    %6918 = vmatpush2.bf16.msra.mxu0 %v6715
    %6919 = vmatprep.subr.bf16.mxu0 %v6708
    %6920 = vmatpush2.bf16.msra.mxu0 %v6707
    %6921 = vmatprep.subr.bf16.mxu0 %v6700
    %6922 = vmatpush2.bf16.msra.mxu0 %v6699
    %6923 = vmatprep.mubr.bf16.mxu0 %v6236
    %6924 = vmatmul.mubr.bf16.gmra.mxu0 %v6235
    %v6925 = vpop.f32.mrf.mxu0
    %v6926 = vadd.f32 %v6174, %v6925
    %v6927 = vpop.f32.mrf.mxu0
    %v6928 = vadd.f32 %v6178, %v6927
    %v6929 = vpop.f32.mrf.mxu0
    %v6930 = vadd.f32 %v6174, %v6929
    %v6931 = vpop.f32.mrf.mxu0
    %v6932 = vadd.f32 %v6178, %v6931
    %6933 = vmatprep.mubr.bf16.mxu0 %v6238
    %6934 = vmatmul.mubr.bf16.gmra.mxu0 %v6237
    %v6935 = vpop.f32.mrf.mxu0
    %v6936 = vadd.f32 %v6174, %v6935
    %v6937 = vpop.f32.mrf.mxu0
    %v6938 = vadd.f32 %v6178, %v6937
    %v6939 = vpop.f32.mrf.mxu0
    %v6940 = vadd.f32 %v6174, %v6939
    %v6941 = vpop.f32.mrf.mxu0
    %v6942 = vadd.f32 %v6178, %v6941
    %6943 = vmatprep.mubr.bf16.mxu0 %v6240
    %6944 = vmatmul.mubr.bf16.gmra.mxu0 %v6239
    %v6945 = vpop.f32.mrf.mxu0
    %v6946 = vadd.f32 %v6174, %v6945
    %v6947 = vpop.f32.mrf.mxu0
    %v6948 = vadd.f32 %v6178, %v6947
    %v6949 = vpop.f32.mrf.mxu0
    %v6950 = vadd.f32 %v6174, %v6949
    %v6951 = vpop.f32.mrf.mxu0
    %v6952 = vadd.f32 %v6178, %v6951
    %6953 = vmatprep.mubr.bf16.mxu0 %v6242
    %6954 = vmatmul.mubr.bf16.gmra.mxu0 %v6241
    %v6955 = vpop.f32.mrf.mxu0
    %v6956 = vadd.f32 %v6174, %v6955
    %v6957 = vpop.f32.mrf.mxu0
    %v6958 = vadd.f32 %v6178, %v6957
    %v6959 = vpop.f32.mrf.mxu0
    %v6960 = vadd.f32 %v6174, %v6959
    %v6961 = vpop.f32.mrf.mxu0
    %v6962 = vadd.f32 %v6178, %v6961
    %6963 = vdwg.mxu0
    %6964 = vmatprep.subr.bf16.mxu0 %v6694
    %6965 = vmatpush1.bf16.msra.mxu0 %v6693
    %6966 = vmatprep.subr.bf16.mxu0 %v6686
    %6967 = vmatpush1.bf16.msra.mxu0 %v6685
    %6968 = vmatprep.subr.bf16.mxu0 %v6678
    %6969 = vmatpush1.bf16.msra.mxu0 %v6677
    %6970 = vmatprep.subr.bf16.mxu0 %v6670
    %6971 = vmatpush1.bf16.msra.mxu0 %v6669
    %6972 = vmatprep.subr.bf16.mxu0 %v6662
    %6973 = vmatpush1.bf16.msra.mxu0 %v6661
    %6974 = vmatprep.subr.bf16.mxu0 %v6654
    %6975 = vmatpush1.bf16.msra.mxu0 %v6653
    %6976 = vmatprep.subr.bf16.mxu0 %v6646
    %6977 = vmatpush1.bf16.msra.mxu0 %v6645
    %6978 = vmatprep.subr.bf16.mxu0 %v6638
    %6979 = vmatpush1.bf16.msra.mxu0 %v6637
    %6980 = vmatprep.subr.bf16.mxu0 %v6758
    %6981 = vmatpush2.bf16.msra.mxu0 %v6757
    %6982 = vmatprep.subr.bf16.mxu0 %v6750
    %6983 = vmatpush2.bf16.msra.mxu0 %v6749
    %6984 = vmatprep.subr.bf16.mxu0 %v6742
    %6985 = vmatpush2.bf16.msra.mxu0 %v6741
    %6986 = vmatprep.subr.bf16.mxu0 %v6734
    %6987 = vmatpush2.bf16.msra.mxu0 %v6733
    %6988 = vmatprep.subr.bf16.mxu0 %v6726
    %6989 = vmatpush2.bf16.msra.mxu0 %v6725
    %6990 = vmatprep.subr.bf16.mxu0 %v6718
    %6991 = vmatpush2.bf16.msra.mxu0 %v6717
    %6992 = vmatprep.subr.bf16.mxu0 %v6710
    %6993 = vmatpush2.bf16.msra.mxu0 %v6709
    %6994 = vmatprep.subr.bf16.mxu0 %v6702
    %6995 = vmatpush2.bf16.msra.mxu0 %v6701
    %6996 = vmatprep.mubr.bf16.mxu0 %v6236
    %6997 = vmatmul.mubr.bf16.gmra.mxu0 %v6235
    %v6998 = vpop.f32.mrf.mxu0
    %v6999 = vadd.f32 %v6182, %v6998
    %v7000 = vpop.f32.mrf.mxu0
    %v7001 = vadd.f32 %v6186, %v7000
    %v7002 = vpop.f32.mrf.mxu0
    %v7003 = vadd.f32 %v6182, %v7002
    %v7004 = vpop.f32.mrf.mxu0
    %v7005 = vadd.f32 %v6186, %v7004
    %7006 = vmatprep.mubr.bf16.mxu0 %v6238
    %7007 = vmatmul.mubr.bf16.gmra.mxu0 %v6237
    %v7008 = vpop.f32.mrf.mxu0
    %v7009 = vadd.f32 %v6182, %v7008
    %v7010 = vpop.f32.mrf.mxu0
    %v7011 = vadd.f32 %v6186, %v7010
    %v7012 = vpop.f32.mrf.mxu0
    %v7013 = vadd.f32 %v6182, %v7012
    %v7014 = vpop.f32.mrf.mxu0
    %v7015 = vadd.f32 %v6186, %v7014
    %7016 = vmatprep.mubr.bf16.mxu0 %v6240
    %7017 = vmatmul.mubr.bf16.gmra.mxu0 %v6239
    %v7018 = vpop.f32.mrf.mxu0
    %v7019 = vadd.f32 %v6182, %v7018
    %v7020 = vpop.f32.mrf.mxu0
    %v7021 = vadd.f32 %v6186, %v7020
    %v7022 = vpop.f32.mrf.mxu0
    %v7023 = vadd.f32 %v6182, %v7022
    %v7024 = vpop.f32.mrf.mxu0
    %v7025 = vadd.f32 %v6186, %v7024
    %7026 = vmatprep.mubr.bf16.mxu0 %v6242
    %7027 = vmatmul.mubr.bf16.gmra.mxu0 %v6241
    %v7028 = vpop.f32.mrf.mxu0
    %v7029 = vadd.f32 %v6182, %v7028
    %v7030 = vpop.f32.mrf.mxu0
    %v7031 = vadd.f32 %v6186, %v7030
    %v7032 = vpop.f32.mrf.mxu0
    %v7033 = vadd.f32 %v6182, %v7032
    %v7034 = vpop.f32.mrf.mxu0
    %v7035 = vadd.f32 %v6186, %v7034
    %7036 = vdwg.mxu0
    %7037 = vmatprep.subr.bf16.mxu0 %v6696
    %7038 = vmatpush1.bf16.msra.mxu0 %v6695
    %7039 = vmatprep.subr.bf16.mxu0 %v6688
    %7040 = vmatpush1.bf16.msra.mxu0 %v6687
    %7041 = vmatprep.subr.bf16.mxu0 %v6680
    %7042 = vmatpush1.bf16.msra.mxu0 %v6679
    %7043 = vmatprep.subr.bf16.mxu0 %v6672
    %7044 = vmatpush1.bf16.msra.mxu0 %v6671
    %7045 = vmatprep.subr.bf16.mxu0 %v6664
    %7046 = vmatpush1.bf16.msra.mxu0 %v6663
    %7047 = vmatprep.subr.bf16.mxu0 %v6656
    %7048 = vmatpush1.bf16.msra.mxu0 %v6655
    %7049 = vmatprep.subr.bf16.mxu0 %v6648
    %7050 = vmatpush1.bf16.msra.mxu0 %v6647
    %7051 = vmatprep.subr.bf16.mxu0 %v6640
    %7052 = vmatpush1.bf16.msra.mxu0 %v6639
    %7053 = vmatprep.subr.bf16.mxu0 %v6760
    %7054 = vmatpush2.bf16.msra.mxu0 %v6759
    %7055 = vmatprep.subr.bf16.mxu0 %v6752
    %7056 = vmatpush2.bf16.msra.mxu0 %v6751
    %7057 = vmatprep.subr.bf16.mxu0 %v6744
    %7058 = vmatpush2.bf16.msra.mxu0 %v6743
    %7059 = vmatprep.subr.bf16.mxu0 %v6736
    %7060 = vmatpush2.bf16.msra.mxu0 %v6735
    %7061 = vmatprep.subr.bf16.mxu0 %v6728
    %7062 = vmatpush2.bf16.msra.mxu0 %v6727
    %7063 = vmatprep.subr.bf16.mxu0 %v6720
    %7064 = vmatpush2.bf16.msra.mxu0 %v6719
    %7065 = vmatprep.subr.bf16.mxu0 %v6712
    %7066 = vmatpush2.bf16.msra.mxu0 %v6711
    %7067 = vmatprep.subr.bf16.mxu0 %v6704
    %7068 = vmatpush2.bf16.msra.mxu0 %v6703
    %7069 = vmatprep.mubr.bf16.mxu0 %v6236
    %7070 = vmatmul.mubr.bf16.gmra.mxu0 %v6235
    %v7071 = vpop.f32.mrf.mxu0
    %v7072 = vadd.f32 %v6190, %v7071
    %v7073 = vpop.f32.mrf.mxu0
    %v7074 = vadd.f32 %v6194, %v7073
    %v7075 = vpop.f32.mrf.mxu0
    %v7076 = vadd.f32 %v6190, %v7075
    %v7077 = vpop.f32.mrf.mxu0
    %v7078 = vadd.f32 %v6194, %v7077
    %7079 = vmatprep.mubr.bf16.mxu0 %v6238
    %7080 = vmatmul.mubr.bf16.gmra.mxu0 %v6237
    %v7081 = vpop.f32.mrf.mxu0
    %v7082 = vadd.f32 %v6190, %v7081
    %v7083 = vpop.f32.mrf.mxu0
    %v7084 = vadd.f32 %v6194, %v7083
    %v7085 = vpop.f32.mrf.mxu0
    %v7086 = vadd.f32 %v6190, %v7085
    %v7087 = vpop.f32.mrf.mxu0
    %v7088 = vadd.f32 %v6194, %v7087
    %7089 = vmatprep.mubr.bf16.mxu0 %v6240
    %7090 = vmatmul.mubr.bf16.gmra.mxu0 %v6239
    %v7091 = vpop.f32.mrf.mxu0
    %v7092 = vadd.f32 %v6190, %v7091
    %v7093 = vpop.f32.mrf.mxu0
    %v7094 = vadd.f32 %v6194, %v7093
    %v7095 = vpop.f32.mrf.mxu0
    %v7096 = vadd.f32 %v6190, %v7095
    %v7097 = vpop.f32.mrf.mxu0
    %v7098 = vadd.f32 %v6194, %v7097
    %7099 = vmatprep.mubr.bf16.mxu0 %v6242
    %7100 = vmatmul.mubr.bf16.gmra.mxu0 %v6241
    %v7101 = vpop.f32.mrf.mxu0
    %v7102 = vadd.f32 %v6190, %v7101
    %v7103 = vpop.f32.mrf.mxu0
    %v7104 = vadd.f32 %v6194, %v7103
    %v7105 = vpop.f32.mrf.mxu0
    %v7106 = vadd.f32 %v6190, %v7105
    %v7107 = vpop.f32.mrf.mxu0
    %v7108 = vadd.f32 %v6194, %v7107
    %7109 = vdwg.mxu0
    %7110 = vmatprep.subr.bf16.mxu0 %v6698
    %7111 = vmatpush1.bf16.msra.mxu0 %v6697
    %7112 = vmatprep.subr.bf16.mxu0 %v6690
    %7113 = vmatpush1.bf16.msra.mxu0 %v6689
    %7114 = vmatprep.subr.bf16.mxu0 %v6682
    %7115 = vmatpush1.bf16.msra.mxu0 %v6681
    %7116 = vmatprep.subr.bf16.mxu0 %v6674
    %7117 = vmatpush1.bf16.msra.mxu0 %v6673
    %7118 = vmatprep.subr.bf16.mxu0 %v6666
    %7119 = vmatpush1.bf16.msra.mxu0 %v6665
    %7120 = vmatprep.subr.bf16.mxu0 %v6658
    %7121 = vmatpush1.bf16.msra.mxu0 %v6657
    %7122 = vmatprep.subr.bf16.mxu0 %v6650
    %7123 = vmatpush1.bf16.msra.mxu0 %v6649
    %7124 = vmatprep.subr.bf16.mxu0 %v6642
    %7125 = vmatpush1.bf16.msra.mxu0 %v6641
    %7126 = vmatprep.subr.bf16.mxu0 %v6762
    %7127 = vmatpush2.bf16.msra.mxu0 %v6761
    %7128 = vmatprep.subr.bf16.mxu0 %v6754
    %7129 = vmatpush2.bf16.msra.mxu0 %v6753
    %7130 = vmatprep.subr.bf16.mxu0 %v6746
    %7131 = vmatpush2.bf16.msra.mxu0 %v6745
    %7132 = vmatprep.subr.bf16.mxu0 %v6738
    %7133 = vmatpush2.bf16.msra.mxu0 %v6737
    %7134 = vmatprep.subr.bf16.mxu0 %v6730
    %7135 = vmatpush2.bf16.msra.mxu0 %v6729
    %7136 = vmatprep.subr.bf16.mxu0 %v6722
    %7137 = vmatpush2.bf16.msra.mxu0 %v6721
    %7138 = vmatprep.subr.bf16.mxu0 %v6714
    %7139 = vmatpush2.bf16.msra.mxu0 %v6713
    %7140 = vmatprep.subr.bf16.mxu0 %v6706
    %7141 = vmatpush2.bf16.msra.mxu0 %v6705
    %7142 = vmatprep.mubr.bf16.mxu0 %v6236
    %7143 = vmatmul.mubr.bf16.gmra.mxu0 %v6235
    %v7144 = vpop.f32.mrf.mxu0
    %v7145 = vadd.f32 %v6198, %v7144
    %v7146 = vpop.f32.mrf.mxu0
    %v7147 = vadd.f32 %v6202, %v7146
    %v7148 = vpop.f32.mrf.mxu0
    %v7149 = vadd.f32 %v6198, %v7148
    %v7150 = vpop.f32.mrf.mxu0
    %v7151 = vadd.f32 %v6202, %v7150
    %7152 = vmatprep.mubr.bf16.mxu0 %v6238
    %7153 = vmatmul.mubr.bf16.gmra.mxu0 %v6237
    %v7154 = vpop.f32.mrf.mxu0
    %v7155 = vadd.f32 %v6198, %v7154
    %v7156 = vpop.f32.mrf.mxu0
    %v7157 = vadd.f32 %v6202, %v7156
    %v7158 = vpop.f32.mrf.mxu0
    %v7159 = vadd.f32 %v6198, %v7158
    %v7160 = vpop.f32.mrf.mxu0
    %v7161 = vadd.f32 %v6202, %v7160
    %7162 = vmatprep.mubr.bf16.mxu0 %v6240
    %7163 = vmatmul.mubr.bf16.gmra.mxu0 %v6239
    %v7164 = vpop.f32.mrf.mxu0
    %v7165 = vadd.f32 %v6198, %v7164
    %v7166 = vpop.f32.mrf.mxu0
    %v7167 = vadd.f32 %v6202, %v7166
    %v7168 = vpop.f32.mrf.mxu0
    %v7169 = vadd.f32 %v6198, %v7168
    %v7170 = vpop.f32.mrf.mxu0
    %v7171 = vadd.f32 %v6202, %v7170
    %7172 = vmatprep.mubr.bf16.mxu0 %v6242
    %7173 = vmatmul.mubr.bf16.gmra.mxu0 %v6241
    %v7174 = vpop.f32.mrf.mxu0
    %v7175 = vadd.f32 %v6198, %v7174
    %v7176 = vpop.f32.mrf.mxu0
    %v7177 = vadd.f32 %v6202, %v7176
    %v7178 = vpop.f32.mrf.mxu0
    %v7179 = vadd.f32 %v6198, %v7178
    %v7180 = vpop.f32.mrf.mxu0
    %v7181 = vadd.f32 %v6202, %v7180
    %7182 = vdwg.mxu0
    %v7183 = vpack.c.bf16 %v6930, %v6926
    %v7184 = vpack.c.bf16 %v6932, %v6928
    %v7185 = vpack.c.bf16 %v7003, %v6999
    %v7186 = vpack.c.bf16 %v7005, %v7001
    %v7187 = vpack.c.bf16 %v7076, %v7072
    %v7188 = vpack.c.bf16 %v7078, %v7074
    %v7189 = vpack.c.bf16 %v7149, %v7145
    %v7190 = vpack.c.bf16 %v7151, %v7147
    %v7191 = vpack.c.bf16 %v6940, %v6936
    %v7192 = vpack.c.bf16 %v6942, %v6938
    %v7193 = vpack.c.bf16 %v7013, %v7009
    %v7194 = vpack.c.bf16 %v7015, %v7011
    %v7195 = vpack.c.bf16 %v7086, %v7082
    %v7196 = vpack.c.bf16 %v7088, %v7084
    %v7197 = vpack.c.bf16 %v7159, %v7155
    %v7198 = vpack.c.bf16 %v7161, %v7157
    %v7199 = vpack.c.bf16 %v6950, %v6946
    %v7200 = vpack.c.bf16 %v6952, %v6948
    %v7201 = vpack.c.bf16 %v7023, %v7019
    %v7202 = vpack.c.bf16 %v7025, %v7021
    %v7203 = vpack.c.bf16 %v7096, %v7092
    %v7204 = vpack.c.bf16 %v7098, %v7094
    %v7205 = vpack.c.bf16 %v7169, %v7165
    %v7206 = vpack.c.bf16 %v7171, %v7167
    %v7207 = vpack.c.bf16 %v6960, %v6956
    %v7208 = vpack.c.bf16 %v6962, %v6958
    %v7209 = vpack.c.bf16 %v7033, %v7029
    %v7210 = vpack.c.bf16 %v7035, %v7031
    %v7211 = vpack.c.bf16 %v7106, %v7102
    %v7212 = vpack.c.bf16 %v7108, %v7104
    %v7213 = vpack.c.bf16 %v7179, %v7175
    %v7214 = vpack.c.bf16 %v7181, %v7177
    %v7247 = vunpack.c.l.b16 %v7183
    %v7248 = vunpack.c.l.b16 %v7184
    %v7249 = vunpack.c.l.b16 %v7185
    %v7250 = vunpack.c.l.b16 %v7186
    %v7251 = vunpack.c.l.b16 %v7187
    %v7252 = vunpack.c.l.b16 %v7188
    %v7253 = vunpack.c.l.b16 %v7189
    %v7254 = vunpack.c.l.b16 %v7190
    %v7255 = vunpack.c.h.b16 %v7183
    %v7256 = vunpack.c.h.b16 %v7184
    %v7257 = vunpack.c.h.b16 %v7185
    %v7258 = vunpack.c.h.b16 %v7186
    %v7259 = vunpack.c.h.b16 %v7187
    %v7260 = vunpack.c.h.b16 %v7188
    %v7261 = vunpack.c.h.b16 %v7189
    %v7262 = vunpack.c.h.b16 %v7190
    %v7263 = vunpack.c.l.b16 %v7191
    %v7264 = vunpack.c.l.b16 %v7192
    %v7265 = vunpack.c.l.b16 %v7193
    %v7266 = vunpack.c.l.b16 %v7194
    %v7267 = vunpack.c.l.b16 %v7195
    %v7268 = vunpack.c.l.b16 %v7196
    %v7269 = vunpack.c.l.b16 %v7197
    %v7270 = vunpack.c.l.b16 %v7198
    %v7271 = vunpack.c.h.b16 %v7191
    %v7272 = vunpack.c.h.b16 %v7192
    %v7273 = vunpack.c.h.b16 %v7193
    %v7274 = vunpack.c.h.b16 %v7194
    %v7275 = vunpack.c.h.b16 %v7195
    %v7276 = vunpack.c.h.b16 %v7196
    %v7277 = vunpack.c.h.b16 %v7197
    %v7278 = vunpack.c.h.b16 %v7198
    %v7279 = vunpack.c.l.b16 %v7199
    %v7280 = vunpack.c.l.b16 %v7200
    %v7281 = vunpack.c.l.b16 %v7201
    %v7282 = vunpack.c.l.b16 %v7202
    %v7283 = vunpack.c.l.b16 %v7203
    %v7284 = vunpack.c.l.b16 %v7204
    %v7285 = vunpack.c.l.b16 %v7205
    %v7286 = vunpack.c.l.b16 %v7206
    %v7287 = vunpack.c.h.b16 %v7199
    %v7288 = vunpack.c.h.b16 %v7200
    %v7289 = vunpack.c.h.b16 %v7201
    %v7290 = vunpack.c.h.b16 %v7202
    %v7291 = vunpack.c.h.b16 %v7203
    %v7292 = vunpack.c.h.b16 %v7204
    %v7293 = vunpack.c.h.b16 %v7205
    %v7294 = vunpack.c.h.b16 %v7206
    %v7295 = vunpack.c.l.b16 %v7207
    %v7296 = vunpack.c.l.b16 %v7208
    %v7297 = vunpack.c.l.b16 %v7209
    %v7298 = vunpack.c.l.b16 %v7210
    %v7299 = vunpack.c.l.b16 %v7211
    %v7300 = vunpack.c.l.b16 %v7212
    %v7301 = vunpack.c.l.b16 %v7213
    %v7302 = vunpack.c.l.b16 %v7214
    %v7303 = vunpack.c.h.b16 %v7207
    %v7304 = vunpack.c.h.b16 %v7208
    %v7305 = vunpack.c.h.b16 %v7209
    %v7306 = vunpack.c.h.b16 %v7210
    %v7307 = vunpack.c.h.b16 %v7211
    %v7308 = vunpack.c.h.b16 %v7212
    %v7309 = vunpack.c.h.b16 %v7213
    %v7310 = vunpack.c.h.b16 %v7214
    %v7311 = vpack.c.b16 %v7248, %v7247
    %v7312 = vpack.c.b16 %v7250, %v7249
    %v7313 = vpack.c.b16 %v7252, %v7251
    %v7314 = vpack.c.b16 %v7254, %v7253
    %v7315 = vpack.c.b16 %v7256, %v7255
    %v7316 = vpack.c.b16 %v7258, %v7257
    %v7317 = vpack.c.b16 %v7260, %v7259
    %v7318 = vpack.c.b16 %v7262, %v7261
    %v7319 = vpack.c.b16 %v7264, %v7263
    %v7320 = vpack.c.b16 %v7266, %v7265
    %v7321 = vpack.c.b16 %v7268, %v7267
    %v7322 = vpack.c.b16 %v7270, %v7269
    %v7323 = vpack.c.b16 %v7272, %v7271
    %v7324 = vpack.c.b16 %v7274, %v7273
    %v7325 = vpack.c.b16 %v7276, %v7275
    %v7326 = vpack.c.b16 %v7278, %v7277
    %v7327 = vpack.c.b16 %v7280, %v7279
    %v7328 = vpack.c.b16 %v7282, %v7281
    %v7329 = vpack.c.b16 %v7284, %v7283
    %v7330 = vpack.c.b16 %v7286, %v7285
    %v7331 = vpack.c.b16 %v7288, %v7287
    %v7332 = vpack.c.b16 %v7290, %v7289
    %v7333 = vpack.c.b16 %v7292, %v7291
    %v7334 = vpack.c.b16 %v7294, %v7293
    %v7335 = vpack.c.b16 %v7296, %v7295
    %v7336 = vpack.c.b16 %v7298, %v7297
    %v7337 = vpack.c.b16 %v7300, %v7299
    %v7338 = vpack.c.b16 %v7302, %v7301
    %v7339 = vpack.c.b16 %v7304, %v7303
    %v7340 = vpack.c.b16 %v7306, %v7305
    %v7341 = vpack.c.b16 %v7308, %v7307
    %v7342 = vpack.c.b16 %v7310, %v7309
    %7375 = vst [vmem:[#allocation2] sm:$0xff] %v7311
    %7376 = vst [vmem:[#allocation2 + $0x8] sm:$0xff] %v7312
    %7377 = vst [vmem:[#allocation2 + $0x10] sm:$0xff] %v7313
    %7378 = vst [vmem:[#allocation2 + $0x18] sm:$0xff] %v7314
    %7379 = vst [vmem:[#allocation2 + $0x20] sm:$0xff] %v7315
    %7380 = vst [vmem:[#allocation2 + $0x28] sm:$0xff] %v7316
    %7381 = vst [vmem:[#allocation2 + $0x30] sm:$0xff] %v7317
    %7382 = vst [vmem:[#allocation2 + $0x38] sm:$0xff] %v7318
    %7383 = vst [vmem:[#allocation2 + $0x40] sm:$0xff] %v7319
    %7384 = vst [vmem:[#allocation2 + $0x48] sm:$0xff] %v7320
    %7385 = vst [vmem:[#allocation2 + $0x50] sm:$0xff] %v7321
    %7386 = vst [vmem:[#allocation2 + $0x58] sm:$0xff] %v7322
    %7387 = vst [vmem:[#allocation2 + $0x60] sm:$0xff] %v7323
    %7388 = vst [vmem:[#allocation2 + $0x68] sm:$0xff] %v7324
    %7389 = vst [vmem:[#allocation2 + $0x70] sm:$0xff] %v7325
    %7390 = vst [vmem:[#allocation2 + $0x78] sm:$0xff] %v7326
    %7391 = vst [vmem:[#allocation2 + $0x80] sm:$0xff] %v7327
    %7392 = vst [vmem:[#allocation2 + $0x88] sm:$0xff] %v7328
    %7393 = vst [vmem:[#allocation2 + $0x90] sm:$0xff] %v7329
    %7394 = vst [vmem:[#allocation2 + $0x98] sm:$0xff] %v7330
    %7395 = vst [vmem:[#allocation2 + $0xa0] sm:$0xff] %v7331
    %7396 = vst [vmem:[#allocation2 + $0xa8] sm:$0xff] %v7332
    %7397 = vst [vmem:[#allocation2 + $0xb0] sm:$0xff] %v7333
    %7398 = vst [vmem:[#allocation2 + $0xb8] sm:$0xff] %v7334
    %7399 = vst [vmem:[#allocation2 + $0xc0] sm:$0xff] %v7335
    %7400 = vst [vmem:[#allocation2 + $0xc8] sm:$0xff] %v7336
    %7401 = vst [vmem:[#allocation2 + $0xd0] sm:$0xff] %v7337
    %7402 = vst [vmem:[#allocation2 + $0xd8] sm:$0xff] %v7338
    %7403 = vst [vmem:[#allocation2 + $0xe0] sm:$0xff] %v7339
    %7404 = vst [vmem:[#allocation2 + $0xe8] sm:$0xff] %v7340
    %7405 = vst [vmem:[#allocation2 + $0xf0] sm:$0xff] %v7341
    %7406 = vst [vmem:[#allocation2 + $0xf8] sm:$0xff] %v7342
    %v7407 = vld [vmem:[#allocation11] sm:$0xff]
    %v7408 = vld [vmem:[#allocation11 + $0x8] sm:$0xff]
    %v7409 = vld [vmem:[#allocation11 + $0x10] sm:$0xff]
    %v7410 = vld [vmem:[#allocation11 + $0x18] sm:$0xff]
    %v7411 = vld [vmem:[#allocation11 + $0x20] sm:$0xff]
    %v7412 = vld [vmem:[#allocation11 + $0x28] sm:$0xff]
    %v7413 = vld [vmem:[#allocation11 + $0x30] sm:$0xff]
    %v7414 = vld [vmem:[#allocation11 + $0x38] sm:$0xff]
    %v7415 = vld [vmem:[#allocation11 + $0x40] sm:$0xff]
    %v7416 = vld [vmem:[#allocation11 + $0x48] sm:$0xff]
    %v7417 = vld [vmem:[#allocation11 + $0x50] sm:$0xff]
    %v7418 = vld [vmem:[#allocation11 + $0x58] sm:$0xff]
    %v7419 = vld [vmem:[#allocation11 + $0x60] sm:$0xff]
    %v7420 = vld [vmem:[#allocation11 + $0x68] sm:$0xff]
    %v7421 = vld [vmem:[#allocation11 + $0x70] sm:$0xff]
    %v7422 = vld [vmem:[#allocation11 + $0x78] sm:$0xff]
    %v7423 = vld [vmem:[#allocation11 + $0x80] sm:$0xff]
    %v7424 = vld [vmem:[#allocation11 + $0x88] sm:$0xff]
    %v7425 = vld [vmem:[#allocation11 + $0x90] sm:$0xff]
    %v7426 = vld [vmem:[#allocation11 + $0x98] sm:$0xff]
    %v7427 = vld [vmem:[#allocation11 + $0xa0] sm:$0xff]
    %v7428 = vld [vmem:[#allocation11 + $0xa8] sm:$0xff]
    %v7429 = vld [vmem:[#allocation11 + $0xb0] sm:$0xff]
    %v7430 = vld [vmem:[#allocation11 + $0xb8] sm:$0xff]
    %v7431 = vld [vmem:[#allocation11 + $0xc0] sm:$0xff]
    %v7432 = vld [vmem:[#allocation11 + $0xc8] sm:$0xff]
    %v7433 = vld [vmem:[#allocation11 + $0xd0] sm:$0xff]
    %v7434 = vld [vmem:[#allocation11 + $0xd8] sm:$0xff]
    %v7435 = vld [vmem:[#allocation11 + $0xe0] sm:$0xff]
    %v7436 = vld [vmem:[#allocation11 + $0xe8] sm:$0xff]
    %v7437 = vld [vmem:[#allocation11 + $0xf0] sm:$0xff]
    %v7438 = vld [vmem:[#allocation11 + $0xf8] sm:$0xff]
    %v7439 = vld [vmem:[#allocation12] sm:$0xff]
    %v7440 = vld [vmem:[#allocation12 + $0x8] sm:$0xff]
    %v7441 = vld [vmem:[#allocation12 + $0x10] sm:$0xff]
    %v7442 = vld [vmem:[#allocation12 + $0x18] sm:$0xff]
    %v7443 = vld [vmem:[#allocation12 + $0x20] sm:$0xff]
    %v7444 = vld [vmem:[#allocation12 + $0x28] sm:$0xff]
    %v7445 = vld [vmem:[#allocation12 + $0x30] sm:$0xff]
    %v7446 = vld [vmem:[#allocation12 + $0x38] sm:$0xff]
    %v7447 = vld [vmem:[#allocation12 + $0x40] sm:$0xff]
    %v7448 = vld [vmem:[#allocation12 + $0x48] sm:$0xff]
    %v7449 = vld [vmem:[#allocation12 + $0x50] sm:$0xff]
    %v7450 = vld [vmem:[#allocation12 + $0x58] sm:$0xff]
    %v7451 = vld [vmem:[#allocation12 + $0x60] sm:$0xff]
    %v7452 = vld [vmem:[#allocation12 + $0x68] sm:$0xff]
    %v7453 = vld [vmem:[#allocation12 + $0x70] sm:$0xff]
    %v7454 = vld [vmem:[#allocation12 + $0x78] sm:$0xff]
    %v7455 = vld [vmem:[#allocation12 + $0x80] sm:$0xff]
    %v7456 = vld [vmem:[#allocation12 + $0x88] sm:$0xff]
    %v7457 = vld [vmem:[#allocation12 + $0x90] sm:$0xff]
    %v7458 = vld [vmem:[#allocation12 + $0x98] sm:$0xff]
    %v7459 = vld [vmem:[#allocation12 + $0xa0] sm:$0xff]
    %v7460 = vld [vmem:[#allocation12 + $0xa8] sm:$0xff]
    %v7461 = vld [vmem:[#allocation12 + $0xb0] sm:$0xff]
    %v7462 = vld [vmem:[#allocation12 + $0xb8] sm:$0xff]
    %v7463 = vld [vmem:[#allocation12 + $0xc0] sm:$0xff]
    %v7464 = vld [vmem:[#allocation12 + $0xc8] sm:$0xff]
    %v7465 = vld [vmem:[#allocation12 + $0xd0] sm:$0xff]
    %v7466 = vld [vmem:[#allocation12 + $0xd8] sm:$0xff]
    %v7467 = vld [vmem:[#allocation12 + $0xe0] sm:$0xff]
    %v7468 = vld [vmem:[#allocation12 + $0xe8] sm:$0xff]
    %v7469 = vld [vmem:[#allocation12 + $0xf0] sm:$0xff]
    %v7470 = vld [vmem:[#allocation12 + $0xf8] sm:$0xff]
    %v7471 = vld [vmem:[%s1155] sm:$0xff]
    %v7472 = vld [vmem:[%s1155 + $0x8] sm:$0xff]
    %v7473 = vunpack.c.l.bf16 %v7471
    %v7474 = vunpack.c.h.bf16 %v7471
    %v7475 = vunpack.c.l.bf16 %v7472
    %v7476 = vunpack.c.h.bf16 %v7472
    %v7509 = vunpack.c.l.b16 %v7407
    %v7510 = vunpack.c.h.b16 %v7407
    %v7511 = vunpack.c.l.b16 %v7408
    %v7512 = vunpack.c.h.b16 %v7408
    %v7513 = vunpack.c.l.b16 %v7409
    %v7514 = vunpack.c.h.b16 %v7409
    %v7515 = vunpack.c.l.b16 %v7410
    %v7516 = vunpack.c.h.b16 %v7410
    %v7517 = vunpack.c.l.b16 %v7411
    %v7518 = vunpack.c.h.b16 %v7411
    %v7519 = vunpack.c.l.b16 %v7412
    %v7520 = vunpack.c.h.b16 %v7412
    %v7521 = vunpack.c.l.b16 %v7413
    %v7522 = vunpack.c.h.b16 %v7413
    %v7523 = vunpack.c.l.b16 %v7414
    %v7524 = vunpack.c.h.b16 %v7414
    %v7525 = vunpack.c.l.b16 %v7415
    %v7526 = vunpack.c.h.b16 %v7415
    %v7527 = vunpack.c.l.b16 %v7416
    %v7528 = vunpack.c.h.b16 %v7416
    %v7529 = vunpack.c.l.b16 %v7417
    %v7530 = vunpack.c.h.b16 %v7417
    %v7531 = vunpack.c.l.b16 %v7418
    %v7532 = vunpack.c.h.b16 %v7418
    %v7533 = vunpack.c.l.b16 %v7419
    %v7534 = vunpack.c.h.b16 %v7419
    %v7535 = vunpack.c.l.b16 %v7420
    %v7536 = vunpack.c.h.b16 %v7420
    %v7537 = vunpack.c.l.b16 %v7421
    %v7538 = vunpack.c.h.b16 %v7421
    %v7539 = vunpack.c.l.b16 %v7422
    %v7540 = vunpack.c.h.b16 %v7422
    %v7541 = vunpack.c.l.b16 %v7423
    %v7542 = vunpack.c.h.b16 %v7423
    %v7543 = vunpack.c.l.b16 %v7424
    %v7544 = vunpack.c.h.b16 %v7424
    %v7545 = vunpack.c.l.b16 %v7425
    %v7546 = vunpack.c.h.b16 %v7425
    %v7547 = vunpack.c.l.b16 %v7426
    %v7548 = vunpack.c.h.b16 %v7426
    %v7549 = vunpack.c.l.b16 %v7427
    %v7550 = vunpack.c.h.b16 %v7427
    %v7551 = vunpack.c.l.b16 %v7428
    %v7552 = vunpack.c.h.b16 %v7428
    %v7553 = vunpack.c.l.b16 %v7429
    %v7554 = vunpack.c.h.b16 %v7429
    %v7555 = vunpack.c.l.b16 %v7430
    %v7556 = vunpack.c.h.b16 %v7430
    %v7557 = vunpack.c.l.b16 %v7431
    %v7558 = vunpack.c.h.b16 %v7431
    %v7559 = vunpack.c.l.b16 %v7432
    %v7560 = vunpack.c.h.b16 %v7432
    %v7561 = vunpack.c.l.b16 %v7433
    %v7562 = vunpack.c.h.b16 %v7433
    %v7563 = vunpack.c.l.b16 %v7434
    %v7564 = vunpack.c.h.b16 %v7434
    %v7565 = vunpack.c.l.b16 %v7435
    %v7566 = vunpack.c.h.b16 %v7435
    %v7567 = vunpack.c.l.b16 %v7436
    %v7568 = vunpack.c.h.b16 %v7436
    %v7569 = vunpack.c.l.b16 %v7437
    %v7570 = vunpack.c.h.b16 %v7437
    %v7571 = vunpack.c.l.b16 %v7438
    %v7572 = vunpack.c.h.b16 %v7438
    %v7573 = vpack.c.b16 %v7513, %v7509
    %v7574 = vpack.c.b16 %v7514, %v7510
    %v7575 = vpack.c.b16 %v7515, %v7511
    %v7576 = vpack.c.b16 %v7516, %v7512
    %v7577 = vpack.c.b16 %v7521, %v7517
    %v7578 = vpack.c.b16 %v7522, %v7518
    %v7579 = vpack.c.b16 %v7523, %v7519
    %v7580 = vpack.c.b16 %v7524, %v7520
    %v7581 = vpack.c.b16 %v7529, %v7525
    %v7582 = vpack.c.b16 %v7530, %v7526
    %v7583 = vpack.c.b16 %v7531, %v7527
    %v7584 = vpack.c.b16 %v7532, %v7528
    %v7585 = vpack.c.b16 %v7537, %v7533
    %v7586 = vpack.c.b16 %v7538, %v7534
    %v7587 = vpack.c.b16 %v7539, %v7535
    %v7588 = vpack.c.b16 %v7540, %v7536
    %v7589 = vpack.c.b16 %v7545, %v7541
    %v7590 = vpack.c.b16 %v7546, %v7542
    %v7591 = vpack.c.b16 %v7547, %v7543
    %v7592 = vpack.c.b16 %v7548, %v7544
    %v7593 = vpack.c.b16 %v7553, %v7549
    %v7594 = vpack.c.b16 %v7554, %v7550
    %v7595 = vpack.c.b16 %v7555, %v7551
    %v7596 = vpack.c.b16 %v7556, %v7552
    %v7597 = vpack.c.b16 %v7561, %v7557
    %v7598 = vpack.c.b16 %v7562, %v7558
    %v7599 = vpack.c.b16 %v7563, %v7559
    %v7600 = vpack.c.b16 %v7564, %v7560
    %v7601 = vpack.c.b16 %v7569, %v7565
    %v7602 = vpack.c.b16 %v7570, %v7566
    %v7603 = vpack.c.b16 %v7571, %v7567
    %v7604 = vpack.c.b16 %v7572, %v7568
    %7637 = vmatprep.subr.bf16.mxu0 %v7602
    %7638 = vmatpush1.bf16.msra.mxu0 %v7601
    %7639 = vmatprep.subr.bf16.mxu0 %v7598
    %7640 = vmatpush1.bf16.msra.mxu0 %v7597
    %7641 = vmatprep.subr.bf16.mxu0 %v7594
    %7642 = vmatpush1.bf16.msra.mxu0 %v7593
    %7643 = vmatprep.subr.bf16.mxu0 %v7590
    %7644 = vmatpush1.bf16.msra.mxu0 %v7589
    %7645 = vmatprep.subr.bf16.mxu0 %v7586
    %7646 = vmatpush1.bf16.msra.mxu0 %v7585
    %7647 = vmatprep.subr.bf16.mxu0 %v7582
    %7648 = vmatpush1.bf16.msra.mxu0 %v7581
    %7649 = vmatprep.subr.bf16.mxu0 %v7578
    %7650 = vmatpush1.bf16.msra.mxu0 %v7577
    %7651 = vmatprep.subr.bf16.mxu0 %v7574
    %7652 = vmatpush1.bf16.msra.mxu0 %v7573
    %7653 = vmatprep.subr.bf16.mxu0 0
    %7654 = vmatpush2.bf16.msra.mxu0 0
    %7655 = vmatprep.subr.bf16.mxu0 0
    %7656 = vmatpush2.bf16.msra.mxu0 0
    %7657 = vmatprep.subr.bf16.mxu0 0
    %7658 = vmatpush2.bf16.msra.mxu0 0
    %7659 = vmatprep.subr.bf16.mxu0 0
    %7660 = vmatpush2.bf16.msra.mxu0 0
    %7661 = vmatprep.subr.bf16.mxu0 0
    %7662 = vmatpush2.bf16.msra.mxu0 0
    %7663 = vmatprep.subr.bf16.mxu0 0
    %7664 = vmatpush2.bf16.msra.mxu0 0
    %7665 = vmatprep.subr.bf16.mxu0 0
    %7666 = vmatpush2.bf16.msra.mxu0 0
    %7667 = vmatprep.subr.bf16.mxu0 0
    %7668 = vmatpush2.bf16.msra.mxu0 0
    %7669 = vmatprep.mubr.bf16.mxu0 0
    %7670 = vmatmul.mubr.bf16.gmra.mxu0 0
    %v7671 = vpop.f32.mrf.mxu0
    %v7672 = vadd.f32 %v7473, %v7671
    %v7673 = vpop.f32.mrf.mxu0
    %v7674 = vadd.f32 %v7474, %v7673
    %v7675 = vpop.f32.mrf.mxu0
    %v7676 = vpop.f32.mrf.mxu0
    %7677 = vdwg.mxu0
    %7678 = vmatprep.subr.bf16.mxu0 %v7604
    %7679 = vmatpush1.bf16.msra.mxu0 %v7603
    %7680 = vmatprep.subr.bf16.mxu0 %v7600
    %7681 = vmatpush1.bf16.msra.mxu0 %v7599
    %7682 = vmatprep.subr.bf16.mxu0 %v7596
    %7683 = vmatpush1.bf16.msra.mxu0 %v7595
    %7684 = vmatprep.subr.bf16.mxu0 %v7592
    %7685 = vmatpush1.bf16.msra.mxu0 %v7591
    %7686 = vmatprep.subr.bf16.mxu0 %v7588
    %7687 = vmatpush1.bf16.msra.mxu0 %v7587
    %7688 = vmatprep.subr.bf16.mxu0 %v7584
    %7689 = vmatpush1.bf16.msra.mxu0 %v7583
    %7690 = vmatprep.subr.bf16.mxu0 %v7580
    %7691 = vmatpush1.bf16.msra.mxu0 %v7579
    %7692 = vmatprep.subr.bf16.mxu0 %v7576
    %7693 = vmatpush1.bf16.msra.mxu0 %v7575
    %7694 = vmatprep.subr.bf16.mxu0 0
    %7695 = vmatpush2.bf16.msra.mxu0 0
    %7696 = vmatprep.subr.bf16.mxu0 0
    %7697 = vmatpush2.bf16.msra.mxu0 0
    %7698 = vmatprep.subr.bf16.mxu0 0
    %7699 = vmatpush2.bf16.msra.mxu0 0
    %7700 = vmatprep.subr.bf16.mxu0 0
    %7701 = vmatpush2.bf16.msra.mxu0 0
    %7702 = vmatprep.subr.bf16.mxu0 0
    %7703 = vmatpush2.bf16.msra.mxu0 0
    %7704 = vmatprep.subr.bf16.mxu0 0
    %7705 = vmatpush2.bf16.msra.mxu0 0
    %7706 = vmatprep.subr.bf16.mxu0 0
    %7707 = vmatpush2.bf16.msra.mxu0 0
    %7708 = vmatprep.subr.bf16.mxu0 0
    %7709 = vmatpush2.bf16.msra.mxu0 0
    %7710 = vmatprep.mubr.bf16.mxu0 0
    %7711 = vmatmul.mubr.bf16.gmra.mxu0 0
    %v7712 = vpop.f32.mrf.mxu0
    %v7713 = vadd.f32 %v7475, %v7712
    %v7714 = vpop.f32.mrf.mxu0
    %v7715 = vadd.f32 %v7476, %v7714
    %v7716 = vpop.f32.mrf.mxu0
    %v7717 = vpop.f32.mrf.mxu0
    %7718 = vdwg.mxu0
    %v7719 = vld [vmem:[%s1406 + $0x10] sm:$0xff]
    %v7720 = vld [vmem:[%s1406 + $0x18] sm:$0xff]
    %v7721 = vunpack.c.l.bf16 %v7719
    %v7722 = vunpack.c.h.bf16 %v7719
    %v7723 = vunpack.c.l.bf16 %v7720
    %v7724 = vunpack.c.h.bf16 %v7720
    %v7757 = vunpack.c.l.b16 %v7439
    %v7758 = vunpack.c.h.b16 %v7439
    %v7759 = vunpack.c.l.b16 %v7440
    %v7760 = vunpack.c.h.b16 %v7440
    %v7761 = vunpack.c.l.b16 %v7441
    %v7762 = vunpack.c.h.b16 %v7441
    %v7763 = vunpack.c.l.b16 %v7442
    %v7764 = vunpack.c.h.b16 %v7442
    %v7765 = vunpack.c.l.b16 %v7443
    %v7766 = vunpack.c.h.b16 %v7443
    %v7767 = vunpack.c.l.b16 %v7444
    %v7768 = vunpack.c.h.b16 %v7444
    %v7769 = vunpack.c.l.b16 %v7445
    %v7770 = vunpack.c.h.b16 %v7445
    %v7771 = vunpack.c.l.b16 %v7446
    %v7772 = vunpack.c.h.b16 %v7446
    %v7773 = vunpack.c.l.b16 %v7447
    %v7774 = vunpack.c.h.b16 %v7447
    %v7775 = vunpack.c.l.b16 %v7448
    %v7776 = vunpack.c.h.b16 %v7448
    %v7777 = vunpack.c.l.b16 %v7449
    %v7778 = vunpack.c.h.b16 %v7449
    %v7779 = vunpack.c.l.b16 %v7450
    %v7780 = vunpack.c.h.b16 %v7450
    %v7781 = vunpack.c.l.b16 %v7451
    %v7782 = vunpack.c.h.b16 %v7451
    %v7783 = vunpack.c.l.b16 %v7452
    %v7784 = vunpack.c.h.b16 %v7452
    %v7785 = vunpack.c.l.b16 %v7453
    %v7786 = vunpack.c.h.b16 %v7453
    %v7787 = vunpack.c.l.b16 %v7454
    %v7788 = vunpack.c.h.b16 %v7454
    %v7789 = vunpack.c.l.b16 %v7455
    %v7790 = vunpack.c.h.b16 %v7455
    %v7791 = vunpack.c.l.b16 %v7456
    %v7792 = vunpack.c.h.b16 %v7456
    %v7793 = vunpack.c.l.b16 %v7457
    %v7794 = vunpack.c.h.b16 %v7457
    %v7795 = vunpack.c.l.b16 %v7458
    %v7796 = vunpack.c.h.b16 %v7458
    %v7797 = vunpack.c.l.b16 %v7459
    %v7798 = vunpack.c.h.b16 %v7459
    %v7799 = vunpack.c.l.b16 %v7460
    %v7800 = vunpack.c.h.b16 %v7460
    %v7801 = vunpack.c.l.b16 %v7461
    %v7802 = vunpack.c.h.b16 %v7461
    %v7803 = vunpack.c.l.b16 %v7462
    %v7804 = vunpack.c.h.b16 %v7462
    %v7805 = vunpack.c.l.b16 %v7463
    %v7806 = vunpack.c.h.b16 %v7463
    %v7807 = vunpack.c.l.b16 %v7464
    %v7808 = vunpack.c.h.b16 %v7464
    %v7809 = vunpack.c.l.b16 %v7465
    %v7810 = vunpack.c.h.b16 %v7465
    %v7811 = vunpack.c.l.b16 %v7466
    %v7812 = vunpack.c.h.b16 %v7466
    %v7813 = vunpack.c.l.b16 %v7467
    %v7814 = vunpack.c.h.b16 %v7467
    %v7815 = vunpack.c.l.b16 %v7468
    %v7816 = vunpack.c.h.b16 %v7468
    %v7817 = vunpack.c.l.b16 %v7469
    %v7818 = vunpack.c.h.b16 %v7469
    %v7819 = vunpack.c.l.b16 %v7470
    %v7820 = vunpack.c.h.b16 %v7470
    %v7821 = vpack.c.b16 %v7761, %v7757
    %v7822 = vpack.c.b16 %v7762, %v7758
    %v7823 = vpack.c.b16 %v7763, %v7759
    %v7824 = vpack.c.b16 %v7764, %v7760
    %v7825 = vpack.c.b16 %v7769, %v7765
    %v7826 = vpack.c.b16 %v7770, %v7766
    %v7827 = vpack.c.b16 %v7771, %v7767
    %v7828 = vpack.c.b16 %v7772, %v7768
    %v7829 = vpack.c.b16 %v7777, %v7773
    %v7830 = vpack.c.b16 %v7778, %v7774
    %v7831 = vpack.c.b16 %v7779, %v7775
    %v7832 = vpack.c.b16 %v7780, %v7776
    %v7833 = vpack.c.b16 %v7785, %v7781
    %v7834 = vpack.c.b16 %v7786, %v7782
    %v7835 = vpack.c.b16 %v7787, %v7783
    %v7836 = vpack.c.b16 %v7788, %v7784
    %v7837 = vpack.c.b16 %v7793, %v7789
    %v7838 = vpack.c.b16 %v7794, %v7790
    %v7839 = vpack.c.b16 %v7795, %v7791
    %v7840 = vpack.c.b16 %v7796, %v7792
    %v7841 = vpack.c.b16 %v7801, %v7797
    %v7842 = vpack.c.b16 %v7802, %v7798
    %v7843 = vpack.c.b16 %v7803, %v7799
    %v7844 = vpack.c.b16 %v7804, %v7800
    %v7845 = vpack.c.b16 %v7809, %v7805
    %v7846 = vpack.c.b16 %v7810, %v7806
    %v7847 = vpack.c.b16 %v7811, %v7807
    %v7848 = vpack.c.b16 %v7812, %v7808
    %v7849 = vpack.c.b16 %v7817, %v7813
    %v7850 = vpack.c.b16 %v7818, %v7814
    %v7851 = vpack.c.b16 %v7819, %v7815
    %v7852 = vpack.c.b16 %v7820, %v7816
    %7885 = vmatprep.subr.bf16.mxu0 %v7850
    %7886 = vmatpush1.bf16.msra.mxu0 %v7849
    %7887 = vmatprep.subr.bf16.mxu0 %v7846
    %7888 = vmatpush1.bf16.msra.mxu0 %v7845
    %7889 = vmatprep.subr.bf16.mxu0 %v7842
    %7890 = vmatpush1.bf16.msra.mxu0 %v7841
    %7891 = vmatprep.subr.bf16.mxu0 %v7838
    %7892 = vmatpush1.bf16.msra.mxu0 %v7837
    %7893 = vmatprep.subr.bf16.mxu0 %v7834
    %7894 = vmatpush1.bf16.msra.mxu0 %v7833
    %7895 = vmatprep.subr.bf16.mxu0 %v7830
    %7896 = vmatpush1.bf16.msra.mxu0 %v7829
    %7897 = vmatprep.subr.bf16.mxu0 %v7826
    %7898 = vmatpush1.bf16.msra.mxu0 %v7825
    %7899 = vmatprep.subr.bf16.mxu0 %v7822
    %7900 = vmatpush1.bf16.msra.mxu0 %v7821
    %7901 = vmatprep.subr.bf16.mxu0 0
    %7902 = vmatpush2.bf16.msra.mxu0 0
    %7903 = vmatprep.subr.bf16.mxu0 0
    %7904 = vmatpush2.bf16.msra.mxu0 0
    %7905 = vmatprep.subr.bf16.mxu0 0
    %7906 = vmatpush2.bf16.msra.mxu0 0
    %7907 = vmatprep.subr.bf16.mxu0 0
    %7908 = vmatpush2.bf16.msra.mxu0 0
    %7909 = vmatprep.subr.bf16.mxu0 0
    %7910 = vmatpush2.bf16.msra.mxu0 0
    %7911 = vmatprep.subr.bf16.mxu0 0
    %7912 = vmatpush2.bf16.msra.mxu0 0
    %7913 = vmatprep.subr.bf16.mxu0 0
    %7914 = vmatpush2.bf16.msra.mxu0 0
    %7915 = vmatprep.subr.bf16.mxu0 0
    %7916 = vmatpush2.bf16.msra.mxu0 0
    %7917 = vmatprep.mubr.bf16.mxu0 0
    %7918 = vmatmul.mubr.bf16.gmra.mxu0 0
    %v7919 = vpop.f32.mrf.mxu0
    %v7920 = vadd.f32 %v7721, %v7919
    %v7921 = vpop.f32.mrf.mxu0
    %v7922 = vadd.f32 %v7722, %v7921
    %v7923 = vpop.f32.mrf.mxu0
    %v7924 = vpop.f32.mrf.mxu0
    %7925 = vdwg.mxu0
    %7926 = vmatprep.subr.bf16.mxu0 %v7852
    %7927 = vmatpush1.bf16.msra.mxu0 %v7851
    %7928 = vmatprep.subr.bf16.mxu0 %v7848
    %7929 = vmatpush1.bf16.msra.mxu0 %v7847
    %7930 = vmatprep.subr.bf16.mxu0 %v7844
    %7931 = vmatpush1.bf16.msra.mxu0 %v7843
    %7932 = vmatprep.subr.bf16.mxu0 %v7840
    %7933 = vmatpush1.bf16.msra.mxu0 %v7839
    %7934 = vmatprep.subr.bf16.mxu0 %v7836
    %7935 = vmatpush1.bf16.msra.mxu0 %v7835
    %7936 = vmatprep.subr.bf16.mxu0 %v7832
    %7937 = vmatpush1.bf16.msra.mxu0 %v7831
    %7938 = vmatprep.subr.bf16.mxu0 %v7828
    %7939 = vmatpush1.bf16.msra.mxu0 %v7827
    %7940 = vmatprep.subr.bf16.mxu0 %v7824
    %7941 = vmatpush1.bf16.msra.mxu0 %v7823
    %7942 = vmatprep.subr.bf16.mxu0 0
    %7943 = vmatpush2.bf16.msra.mxu0 0
    %7944 = vmatprep.subr.bf16.mxu0 0
    %7945 = vmatpush2.bf16.msra.mxu0 0
    %7946 = vmatprep.subr.bf16.mxu0 0
    %7947 = vmatpush2.bf16.msra.mxu0 0
    %7948 = vmatprep.subr.bf16.mxu0 0
    %7949 = vmatpush2.bf16.msra.mxu0 0
    %7950 = vmatprep.subr.bf16.mxu0 0
    %7951 = vmatpush2.bf16.msra.mxu0 0
    %7952 = vmatprep.subr.bf16.mxu0 0
    %7953 = vmatpush2.bf16.msra.mxu0 0
    %7954 = vmatprep.subr.bf16.mxu0 0
    %7955 = vmatpush2.bf16.msra.mxu0 0
    %7956 = vmatprep.subr.bf16.mxu0 0
    %7957 = vmatpush2.bf16.msra.mxu0 0
    %7958 = vmatprep.mubr.bf16.mxu0 0
    %7959 = vmatmul.mubr.bf16.gmra.mxu0 0
    %v7960 = vpop.f32.mrf.mxu0
    %v7961 = vadd.f32 %v7723, %v7960
    %v7962 = vpop.f32.mrf.mxu0
    %v7963 = vadd.f32 %v7724, %v7962
    %v7964 = vpop.f32.mrf.mxu0
    %v7965 = vpop.f32.mrf.mxu0
    %7966 = vdwg.mxu0
    %v7967 = vxor.u32 %v7672, 2147483648
    %v7968 = vmul.f32 %v7967, 1.442695
    %v7969 = vpow.pop %v7968
    %v7970 = vadd.f32 %v7969, 1.0
    %v7971 = vrcp.pop %v7970
    %v7972 = vmul.f32 1.0, %v7971
    %v7973 = vxor.u32 %v7674, 2147483648
    %v7974 = vmul.f32 %v7973, 1.442695
    %v7975 = vpow.pop %v7974
    %v7976 = vadd.f32 %v7975, 1.0
    %v7977 = vrcp.pop %v7976
    %v7978 = vmul.f32 1.0, %v7977
    %v7979 = vtanh.pop %v7713
    %v7980 = vxor.u32 %v7715, 2147483648
    %v7981 = vmul.f32 %v7980, 1.442695
    %v7982 = vpow.pop %v7981
    %v7983 = vadd.f32 %v7982, 1.0
    %v7984 = vrcp.pop %v7983
    %v7985 = vmul.f32 1.0, %v7984
    %v7986 = vmul.f32 %v7978, 0.0
    %v7987 = vmul.f32 %v7972, %v7979
    %v7988 = vadd.f32 %v7986, %v7987
    %v7989 = vtanh.pop %v7988
    %v7990 = vmul.f32 %v7985, %v7989
    %v7991 = vxor.u32 %v7920, 2147483648
    %v7992 = vmul.f32 %v7991, 1.442695
    %v7993 = vpow.pop %v7992
    %v7994 = vadd.f32 %v7993, 1.0
    %v7995 = vrcp.pop %v7994
    %v7996 = vmul.f32 1.0, %v7995
    %v7997 = vxor.u32 %v7922, 2147483648
    %v7998 = vmul.f32 %v7997, 1.442695
    %v7999 = vpow.pop %v7998
    %v8000 = vadd.f32 %v7999, 1.0
    %v8001 = vrcp.pop %v8000
    %v8002 = vmul.f32 1.0, %v8001
    %v8003 = vtanh.pop %v7961
    %v8004 = vxor.u32 %v7963, 2147483648
    %v8005 = vmul.f32 %v8004, 1.442695
    %v8006 = vpow.pop %v8005
    %v8007 = vadd.f32 %v8006, 1.0
    %v8008 = vrcp.pop %v8007
    %v8009 = vmul.f32 1.0, %v8008
    %v8010 = vmul.f32 %v8002, 0.0
    %v8011 = vmul.f32 %v7996, %v8003
    %v8012 = vadd.f32 %v8010, %v8011
    %v8013 = vtanh.pop %v8012
    %v8014 = vmul.f32 %v8009, %v8013
    %v8015 = vpack.c.bf16 %v7990, %v7990
    %v8016 = vpack.c.bf16 %v8014, %v8014
    %v8017 = vld [vmem:[%s1779] sm:$0xff]
    %v8018 = vld [vmem:[%s1779 + $0x8] sm:$0xff]
    %v8019 = vunpack.c.l.bf16 %v8017
    %v8020 = vunpack.c.h.bf16 %v8017
    %v8021 = vunpack.c.l.bf16 %v8018
    %v8022 = vunpack.c.h.bf16 %v8018
    %8023 = vmatprep.subr.bf16.mxu0 %v7602
    %8024 = vmatpush1.bf16.msra.mxu0 %v7601
    %8025 = vmatprep.subr.bf16.mxu0 %v7598
    %8026 = vmatpush1.bf16.msra.mxu0 %v7597
    %8027 = vmatprep.subr.bf16.mxu0 %v7594
    %8028 = vmatpush1.bf16.msra.mxu0 %v7593
    %8029 = vmatprep.subr.bf16.mxu0 %v7590
    %8030 = vmatpush1.bf16.msra.mxu0 %v7589
    %8031 = vmatprep.subr.bf16.mxu0 %v7586
    %8032 = vmatpush1.bf16.msra.mxu0 %v7585
    %8033 = vmatprep.subr.bf16.mxu0 %v7582
    %8034 = vmatpush1.bf16.msra.mxu0 %v7581
    %8035 = vmatprep.subr.bf16.mxu0 %v7578
    %8036 = vmatpush1.bf16.msra.mxu0 %v7577
    %8037 = vmatprep.subr.bf16.mxu0 %v7574
    %8038 = vmatpush1.bf16.msra.mxu0 %v7573
    %8039 = vmatprep.subr.bf16.mxu0 0
    %8040 = vmatpush2.bf16.msra.mxu0 0
    %8041 = vmatprep.subr.bf16.mxu0 0
    %8042 = vmatpush2.bf16.msra.mxu0 0
    %8043 = vmatprep.subr.bf16.mxu0 0
    %8044 = vmatpush2.bf16.msra.mxu0 0
    %8045 = vmatprep.subr.bf16.mxu0 0
    %8046 = vmatpush2.bf16.msra.mxu0 0
    %8047 = vmatprep.subr.bf16.mxu0 0
    %8048 = vmatpush2.bf16.msra.mxu0 0
    %8049 = vmatprep.subr.bf16.mxu0 0
    %8050 = vmatpush2.bf16.msra.mxu0 0
    %8051 = vmatprep.subr.bf16.mxu0 0
    %8052 = vmatpush2.bf16.msra.mxu0 0
    %8053 = vmatprep.subr.bf16.mxu0 0
    %8054 = vmatpush2.bf16.msra.mxu0 0
    %8055 = vmatprep.mubr.bf16.mxu0 0
    %8056 = vmatmul.mubr.bf16.gmra.mxu0 %v8015
    %v8057 = vpop.f32.mrf.mxu0
    %v8058 = vadd.f32 %v8019, %v8057
    %v8059 = vpop.f32.mrf.mxu0
    %v8060 = vadd.f32 %v8020, %v8059
    %v8061 = vpop.f32.mrf.mxu0
    %v8062 = vpop.f32.mrf.mxu0
    %8063 = vdwg.mxu0
    %8064 = vmatprep.subr.bf16.mxu0 %v7604
    %8065 = vmatpush1.bf16.msra.mxu0 %v7603
    %8066 = vmatprep.subr.bf16.mxu0 %v7600
    %8067 = vmatpush1.bf16.msra.mxu0 %v7599
    %8068 = vmatprep.subr.bf16.mxu0 %v7596
    %8069 = vmatpush1.bf16.msra.mxu0 %v7595
    %8070 = vmatprep.subr.bf16.mxu0 %v7592
    %8071 = vmatpush1.bf16.msra.mxu0 %v7591
    %8072 = vmatprep.subr.bf16.mxu0 %v7588
    %8073 = vmatpush1.bf16.msra.mxu0 %v7587
    %8074 = vmatprep.subr.bf16.mxu0 %v7584
    %8075 = vmatpush1.bf16.msra.mxu0 %v7583
    %8076 = vmatprep.subr.bf16.mxu0 %v7580
    %8077 = vmatpush1.bf16.msra.mxu0 %v7579
    %8078 = vmatprep.subr.bf16.mxu0 %v7576
    %8079 = vmatpush1.bf16.msra.mxu0 %v7575
    %8080 = vmatprep.subr.bf16.mxu0 0
    %8081 = vmatpush2.bf16.msra.mxu0 0
    %8082 = vmatprep.subr.bf16.mxu0 0
    %8083 = vmatpush2.bf16.msra.mxu0 0
    %8084 = vmatprep.subr.bf16.mxu0 0
    %8085 = vmatpush2.bf16.msra.mxu0 0
    %8086 = vmatprep.subr.bf16.mxu0 0
    %8087 = vmatpush2.bf16.msra.mxu0 0
    %8088 = vmatprep.subr.bf16.mxu0 0
    %8089 = vmatpush2.bf16.msra.mxu0 0
    %8090 = vmatprep.subr.bf16.mxu0 0
    %8091 = vmatpush2.bf16.msra.mxu0 0
    %8092 = vmatprep.subr.bf16.mxu0 0
    %8093 = vmatpush2.bf16.msra.mxu0 0
    %8094 = vmatprep.subr.bf16.mxu0 0
    %8095 = vmatpush2.bf16.msra.mxu0 0
    %8096 = vmatprep.mubr.bf16.mxu0 0
    %8097 = vmatmul.mubr.bf16.gmra.mxu0 %v8015
    %v8098 = vpop.f32.mrf.mxu0
    %v8099 = vadd.f32 %v8021, %v8098
    %v8100 = vpop.f32.mrf.mxu0
    %v8101 = vadd.f32 %v8022, %v8100
    %v8102 = vpop.f32.mrf.mxu0
    %v8103 = vpop.f32.mrf.mxu0
    %8104 = vdwg.mxu0
    %v8105 = vld [vmem:[%s2030 + $0x10] sm:$0xff]
    %v8106 = vld [vmem:[%s2030 + $0x18] sm:$0xff]
    %v8107 = vunpack.c.l.bf16 %v8105
    %v8108 = vunpack.c.h.bf16 %v8105
    %v8109 = vunpack.c.l.bf16 %v8106
    %v8110 = vunpack.c.h.bf16 %v8106
    %8111 = vmatprep.subr.bf16.mxu0 %v7850
    %8112 = vmatpush1.bf16.msra.mxu0 %v7849
    %8113 = vmatprep.subr.bf16.mxu0 %v7846
    %8114 = vmatpush1.bf16.msra.mxu0 %v7845
    %8115 = vmatprep.subr.bf16.mxu0 %v7842
    %8116 = vmatpush1.bf16.msra.mxu0 %v7841
    %8117 = vmatprep.subr.bf16.mxu0 %v7838
    %8118 = vmatpush1.bf16.msra.mxu0 %v7837
    %8119 = vmatprep.subr.bf16.mxu0 %v7834
    %8120 = vmatpush1.bf16.msra.mxu0 %v7833
    %8121 = vmatprep.subr.bf16.mxu0 %v7830
    %8122 = vmatpush1.bf16.msra.mxu0 %v7829
    %8123 = vmatprep.subr.bf16.mxu0 %v7826
    %8124 = vmatpush1.bf16.msra.mxu0 %v7825
    %8125 = vmatprep.subr.bf16.mxu0 %v7822
    %8126 = vmatpush1.bf16.msra.mxu0 %v7821
    %8127 = vmatprep.subr.bf16.mxu0 0
    %8128 = vmatpush2.bf16.msra.mxu0 0
    %8129 = vmatprep.subr.bf16.mxu0 0
    %8130 = vmatpush2.bf16.msra.mxu0 0
    %8131 = vmatprep.subr.bf16.mxu0 0
    %8132 = vmatpush2.bf16.msra.mxu0 0
    %8133 = vmatprep.subr.bf16.mxu0 0
    %8134 = vmatpush2.bf16.msra.mxu0 0
    %8135 = vmatprep.subr.bf16.mxu0 0
    %8136 = vmatpush2.bf16.msra.mxu0 0
    %8137 = vmatprep.subr.bf16.mxu0 0
    %8138 = vmatpush2.bf16.msra.mxu0 0
    %8139 = vmatprep.subr.bf16.mxu0 0
    %8140 = vmatpush2.bf16.msra.mxu0 0
    %8141 = vmatprep.subr.bf16.mxu0 0
    %8142 = vmatpush2.bf16.msra.mxu0 0
    %8143 = vmatprep.mubr.bf16.mxu0 0
    %8144 = vmatmul.mubr.bf16.gmra.mxu0 %v8016
    %v8145 = vpop.f32.mrf.mxu0
    %v8146 = vadd.f32 %v8107, %v8145
    %v8147 = vpop.f32.mrf.mxu0
    %v8148 = vadd.f32 %v8108, %v8147
    %v8149 = vpop.f32.mrf.mxu0
    %v8150 = vpop.f32.mrf.mxu0
    %8151 = vdwg.mxu0
    %8152 = vmatprep.subr.bf16.mxu0 %v7852
    %8153 = vmatpush1.bf16.msra.mxu0 %v7851
    %8154 = vmatprep.subr.bf16.mxu0 %v7848
    %8155 = vmatpush1.bf16.msra.mxu0 %v7847
    %8156 = vmatprep.subr.bf16.mxu0 %v7844
    %8157 = vmatpush1.bf16.msra.mxu0 %v7843
    %8158 = vmatprep.subr.bf16.mxu0 %v7840
    %8159 = vmatpush1.bf16.msra.mxu0 %v7839
    %8160 = vmatprep.subr.bf16.mxu0 %v7836
    %8161 = vmatpush1.bf16.msra.mxu0 %v7835
    %8162 = vmatprep.subr.bf16.mxu0 %v7832
    %8163 = vmatpush1.bf16.msra.mxu0 %v7831
    %8164 = vmatprep.subr.bf16.mxu0 %v7828
    %8165 = vmatpush1.bf16.msra.mxu0 %v7827
    %8166 = vmatprep.subr.bf16.mxu0 %v7824
    %8167 = vmatpush1.bf16.msra.mxu0 %v7823
    %8168 = vmatprep.subr.bf16.mxu0 0
    %8169 = vmatpush2.bf16.msra.mxu0 0
    %8170 = vmatprep.subr.bf16.mxu0 0
    %8171 = vmatpush2.bf16.msra.mxu0 0
    %8172 = vmatprep.subr.bf16.mxu0 0
    %8173 = vmatpush2.bf16.msra.mxu0 0
    %8174 = vmatprep.subr.bf16.mxu0 0
    %8175 = vmatpush2.bf16.msra.mxu0 0
    %8176 = vmatprep.subr.bf16.mxu0 0
    %8177 = vmatpush2.bf16.msra.mxu0 0
    %8178 = vmatprep.subr.bf16.mxu0 0
    %8179 = vmatpush2.bf16.msra.mxu0 0
    %8180 = vmatprep.subr.bf16.mxu0 0
    %8181 = vmatpush2.bf16.msra.mxu0 0
    %8182 = vmatprep.subr.bf16.mxu0 0
    %8183 = vmatpush2.bf16.msra.mxu0 0
    %8184 = vmatprep.mubr.bf16.mxu0 0
    %8185 = vmatmul.mubr.bf16.gmra.mxu0 %v8016
    %v8186 = vpop.f32.mrf.mxu0
    %v8187 = vadd.f32 %v8109, %v8186
    %v8188 = vpop.f32.mrf.mxu0
    %v8189 = vadd.f32 %v8110, %v8188
    %v8190 = vpop.f32.mrf.mxu0
    %v8191 = vpop.f32.mrf.mxu0
    %8192 = vdwg.mxu0
    %v8193 = vxor.u32 %v8058, 2147483648
    %v8194 = vmul.f32 %v8193, 1.442695
    %v8195 = vpow.pop %v8194
    %v8196 = vadd.f32 %v8195, 1.0
    %v8197 = vrcp.pop %v8196
    %v8198 = vmul.f32 1.0, %v8197
    %v8199 = vxor.u32 %v8060, 2147483648
    %v8200 = vmul.f32 %v8199, 1.442695
    %v8201 = vpow.pop %v8200
    %v8202 = vadd.f32 %v8201, 1.0
    %v8203 = vrcp.pop %v8202
    %v8204 = vmul.f32 1.0, %v8203
    %v8205 = vtanh.pop %v8099
    %v8206 = vxor.u32 %v8101, 2147483648
    %v8207 = vmul.f32 %v8206, 1.442695
    %v8208 = vpow.pop %v8207
    %v8209 = vadd.f32 %v8208, 1.0
    %v8210 = vrcp.pop %v8209
    %v8211 = vmul.f32 1.0, %v8210
    %v8212 = vmul.f32 %v8204, %v7988
    %v8213 = vmul.f32 %v8198, %v8205
    %v8214 = vadd.f32 %v8212, %v8213
    %v8215 = vtanh.pop %v8214
    %v8216 = vmul.f32 %v8211, %v8215
    %v8217 = vxor.u32 %v8146, 2147483648
    %v8218 = vmul.f32 %v8217, 1.442695
    %v8219 = vpow.pop %v8218
    %v8220 = vadd.f32 %v8219, 1.0
    %v8221 = vrcp.pop %v8220
    %v8222 = vmul.f32 1.0, %v8221
    %v8223 = vxor.u32 %v8148, 2147483648
    %v8224 = vmul.f32 %v8223, 1.442695
    %v8225 = vpow.pop %v8224
    %v8226 = vadd.f32 %v8225, 1.0
    %v8227 = vrcp.pop %v8226
    %v8228 = vmul.f32 1.0, %v8227
    %v8229 = vtanh.pop %v8187
    %v8230 = vxor.u32 %v8189, 2147483648
    %v8231 = vmul.f32 %v8230, 1.442695
    %v8232 = vpow.pop %v8231
    %v8233 = vadd.f32 %v8232, 1.0
    %v8234 = vrcp.pop %v8233
    %v8235 = vmul.f32 1.0, %v8234
    %v8236 = vmul.f32 %v8228, %v8012
    %v8237 = vmul.f32 %v8222, %v8229
    %v8238 = vadd.f32 %v8236, %v8237
    %v8239 = vtanh.pop %v8238
    %v8240 = vmul.f32 %v8235, %v8239
    %v8241 = vpack.c.bf16 %v8216, %v8216
    %v8242 = vpack.c.bf16 %v8240, %v8240
    %v8243 = vld [vmem:[%s2403] sm:$0xff]
    %v8244 = vld [vmem:[%s2403 + $0x8] sm:$0xff]
    %v8245 = vunpack.c.l.bf16 %v8243
    %v8246 = vunpack.c.h.bf16 %v8243
    %v8247 = vunpack.c.l.bf16 %v8244
    %v8248 = vunpack.c.h.bf16 %v8244
    %8249 = vmatprep.subr.bf16.mxu0 %v7602
    %8250 = vmatpush1.bf16.msra.mxu0 %v7601
    %8251 = vmatprep.subr.bf16.mxu0 %v7598
    %8252 = vmatpush1.bf16.msra.mxu0 %v7597
    %8253 = vmatprep.subr.bf16.mxu0 %v7594
    %8254 = vmatpush1.bf16.msra.mxu0 %v7593
    %8255 = vmatprep.subr.bf16.mxu0 %v7590
    %8256 = vmatpush1.bf16.msra.mxu0 %v7589
    %8257 = vmatprep.subr.bf16.mxu0 %v7586
    %8258 = vmatpush1.bf16.msra.mxu0 %v7585
    %8259 = vmatprep.subr.bf16.mxu0 %v7582
    %8260 = vmatpush1.bf16.msra.mxu0 %v7581
    %8261 = vmatprep.subr.bf16.mxu0 %v7578
    %8262 = vmatpush1.bf16.msra.mxu0 %v7577
    %8263 = vmatprep.subr.bf16.mxu0 %v7574
    %8264 = vmatpush1.bf16.msra.mxu0 %v7573
    %8265 = vmatprep.subr.bf16.mxu0 0
    %8266 = vmatpush2.bf16.msra.mxu0 0
    %8267 = vmatprep.subr.bf16.mxu0 0
    %8268 = vmatpush2.bf16.msra.mxu0 0
    %8269 = vmatprep.subr.bf16.mxu0 0
    %8270 = vmatpush2.bf16.msra.mxu0 0
    %8271 = vmatprep.subr.bf16.mxu0 0
    %8272 = vmatpush2.bf16.msra.mxu0 0
    %8273 = vmatprep.subr.bf16.mxu0 0
    %8274 = vmatpush2.bf16.msra.mxu0 0
    %8275 = vmatprep.subr.bf16.mxu0 0
    %8276 = vmatpush2.bf16.msra.mxu0 0
    %8277 = vmatprep.subr.bf16.mxu0 0
    %8278 = vmatpush2.bf16.msra.mxu0 0
    %8279 = vmatprep.subr.bf16.mxu0 0
    %8280 = vmatpush2.bf16.msra.mxu0 0
    %8281 = vmatprep.mubr.bf16.mxu0 0
    %8282 = vmatmul.mubr.bf16.gmra.mxu0 %v8241
    %v8283 = vpop.f32.mrf.mxu0
    %v8284 = vadd.f32 %v8245, %v8283
    %v8285 = vpop.f32.mrf.mxu0
    %v8286 = vadd.f32 %v8246, %v8285
    %v8287 = vpop.f32.mrf.mxu0
    %v8288 = vpop.f32.mrf.mxu0
    %8289 = vdwg.mxu0
    %8290 = vmatprep.subr.bf16.mxu0 %v7604
    %8291 = vmatpush1.bf16.msra.mxu0 %v7603
    %8292 = vmatprep.subr.bf16.mxu0 %v7600
    %8293 = vmatpush1.bf16.msra.mxu0 %v7599
    %8294 = vmatprep.subr.bf16.mxu0 %v7596
    %8295 = vmatpush1.bf16.msra.mxu0 %v7595
    %8296 = vmatprep.subr.bf16.mxu0 %v7592
    %8297 = vmatpush1.bf16.msra.mxu0 %v7591
    %8298 = vmatprep.subr.bf16.mxu0 %v7588
    %8299 = vmatpush1.bf16.msra.mxu0 %v7587
    %8300 = vmatprep.subr.bf16.mxu0 %v7584
    %8301 = vmatpush1.bf16.msra.mxu0 %v7583
    %8302 = vmatprep.subr.bf16.mxu0 %v7580
    %8303 = vmatpush1.bf16.msra.mxu0 %v7579
    %8304 = vmatprep.subr.bf16.mxu0 %v7576
    %8305 = vmatpush1.bf16.msra.mxu0 %v7575
    %8306 = vmatprep.subr.bf16.mxu0 0
    %8307 = vmatpush2.bf16.msra.mxu0 0
    %8308 = vmatprep.subr.bf16.mxu0 0
    %8309 = vmatpush2.bf16.msra.mxu0 0
    %8310 = vmatprep.subr.bf16.mxu0 0
    %8311 = vmatpush2.bf16.msra.mxu0 0
    %8312 = vmatprep.subr.bf16.mxu0 0
    %8313 = vmatpush2.bf16.msra.mxu0 0
    %8314 = vmatprep.subr.bf16.mxu0 0
    %8315 = vmatpush2.bf16.msra.mxu0 0
    %8316 = vmatprep.subr.bf16.mxu0 0
    %8317 = vmatpush2.bf16.msra.mxu0 0
    %8318 = vmatprep.subr.bf16.mxu0 0
    %8319 = vmatpush2.bf16.msra.mxu0 0
    %8320 = vmatprep.subr.bf16.mxu0 0
    %8321 = vmatpush2.bf16.msra.mxu0 0
    %8322 = vmatprep.mubr.bf16.mxu0 0
    %8323 = vmatmul.mubr.bf16.gmra.mxu0 %v8241
    %v8324 = vpop.f32.mrf.mxu0
    %v8325 = vadd.f32 %v8247, %v8324
    %v8326 = vpop.f32.mrf.mxu0
    %v8327 = vadd.f32 %v8248, %v8326
    %v8328 = vpop.f32.mrf.mxu0
    %v8329 = vpop.f32.mrf.mxu0
    %8330 = vdwg.mxu0
    %v8331 = vld [vmem:[%s2654 + $0x10] sm:$0xff]
    %v8332 = vld [vmem:[%s2654 + $0x18] sm:$0xff]
    %v8333 = vunpack.c.l.bf16 %v8331
    %v8334 = vunpack.c.h.bf16 %v8331
    %v8335 = vunpack.c.l.bf16 %v8332
    %v8336 = vunpack.c.h.bf16 %v8332
    %8337 = vmatprep.subr.bf16.mxu0 %v7850
    %8338 = vmatpush1.bf16.msra.mxu0 %v7849
    %8339 = vmatprep.subr.bf16.mxu0 %v7846
    %8340 = vmatpush1.bf16.msra.mxu0 %v7845
    %8341 = vmatprep.subr.bf16.mxu0 %v7842
    %8342 = vmatpush1.bf16.msra.mxu0 %v7841
    %8343 = vmatprep.subr.bf16.mxu0 %v7838
    %8344 = vmatpush1.bf16.msra.mxu0 %v7837
    %8345 = vmatprep.subr.bf16.mxu0 %v7834
    %8346 = vmatpush1.bf16.msra.mxu0 %v7833
    %8347 = vmatprep.subr.bf16.mxu0 %v7830
    %8348 = vmatpush1.bf16.msra.mxu0 %v7829
    %8349 = vmatprep.subr.bf16.mxu0 %v7826
    %8350 = vmatpush1.bf16.msra.mxu0 %v7825
    %8351 = vmatprep.subr.bf16.mxu0 %v7822
    %8352 = vmatpush1.bf16.msra.mxu0 %v7821
    %8353 = vmatprep.subr.bf16.mxu0 0
    %8354 = vmatpush2.bf16.msra.mxu0 0
    %8355 = vmatprep.subr.bf16.mxu0 0
    %8356 = vmatpush2.bf16.msra.mxu0 0
    %8357 = vmatprep.subr.bf16.mxu0 0
    %8358 = vmatpush2.bf16.msra.mxu0 0
    %8359 = vmatprep.subr.bf16.mxu0 0
    %8360 = vmatpush2.bf16.msra.mxu0 0
    %8361 = vmatprep.subr.bf16.mxu0 0
    %8362 = vmatpush2.bf16.msra.mxu0 0
    %8363 = vmatprep.subr.bf16.mxu0 0
    %8364 = vmatpush2.bf16.msra.mxu0 0
    %8365 = vmatprep.subr.bf16.mxu0 0
    %8366 = vmatpush2.bf16.msra.mxu0 0
    %8367 = vmatprep.subr.bf16.mxu0 0
    %8368 = vmatpush2.bf16.msra.mxu0 0
    %8369 = vmatprep.mubr.bf16.mxu0 0
    %8370 = vmatmul.mubr.bf16.gmra.mxu0 %v8242
    %v8371 = vpop.f32.mrf.mxu0
    %v8372 = vadd.f32 %v8333, %v8371
    %v8373 = vpop.f32.mrf.mxu0
    %v8374 = vadd.f32 %v8334, %v8373
    %v8375 = vpop.f32.mrf.mxu0
    %v8376 = vpop.f32.mrf.mxu0
    %8377 = vdwg.mxu0
    %8378 = vmatprep.subr.bf16.mxu0 %v7852
    %8379 = vmatpush1.bf16.msra.mxu0 %v7851
    %8380 = vmatprep.subr.bf16.mxu0 %v7848
    %8381 = vmatpush1.bf16.msra.mxu0 %v7847
    %8382 = vmatprep.subr.bf16.mxu0 %v7844
    %8383 = vmatpush1.bf16.msra.mxu0 %v7843
    %8384 = vmatprep.subr.bf16.mxu0 %v7840
    %8385 = vmatpush1.bf16.msra.mxu0 %v7839
    %8386 = vmatprep.subr.bf16.mxu0 %v7836
    %8387 = vmatpush1.bf16.msra.mxu0 %v7835
    %8388 = vmatprep.subr.bf16.mxu0 %v7832
    %8389 = vmatpush1.bf16.msra.mxu0 %v7831
    %8390 = vmatprep.subr.bf16.mxu0 %v7828
    %8391 = vmatpush1.bf16.msra.mxu0 %v7827
    %8392 = vmatprep.subr.bf16.mxu0 %v7824
    %8393 = vmatpush1.bf16.msra.mxu0 %v7823
    %8394 = vmatprep.subr.bf16.mxu0 0
    %8395 = vmatpush2.bf16.msra.mxu0 0
    %8396 = vmatprep.subr.bf16.mxu0 0
    %8397 = vmatpush2.bf16.msra.mxu0 0
    %8398 = vmatprep.subr.bf16.mxu0 0
    %8399 = vmatpush2.bf16.msra.mxu0 0
    %8400 = vmatprep.subr.bf16.mxu0 0
    %8401 = vmatpush2.bf16.msra.mxu0 0
    %8402 = vmatprep.subr.bf16.mxu0 0
    %8403 = vmatpush2.bf16.msra.mxu0 0
    %8404 = vmatprep.subr.bf16.mxu0 0
    %8405 = vmatpush2.bf16.msra.mxu0 0
    %8406 = vmatprep.subr.bf16.mxu0 0
    %8407 = vmatpush2.bf16.msra.mxu0 0
    %8408 = vmatprep.subr.bf16.mxu0 0
    %8409 = vmatpush2.bf16.msra.mxu0 0
    %8410 = vmatprep.mubr.bf16.mxu0 0
    %8411 = vmatmul.mubr.bf16.gmra.mxu0 %v8242
    %v8412 = vpop.f32.mrf.mxu0
    %v8413 = vadd.f32 %v8335, %v8412
    %v8414 = vpop.f32.mrf.mxu0
    %v8415 = vadd.f32 %v8336, %v8414
    %v8416 = vpop.f32.mrf.mxu0
    %v8417 = vpop.f32.mrf.mxu0
    %8418 = vdwg.mxu0
    %v8419 = vxor.u32 %v8284, 2147483648
    %v8420 = vmul.f32 %v8419, 1.442695
    %v8421 = vpow.pop %v8420
    %v8422 = vadd.f32 %v8421, 1.0
    %v8423 = vrcp.pop %v8422
    %v8424 = vmul.f32 1.0, %v8423
    %v8425 = vxor.u32 %v8286, 2147483648
    %v8426 = vmul.f32 %v8425, 1.442695
    %v8427 = vpow.pop %v8426
    %v8428 = vadd.f32 %v8427, 1.0
    %v8429 = vrcp.pop %v8428
    %v8430 = vmul.f32 1.0, %v8429
    %v8431 = vtanh.pop %v8325
    %v8432 = vxor.u32 %v8327, 2147483648
    %v8433 = vmul.f32 %v8432, 1.442695
    %v8434 = vpow.pop %v8433
    %v8435 = vadd.f32 %v8434, 1.0
    %v8436 = vrcp.pop %v8435
    %v8437 = vmul.f32 1.0, %v8436
    %v8438 = vmul.f32 %v8430, %v8214
    %v8439 = vmul.f32 %v8424, %v8431
    %v8440 = vadd.f32 %v8438, %v8439
    %v8441 = vtanh.pop %v8440
    %v8442 = vmul.f32 %v8437, %v8441
    %v8443 = vxor.u32 %v8372, 2147483648
    %v8444 = vmul.f32 %v8443, 1.442695
    %v8445 = vpow.pop %v8444
    %v8446 = vadd.f32 %v8445, 1.0
    %v8447 = vrcp.pop %v8446
    %v8448 = vmul.f32 1.0, %v8447
    %v8449 = vxor.u32 %v8374, 2147483648
    %v8450 = vmul.f32 %v8449, 1.442695
    %v8451 = vpow.pop %v8450
    %v8452 = vadd.f32 %v8451, 1.0
    %v8453 = vrcp.pop %v8452
    %v8454 = vmul.f32 1.0, %v8453
    %v8455 = vtanh.pop %v8413
    %v8456 = vxor.u32 %v8415, 2147483648
    %v8457 = vmul.f32 %v8456, 1.442695
    %v8458 = vpow.pop %v8457
    %v8459 = vadd.f32 %v8458, 1.0
    %v8460 = vrcp.pop %v8459
    %v8461 = vmul.f32 1.0, %v8460
    %v8462 = vmul.f32 %v8454, %v8238
    %v8463 = vmul.f32 %v8448, %v8455
    %v8464 = vadd.f32 %v8462, %v8463
    %v8465 = vtanh.pop %v8464
    %v8466 = vmul.f32 %v8461, %v8465
    %v8467 = vpack.c.bf16 %v8442, %v8442
    %v8468 = vpack.c.bf16 %v8466, %v8466
    %v8469 = vld [vmem:[%s3027] sm:$0xff]
    %v8470 = vld [vmem:[%s3027 + $0x8] sm:$0xff]
    %v8471 = vunpack.c.l.bf16 %v8469
    %v8472 = vunpack.c.h.bf16 %v8469
    %v8473 = vunpack.c.l.bf16 %v8470
    %v8474 = vunpack.c.h.bf16 %v8470
    %8475 = vmatprep.subr.bf16.mxu0 %v7602
    %8476 = vmatpush1.bf16.msra.mxu0 %v7601
    %8477 = vmatprep.subr.bf16.mxu0 %v7598
    %8478 = vmatpush1.bf16.msra.mxu0 %v7597
    %8479 = vmatprep.subr.bf16.mxu0 %v7594
    %8480 = vmatpush1.bf16.msra.mxu0 %v7593
    %8481 = vmatprep.subr.bf16.mxu0 %v7590
    %8482 = vmatpush1.bf16.msra.mxu0 %v7589
    %8483 = vmatprep.subr.bf16.mxu0 %v7586
    %8484 = vmatpush1.bf16.msra.mxu0 %v7585
    %8485 = vmatprep.subr.bf16.mxu0 %v7582
    %8486 = vmatpush1.bf16.msra.mxu0 %v7581
    %8487 = vmatprep.subr.bf16.mxu0 %v7578
    %8488 = vmatpush1.bf16.msra.mxu0 %v7577
    %8489 = vmatprep.subr.bf16.mxu0 %v7574
    %8490 = vmatpush1.bf16.msra.mxu0 %v7573
    %8491 = vmatprep.subr.bf16.mxu0 0
    %8492 = vmatpush2.bf16.msra.mxu0 0
    %8493 = vmatprep.subr.bf16.mxu0 0
    %8494 = vmatpush2.bf16.msra.mxu0 0
    %8495 = vmatprep.subr.bf16.mxu0 0
    %8496 = vmatpush2.bf16.msra.mxu0 0
    %8497 = vmatprep.subr.bf16.mxu0 0
    %8498 = vmatpush2.bf16.msra.mxu0 0
    %8499 = vmatprep.subr.bf16.mxu0 0
    %8500 = vmatpush2.bf16.msra.mxu0 0
    %8501 = vmatprep.subr.bf16.mxu0 0
    %8502 = vmatpush2.bf16.msra.mxu0 0
    %8503 = vmatprep.subr.bf16.mxu0 0
    %8504 = vmatpush2.bf16.msra.mxu0 0
    %8505 = vmatprep.subr.bf16.mxu0 0
    %8506 = vmatpush2.bf16.msra.mxu0 0
    %8507 = vmatprep.mubr.bf16.mxu0 0
    %8508 = vmatmul.mubr.bf16.gmra.mxu0 %v8467
    %v8509 = vpop.f32.mrf.mxu0
    %v8510 = vadd.f32 %v8471, %v8509
    %v8511 = vpop.f32.mrf.mxu0
    %v8512 = vadd.f32 %v8472, %v8511
    %v8513 = vpop.f32.mrf.mxu0
    %v8514 = vpop.f32.mrf.mxu0
    %8515 = vdwg.mxu0
    %8516 = vmatprep.subr.bf16.mxu0 %v7604
    %8517 = vmatpush1.bf16.msra.mxu0 %v7603
    %8518 = vmatprep.subr.bf16.mxu0 %v7600
    %8519 = vmatpush1.bf16.msra.mxu0 %v7599
    %8520 = vmatprep.subr.bf16.mxu0 %v7596
    %8521 = vmatpush1.bf16.msra.mxu0 %v7595
    %8522 = vmatprep.subr.bf16.mxu0 %v7592
    %8523 = vmatpush1.bf16.msra.mxu0 %v7591
    %8524 = vmatprep.subr.bf16.mxu0 %v7588
    %8525 = vmatpush1.bf16.msra.mxu0 %v7587
    %8526 = vmatprep.subr.bf16.mxu0 %v7584
    %8527 = vmatpush1.bf16.msra.mxu0 %v7583
    %8528 = vmatprep.subr.bf16.mxu0 %v7580
    %8529 = vmatpush1.bf16.msra.mxu0 %v7579
    %8530 = vmatprep.subr.bf16.mxu0 %v7576
    %8531 = vmatpush1.bf16.msra.mxu0 %v7575
    %8532 = vmatprep.subr.bf16.mxu0 0
    %8533 = vmatpush2.bf16.msra.mxu0 0
    %8534 = vmatprep.subr.bf16.mxu0 0
    %8535 = vmatpush2.bf16.msra.mxu0 0
    %8536 = vmatprep.subr.bf16.mxu0 0
    %8537 = vmatpush2.bf16.msra.mxu0 0
    %8538 = vmatprep.subr.bf16.mxu0 0
    %8539 = vmatpush2.bf16.msra.mxu0 0
    %8540 = vmatprep.subr.bf16.mxu0 0
    %8541 = vmatpush2.bf16.msra.mxu0 0
    %8542 = vmatprep.subr.bf16.mxu0 0
    %8543 = vmatpush2.bf16.msra.mxu0 0
    %8544 = vmatprep.subr.bf16.mxu0 0
    %8545 = vmatpush2.bf16.msra.mxu0 0
    %8546 = vmatprep.subr.bf16.mxu0 0
    %8547 = vmatpush2.bf16.msra.mxu0 0
    %8548 = vmatprep.mubr.bf16.mxu0 0
    %8549 = vmatmul.mubr.bf16.gmra.mxu0 %v8467
    %v8550 = vpop.f32.mrf.mxu0
    %v8551 = vadd.f32 %v8473, %v8550
    %v8552 = vpop.f32.mrf.mxu0
    %v8553 = vadd.f32 %v8474, %v8552
    %v8554 = vpop.f32.mrf.mxu0
    %v8555 = vpop.f32.mrf.mxu0
    %8556 = vdwg.mxu0
    %v8557 = vld [vmem:[%s3278 + $0x10] sm:$0xff]
    %v8558 = vld [vmem:[%s3278 + $0x18] sm:$0xff]
    %v8559 = vunpack.c.l.bf16 %v8557
    %v8560 = vunpack.c.h.bf16 %v8557
    %v8561 = vunpack.c.l.bf16 %v8558
    %v8562 = vunpack.c.h.bf16 %v8558
    %8563 = vmatprep.subr.bf16.mxu0 %v7850
    %8564 = vmatpush1.bf16.msra.mxu0 %v7849
    %8565 = vmatprep.subr.bf16.mxu0 %v7846
    %8566 = vmatpush1.bf16.msra.mxu0 %v7845
    %8567 = vmatprep.subr.bf16.mxu0 %v7842
    %8568 = vmatpush1.bf16.msra.mxu0 %v7841
    %8569 = vmatprep.subr.bf16.mxu0 %v7838
    %8570 = vmatpush1.bf16.msra.mxu0 %v7837
    %8571 = vmatprep.subr.bf16.mxu0 %v7834
    %8572 = vmatpush1.bf16.msra.mxu0 %v7833
    %8573 = vmatprep.subr.bf16.mxu0 %v7830
    %8574 = vmatpush1.bf16.msra.mxu0 %v7829
    %8575 = vmatprep.subr.bf16.mxu0 %v7826
    %8576 = vmatpush1.bf16.msra.mxu0 %v7825
    %8577 = vmatprep.subr.bf16.mxu0 %v7822
    %8578 = vmatpush1.bf16.msra.mxu0 %v7821
    %8579 = vmatprep.subr.bf16.mxu0 0
    %8580 = vmatpush2.bf16.msra.mxu0 0
    %8581 = vmatprep.subr.bf16.mxu0 0
    %8582 = vmatpush2.bf16.msra.mxu0 0
    %8583 = vmatprep.subr.bf16.mxu0 0
    %8584 = vmatpush2.bf16.msra.mxu0 0
    %8585 = vmatprep.subr.bf16.mxu0 0
    %8586 = vmatpush2.bf16.msra.mxu0 0
    %8587 = vmatprep.subr.bf16.mxu0 0
    %8588 = vmatpush2.bf16.msra.mxu0 0
    %8589 = vmatprep.subr.bf16.mxu0 0
    %8590 = vmatpush2.bf16.msra.mxu0 0
    %8591 = vmatprep.subr.bf16.mxu0 0
    %8592 = vmatpush2.bf16.msra.mxu0 0
    %8593 = vmatprep.subr.bf16.mxu0 0
    %8594 = vmatpush2.bf16.msra.mxu0 0
    %8595 = vmatprep.mubr.bf16.mxu0 0
    %8596 = vmatmul.mubr.bf16.gmra.mxu0 %v8468
    %v8597 = vpop.f32.mrf.mxu0
    %v8598 = vadd.f32 %v8559, %v8597
    %v8599 = vpop.f32.mrf.mxu0
    %v8600 = vadd.f32 %v8560, %v8599
    %v8601 = vpop.f32.mrf.mxu0
    %v8602 = vpop.f32.mrf.mxu0
    %8603 = vdwg.mxu0
    %8604 = vmatprep.subr.bf16.mxu0 %v7852
    %8605 = vmatpush1.bf16.msra.mxu0 %v7851
    %8606 = vmatprep.subr.bf16.mxu0 %v7848
    %8607 = vmatpush1.bf16.msra.mxu0 %v7847
    %8608 = vmatprep.subr.bf16.mxu0 %v7844
    %8609 = vmatpush1.bf16.msra.mxu0 %v7843
    %8610 = vmatprep.subr.bf16.mxu0 %v7840
    %8611 = vmatpush1.bf16.msra.mxu0 %v7839
    %8612 = vmatprep.subr.bf16.mxu0 %v7836
    %8613 = vmatpush1.bf16.msra.mxu0 %v7835
    %8614 = vmatprep.subr.bf16.mxu0 %v7832
    %8615 = vmatpush1.bf16.msra.mxu0 %v7831
    %8616 = vmatprep.subr.bf16.mxu0 %v7828
    %8617 = vmatpush1.bf16.msra.mxu0 %v7827
    %8618 = vmatprep.subr.bf16.mxu0 %v7824
    %8619 = vmatpush1.bf16.msra.mxu0 %v7823
    %8620 = vmatprep.subr.bf16.mxu0 0
    %8621 = vmatpush2.bf16.msra.mxu0 0
    %8622 = vmatprep.subr.bf16.mxu0 0
    %8623 = vmatpush2.bf16.msra.mxu0 0
    %8624 = vmatprep.subr.bf16.mxu0 0
    %8625 = vmatpush2.bf16.msra.mxu0 0
    %8626 = vmatprep.subr.bf16.mxu0 0
    %8627 = vmatpush2.bf16.msra.mxu0 0
    %8628 = vmatprep.subr.bf16.mxu0 0
    %8629 = vmatpush2.bf16.msra.mxu0 0
    %8630 = vmatprep.subr.bf16.mxu0 0
    %8631 = vmatpush2.bf16.msra.mxu0 0
    %8632 = vmatprep.subr.bf16.mxu0 0
    %8633 = vmatpush2.bf16.msra.mxu0 0
    %8634 = vmatprep.subr.bf16.mxu0 0
    %8635 = vmatpush2.bf16.msra.mxu0 0
    %8636 = vmatprep.mubr.bf16.mxu0 0
    %8637 = vmatmul.mubr.bf16.gmra.mxu0 %v8468
    %v8638 = vpop.f32.mrf.mxu0
    %v8639 = vadd.f32 %v8561, %v8638
    %v8640 = vpop.f32.mrf.mxu0
    %v8641 = vadd.f32 %v8562, %v8640
    %v8642 = vpop.f32.mrf.mxu0
    %v8643 = vpop.f32.mrf.mxu0
    %8644 = vdwg.mxu0
    %v8645 = vxor.u32 %v8510, 2147483648
    %v8646 = vmul.f32 %v8645, 1.442695
    %v8647 = vpow.pop %v8646
    %v8648 = vadd.f32 %v8647, 1.0
    %v8649 = vrcp.pop %v8648
    %v8650 = vmul.f32 1.0, %v8649
    %v8651 = vxor.u32 %v8512, 2147483648
    %v8652 = vmul.f32 %v8651, 1.442695
    %v8653 = vpow.pop %v8652
    %v8654 = vadd.f32 %v8653, 1.0
    %v8655 = vrcp.pop %v8654
    %v8656 = vmul.f32 1.0, %v8655
    %v8657 = vtanh.pop %v8551
    %v8658 = vxor.u32 %v8553, 2147483648
    %v8659 = vmul.f32 %v8658, 1.442695
    %v8660 = vpow.pop %v8659
    %v8661 = vadd.f32 %v8660, 1.0
    %v8662 = vrcp.pop %v8661
    %v8663 = vmul.f32 1.0, %v8662
    %v8664 = vmul.f32 %v8656, %v8440
    %v8665 = vmul.f32 %v8650, %v8657
    %v8666 = vadd.f32 %v8664, %v8665
    %v8667 = vtanh.pop %v8666
    %v8668 = vmul.f32 %v8663, %v8667
    %v8669 = vxor.u32 %v8598, 2147483648
    %v8670 = vmul.f32 %v8669, 1.442695
    %v8671 = vpow.pop %v8670
    %v8672 = vadd.f32 %v8671, 1.0
    %v8673 = vrcp.pop %v8672
    %v8674 = vmul.f32 1.0, %v8673
    %v8675 = vxor.u32 %v8600, 2147483648
    %v8676 = vmul.f32 %v8675, 1.442695
    %v8677 = vpow.pop %v8676
    %v8678 = vadd.f32 %v8677, 1.0
    %v8679 = vrcp.pop %v8678
    %v8680 = vmul.f32 1.0, %v8679
    %v8681 = vtanh.pop %v8639
    %v8682 = vxor.u32 %v8641, 2147483648
    %v8683 = vmul.f32 %v8682, 1.442695
    %v8684 = vpow.pop %v8683
    %v8685 = vadd.f32 %v8684, 1.0
    %v8686 = vrcp.pop %v8685
    %v8687 = vmul.f32 1.0, %v8686
    %v8688 = vmul.f32 %v8680, %v8464
    %v8689 = vmul.f32 %v8674, %v8681
    %v8690 = vadd.f32 %v8688, %v8689
    %v8691 = vtanh.pop %v8690
    %v8692 = vmul.f32 %v8687, %v8691
    %v8693 = vpack.c.bf16 %v8668, %v8668
    %v8694 = vpack.c.bf16 %v8692, %v8692
    %v8695 = vld [vmem:[%s3278] sm:$0xff]
    %v8696 = vld [vmem:[%s3278 + $0x8] sm:$0xff]
    %v8697 = vunpack.c.l.bf16 %v8695
    %v8698 = vunpack.c.h.bf16 %v8695
    %v8699 = vunpack.c.l.bf16 %v8696
    %v8700 = vunpack.c.h.bf16 %v8696
    %8701 = vmatprep.subr.bf16.mxu0 %v7602
    %8702 = vmatpush1.bf16.msra.mxu0 %v7601
    %8703 = vmatprep.subr.bf16.mxu0 %v7598
    %8704 = vmatpush1.bf16.msra.mxu0 %v7597
    %8705 = vmatprep.subr.bf16.mxu0 %v7594
    %8706 = vmatpush1.bf16.msra.mxu0 %v7593
    %8707 = vmatprep.subr.bf16.mxu0 %v7590
    %8708 = vmatpush1.bf16.msra.mxu0 %v7589
    %8709 = vmatprep.subr.bf16.mxu0 %v7586
    %8710 = vmatpush1.bf16.msra.mxu0 %v7585
    %8711 = vmatprep.subr.bf16.mxu0 %v7582
    %8712 = vmatpush1.bf16.msra.mxu0 %v7581
    %8713 = vmatprep.subr.bf16.mxu0 %v7578
    %8714 = vmatpush1.bf16.msra.mxu0 %v7577
    %8715 = vmatprep.subr.bf16.mxu0 %v7574
    %8716 = vmatpush1.bf16.msra.mxu0 %v7573
    %8717 = vmatprep.subr.bf16.mxu0 0
    %8718 = vmatpush2.bf16.msra.mxu0 0
    %8719 = vmatprep.subr.bf16.mxu0 0
    %8720 = vmatpush2.bf16.msra.mxu0 0
    %8721 = vmatprep.subr.bf16.mxu0 0
    %8722 = vmatpush2.bf16.msra.mxu0 0
    %8723 = vmatprep.subr.bf16.mxu0 0
    %8724 = vmatpush2.bf16.msra.mxu0 0
    %8725 = vmatprep.subr.bf16.mxu0 0
    %8726 = vmatpush2.bf16.msra.mxu0 0
    %8727 = vmatprep.subr.bf16.mxu0 0
    %8728 = vmatpush2.bf16.msra.mxu0 0
    %8729 = vmatprep.subr.bf16.mxu0 0
    %8730 = vmatpush2.bf16.msra.mxu0 0
    %8731 = vmatprep.subr.bf16.mxu0 0
    %8732 = vmatpush2.bf16.msra.mxu0 0
    %8733 = vmatprep.mubr.bf16.mxu0 0
    %8734 = vmatmul.mubr.bf16.gmra.mxu0 %v8693
    %v8735 = vpop.f32.mrf.mxu0
    %v8736 = vadd.f32 %v8697, %v8735
    %v8737 = vpop.f32.mrf.mxu0
    %v8738 = vadd.f32 %v8698, %v8737
    %v8739 = vpop.f32.mrf.mxu0
    %v8740 = vpop.f32.mrf.mxu0
    %8741 = vdwg.mxu0
    %8742 = vmatprep.subr.bf16.mxu0 %v7604
    %8743 = vmatpush1.bf16.msra.mxu0 %v7603
    %8744 = vmatprep.subr.bf16.mxu0 %v7600
    %8745 = vmatpush1.bf16.msra.mxu0 %v7599
    %8746 = vmatprep.subr.bf16.mxu0 %v7596
    %8747 = vmatpush1.bf16.msra.mxu0 %v7595
    %8748 = vmatprep.subr.bf16.mxu0 %v7592
    %8749 = vmatpush1.bf16.msra.mxu0 %v7591
    %8750 = vmatprep.subr.bf16.mxu0 %v7588
    %8751 = vmatpush1.bf16.msra.mxu0 %v7587
    %8752 = vmatprep.subr.bf16.mxu0 %v7584
    %8753 = vmatpush1.bf16.msra.mxu0 %v7583
    %8754 = vmatprep.subr.bf16.mxu0 %v7580
    %8755 = vmatpush1.bf16.msra.mxu0 %v7579
    %8756 = vmatprep.subr.bf16.mxu0 %v7576
    %8757 = vmatpush1.bf16.msra.mxu0 %v7575
    %8758 = vmatprep.subr.bf16.mxu0 0
    %8759 = vmatpush2.bf16.msra.mxu0 0
    %8760 = vmatprep.subr.bf16.mxu0 0
    %8761 = vmatpush2.bf16.msra.mxu0 0
    %8762 = vmatprep.subr.bf16.mxu0 0
    %8763 = vmatpush2.bf16.msra.mxu0 0
    %8764 = vmatprep.subr.bf16.mxu0 0
    %8765 = vmatpush2.bf16.msra.mxu0 0
    %8766 = vmatprep.subr.bf16.mxu0 0
    %8767 = vmatpush2.bf16.msra.mxu0 0
    %8768 = vmatprep.subr.bf16.mxu0 0
    %8769 = vmatpush2.bf16.msra.mxu0 0
    %8770 = vmatprep.subr.bf16.mxu0 0
    %8771 = vmatpush2.bf16.msra.mxu0 0
    %8772 = vmatprep.subr.bf16.mxu0 0
    %8773 = vmatpush2.bf16.msra.mxu0 0
    %8774 = vmatprep.mubr.bf16.mxu0 0
    %8775 = vmatmul.mubr.bf16.gmra.mxu0 %v8693
    %v8776 = vpop.f32.mrf.mxu0
    %v8777 = vadd.f32 %v8699, %v8776
    %v8778 = vpop.f32.mrf.mxu0
    %v8779 = vadd.f32 %v8700, %v8778
    %v8780 = vpop.f32.mrf.mxu0
    %v8781 = vpop.f32.mrf.mxu0
    %8782 = vdwg.mxu0
    %v8783 = vld [vmem:[%s3027 + $0x10] sm:$0xff]
    %v8784 = vld [vmem:[%s3027 + $0x18] sm:$0xff]
    %v8785 = vunpack.c.l.bf16 %v8783
    %v8786 = vunpack.c.h.bf16 %v8783
    %v8787 = vunpack.c.l.bf16 %v8784
    %v8788 = vunpack.c.h.bf16 %v8784
    %8789 = vmatprep.subr.bf16.mxu0 %v7850
    %8790 = vmatpush1.bf16.msra.mxu0 %v7849
    %8791 = vmatprep.subr.bf16.mxu0 %v7846
    %8792 = vmatpush1.bf16.msra.mxu0 %v7845
    %8793 = vmatprep.subr.bf16.mxu0 %v7842
    %8794 = vmatpush1.bf16.msra.mxu0 %v7841
    %8795 = vmatprep.subr.bf16.mxu0 %v7838
    %8796 = vmatpush1.bf16.msra.mxu0 %v7837
    %8797 = vmatprep.subr.bf16.mxu0 %v7834
    %8798 = vmatpush1.bf16.msra.mxu0 %v7833
    %8799 = vmatprep.subr.bf16.mxu0 %v7830
    %8800 = vmatpush1.bf16.msra.mxu0 %v7829
    %8801 = vmatprep.subr.bf16.mxu0 %v7826
    %8802 = vmatpush1.bf16.msra.mxu0 %v7825
    %8803 = vmatprep.subr.bf16.mxu0 %v7822
    %8804 = vmatpush1.bf16.msra.mxu0 %v7821
    %8805 = vmatprep.subr.bf16.mxu0 0
    %8806 = vmatpush2.bf16.msra.mxu0 0
    %8807 = vmatprep.subr.bf16.mxu0 0
    %8808 = vmatpush2.bf16.msra.mxu0 0
    %8809 = vmatprep.subr.bf16.mxu0 0
    %8810 = vmatpush2.bf16.msra.mxu0 0
    %8811 = vmatprep.subr.bf16.mxu0 0
    %8812 = vmatpush2.bf16.msra.mxu0 0
    %8813 = vmatprep.subr.bf16.mxu0 0
    %8814 = vmatpush2.bf16.msra.mxu0 0
    %8815 = vmatprep.subr.bf16.mxu0 0
    %8816 = vmatpush2.bf16.msra.mxu0 0
    %8817 = vmatprep.subr.bf16.mxu0 0
    %8818 = vmatpush2.bf16.msra.mxu0 0
    %8819 = vmatprep.subr.bf16.mxu0 0
    %8820 = vmatpush2.bf16.msra.mxu0 0
    %8821 = vmatprep.mubr.bf16.mxu0 0
    %8822 = vmatmul.mubr.bf16.gmra.mxu0 %v8694
    %v8823 = vpop.f32.mrf.mxu0
    %v8824 = vadd.f32 %v8785, %v8823
    %v8825 = vpop.f32.mrf.mxu0
    %v8826 = vadd.f32 %v8786, %v8825
    %v8827 = vpop.f32.mrf.mxu0
    %v8828 = vpop.f32.mrf.mxu0
    %8829 = vdwg.mxu0
    %8830 = vmatprep.subr.bf16.mxu0 %v7852
    %8831 = vmatpush1.bf16.msra.mxu0 %v7851
    %8832 = vmatprep.subr.bf16.mxu0 %v7848
    %8833 = vmatpush1.bf16.msra.mxu0 %v7847
    %8834 = vmatprep.subr.bf16.mxu0 %v7844
    %8835 = vmatpush1.bf16.msra.mxu0 %v7843
    %8836 = vmatprep.subr.bf16.mxu0 %v7840
    %8837 = vmatpush1.bf16.msra.mxu0 %v7839
    %8838 = vmatprep.subr.bf16.mxu0 %v7836
    %8839 = vmatpush1.bf16.msra.mxu0 %v7835
    %8840 = vmatprep.subr.bf16.mxu0 %v7832
    %8841 = vmatpush1.bf16.msra.mxu0 %v7831
    %8842 = vmatprep.subr.bf16.mxu0 %v7828
    %8843 = vmatpush1.bf16.msra.mxu0 %v7827
    %8844 = vmatprep.subr.bf16.mxu0 %v7824
    %8845 = vmatpush1.bf16.msra.mxu0 %v7823
    %8846 = vmatprep.subr.bf16.mxu0 0
    %8847 = vmatpush2.bf16.msra.mxu0 0
    %8848 = vmatprep.subr.bf16.mxu0 0
    %8849 = vmatpush2.bf16.msra.mxu0 0
    %8850 = vmatprep.subr.bf16.mxu0 0
    %8851 = vmatpush2.bf16.msra.mxu0 0
    %8852 = vmatprep.subr.bf16.mxu0 0
    %8853 = vmatpush2.bf16.msra.mxu0 0
    %8854 = vmatprep.subr.bf16.mxu0 0
    %8855 = vmatpush2.bf16.msra.mxu0 0
    %8856 = vmatprep.subr.bf16.mxu0 0
    %8857 = vmatpush2.bf16.msra.mxu0 0
    %8858 = vmatprep.subr.bf16.mxu0 0
    %8859 = vmatpush2.bf16.msra.mxu0 0
    %8860 = vmatprep.subr.bf16.mxu0 0
    %8861 = vmatpush2.bf16.msra.mxu0 0
    %8862 = vmatprep.mubr.bf16.mxu0 0
    %8863 = vmatmul.mubr.bf16.gmra.mxu0 %v8694
    %v8864 = vpop.f32.mrf.mxu0
    %v8865 = vadd.f32 %v8787, %v8864
    %v8866 = vpop.f32.mrf.mxu0
    %v8867 = vadd.f32 %v8788, %v8866
    %v8868 = vpop.f32.mrf.mxu0
    %v8869 = vpop.f32.mrf.mxu0
    %8870 = vdwg.mxu0
    %v8871 = vxor.u32 %v8736, 2147483648
    %v8872 = vmul.f32 %v8871, 1.442695
    %v8873 = vpow.pop %v8872
    %v8874 = vadd.f32 %v8873, 1.0
    %v8875 = vrcp.pop %v8874
    %v8876 = vmul.f32 1.0, %v8875
    %v8877 = vxor.u32 %v8738, 2147483648
    %v8878 = vmul.f32 %v8877, 1.442695
    %v8879 = vpow.pop %v8878
    %v8880 = vadd.f32 %v8879, 1.0
    %v8881 = vrcp.pop %v8880
    %v8882 = vmul.f32 1.0, %v8881
    %v8883 = vtanh.pop %v8777
    %v8884 = vxor.u32 %v8779, 2147483648
    %v8885 = vmul.f32 %v8884, 1.442695
    %v8886 = vpow.pop %v8885
    %v8887 = vadd.f32 %v8886, 1.0
    %v8888 = vrcp.pop %v8887
    %v8889 = vmul.f32 1.0, %v8888
    %v8890 = vmul.f32 %v8882, %v8666
    %v8891 = vmul.f32 %v8876, %v8883
    %v8892 = vadd.f32 %v8890, %v8891
    %v8893 = vtanh.pop %v8892
    %v8894 = vmul.f32 %v8889, %v8893
    %v8895 = vxor.u32 %v8824, 2147483648
    %v8896 = vmul.f32 %v8895, 1.442695
    %v8897 = vpow.pop %v8896
    %v8898 = vadd.f32 %v8897, 1.0
    %v8899 = vrcp.pop %v8898
    %v8900 = vmul.f32 1.0, %v8899
    %v8901 = vxor.u32 %v8826, 2147483648
    %v8902 = vmul.f32 %v8901, 1.442695
    %v8903 = vpow.pop %v8902
    %v8904 = vadd.f32 %v8903, 1.0
    %v8905 = vrcp.pop %v8904
    %v8906 = vmul.f32 1.0, %v8905
    %v8907 = vtanh.pop %v8865
    %v8908 = vxor.u32 %v8867, 2147483648
    %v8909 = vmul.f32 %v8908, 1.442695
    %v8910 = vpow.pop %v8909
    %v8911 = vadd.f32 %v8910, 1.0
    %v8912 = vrcp.pop %v8911
    %v8913 = vmul.f32 1.0, %v8912
    %v8914 = vmul.f32 %v8906, %v8690
    %v8915 = vmul.f32 %v8900, %v8907
    %v8916 = vadd.f32 %v8914, %v8915
    %v8917 = vtanh.pop %v8916
    %v8918 = vmul.f32 %v8913, %v8917
    %v8919 = vpack.c.bf16 %v8894, %v8894
    %v8920 = vpack.c.bf16 %v8918, %v8918
    %v8921 = vld [vmem:[%s2654] sm:$0xff]
    %v8922 = vld [vmem:[%s2654 + $0x8] sm:$0xff]
    %v8923 = vunpack.c.l.bf16 %v8921
    %v8924 = vunpack.c.h.bf16 %v8921
    %v8925 = vunpack.c.l.bf16 %v8922
    %v8926 = vunpack.c.h.bf16 %v8922
    %8927 = vmatprep.subr.bf16.mxu0 %v7602
    %8928 = vmatpush1.bf16.msra.mxu0 %v7601
    %8929 = vmatprep.subr.bf16.mxu0 %v7598
    %8930 = vmatpush1.bf16.msra.mxu0 %v7597
    %8931 = vmatprep.subr.bf16.mxu0 %v7594
    %8932 = vmatpush1.bf16.msra.mxu0 %v7593
    %8933 = vmatprep.subr.bf16.mxu0 %v7590
    %8934 = vmatpush1.bf16.msra.mxu0 %v7589
    %8935 = vmatprep.subr.bf16.mxu0 %v7586
    %8936 = vmatpush1.bf16.msra.mxu0 %v7585
    %8937 = vmatprep.subr.bf16.mxu0 %v7582
    %8938 = vmatpush1.bf16.msra.mxu0 %v7581
    %8939 = vmatprep.subr.bf16.mxu0 %v7578
    %8940 = vmatpush1.bf16.msra.mxu0 %v7577
    %8941 = vmatprep.subr.bf16.mxu0 %v7574
    %8942 = vmatpush1.bf16.msra.mxu0 %v7573
    %8943 = vmatprep.subr.bf16.mxu0 0
    %8944 = vmatpush2.bf16.msra.mxu0 0
    %8945 = vmatprep.subr.bf16.mxu0 0
    %8946 = vmatpush2.bf16.msra.mxu0 0
    %8947 = vmatprep.subr.bf16.mxu0 0
    %8948 = vmatpush2.bf16.msra.mxu0 0
    %8949 = vmatprep.subr.bf16.mxu0 0
    %8950 = vmatpush2.bf16.msra.mxu0 0
    %8951 = vmatprep.subr.bf16.mxu0 0
    %8952 = vmatpush2.bf16.msra.mxu0 0
    %8953 = vmatprep.subr.bf16.mxu0 0
    %8954 = vmatpush2.bf16.msra.mxu0 0
    %8955 = vmatprep.subr.bf16.mxu0 0
    %8956 = vmatpush2.bf16.msra.mxu0 0
    %8957 = vmatprep.subr.bf16.mxu0 0
    %8958 = vmatpush2.bf16.msra.mxu0 0
    %8959 = vmatprep.mubr.bf16.mxu0 0
    %8960 = vmatmul.mubr.bf16.gmra.mxu0 %v8919
    %v8961 = vpop.f32.mrf.mxu0
    %v8962 = vadd.f32 %v8923, %v8961
    %v8963 = vpop.f32.mrf.mxu0
    %v8964 = vadd.f32 %v8924, %v8963
    %v8965 = vpop.f32.mrf.mxu0
    %v8966 = vpop.f32.mrf.mxu0
    %8967 = vdwg.mxu0
    %8968 = vmatprep.subr.bf16.mxu0 %v7604
    %8969 = vmatpush1.bf16.msra.mxu0 %v7603
    %8970 = vmatprep.subr.bf16.mxu0 %v7600
    %8971 = vmatpush1.bf16.msra.mxu0 %v7599
    %8972 = vmatprep.subr.bf16.mxu0 %v7596
    %8973 = vmatpush1.bf16.msra.mxu0 %v7595
    %8974 = vmatprep.subr.bf16.mxu0 %v7592
    %8975 = vmatpush1.bf16.msra.mxu0 %v7591
    %8976 = vmatprep.subr.bf16.mxu0 %v7588
    %8977 = vmatpush1.bf16.msra.mxu0 %v7587
    %8978 = vmatprep.subr.bf16.mxu0 %v7584
    %8979 = vmatpush1.bf16.msra.mxu0 %v7583
    %8980 = vmatprep.subr.bf16.mxu0 %v7580
    %8981 = vmatpush1.bf16.msra.mxu0 %v7579
    %8982 = vmatprep.subr.bf16.mxu0 %v7576
    %8983 = vmatpush1.bf16.msra.mxu0 %v7575
    %8984 = vmatprep.subr.bf16.mxu0 0
    %8985 = vmatpush2.bf16.msra.mxu0 0
    %8986 = vmatprep.subr.bf16.mxu0 0
    %8987 = vmatpush2.bf16.msra.mxu0 0
    %8988 = vmatprep.subr.bf16.mxu0 0
    %8989 = vmatpush2.bf16.msra.mxu0 0
    %8990 = vmatprep.subr.bf16.mxu0 0
    %8991 = vmatpush2.bf16.msra.mxu0 0
    %8992 = vmatprep.subr.bf16.mxu0 0
    %8993 = vmatpush2.bf16.msra.mxu0 0
    %8994 = vmatprep.subr.bf16.mxu0 0
    %8995 = vmatpush2.bf16.msra.mxu0 0
    %8996 = vmatprep.subr.bf16.mxu0 0
    %8997 = vmatpush2.bf16.msra.mxu0 0
    %8998 = vmatprep.subr.bf16.mxu0 0
    %8999 = vmatpush2.bf16.msra.mxu0 0
    %9000 = vmatprep.mubr.bf16.mxu0 0
    %9001 = vmatmul.mubr.bf16.gmra.mxu0 %v8919
    %v9002 = vpop.f32.mrf.mxu0
    %v9003 = vadd.f32 %v8925, %v9002
    %v9004 = vpop.f32.mrf.mxu0
    %v9005 = vadd.f32 %v8926, %v9004
    %v9006 = vpop.f32.mrf.mxu0
    %v9007 = vpop.f32.mrf.mxu0
    %9008 = vdwg.mxu0
    %v9009 = vld [vmem:[%s2403 + $0x10] sm:$0xff]
    %v9010 = vld [vmem:[%s2403 + $0x18] sm:$0xff]
    %v9011 = vunpack.c.l.bf16 %v9009
    %v9012 = vunpack.c.h.bf16 %v9009
    %v9013 = vunpack.c.l.bf16 %v9010
    %v9014 = vunpack.c.h.bf16 %v9010
    %9015 = vmatprep.subr.bf16.mxu0 %v7850
    %9016 = vmatpush1.bf16.msra.mxu0 %v7849
    %9017 = vmatprep.subr.bf16.mxu0 %v7846
    %9018 = vmatpush1.bf16.msra.mxu0 %v7845
    %9019 = vmatprep.subr.bf16.mxu0 %v7842
    %9020 = vmatpush1.bf16.msra.mxu0 %v7841
    %9021 = vmatprep.subr.bf16.mxu0 %v7838
    %9022 = vmatpush1.bf16.msra.mxu0 %v7837
    %9023 = vmatprep.subr.bf16.mxu0 %v7834
    %9024 = vmatpush1.bf16.msra.mxu0 %v7833
    %9025 = vmatprep.subr.bf16.mxu0 %v7830
    %9026 = vmatpush1.bf16.msra.mxu0 %v7829
    %9027 = vmatprep.subr.bf16.mxu0 %v7826
    %9028 = vmatpush1.bf16.msra.mxu0 %v7825
    %9029 = vmatprep.subr.bf16.mxu0 %v7822
    %9030 = vmatpush1.bf16.msra.mxu0 %v7821
    %9031 = vmatprep.subr.bf16.mxu0 0
    %9032 = vmatpush2.bf16.msra.mxu0 0
    %9033 = vmatprep.subr.bf16.mxu0 0
    %9034 = vmatpush2.bf16.msra.mxu0 0
    %9035 = vmatprep.subr.bf16.mxu0 0
    %9036 = vmatpush2.bf16.msra.mxu0 0
    %9037 = vmatprep.subr.bf16.mxu0 0
    %9038 = vmatpush2.bf16.msra.mxu0 0
    %9039 = vmatprep.subr.bf16.mxu0 0
    %9040 = vmatpush2.bf16.msra.mxu0 0
    %9041 = vmatprep.subr.bf16.mxu0 0
    %9042 = vmatpush2.bf16.msra.mxu0 0
    %9043 = vmatprep.subr.bf16.mxu0 0
    %9044 = vmatpush2.bf16.msra.mxu0 0
    %9045 = vmatprep.subr.bf16.mxu0 0
    %9046 = vmatpush2.bf16.msra.mxu0 0
    %9047 = vmatprep.mubr.bf16.mxu0 0
    %9048 = vmatmul.mubr.bf16.gmra.mxu0 %v8920
    %v9049 = vpop.f32.mrf.mxu0
    %v9050 = vadd.f32 %v9011, %v9049
    %v9051 = vpop.f32.mrf.mxu0
    %v9052 = vadd.f32 %v9012, %v9051
    %v9053 = vpop.f32.mrf.mxu0
    %v9054 = vpop.f32.mrf.mxu0
    %9055 = vdwg.mxu0
    %9056 = vmatprep.subr.bf16.mxu0 %v7852
    %9057 = vmatpush1.bf16.msra.mxu0 %v7851
    %9058 = vmatprep.subr.bf16.mxu0 %v7848
    %9059 = vmatpush1.bf16.msra.mxu0 %v7847
    %9060 = vmatprep.subr.bf16.mxu0 %v7844
    %9061 = vmatpush1.bf16.msra.mxu0 %v7843
    %9062 = vmatprep.subr.bf16.mxu0 %v7840
    %9063 = vmatpush1.bf16.msra.mxu0 %v7839
    %9064 = vmatprep.subr.bf16.mxu0 %v7836
    %9065 = vmatpush1.bf16.msra.mxu0 %v7835
    %9066 = vmatprep.subr.bf16.mxu0 %v7832
    %9067 = vmatpush1.bf16.msra.mxu0 %v7831
    %9068 = vmatprep.subr.bf16.mxu0 %v7828
    %9069 = vmatpush1.bf16.msra.mxu0 %v7827
    %9070 = vmatprep.subr.bf16.mxu0 %v7824
    %9071 = vmatpush1.bf16.msra.mxu0 %v7823
    %9072 = vmatprep.subr.bf16.mxu0 0
    %9073 = vmatpush2.bf16.msra.mxu0 0
    %9074 = vmatprep.subr.bf16.mxu0 0
    %9075 = vmatpush2.bf16.msra.mxu0 0
    %9076 = vmatprep.subr.bf16.mxu0 0
    %9077 = vmatpush2.bf16.msra.mxu0 0
    %9078 = vmatprep.subr.bf16.mxu0 0
    %9079 = vmatpush2.bf16.msra.mxu0 0
    %9080 = vmatprep.subr.bf16.mxu0 0
    %9081 = vmatpush2.bf16.msra.mxu0 0
    %9082 = vmatprep.subr.bf16.mxu0 0
    %9083 = vmatpush2.bf16.msra.mxu0 0
    %9084 = vmatprep.subr.bf16.mxu0 0
    %9085 = vmatpush2.bf16.msra.mxu0 0
    %9086 = vmatprep.subr.bf16.mxu0 0
    %9087 = vmatpush2.bf16.msra.mxu0 0
    %9088 = vmatprep.mubr.bf16.mxu0 0
    %9089 = vmatmul.mubr.bf16.gmra.mxu0 %v8920
    %v9090 = vpop.f32.mrf.mxu0
    %v9091 = vadd.f32 %v9013, %v9090
    %v9092 = vpop.f32.mrf.mxu0
    %v9093 = vadd.f32 %v9014, %v9092
    %v9094 = vpop.f32.mrf.mxu0
    %v9095 = vpop.f32.mrf.mxu0
    %9096 = vdwg.mxu0
    %v9097 = vxor.u32 %v8962, 2147483648
    %v9098 = vmul.f32 %v9097, 1.442695
    %v9099 = vpow.pop %v9098
    %v9100 = vadd.f32 %v9099, 1.0
    %v9101 = vrcp.pop %v9100
    %v9102 = vmul.f32 1.0, %v9101
    %v9103 = vxor.u32 %v8964, 2147483648
    %v9104 = vmul.f32 %v9103, 1.442695
    %v9105 = vpow.pop %v9104
    %v9106 = vadd.f32 %v9105, 1.0
    %v9107 = vrcp.pop %v9106
    %v9108 = vmul.f32 1.0, %v9107
    %v9109 = vtanh.pop %v9003
    %v9110 = vxor.u32 %v9005, 2147483648
    %v9111 = vmul.f32 %v9110, 1.442695
    %v9112 = vpow.pop %v9111
    %v9113 = vadd.f32 %v9112, 1.0
    %v9114 = vrcp.pop %v9113
    %v9115 = vmul.f32 1.0, %v9114
    %v9116 = vmul.f32 %v9108, %v8892
    %v9117 = vmul.f32 %v9102, %v9109
    %v9118 = vadd.f32 %v9116, %v9117
    %v9119 = vtanh.pop %v9118
    %v9120 = vmul.f32 %v9115, %v9119
    %v9121 = vxor.u32 %v9050, 2147483648
    %v9122 = vmul.f32 %v9121, 1.442695
    %v9123 = vpow.pop %v9122
    %v9124 = vadd.f32 %v9123, 1.0
    %v9125 = vrcp.pop %v9124
    %v9126 = vmul.f32 1.0, %v9125
    %v9127 = vxor.u32 %v9052, 2147483648
    %v9128 = vmul.f32 %v9127, 1.442695
    %v9129 = vpow.pop %v9128
    %v9130 = vadd.f32 %v9129, 1.0
    %v9131 = vrcp.pop %v9130
    %v9132 = vmul.f32 1.0, %v9131
    %v9133 = vtanh.pop %v9091
    %v9134 = vxor.u32 %v9093, 2147483648
    %v9135 = vmul.f32 %v9134, 1.442695
    %v9136 = vpow.pop %v9135
    %v9137 = vadd.f32 %v9136, 1.0
    %v9138 = vrcp.pop %v9137
    %v9139 = vmul.f32 1.0, %v9138
    %v9140 = vmul.f32 %v9132, %v8916
    %v9141 = vmul.f32 %v9126, %v9133
    %v9142 = vadd.f32 %v9140, %v9141
    %v9143 = vtanh.pop %v9142
    %v9144 = vmul.f32 %v9139, %v9143
    %v9145 = vpack.c.bf16 %v9120, %v9120
    %v9146 = vpack.c.bf16 %v9144, %v9144
    %v9147 = vld [vmem:[%s2030] sm:$0xff]
    %v9148 = vld [vmem:[%s2030 + $0x8] sm:$0xff]
    %v9149 = vunpack.c.l.bf16 %v9147
    %v9150 = vunpack.c.h.bf16 %v9147
    %v9151 = vunpack.c.l.bf16 %v9148
    %v9152 = vunpack.c.h.bf16 %v9148
    %9153 = vmatprep.subr.bf16.mxu0 %v7602
    %9154 = vmatpush1.bf16.msra.mxu0 %v7601
    %9155 = vmatprep.subr.bf16.mxu0 %v7598
    %9156 = vmatpush1.bf16.msra.mxu0 %v7597
    %9157 = vmatprep.subr.bf16.mxu0 %v7594
    %9158 = vmatpush1.bf16.msra.mxu0 %v7593
    %9159 = vmatprep.subr.bf16.mxu0 %v7590
    %9160 = vmatpush1.bf16.msra.mxu0 %v7589
    %9161 = vmatprep.subr.bf16.mxu0 %v7586
    %9162 = vmatpush1.bf16.msra.mxu0 %v7585
    %9163 = vmatprep.subr.bf16.mxu0 %v7582
    %9164 = vmatpush1.bf16.msra.mxu0 %v7581
    %9165 = vmatprep.subr.bf16.mxu0 %v7578
    %9166 = vmatpush1.bf16.msra.mxu0 %v7577
    %9167 = vmatprep.subr.bf16.mxu0 %v7574
    %9168 = vmatpush1.bf16.msra.mxu0 %v7573
    %9169 = vmatprep.subr.bf16.mxu0 0
    %9170 = vmatpush2.bf16.msra.mxu0 0
    %9171 = vmatprep.subr.bf16.mxu0 0
    %9172 = vmatpush2.bf16.msra.mxu0 0
    %9173 = vmatprep.subr.bf16.mxu0 0
    %9174 = vmatpush2.bf16.msra.mxu0 0
    %9175 = vmatprep.subr.bf16.mxu0 0
    %9176 = vmatpush2.bf16.msra.mxu0 0
    %9177 = vmatprep.subr.bf16.mxu0 0
    %9178 = vmatpush2.bf16.msra.mxu0 0
    %9179 = vmatprep.subr.bf16.mxu0 0
    %9180 = vmatpush2.bf16.msra.mxu0 0
    %9181 = vmatprep.subr.bf16.mxu0 0
    %9182 = vmatpush2.bf16.msra.mxu0 0
    %9183 = vmatprep.subr.bf16.mxu0 0
    %9184 = vmatpush2.bf16.msra.mxu0 0
    %9185 = vmatprep.mubr.bf16.mxu0 0
    %9186 = vmatmul.mubr.bf16.gmra.mxu0 %v9145
    %v9187 = vpop.f32.mrf.mxu0
    %v9188 = vadd.f32 %v9149, %v9187
    %v9189 = vpop.f32.mrf.mxu0
    %v9190 = vadd.f32 %v9150, %v9189
    %v9191 = vpop.f32.mrf.mxu0
    %v9192 = vpop.f32.mrf.mxu0
    %9193 = vdwg.mxu0
    %9194 = vmatprep.subr.bf16.mxu0 %v7604
    %9195 = vmatpush1.bf16.msra.mxu0 %v7603
    %9196 = vmatprep.subr.bf16.mxu0 %v7600
    %9197 = vmatpush1.bf16.msra.mxu0 %v7599
    %9198 = vmatprep.subr.bf16.mxu0 %v7596
    %9199 = vmatpush1.bf16.msra.mxu0 %v7595
    %9200 = vmatprep.subr.bf16.mxu0 %v7592
    %9201 = vmatpush1.bf16.msra.mxu0 %v7591
    %9202 = vmatprep.subr.bf16.mxu0 %v7588
    %9203 = vmatpush1.bf16.msra.mxu0 %v7587
    %9204 = vmatprep.subr.bf16.mxu0 %v7584
    %9205 = vmatpush1.bf16.msra.mxu0 %v7583
    %9206 = vmatprep.subr.bf16.mxu0 %v7580
    %9207 = vmatpush1.bf16.msra.mxu0 %v7579
    %9208 = vmatprep.subr.bf16.mxu0 %v7576
    %9209 = vmatpush1.bf16.msra.mxu0 %v7575
    %9210 = vmatprep.subr.bf16.mxu0 0
    %9211 = vmatpush2.bf16.msra.mxu0 0
    %9212 = vmatprep.subr.bf16.mxu0 0
    %9213 = vmatpush2.bf16.msra.mxu0 0
    %9214 = vmatprep.subr.bf16.mxu0 0
    %9215 = vmatpush2.bf16.msra.mxu0 0
    %9216 = vmatprep.subr.bf16.mxu0 0
    %9217 = vmatpush2.bf16.msra.mxu0 0
    %9218 = vmatprep.subr.bf16.mxu0 0
    %9219 = vmatpush2.bf16.msra.mxu0 0
    %9220 = vmatprep.subr.bf16.mxu0 0
    %9221 = vmatpush2.bf16.msra.mxu0 0
    %9222 = vmatprep.subr.bf16.mxu0 0
    %9223 = vmatpush2.bf16.msra.mxu0 0
    %9224 = vmatprep.subr.bf16.mxu0 0
    %9225 = vmatpush2.bf16.msra.mxu0 0
    %9226 = vmatprep.mubr.bf16.mxu0 0
    %9227 = vmatmul.mubr.bf16.gmra.mxu0 %v9145
    %v9228 = vpop.f32.mrf.mxu0
    %v9229 = vadd.f32 %v9151, %v9228
    %v9230 = vpop.f32.mrf.mxu0
    %v9231 = vadd.f32 %v9152, %v9230
    %v9232 = vpop.f32.mrf.mxu0
    %v9233 = vpop.f32.mrf.mxu0
    %9234 = vdwg.mxu0
    %v9235 = vld [vmem:[%s1779 + $0x10] sm:$0xff]
    %v9236 = vld [vmem:[%s1779 + $0x18] sm:$0xff]
    %v9237 = vunpack.c.l.bf16 %v9235
    %v9238 = vunpack.c.h.bf16 %v9235
    %v9239 = vunpack.c.l.bf16 %v9236
    %v9240 = vunpack.c.h.bf16 %v9236
    %9241 = vmatprep.subr.bf16.mxu0 %v7850
    %9242 = vmatpush1.bf16.msra.mxu0 %v7849
    %9243 = vmatprep.subr.bf16.mxu0 %v7846
    %9244 = vmatpush1.bf16.msra.mxu0 %v7845
    %9245 = vmatprep.subr.bf16.mxu0 %v7842
    %9246 = vmatpush1.bf16.msra.mxu0 %v7841
    %9247 = vmatprep.subr.bf16.mxu0 %v7838
    %9248 = vmatpush1.bf16.msra.mxu0 %v7837
    %9249 = vmatprep.subr.bf16.mxu0 %v7834
    %9250 = vmatpush1.bf16.msra.mxu0 %v7833
    %9251 = vmatprep.subr.bf16.mxu0 %v7830
    %9252 = vmatpush1.bf16.msra.mxu0 %v7829
    %9253 = vmatprep.subr.bf16.mxu0 %v7826
    %9254 = vmatpush1.bf16.msra.mxu0 %v7825
    %9255 = vmatprep.subr.bf16.mxu0 %v7822
    %9256 = vmatpush1.bf16.msra.mxu0 %v7821
    %9257 = vmatprep.subr.bf16.mxu0 0
    %9258 = vmatpush2.bf16.msra.mxu0 0
    %9259 = vmatprep.subr.bf16.mxu0 0
    %9260 = vmatpush2.bf16.msra.mxu0 0
    %9261 = vmatprep.subr.bf16.mxu0 0
    %9262 = vmatpush2.bf16.msra.mxu0 0
    %9263 = vmatprep.subr.bf16.mxu0 0
    %9264 = vmatpush2.bf16.msra.mxu0 0
    %9265 = vmatprep.subr.bf16.mxu0 0
    %9266 = vmatpush2.bf16.msra.mxu0 0
    %9267 = vmatprep.subr.bf16.mxu0 0
    %9268 = vmatpush2.bf16.msra.mxu0 0
    %9269 = vmatprep.subr.bf16.mxu0 0
    %9270 = vmatpush2.bf16.msra.mxu0 0
    %9271 = vmatprep.subr.bf16.mxu0 0
    %9272 = vmatpush2.bf16.msra.mxu0 0
    %9273 = vmatprep.mubr.bf16.mxu0 0
    %9274 = vmatmul.mubr.bf16.gmra.mxu0 %v9146
    %v9275 = vpop.f32.mrf.mxu0
    %v9276 = vadd.f32 %v9237, %v9275
    %v9277 = vpop.f32.mrf.mxu0
    %v9278 = vadd.f32 %v9238, %v9277
    %v9279 = vpop.f32.mrf.mxu0
    %v9280 = vpop.f32.mrf.mxu0
    %9281 = vdwg.mxu0
    %9282 = vmatprep.subr.bf16.mxu0 %v7852
    %9283 = vmatpush1.bf16.msra.mxu0 %v7851
    %9284 = vmatprep.subr.bf16.mxu0 %v7848
    %9285 = vmatpush1.bf16.msra.mxu0 %v7847
    %9286 = vmatprep.subr.bf16.mxu0 %v7844
    %9287 = vmatpush1.bf16.msra.mxu0 %v7843
    %9288 = vmatprep.subr.bf16.mxu0 %v7840
    %9289 = vmatpush1.bf16.msra.mxu0 %v7839
    %9290 = vmatprep.subr.bf16.mxu0 %v7836
    %9291 = vmatpush1.bf16.msra.mxu0 %v7835
    %9292 = vmatprep.subr.bf16.mxu0 %v7832
    %9293 = vmatpush1.bf16.msra.mxu0 %v7831
    %9294 = vmatprep.subr.bf16.mxu0 %v7828
    %9295 = vmatpush1.bf16.msra.mxu0 %v7827
    %9296 = vmatprep.subr.bf16.mxu0 %v7824
    %9297 = vmatpush1.bf16.msra.mxu0 %v7823
    %9298 = vmatprep.subr.bf16.mxu0 0
    %9299 = vmatpush2.bf16.msra.mxu0 0
    %9300 = vmatprep.subr.bf16.mxu0 0
    %9301 = vmatpush2.bf16.msra.mxu0 0
    %9302 = vmatprep.subr.bf16.mxu0 0
    %9303 = vmatpush2.bf16.msra.mxu0 0
    %9304 = vmatprep.subr.bf16.mxu0 0
    %9305 = vmatpush2.bf16.msra.mxu0 0
    %9306 = vmatprep.subr.bf16.mxu0 0
    %9307 = vmatpush2.bf16.msra.mxu0 0
    %9308 = vmatprep.subr.bf16.mxu0 0
    %9309 = vmatpush2.bf16.msra.mxu0 0
    %9310 = vmatprep.subr.bf16.mxu0 0
    %9311 = vmatpush2.bf16.msra.mxu0 0
    %9312 = vmatprep.subr.bf16.mxu0 0
    %9313 = vmatpush2.bf16.msra.mxu0 0
    %9314 = vmatprep.mubr.bf16.mxu0 0
    %9315 = vmatmul.mubr.bf16.gmra.mxu0 %v9146
    %v9316 = vpop.f32.mrf.mxu0
    %v9317 = vadd.f32 %v9239, %v9316
    %v9318 = vpop.f32.mrf.mxu0
    %v9319 = vadd.f32 %v9240, %v9318
    %v9320 = vpop.f32.mrf.mxu0
    %v9321 = vpop.f32.mrf.mxu0
    %9322 = vdwg.mxu0
    %v9323 = vxor.u32 %v9188, 2147483648
    %v9324 = vmul.f32 %v9323, 1.442695
    %v9325 = vpow.pop %v9324
    %v9326 = vadd.f32 %v9325, 1.0
    %v9327 = vrcp.pop %v9326
    %v9328 = vmul.f32 1.0, %v9327
    %v9329 = vxor.u32 %v9190, 2147483648
    %v9330 = vmul.f32 %v9329, 1.442695
    %v9331 = vpow.pop %v9330
    %v9332 = vadd.f32 %v9331, 1.0
    %v9333 = vrcp.pop %v9332
    %v9334 = vmul.f32 1.0, %v9333
    %v9335 = vtanh.pop %v9229
    %v9336 = vxor.u32 %v9231, 2147483648
    %v9337 = vmul.f32 %v9336, 1.442695
    %v9338 = vpow.pop %v9337
    %v9339 = vadd.f32 %v9338, 1.0
    %v9340 = vrcp.pop %v9339
    %v9341 = vmul.f32 1.0, %v9340
    %v9342 = vmul.f32 %v9334, %v9118
    %v9343 = vmul.f32 %v9328, %v9335
    %v9344 = vadd.f32 %v9342, %v9343
    %v9345 = vtanh.pop %v9344
    %v9346 = vmul.f32 %v9341, %v9345
    %v9347 = vxor.u32 %v9276, 2147483648
    %v9348 = vmul.f32 %v9347, 1.442695
    %v9349 = vpow.pop %v9348
    %v9350 = vadd.f32 %v9349, 1.0
    %v9351 = vrcp.pop %v9350
    %v9352 = vmul.f32 1.0, %v9351
    %v9353 = vxor.u32 %v9278, 2147483648
    %v9354 = vmul.f32 %v9353, 1.442695
    %v9355 = vpow.pop %v9354
    %v9356 = vadd.f32 %v9355, 1.0
    %v9357 = vrcp.pop %v9356
    %v9358 = vmul.f32 1.0, %v9357
    %v9359 = vtanh.pop %v9317
    %v9360 = vxor.u32 %v9319, 2147483648
    %v9361 = vmul.f32 %v9360, 1.442695
    %v9362 = vpow.pop %v9361
    %v9363 = vadd.f32 %v9362, 1.0
    %v9364 = vrcp.pop %v9363
    %v9365 = vmul.f32 1.0, %v9364
    %v9366 = vmul.f32 %v9358, %v9142
    %v9367 = vmul.f32 %v9352, %v9359
    %v9368 = vadd.f32 %v9366, %v9367
    %v9369 = vtanh.pop %v9368
    %v9370 = vmul.f32 %v9365, %v9369
    %v9371 = vpack.c.bf16 %v9346, %v9346
    %v9372 = vpack.c.bf16 %v9370, %v9370
    %v9373 = vld [vmem:[%s1406] sm:$0xff]
    %v9374 = vld [vmem:[%s1406 + $0x8] sm:$0xff]
    %v9375 = vunpack.c.l.bf16 %v9373
    %v9376 = vunpack.c.h.bf16 %v9373
    %v9377 = vunpack.c.l.bf16 %v9374
    %v9378 = vunpack.c.h.bf16 %v9374
    %9379 = vmatprep.subr.bf16.mxu0 %v7602
    %9380 = vmatpush1.bf16.msra.mxu0 %v7601
    %9381 = vmatprep.subr.bf16.mxu0 %v7598
    %9382 = vmatpush1.bf16.msra.mxu0 %v7597
    %9383 = vmatprep.subr.bf16.mxu0 %v7594
    %9384 = vmatpush1.bf16.msra.mxu0 %v7593
    %9385 = vmatprep.subr.bf16.mxu0 %v7590
    %9386 = vmatpush1.bf16.msra.mxu0 %v7589
    %9387 = vmatprep.subr.bf16.mxu0 %v7586
    %9388 = vmatpush1.bf16.msra.mxu0 %v7585
    %9389 = vmatprep.subr.bf16.mxu0 %v7582
    %9390 = vmatpush1.bf16.msra.mxu0 %v7581
    %9391 = vmatprep.subr.bf16.mxu0 %v7578
    %9392 = vmatpush1.bf16.msra.mxu0 %v7577
    %9393 = vmatprep.subr.bf16.mxu0 %v7574
    %9394 = vmatpush1.bf16.msra.mxu0 %v7573
    %9395 = vmatprep.subr.bf16.mxu0 0
    %9396 = vmatpush2.bf16.msra.mxu0 0
    %9397 = vmatprep.subr.bf16.mxu0 0
    %9398 = vmatpush2.bf16.msra.mxu0 0
    %9399 = vmatprep.subr.bf16.mxu0 0
    %9400 = vmatpush2.bf16.msra.mxu0 0
    %9401 = vmatprep.subr.bf16.mxu0 0
    %9402 = vmatpush2.bf16.msra.mxu0 0
    %9403 = vmatprep.subr.bf16.mxu0 0
    %9404 = vmatpush2.bf16.msra.mxu0 0
    %9405 = vmatprep.subr.bf16.mxu0 0
    %9406 = vmatpush2.bf16.msra.mxu0 0
    %9407 = vmatprep.subr.bf16.mxu0 0
    %9408 = vmatpush2.bf16.msra.mxu0 0
    %9409 = vmatprep.subr.bf16.mxu0 0
    %9410 = vmatpush2.bf16.msra.mxu0 0
    %9411 = vmatprep.mubr.bf16.mxu0 0
    %9412 = vmatmul.mubr.bf16.gmra.mxu0 %v9371
    %v9413 = vpop.f32.mrf.mxu0
    %v9414 = vadd.f32 %v9375, %v9413
    %v9415 = vpop.f32.mrf.mxu0
    %v9416 = vadd.f32 %v9376, %v9415
    %v9417 = vpop.f32.mrf.mxu0
    %v9418 = vpop.f32.mrf.mxu0
    %9419 = vdwg.mxu0
    %9420 = vmatprep.subr.bf16.mxu0 %v7604
    %9421 = vmatpush1.bf16.msra.mxu0 %v7603
    %9422 = vmatprep.subr.bf16.mxu0 %v7600
    %9423 = vmatpush1.bf16.msra.mxu0 %v7599
    %9424 = vmatprep.subr.bf16.mxu0 %v7596
    %9425 = vmatpush1.bf16.msra.mxu0 %v7595
    %9426 = vmatprep.subr.bf16.mxu0 %v7592
    %9427 = vmatpush1.bf16.msra.mxu0 %v7591
    %9428 = vmatprep.subr.bf16.mxu0 %v7588
    %9429 = vmatpush1.bf16.msra.mxu0 %v7587
    %9430 = vmatprep.subr.bf16.mxu0 %v7584
    %9431 = vmatpush1.bf16.msra.mxu0 %v7583
    %9432 = vmatprep.subr.bf16.mxu0 %v7580
    %9433 = vmatpush1.bf16.msra.mxu0 %v7579
    %9434 = vmatprep.subr.bf16.mxu0 %v7576
    %9435 = vmatpush1.bf16.msra.mxu0 %v7575
    %9436 = vmatprep.subr.bf16.mxu0 0
    %9437 = vmatpush2.bf16.msra.mxu0 0
    %9438 = vmatprep.subr.bf16.mxu0 0
    %9439 = vmatpush2.bf16.msra.mxu0 0
    %9440 = vmatprep.subr.bf16.mxu0 0
    %9441 = vmatpush2.bf16.msra.mxu0 0
    %9442 = vmatprep.subr.bf16.mxu0 0
    %9443 = vmatpush2.bf16.msra.mxu0 0
    %9444 = vmatprep.subr.bf16.mxu0 0
    %9445 = vmatpush2.bf16.msra.mxu0 0
    %9446 = vmatprep.subr.bf16.mxu0 0
    %9447 = vmatpush2.bf16.msra.mxu0 0
    %9448 = vmatprep.subr.bf16.mxu0 0
    %9449 = vmatpush2.bf16.msra.mxu0 0
    %9450 = vmatprep.subr.bf16.mxu0 0
    %9451 = vmatpush2.bf16.msra.mxu0 0
    %9452 = vmatprep.mubr.bf16.mxu0 0
    %9453 = vmatmul.mubr.bf16.gmra.mxu0 %v9371
    %v9454 = vpop.f32.mrf.mxu0
    %v9455 = vadd.f32 %v9377, %v9454
    %v9456 = vpop.f32.mrf.mxu0
    %v9457 = vadd.f32 %v9378, %v9456
    %v9458 = vpop.f32.mrf.mxu0
    %v9459 = vpop.f32.mrf.mxu0
    %9460 = vdwg.mxu0
    %v9461 = vld [vmem:[%s1155 + $0x10] sm:$0xff]
    %v9462 = vld [vmem:[%s1155 + $0x18] sm:$0xff]
    %v9463 = vunpack.c.l.bf16 %v9461
    %v9464 = vunpack.c.h.bf16 %v9461
    %v9465 = vunpack.c.l.bf16 %v9462
    %v9466 = vunpack.c.h.bf16 %v9462
    %9467 = vmatprep.subr.bf16.mxu0 %v7850
    %9468 = vmatpush1.bf16.msra.mxu0 %v7849
    %9469 = vmatprep.subr.bf16.mxu0 %v7846
    %9470 = vmatpush1.bf16.msra.mxu0 %v7845
    %9471 = vmatprep.subr.bf16.mxu0 %v7842
    %9472 = vmatpush1.bf16.msra.mxu0 %v7841
    %9473 = vmatprep.subr.bf16.mxu0 %v7838
    %9474 = vmatpush1.bf16.msra.mxu0 %v7837
    %9475 = vmatprep.subr.bf16.mxu0 %v7834
    %9476 = vmatpush1.bf16.msra.mxu0 %v7833
    %9477 = vmatprep.subr.bf16.mxu0 %v7830
    %9478 = vmatpush1.bf16.msra.mxu0 %v7829
    %9479 = vmatprep.subr.bf16.mxu0 %v7826
    %9480 = vmatpush1.bf16.msra.mxu0 %v7825
    %9481 = vmatprep.subr.bf16.mxu0 %v7822
    %9482 = vmatpush1.bf16.msra.mxu0 %v7821
    %9483 = vmatprep.subr.bf16.mxu0 0
    %9484 = vmatpush2.bf16.msra.mxu0 0
    %9485 = vmatprep.subr.bf16.mxu0 0
    %9486 = vmatpush2.bf16.msra.mxu0 0
    %9487 = vmatprep.subr.bf16.mxu0 0
    %9488 = vmatpush2.bf16.msra.mxu0 0
    %9489 = vmatprep.subr.bf16.mxu0 0
    %9490 = vmatpush2.bf16.msra.mxu0 0
    %9491 = vmatprep.subr.bf16.mxu0 0
    %9492 = vmatpush2.bf16.msra.mxu0 0
    %9493 = vmatprep.subr.bf16.mxu0 0
    %9494 = vmatpush2.bf16.msra.mxu0 0
    %9495 = vmatprep.subr.bf16.mxu0 0
    %9496 = vmatpush2.bf16.msra.mxu0 0
    %9497 = vmatprep.subr.bf16.mxu0 0
    %9498 = vmatpush2.bf16.msra.mxu0 0
    %9499 = vmatprep.mubr.bf16.mxu0 0
    %9500 = vmatmul.mubr.bf16.gmra.mxu0 %v9372
    %v9501 = vpop.f32.mrf.mxu0
    %v9502 = vadd.f32 %v9463, %v9501
    %v9503 = vpop.f32.mrf.mxu0
    %v9504 = vadd.f32 %v9464, %v9503
    %v9505 = vpop.f32.mrf.mxu0
    %v9506 = vpop.f32.mrf.mxu0
    %9507 = vdwg.mxu0
    %9508 = vmatprep.subr.bf16.mxu0 %v7852
    %9509 = vmatpush1.bf16.msra.mxu0 %v7851
    %9510 = vmatprep.subr.bf16.mxu0 %v7848
    %9511 = vmatpush1.bf16.msra.mxu0 %v7847
    %9512 = vmatprep.subr.bf16.mxu0 %v7844
    %9513 = vmatpush1.bf16.msra.mxu0 %v7843
    %9514 = vmatprep.subr.bf16.mxu0 %v7840
    %9515 = vmatpush1.bf16.msra.mxu0 %v7839
    %9516 = vmatprep.subr.bf16.mxu0 %v7836
    %9517 = vmatpush1.bf16.msra.mxu0 %v7835
    %9518 = vmatprep.subr.bf16.mxu0 %v7832
    %9519 = vmatpush1.bf16.msra.mxu0 %v7831
    %9520 = vmatprep.subr.bf16.mxu0 %v7828
    %9521 = vmatpush1.bf16.msra.mxu0 %v7827
    %9522 = vmatprep.subr.bf16.mxu0 %v7824
    %9523 = vmatpush1.bf16.msra.mxu0 %v7823
    %9524 = vmatprep.subr.bf16.mxu0 0
    %9525 = vmatpush2.bf16.msra.mxu0 0
    %9526 = vmatprep.subr.bf16.mxu0 0
    %9527 = vmatpush2.bf16.msra.mxu0 0
    %9528 = vmatprep.subr.bf16.mxu0 0
    %9529 = vmatpush2.bf16.msra.mxu0 0
    %9530 = vmatprep.subr.bf16.mxu0 0
    %9531 = vmatpush2.bf16.msra.mxu0 0
    %9532 = vmatprep.subr.bf16.mxu0 0
    %9533 = vmatpush2.bf16.msra.mxu0 0
    %9534 = vmatprep.subr.bf16.mxu0 0
    %9535 = vmatpush2.bf16.msra.mxu0 0
    %9536 = vmatprep.subr.bf16.mxu0 0
    %9537 = vmatpush2.bf16.msra.mxu0 0
    %9538 = vmatprep.subr.bf16.mxu0 0
    %9539 = vmatpush2.bf16.msra.mxu0 0
    %9540 = vmatprep.mubr.bf16.mxu0 0
    %9541 = vmatmul.mubr.bf16.gmra.mxu0 %v9372
    %v9542 = vpop.f32.mrf.mxu0
    %v9543 = vadd.f32 %v9465, %v9542
    %v9544 = vpop.f32.mrf.mxu0
    %v9545 = vadd.f32 %v9466, %v9544
    %v9546 = vpop.f32.mrf.mxu0
    %v9547 = vpop.f32.mrf.mxu0
    %9548 = vdwg.mxu0
    %v9549 = vxor.u32 %v9414, 2147483648
    %v9550 = vmul.f32 %v9549, 1.442695
    %v9551 = vpow.pop %v9550
    %v9552 = vadd.f32 %v9551, 1.0
    %v9553 = vrcp.pop %v9552
    %v9554 = vmul.f32 1.0, %v9553
    %v9555 = vxor.u32 %v9416, 2147483648
    %v9556 = vmul.f32 %v9555, 1.442695
    %v9557 = vpow.pop %v9556
    %v9558 = vadd.f32 %v9557, 1.0
    %v9559 = vrcp.pop %v9558
    %v9560 = vmul.f32 1.0, %v9559
    %v9561 = vtanh.pop %v9455
    %v9562 = vxor.u32 %v9457, 2147483648
    %v9563 = vmul.f32 %v9562, 1.442695
    %v9564 = vpow.pop %v9563
    %v9565 = vadd.f32 %v9564, 1.0
    %v9566 = vrcp.pop %v9565
    %v9567 = vmul.f32 1.0, %v9566
    %v9568 = vmul.f32 %v9560, %v9344
    %v9569 = vmul.f32 %v9554, %v9561
    %v9570 = vadd.f32 %v9568, %v9569
    %v9571 = vtanh.pop %v9570
    %v9572 = vmul.f32 %v9567, %v9571
    %v9573 = vxor.u32 %v9502, 2147483648
    %v9574 = vmul.f32 %v9573, 1.442695
    %v9575 = vpow.pop %v9574
    %v9576 = vadd.f32 %v9575, 1.0
    %v9577 = vrcp.pop %v9576
    %v9578 = vmul.f32 1.0, %v9577
    %v9579 = vxor.u32 %v9504, 2147483648
    %v9580 = vmul.f32 %v9579, 1.442695
    %v9581 = vpow.pop %v9580
    %v9582 = vadd.f32 %v9581, 1.0
    %v9583 = vrcp.pop %v9582
    %v9584 = vmul.f32 1.0, %v9583
    %v9585 = vtanh.pop %v9543
    %v9586 = vxor.u32 %v9545, 2147483648
    %v9587 = vmul.f32 %v9586, 1.442695
    %v9588 = vpow.pop %v9587
    %v9589 = vadd.f32 %v9588, 1.0
    %v9590 = vrcp.pop %v9589
    %v9591 = vmul.f32 1.0, %v9590
    %v9592 = vmul.f32 %v9584, %v9368
    %v9593 = vmul.f32 %v9578, %v9585
    %v9594 = vadd.f32 %v9592, %v9593
    %v9595 = vtanh.pop %v9594
    %v9596 = vmul.f32 %v9591, %v9595
    %9597 = vst [vmem:[%s9] sm:$0xff] %v9572
    %9598 = vst [vmem:[%s9 + $0x8] sm:$0xff] %v9596
    // Predicated region
    $region62: #{sentiment_lstm_forward.1} parent=1 // pred_check
      _
    $region63: #{sentiment_lstm_forward.1} parent=1 // pred_check_branch
      %9600 = sbr.rel (0) target = $region65
    $region64: #{sentiment_lstm_forward.1} parent=1 // pred_region
      _
    $region65: #{sentiment_lstm_forward.1} parent=1 // pred_fallthru
      _
    // Predicated region
    $region66: #{sentiment_lstm_forward.1} parent=1 // pred_check
      _
    $region67: #{sentiment_lstm_forward.1} parent=1 // pred_check_branch
      %9602 = sbr.rel (0) target = $region69
    $region68: #{sentiment_lstm_forward.1} parent=1 // pred_region
      _
    $region69: #{sentiment_lstm_forward.1} parent=1 // pred_fallthru
      _
    %9603 = vsyncpa [#allocation5], 1
    %9604 = vsyncpa [#allocation7], 1
    %9605 = vsyncpa [#allocation10], 1
    %9606 = vsyncpa [#allocation13], 1

</llo_original>
